<compile_context>
chip_gen: v7x
topology: tpu7x:2x2x1
jax: 0.10.0
libtpu: 0.0.40
codegen_flags: <defaults>
</compile_context>

<pallas_src>
import functools

import numpy as np
import jax
import jax.numpy as jnp
from jax.experimental import pallas as pl
from jax.experimental.pallas import tpu as pltpu


def _spn_sample_kernel(q_ref, g_ref, eps_ref, sl_ref, mu_ref, sig_ref, out_ref,
                       *, hard, inv_tau):
    # q_ref   : (TN, R, 1)      repetition mixture weights (gumbel-softmaxed on host)
    # g_ref   : (TN, R, K, F)   Gumbel(0,1) noise for the K-way sum-node softmax
    # eps_ref : (TN, R, F)      [hard]  or (TN, R, K, F) [soft]  N(0,1) noise
    # sl_ref  : (R, K, F)       sum-node logits (shared, loaded once)
    # mu_ref  : (R, K, F)       leaf Gaussian means (shared)
    # sig_ref : (R, K, F)       leaf Gaussian stddevs, clamped (shared)
    # out_ref : (TN, F)
    zlog = (sl_ref[...][None] + g_ref[...]) * inv_tau            # (TN, R, K, F)
    zmax = jnp.max(zlog, axis=2, keepdims=True)                  # (TN, R, 1, F)

    if hard:
        # Straight-through hard gumbel-softmax forward: select the argmax leaf.
        # One-hot selection of mu/sigma, then a single (TN,R,F) reparameterized
        # draw; eps is iid and independent of the argmax so this is
        # distributionally identical to drawing K epsilons and selecting one.
        # (ties -> multi-hot double counting; measure-zero with continuous gumbels)
        sel = zlog >= zmax
        mu_sel = jnp.sum(jnp.where(sel, mu_ref[...][None], 0.0), axis=2)    # (TN,R,F)
        sig_sel = jnp.sum(jnp.where(sel, sig_ref[...][None], 0.0), axis=2)  # (TN,R,F)
        wk = mu_sel + sig_sel * eps_ref[...]                                # (TN,R,F)
    else:
        # Soft path: unnormalized softmax weights; single divide on the
        # K-reduced (TN,R,F) tensors instead of a full-size (TN,R,K,F) divide.
        e = jnp.exp(zlog - zmax)                                            # (TN,R,K,F)
        leaf = mu_ref[...][None] + sig_ref[...][None] * eps_ref[...]        # (TN,R,K,F)
        wk = jnp.sum(e * leaf, axis=2) / jnp.sum(e, axis=2)                 # (TN,R,F)

    # Repetition mixture: q is (TN, R, 1), broadcast over F on-chip.
    out_ref[...] = jnp.sum(wk * q_ref[...], axis=1)                         # (TN, F)


def _spn_decoder_run(z, params, *, num_channels, height, width, tau, hard,
                     min_sigma, max_sigma, noise_key, block_n=32):
    n = z.shape[0]                      # z only supplies the batch size
    r, k, f = params["mu"].shape
    assert f == num_channels * height * width
    assert block_n % 8 == 0, "block_n must be a multiple of 8 (sublane tiling)"

    steps = pl.cdiv(n, block_n)
    n_pad = steps * block_n

    k_rep, k_g, k_eps = jax.random.split(noise_key, 3)

    # Root mixture over repetitions: gumbel-softmax on the host (N*R scalars).
    g_rep = jax.random.gumbel(k_rep, (n_pad, r), jnp.float32)
    rep_pert = (params["rep_logits"][None, :] + g_rep) / tau
    if hard:
        q = jax.nn.one_hot(jnp.argmax(rep_pert, axis=-1), r, dtype=jnp.float32)
    else:
        q = jax.nn.softmax(rep_pert, axis=-1)
    q3 = q[:, :, None]                                           # (N_pad, R, 1)

    # Per-leaf noise, generated host-side (the TPU hardware PRNG primitives do
    # not lower in interpret mode, so portability wins over the HBM saving).
    g = jax.random.gumbel(k_g, (n_pad, r, k, f), jnp.float32)
    if hard:
        eps = jax.random.normal(k_eps, (n_pad, r, f), jnp.float32)
        eps_spec = pl.BlockSpec((block_n, r, f), lambda i: (i, 0, 0))
    else:
        eps = jax.random.normal(k_eps, (n_pad, r, k, f), jnp.float32)
        eps_spec = pl.BlockSpec((block_n, r, k, f), lambda i: (i, 0, 0, 0))

    sigma = jnp.clip(params["sigma"], min_sigma, max_sigma)

    kernel = functools.partial(_spn_sample_kernel, hard=hard,
                               inv_tau=float(1.0 / tau))

    samples_flat = pl.pallas_call(
        kernel,
        out_shape=jax.ShapeDtypeStruct((n_pad, f), jnp.float32),
        grid_spec=pltpu.PrefetchScalarGridSpec(
            num_scalar_prefetch=0,
            grid=(steps,),
            in_specs=[
                pl.BlockSpec((block_n, r, 1), lambda i: (i, 0, 0)),        # q
                pl.BlockSpec((block_n, r, k, f), lambda i: (i, 0, 0, 0)),  # gumbel
                eps_spec,                                                  # eps
                pl.BlockSpec((r, k, f), lambda i: (0, 0, 0)),              # sum_logits
                pl.BlockSpec((r, k, f), lambda i: (0, 0, 0)),              # mu
                pl.BlockSpec((r, k, f), lambda i: (0, 0, 0)),              # sigma
            ],
            out_specs=pl.BlockSpec((block_n, f), lambda i: (i, 0)),
        ),
        compiler_params=pltpu.CompilerParams(
            dimension_semantics=("parallel",)),
    )(q3, g, eps, params["sum_logits"], params["mu"], sigma)

    samples = samples_flat[:n].reshape(n, num_channels, height, width)
    noise = (g[:n], eps[:n], q[:n])
    return samples, noise


def spn_decoder_forward(z, params, *, num_channels, height, width, tau, hard,
                        min_sigma, max_sigma, noise_key, block_n=32):
    samples, _ = _spn_decoder_run(
        z, params, num_channels=num_channels, height=height, width=width,
        tau=tau, hard=hard, min_sigma=min_sigma, max_sigma=max_sigma,
        noise_key=noise_key, block_n=block_n)
    return samples


def _reference_from_noise(g, eps, q, sum_logits, mu, sigma, *, tau, hard):
    """Pure-JAX mirror of the kernel math, fed with the same host noise."""
    zlog = (sum_logits[None] + g) / tau                          # (N, R, K, F)
    zmax = jnp.max(zlog, axis=2, keepdims=True)
    if hard:
        sel = (zlog >= zmax).astype(jnp.float32)
        mu_sel = jnp.sum(sel * mu[None], axis=2)                 # (N, R, F)
        sig_sel = jnp.sum(sel * sigma[None], axis=2)             # (N, R, F)
        wk = mu_sel + sig_sel * eps                              # eps: (N, R, F)
    else:
        p = jax.nn.softmax(zlog, axis=2)
        leaf = mu[None] + sigma[None] * eps                      # eps: (N, R, K, F)
        wk = jnp.sum(p * leaf, axis=2)                           # (N, R, F)
    return jnp.sum(wk * q[:, :, None], axis=1)                   # (N, F)


if __name__ == "__main__":
    # Small shapes consistent with the module's constructor arguments.
    N = 64                       # batch (z.shape[0]); 2 grid steps of 32 samples
    C, H, W = 1, 16, 16          # num_channels, height, width
    D, K, R = 3, 8, 4            # D kept for API parity only (see TODO above)
    tau = 0.5
    min_sigma, max_sigma = 0.1, 1.0
    F = C * H * W

    root = jax.random.PRNGKey(0)
    k_mu, k_ls, k_sum, k_rep, k_z, k_noise = jax.random.split(root, 6)

    # Deterministic synthetic SPN parameters.
    params = {
        "mu": jax.random.normal(k_mu, (R, K, F), jnp.float32),
        "sigma": min_sigma + (max_sigma - min_sigma)
                 * jax.nn.sigmoid(jax.random.normal(k_ls, (R, K, F), jnp.float32)),
        "sum_logits": jax.random.normal(k_sum, (R, K, F), jnp.float32),
        "rep_logits": jax.random.normal(k_rep, (R,), jnp.float32),
    }

    # z is ignored except for its batch size (as in the PyTorch module).
    z = jax.random.normal(k_z, (N, 32), jnp.float32)

    sigma_clamped = jnp.clip(params["sigma"], min_sigma, max_sigma)

    for hard in (False, True):
        # Fast path (what a real forward() call uses).
        samples = spn_decoder_forward(
            z, params, num_channels=C, height=H, width=W, tau=tau, hard=hard,
            min_sigma=min_sigma, max_sigma=max_sigma, noise_key=k_noise)
        samples = jax.block_until_ready(samples)
        assert samples.shape == (N, C, H, W)
        assert bool(jnp.all(jnp.isfinite(samples)))

        # Validation: run again (same key -> same host noise) and compare to a
        # pure-JAX reference computed from that noise.
        samples_chk, (g, eps, q) = _spn_decoder_run(
            z, params, num_channels=C, height=H, width=W, tau=tau, hard=hard,
            min_sigma=min_sigma, max_sigma=max_sigma, noise_key=k_noise)
        samples_chk = jax.block_until_ready(samples_chk)
        np.testing.assert_allclose(np.asarray(samples), np.asarray(samples_chk),
                                   rtol=1e-5, atol=1e-6)

        ref = _reference_from_noise(
            g, eps, q, params["sum_logits"], params["mu"], sigma_clamped,
            tau=tau, hard=hard).reshape(N, C, H, W)
        np.testing.assert_allclose(np.asarray(samples_chk), np.asarray(ref),
                                   rtol=2e-3, atol=2e-3)

    print("KERNEL_OK")
</pallas_src>

<mosaic_0001>
module attributes {stable_mosaic.version = 11 : i64} {
  func.func @_spn_sample_kernel(%arg0: i32, %arg1: memref<32x4x1xf32, #tpu.memory_space<vmem>>, %arg2: memref<32x4x8x256xf32, #tpu.memory_space<vmem>>, %arg3: memref<32x4x8x256xf32, #tpu.memory_space<vmem>>, %arg4: memref<4x8x256xf32, #tpu.memory_space<vmem>>, %arg5: memref<4x8x256xf32, #tpu.memory_space<vmem>>, %arg6: memref<4x8x256xf32, #tpu.memory_space<vmem>>, %arg7: memref<32x256xf32, #tpu.memory_space<vmem>>) attributes {dimension_semantics = [#tpu.dimension_semantics<parallel>], iteration_bounds = array<i64: 2>, scalar_prefetch = 0 : i64, scratch_operands = 0 : i64, tpu.core_type = #tpu.core_type<tc>, window_params = [{transform_indices = @transform_0, window_bounds = array<i64: 32, 4, 1>}, {transform_indices = @transform_1, window_bounds = array<i64: 32, 4, 8, 256>}, {transform_indices = @transform_2, window_bounds = array<i64: 32, 4, 8, 256>}, {pipeline_mode = #tpu.pipeline_mode<synchronous>, transform_indices = @transform_3, window_bounds = array<i64: 4, 8, 256>}, {pipeline_mode = #tpu.pipeline_mode<synchronous>, transform_indices = @transform_4, window_bounds = array<i64: 4, 8, 256>}, {pipeline_mode = #tpu.pipeline_mode<synchronous>, transform_indices = @transform_5, window_bounds = array<i64: 4, 8, 256>}, {transform_indices = @transform_6, window_bounds = array<i64: 32, 256>}]} {
    %c0 = arith.constant 0 : index
    %c0_0 = arith.constant 0 : index
    %c0_1 = arith.constant 0 : index
    %0 = vector.load %arg4[%c0, %c0_0, %c0_1] : memref<4x8x256xf32, #tpu.memory_space<vmem>>, vector<4x8x256xf32>
    %1 = vector.shape_cast %0 : vector<4x8x256xf32> to vector<1x4x8x256xf32>
    %c0_2 = arith.constant 0 : index
    %c0_3 = arith.constant 0 : index
    %c0_4 = arith.constant 0 : index
    %c0_5 = arith.constant 0 : index
    %2 = vector.load %arg2[%c0_2, %c0_3, %c0_4, %c0_5] : memref<32x4x8x256xf32, #tpu.memory_space<vmem>>, vector<32x4x8x256xf32>
    %3 = vector.broadcast %1 : vector<1x4x8x256xf32> to vector<32x4x8x256xf32>
    %4 = arith.addf %3, %2 : vector<32x4x8x256xf32>
    %cst = arith.constant 2.000000e+00 : f32
    %5 = vector.broadcast %cst : f32 to vector<32x4x8x256xf32>
    %6 = arith.mulf %4, %5 : vector<32x4x8x256xf32>
    %cst_6 = arith.constant dense<0xFF800000> : vector<32x4x256xf32>
    %7 = vector.multi_reduction <maximumf>, %6, %cst_6 [2] : vector<32x4x8x256xf32> to vector<32x4x256xf32>
    %8 = vector.shape_cast %7 : vector<32x4x256xf32> to vector<32x4x1x256xf32>
    %9 = vector.broadcast %8 : vector<32x4x1x256xf32> to vector<32x4x8x256xf32>
    %10 = arith.subf %6, %9 : vector<32x4x8x256xf32>
    %11 = math.exp %10 : vector<32x4x8x256xf32>
    %c0_7 = arith.constant 0 : index
    %c0_8 = arith.constant 0 : index
    %c0_9 = arith.constant 0 : index
    %12 = vector.load %arg5[%c0_7, %c0_8, %c0_9] : memref<4x8x256xf32, #tpu.memory_space<vmem>>, vector<4x8x256xf32>
    %13 = vector.shape_cast %12 : vector<4x8x256xf32> to vector<1x4x8x256xf32>
    %c0_10 = arith.constant 0 : index
    %c0_11 = arith.constant 0 : index
    %c0_12 = arith.constant 0 : index
    %14 = vector.load %arg6[%c0_10, %c0_11, %c0_12] : memref<4x8x256xf32, #tpu.memory_space<vmem>>, vector<4x8x256xf32>
    %15 = vector.shape_cast %14 : vector<4x8x256xf32> to vector<1x4x8x256xf32>
    %c0_13 = arith.constant 0 : index
    %c0_14 = arith.constant 0 : index
    %c0_15 = arith.constant 0 : index
    %c0_16 = arith.constant 0 : index
    %16 = vector.load %arg3[%c0_13, %c0_14, %c0_15, %c0_16] : memref<32x4x8x256xf32, #tpu.memory_space<vmem>>, vector<32x4x8x256xf32>
    %17 = vector.broadcast %15 : vector<1x4x8x256xf32> to vector<32x4x8x256xf32>
    %18 = arith.mulf %17, %16 : vector<32x4x8x256xf32>
    %19 = vector.broadcast %13 : vector<1x4x8x256xf32> to vector<32x4x8x256xf32>
    %20 = arith.addf %19, %18 : vector<32x4x8x256xf32>
    %21 = arith.mulf %11, %20 : vector<32x4x8x256xf32>
    %cst_17 = arith.constant dense<0.000000e+00> : vector<32x4x256xf32>
    %22 = vector.multi_reduction <add>, %21, %cst_17 [2] : vector<32x4x8x256xf32> to vector<32x4x256xf32>
    %cst_18 = arith.constant dense<0.000000e+00> : vector<32x4x256xf32>
    %23 = vector.multi_reduction <add>, %11, %cst_18 [2] : vector<32x4x8x256xf32> to vector<32x4x256xf32>
    %24 = arith.divf %22, %23 : vector<32x4x256xf32>
    %c0_19 = arith.constant 0 : index
    %c0_20 = arith.constant 0 : index
    %c0_21 = arith.constant 0 : index
    %25 = vector.load %arg1[%c0_19, %c0_20, %c0_21] : memref<32x4x1xf32, #tpu.memory_space<vmem>>, vector<32x4x1xf32>
    %26 = vector.broadcast %25 : vector<32x4x1xf32> to vector<32x4x256xf32>
    %27 = arith.mulf %24, %26 : vector<32x4x256xf32>
    %cst_22 = arith.constant dense<0.000000e+00> : vector<32x256xf32>
    %28 = vector.multi_reduction <add>, %27, %cst_22 [1] : vector<32x4x256xf32> to vector<32x256xf32>
    %c0_23 = arith.constant 0 : index
    %c0_24 = arith.constant 0 : index
    %29 = vector.load %arg7[%c0_23, %c0_24] : memref<32x256xf32, #tpu.memory_space<vmem>>, vector<32x256xf32>
    tpu.vector_store %arg7[%c0_23, %c0_24], %28 {strides = array<i32>} : memref<32x256xf32, #tpu.memory_space<vmem>>, vector<32x256xf32>,
    return
  }
  func.func @transform_0(%arg0: i32) -> (i32, i32, i32) {
    %c0_i32 = arith.constant 0 : i32
    %c0_i32_0 = arith.constant 0 : i32
    %c0_i32_1 = arith.constant 0 : i32
    return %arg0, %c0_i32, %c0_i32_0 : i32, i32, i32
  }
  func.func @transform_1(%arg0: i32) -> (i32, i32, i32, i32) {
    %c0_i32 = arith.constant 0 : i32
    %c0_i32_0 = arith.constant 0 : i32
    %c0_i32_1 = arith.constant 0 : i32
    %c0_i32_2 = arith.constant 0 : i32
    return %arg0, %c0_i32, %c0_i32_0, %c0_i32_1 : i32, i32, i32, i32
  }
  func.func @transform_2(%arg0: i32) -> (i32, i32, i32, i32) {
    %c0_i32 = arith.constant 0 : i32
    %c0_i32_0 = arith.constant 0 : i32
    %c0_i32_1 = arith.constant 0 : i32
    %c0_i32_2 = arith.constant 0 : i32
    return %arg0, %c0_i32, %c0_i32_0, %c0_i32_1 : i32, i32, i32, i32
  }
  func.func @transform_3(%arg0: i32) -> (i32, i32, i32) {
    %c0_i32 = arith.constant 0 : i32
    %c0_i32_0 = arith.constant 0 : i32
    %c0_i32_1 = arith.constant 0 : i32
    %c0_i32_2 = arith.constant 0 : i32
    return %c0_i32, %c0_i32_0, %c0_i32_1 : i32, i32, i32
  }
  func.func @transform_4(%arg0: i32) -> (i32, i32, i32) {
    %c0_i32 = arith.constant 0 : i32
    %c0_i32_0 = arith.constant 0 : i32
    %c0_i32_1 = arith.constant 0 : i32
    %c0_i32_2 = arith.constant 0 : i32
    return %c0_i32, %c0_i32_0, %c0_i32_1 : i32, i32, i32
  }
  func.func @transform_5(%arg0: i32) -> (i32, i32, i32) {
    %c0_i32 = arith.constant 0 : i32
    %c0_i32_0 = arith.constant 0 : i32
    %c0_i32_1 = arith.constant 0 : i32
    %c0_i32_2 = arith.constant 0 : i32
    return %c0_i32, %c0_i32_0, %c0_i32_1 : i32, i32, i32
  }
  func.func @transform_6(%arg0: i32) -> (i32, i32) {
    %c0_i32 = arith.constant 0 : i32
    %c0_i32_0 = arith.constant 0 : i32
    return %arg0, %c0_i32 : i32, i32
  }
}

</mosaic_0001>

<llo_original>
// kernel: tpu_custom_call.1
$region0: #{tpu_custom_call.1}
  #allocation0 [shape = 'u32[]', space=smem, size = 0x4, offset = 0x4, fixed_abs, tag = 'smem constant byte address 0x4 - core index']
  #allocation1 [shape = 'u32[144,128]{1,0:T(1,128)}', space=vmem, size = 0x12000, scoped, tag = 'internal scratch']
  %s0 = inlined_call_operand.vmem [shape: f32[64,4,1], index: 0, kind: input, shape index: {}]
  %s1 = inlined_call_operand.hbm [shape: f32[64,4,8,256], index: 1, kind: input, shape index: {}]
  %s2 = inlined_call_operand.hbm [shape: f32[64,4,8,256], index: 2, kind: input, shape index: {}]
  %s3 = inlined_call_operand.hbm [shape: f32[4,8,256], index: 3, kind: input, shape index: {}]
  %s4 = inlined_call_operand.hbm [shape: f32[4,8,256], index: 4, kind: input, shape index: {}]
  %s5 = inlined_call_operand.hbm [shape: f32[4,8,256], index: 5, kind: input, shape index: {}]
  %s6 = inlined_call_operand.hbm [shape: f32[64,256], index: 6, kind: output, shape index: {}]
  %s7 = sld [smem:[#allocation0]]
  $region77: #{tpu_custom_call.1} parent=0
    _
  %s9 = ssub.s32 1, %s7
  %s10 = scalar_select 0, %s9, %s7
  $region1: #{tpu_custom_call.1} parent=0
    #allocation2 [shape = 'u8[2097152]{0}', space=vmem, size = 0x200000, scoped, tag = 'input window, operand 1']
    #allocation3 [shape = 's32[2]{0}', space=sflag, size = 0x8, scoped, tag = 'scoped memory for tpu_custom_call.1']
    #allocation4 [shape = 's32[2]{0}', space=sflag, size = 0x8, scoped, tag = 'scoped memory for tpu_custom_call.1']
    #allocation5 [shape = 'u8[2097152]{0}', space=vmem, size = 0x200000, scoped, tag = 'input window, operand 2']
    #allocation6 [shape = 's32[2]{0}', space=sflag, size = 0x8, scoped, tag = 'scoped memory for tpu_custom_call.1']
    #allocation7 [shape = 'u8[32768]{0}', space=vmem, size = 0x8000, scoped, tag = 'input window, operand 3, single buffered']
    #allocation8 [shape = 'u8[32768]{0}', space=vmem, size = 0x8000, scoped, tag = 'input window, operand 4, single buffered']
    #allocation9 [shape = 's32[1]{0}', space=sflag, size = 0x4, scoped, tag = 'scoped memory for tpu_custom_call.1']
    #allocation10 [shape = 'u8[32768]{0}', space=vmem, size = 0x8000, scoped, tag = 'input window, operand 5, single buffered']
    #allocation11 [shape = 'u8[65536]{0}', space=vmem, size = 0x10000, scoped, tag = 'output window, operand 0']
    %11 = vsyncpa [#allocation3], 0
    %s12 = scalar_lea.sflag [#allocation3], 1
    %13 = vsyncpa %s12, 0
    %14 = vsyncpa [#allocation6], 0
    %s15 = scalar_lea.sflag [#allocation6], 1
    %16 = vsyncpa %s15, 0
    %17 = vsyncpa [#allocation9], 0
    %18 = vsyncpa [#allocation4], 0
    %s19 = scalar_lea.sflag [#allocation4], 1
    %20 = vsyncpa %s19, 0
    loop: start=0, step=1, limit=4
    $region2: #{tpu_custom_call.1} parent=1 // loop_pre_header
      _
    $region3: #{tpu_custom_call.1} parent=1 // loop_header
      %s22 = sphi 0, %s26
      %p23 = scmp.ge.s32.totalorder %s22, 4
      %s32 = sphi 0, %s34
      %s35 = sphi 0, %s32
      %s36 = sphi 0, %s35
      %s52 = sphi 0, %s36
      %s58 = sphi 0, %s60
      %s61 = sphi 0, %s58
      %s62 = sphi 0, %s61
      %s78 = sphi 0, %s62
      %s84 = sphi 0, %s86
      %s87 = sphi 0, %s84
      %s88 = sphi 0, %s87
      %s104 = sphi 0, %s88
      %s108 = sphi 0, %s108
      %s110 = sphi 0, %s108
      %s111 = sphi 0, %s110
      %s125 = sphi 0, %s111
      %s129 = sphi 0, %s129
      %s131 = sphi 0, %s129
      %s132 = sphi 0, %s131
      %s146 = sphi 0, %s132
      %s150 = sphi 0, %s150
      %s152 = sphi 0, %s150
      %s153 = sphi 0, %s152
      %s167 = sphi 0, %s153
      %s173 = sphi 0, %s175
      %s176 = sphi 0, %s173
      %s177 = sphi 0, %s176
      %s193 = sphi 0, %s177
    $region4: #{tpu_custom_call.1} parent=1 // loop_header_branch
      %25 = sbr.rel (%p23) target = $region8
    $region5: #{tpu_custom_call.1} parent=1 // loop_body
      %s27 = ssub.s32 %s22, 1
      %s28 = ssub.s32 %s22, 2
      %s29 = sadd.s32 %s22, 1
      %s30 = ssub.s32 %s22, %s29
      %p31 = scmp.eq.s32.totalorder %s30, 0
      %s33 = sadd.s32 %s32, 1
      %s34 = scalar_select %p31, %s32, %s33
      %p37 = pneg %p31
      %p38 = scmp.eq.s32.totalorder %s22, 1
      %p39 = por %p37, %p38
      %p40 = scmp.ne.s32.totalorder %s32, %s35
      %p41 = scmp.eq.s32.totalorder %s22, 0
      %p42 = por %p40, %p41
      %p43 = scmp.ne.s32.totalorder %s32, %s35
      %p44 = scmp.eq.s32.totalorder %s27, 1
      %p45 = por %p43, %p44
      %p46 = scmp.ne.s32.totalorder %s35, %s36
      %p47 = scmp.eq.s32.totalorder %s27, 0
      %p48 = por %p46, %p47
      %p49 = scmp.ne.s32.totalorder %s35, %s36
      %p50 = scmp.eq.s32.totalorder %s28, 1
      %p51 = por %p49, %p50
      %p53 = scmp.ne.s32.totalorder %s36, %s52
      %p54 = scmp.eq.s32.totalorder %s28, 0
      %p55 = por %p53, %p54
      %s56 = ssub.s32 %s22, %s29
      %p57 = scmp.eq.s32.totalorder %s56, 0
      %s59 = sadd.s32 %s58, 1
      %s60 = scalar_select %p57, %s58, %s59
      %p63 = pneg %p57
      %p64 = scmp.eq.s32.totalorder %s22, 1
      %p65 = por %p63, %p64
      %p66 = scmp.ne.s32.totalorder %s58, %s61
      %p67 = scmp.eq.s32.totalorder %s22, 0
      %p68 = por %p66, %p67
      %p69 = scmp.ne.s32.totalorder %s58, %s61
      %p70 = scmp.eq.s32.totalorder %s27, 1
      %p71 = por %p69, %p70
      %p72 = scmp.ne.s32.totalorder %s61, %s62
      %p73 = scmp.eq.s32.totalorder %s27, 0
      %p74 = por %p72, %p73
      %p75 = scmp.ne.s32.totalorder %s61, %s62
      %p76 = scmp.eq.s32.totalorder %s28, 1
      %p77 = por %p75, %p76
      %p79 = scmp.ne.s32.totalorder %s62, %s78
      %p80 = scmp.eq.s32.totalorder %s28, 0
      %p81 = por %p79, %p80
      %s82 = ssub.s32 %s22, %s29
      %p83 = scmp.eq.s32.totalorder %s82, 0
      %s85 = sadd.s32 %s84, 1
      %s86 = scalar_select %p83, %s84, %s85
      %p89 = pneg %p83
      %p90 = scmp.eq.s32.totalorder %s22, 1
      %p91 = por %p89, %p90
      %p92 = scmp.ne.s32.totalorder %s84, %s87
      %p93 = scmp.eq.s32.totalorder %s22, 0
      %p94 = por %p92, %p93
      %p95 = scmp.ne.s32.totalorder %s84, %s87
      %p96 = scmp.eq.s32.totalorder %s27, 1
      %p97 = por %p95, %p96
      %p98 = scmp.ne.s32.totalorder %s87, %s88
      %p99 = scmp.eq.s32.totalorder %s27, 0
      %p100 = por %p98, %p99
      %p101 = scmp.ne.s32.totalorder %s87, %s88
      %p102 = scmp.eq.s32.totalorder %s28, 1
      %p103 = por %p101, %p102
      %p105 = scmp.ne.s32.totalorder %s88, %s104
      %p106 = scmp.eq.s32.totalorder %s28, 0
      %p107 = por %p105, %p106
      %s109 = sadd.s32 %s108, 1
      %p112 = scmp.eq.s32.totalorder %s22, 1
      %p113 = scmp.ne.s32.totalorder %s108, %s110
      %p114 = scmp.eq.s32.totalorder %s22, 0
      %p115 = por %p113, %p114
      %p116 = scmp.ne.s32.totalorder %s108, %s110
      %p117 = scmp.eq.s32.totalorder %s27, 1
      %p118 = por %p116, %p117
      %p119 = scmp.ne.s32.totalorder %s110, %s111
      %p120 = scmp.eq.s32.totalorder %s27, 0
      %p121 = por %p119, %p120
      %p122 = scmp.ne.s32.totalorder %s110, %s111
      %p123 = scmp.eq.s32.totalorder %s28, 1
      %p124 = por %p122, %p123
      %p126 = scmp.ne.s32.totalorder %s111, %s125
      %p127 = scmp.eq.s32.totalorder %s28, 0
      %p128 = por %p126, %p127
      %s130 = sadd.s32 %s129, 1
      %p133 = scmp.eq.s32.totalorder %s22, 1
      %p134 = scmp.ne.s32.totalorder %s129, %s131
      %p135 = scmp.eq.s32.totalorder %s22, 0
      %p136 = por %p134, %p135
      %p137 = scmp.ne.s32.totalorder %s129, %s131
      %p138 = scmp.eq.s32.totalorder %s27, 1
      %p139 = por %p137, %p138
      %p140 = scmp.ne.s32.totalorder %s131, %s132
      %p141 = scmp.eq.s32.totalorder %s27, 0
      %p142 = por %p140, %p141
      %p143 = scmp.ne.s32.totalorder %s131, %s132
      %p144 = scmp.eq.s32.totalorder %s28, 1
      %p145 = por %p143, %p144
      %p147 = scmp.ne.s32.totalorder %s132, %s146
      %p148 = scmp.eq.s32.totalorder %s28, 0
      %p149 = por %p147, %p148
      %s151 = sadd.s32 %s150, 1
      %p154 = scmp.eq.s32.totalorder %s22, 1
      %p155 = scmp.ne.s32.totalorder %s150, %s152
      %p156 = scmp.eq.s32.totalorder %s22, 0
      %p157 = por %p155, %p156
      %p158 = scmp.ne.s32.totalorder %s150, %s152
      %p159 = scmp.eq.s32.totalorder %s27, 1
      %p160 = por %p158, %p159
      %p161 = scmp.ne.s32.totalorder %s152, %s153
      %p162 = scmp.eq.s32.totalorder %s27, 0
      %p163 = por %p161, %p162
      %p164 = scmp.ne.s32.totalorder %s152, %s153
      %p165 = scmp.eq.s32.totalorder %s28, 1
      %p166 = por %p164, %p165
      %p168 = scmp.ne.s32.totalorder %s153, %s167
      %p169 = scmp.eq.s32.totalorder %s28, 0
      %p170 = por %p168, %p169
      %s171 = ssub.s32 %s22, %s29
      %p172 = scmp.eq.s32.totalorder %s171, 0
      %s174 = sadd.s32 %s173, 1
      %s175 = scalar_select %p172, %s173, %s174
      %p178 = pneg %p172
      %p179 = scmp.eq.s32.totalorder %s22, 1
      %p180 = por %p178, %p179
      %p181 = scmp.ne.s32.totalorder %s173, %s176
      %p182 = scmp.eq.s32.totalorder %s22, 0
      %p183 = por %p181, %p182
      %p184 = scmp.ne.s32.totalorder %s173, %s176
      %p185 = scmp.eq.s32.totalorder %s27, 1
      %p186 = por %p184, %p185
      %p187 = scmp.ne.s32.totalorder %s176, %s177
      %p188 = scmp.eq.s32.totalorder %s27, 0
      %p189 = por %p187, %p188
      %p190 = scmp.ne.s32.totalorder %s176, %s177
      %p191 = scmp.eq.s32.totalorder %s28, 1
      %p192 = por %p190, %p191
      %p194 = scmp.ne.s32.totalorder %s177, %s193
      %p195 = scmp.eq.s32.totalorder %s28, 0
      %p196 = por %p194, %p195
      %p197 = scmp.le.s32.totalorder 1, %s22
      %p198 = scmp.lt.s32.totalorder %s22, 3
      %p199 = pnand %p197, %p198
      %p200 = pneg %p199
      // Predicated region
      $region9: #{tpu_custom_call.1} parent=5 // pred_check
        _
      $region10: #{tpu_custom_call.1} parent=5 // pred_check_branch
        %202 = sbr.rel (%p199) target = $region12
      $region11: #{tpu_custom_call.1} parent=5 // pred_region
        %s203 = ssub.s32 %s22, 1
        // Predicated region
        $region13: #{tpu_custom_call.1} parent=11 // pred_check
          %p204 = pneg %p121
        $region14: #{tpu_custom_call.1} parent=11 // pred_check_branch
          %206 = sbr.rel (%p204) target = $region16
        $region15: #{tpu_custom_call.1} parent=11 // pred_region
          %s208 = ssub.s32 1024, 1024
          %209 = vsyncadd [#allocation6], %s208
          %s210 = sshll.u32 [#allocation7], 4
          %s211 = int_to_ptr.vmem [resolvable:$true] %s210
          %216 = dma.hbm_to_vmem [thread:$0]  %s3, 1024, %s211, [#allocation6], 256, 256, 16
        $region16: #{tpu_custom_call.1} parent=11 // pred_fallthru
          _
        // Predicated region
        $region17: #{tpu_custom_call.1} parent=11 // pred_check
          %p217 = pneg %p142
        $region18: #{tpu_custom_call.1} parent=11 // pred_check_branch
          %219 = sbr.rel (%p217) target = $region20
        $region19: #{tpu_custom_call.1} parent=11 // pred_region
          %s221 = ssub.s32 1024, 1024
          %222 = vsyncadd [#allocation9], %s221
          %s223 = sshll.u32 [#allocation8], 4
          %s224 = int_to_ptr.vmem [resolvable:$true] %s223
          %229 = dma.hbm_to_vmem [thread:$0]  %s4, 1024, %s224, [#allocation9], 256, 256, 16
        $region20: #{tpu_custom_call.1} parent=11 // pred_fallthru
          _
        // Predicated region
        $region21: #{tpu_custom_call.1} parent=11 // pred_check
          %p230 = pneg %p163
        $region22: #{tpu_custom_call.1} parent=11 // pred_check_branch
          %232 = sbr.rel (%p230) target = $region24
        $region23: #{tpu_custom_call.1} parent=11 // pred_region
          %s234 = ssub.s32 1024, 1024
          %235 = vsyncadd [#allocation9], %s234
          %s236 = sshll.u32 [#allocation10], 4
          %s237 = int_to_ptr.vmem [resolvable:$true] %s236
          %242 = dma.hbm_to_vmem [thread:$0]  %s5, 1024, %s237, [#allocation9], 256, 256, 16
        $region24: #{tpu_custom_call.1} parent=11 // pred_fallthru
          _
      $region12: #{tpu_custom_call.1} parent=5 // pred_fallthru
        _
      %p243 = scmp.lt.s32.totalorder %s22, 2
      // Predicated region
      $region25: #{tpu_custom_call.1} parent=5 // pred_check
        %p244 = pneg %p243
      $region26: #{tpu_custom_call.1} parent=5 // pred_check_branch
        %246 = sbr.rel (%p244) target = $region28
      $region27: #{tpu_custom_call.1} parent=5 // pred_region
        // Predicated region
        $region29: #{tpu_custom_call.1} parent=27 // pred_check
          %p247 = pneg %p42
        $region30: #{tpu_custom_call.1} parent=27 // pred_check_branch
          %249 = sbr.rel (%p247) target = $region32
        $region31: #{tpu_custom_call.1} parent=27 // pred_region
          %s250 = smul.u32 32, %s22
          %p251 = scmp.lt.s32.totalorder %s250, 63
          %s252 = scalar_select %p251, %s250, 63
          %s253 = smul.addr %s252, 4
          %s254 = scalar_lea.vmem %s0, %s253
          %s255 = smul.u32 32, %s22
        $region32: #{tpu_custom_call.1} parent=27 // pred_fallthru
          _
        // Predicated region
        $region33: #{tpu_custom_call.1} parent=27 // pred_check
          %p256 = pneg %p68
        $region34: #{tpu_custom_call.1} parent=27 // pred_check_branch
          %258 = sbr.rel (%p256) target = $region36
        $region35: #{tpu_custom_call.1} parent=27 // pred_region
          %s259 = sand.u32 %s58, 1
          %s260 = scalar_lea.sflag [#allocation3], %s259
          %s261 = sand.u32 %s58, 1
          %s262 = smul.addr %s261, 2048
          %s263 = scalar_lea.vmem [#allocation2], %s262
          %s264 = smul.u32 32, %s22
          %s266 = ssub.s32 32768, 32768
          %267 = vsyncadd %s260, %s266
          %s268 = smul.addr %s264, 8
          %s269 = smul.addr %s268, 128
          %s270 = scalar_lea.hbm %s1, %s269
          %s271 = sshll.u32 %s263, 4
          %s272 = int_to_ptr.vmem [resolvable:$true] %s271
          %277 = dma.hbm_to_vmem [thread:$0]  %s270, 32768, %s272, %s260, 256, 256, 16
        $region36: #{tpu_custom_call.1} parent=27 // pred_fallthru
          _
        // Predicated region
        $region37: #{tpu_custom_call.1} parent=27 // pred_check
          %p278 = pneg %p94
        $region38: #{tpu_custom_call.1} parent=27 // pred_check_branch
          %280 = sbr.rel (%p278) target = $region40
        $region39: #{tpu_custom_call.1} parent=27 // pred_region
          %s281 = sand.u32 %s22, 1
          %s282 = scalar_lea.sflag [#allocation6], %s281
          %s283 = sand.u32 %s84, 1
          %s284 = smul.addr %s283, 2048
          %s285 = scalar_lea.vmem [#allocation5], %s284
          %s286 = smul.u32 32, %s22
          %s288 = ssub.s32 32768, 32768
          %289 = vsyncadd %s282, %s288
          %s290 = smul.addr %s286, 8
          %s291 = smul.addr %s290, 128
          %s292 = scalar_lea.hbm %s2, %s291
          %s293 = sshll.u32 %s285, 4
          %s294 = int_to_ptr.vmem [resolvable:$true] %s293
          %299 = dma.hbm_to_vmem [thread:$0]  %s292, 32768, %s294, %s282, 256, 256, 16
        $region40: #{tpu_custom_call.1} parent=27 // pred_fallthru
          _
      $region28: #{tpu_custom_call.1} parent=5 // pred_fallthru
        _
      %p300 = scmp.le.s32.totalorder 1, %s22
      %p301 = scmp.lt.s32.totalorder %s22, 3
      %p302 = pnand %p300, %p301
      %p303 = pneg %p302
      // Predicated region
      $region41: #{tpu_custom_call.1} parent=5 // pred_check
        _
      $region42: #{tpu_custom_call.1} parent=5 // pred_check_branch
        %305 = sbr.rel (%p302) target = $region44
      $region43: #{tpu_custom_call.1} parent=5 // pred_region
        %s306 = ssub.s32 %s22, 1
        %s307 = sand.u32 %s61, 1
        %s308 = scalar_lea.sflag [#allocation3], %s307
        %s309 = sand.u32 %s61, 1
        %s310 = smul.addr %s309, 2048
        %s311 = scalar_lea.vmem [#allocation2], %s310
        // Predicated region
        $region45: #{tpu_custom_call.1} parent=43 // pred_check
          %p312 = pneg %p74
        $region46: #{tpu_custom_call.1} parent=43 // pred_check_branch
          %314 = sbr.rel (%p312) target = $region48
        $region47: #{tpu_custom_call.1} parent=43 // pred_region
          %315 = dma.done %s308, 32768
        $region48: #{tpu_custom_call.1} parent=43 // pred_fallthru
          _
        %s316 = sand.u32 %s27, 1
        %s317 = scalar_lea.sflag [#allocation6], %s316
        %s318 = sand.u32 %s87, 1
        %s319 = smul.addr %s318, 2048
        %s320 = scalar_lea.vmem [#allocation5], %s319
        // Predicated region
        $region49: #{tpu_custom_call.1} parent=43 // pred_check
          %p321 = pneg %p100
        $region50: #{tpu_custom_call.1} parent=43 // pred_check_branch
          %323 = sbr.rel (%p321) target = $region52
        $region51: #{tpu_custom_call.1} parent=43 // pred_region
          %324 = dma.done %s317, 32768
        $region52: #{tpu_custom_call.1} parent=43 // pred_fallthru
          _
        // Predicated region
        $region53: #{tpu_custom_call.1} parent=43 // pred_check
          %p325 = pneg %p121
        $region54: #{tpu_custom_call.1} parent=43 // pred_check_branch
          %327 = sbr.rel (%p325) target = $region56
        $region55: #{tpu_custom_call.1} parent=43 // pred_region
          %328 = dma.done [#allocation6], 1024
        $region56: #{tpu_custom_call.1} parent=43 // pred_fallthru
          _
        // Predicated region
        $region57: #{tpu_custom_call.1} parent=43 // pred_check
          %p329 = pneg %p142
        $region58: #{tpu_custom_call.1} parent=43 // pred_check_branch
          %331 = sbr.rel (%p329) target = $region60
        $region59: #{tpu_custom_call.1} parent=43 // pred_region
          %332 = dma.done [#allocation9], 1024
        $region60: #{tpu_custom_call.1} parent=43 // pred_fallthru
          _
        // Predicated region
        $region61: #{tpu_custom_call.1} parent=43 // pred_check
          %p333 = pneg %p163
        $region62: #{tpu_custom_call.1} parent=43 // pred_check_branch
          %335 = sbr.rel (%p333) target = $region64
        $region63: #{tpu_custom_call.1} parent=43 // pred_region
          %336 = dma.done [#allocation9], 1024
        $region64: #{tpu_custom_call.1} parent=43 // pred_fallthru
          _
        %s337 = smul.u32 32, %s27
        %p338 = scmp.lt.s32.totalorder %s337, 63
        %s339 = scalar_select %p338, %s337, 63
        %s340 = smul.addr %s339, 4
        %s341 = scalar_lea.vmem %s0, %s340
        %p342 = pneg %p48
        %p343 = pneg %p45
        %s344 = sand.u32 %s61, 1
        %s345 = scalar_lea.sflag [#allocation3], %s344
        %s346 = sand.u32 %s61, 1
        %s347 = smul.addr %s346, 2048
        %s348 = scalar_lea.vmem [#allocation2], %s347
        %p349 = pneg %p74
        %p350 = pneg %p71
        %s351 = sand.u32 %s27, 1
        %s352 = scalar_lea.sflag [#allocation6], %s351
        %s353 = sand.u32 %s87, 1
        %s354 = smul.addr %s353, 2048
        %s355 = scalar_lea.vmem [#allocation5], %s354
        %p356 = pneg %p100
        %p357 = pneg %p97
        %p358 = pneg %p121
        %p359 = pneg %p118
        %p360 = pneg %p142
        %p361 = pneg %p139
        %p362 = pneg %p163
        %p363 = pneg %p160
        %p364 = pneg %p189
        %p365 = pneg %p186
        %s366 = sand.u32 %s176, 1
        %s367 = scalar_lea.sflag [#allocation4], %s366
        %s368 = sand.u32 %s176, 1
        %s369 = smul.addr %s368, 64
        %s370 = scalar_lea.vmem [#allocation11], %s369
        %s371 = smul.u32 32, %s27
        %p372 = scmp.lt.s32.totalorder %s371, 63
        %s373 = scalar_select %p372, %s371, 63
        %s374 = smul.addr %s373, 4
        %s375 = scalar_lea.vmem %s0, %s374
        %s376 = smul.u32 32, %s27
        %s377 = smul.u32 32, %s27
        %s378 = smul.u32 32, %s27
        %s379 = smul.u32 4, %s27
        %v380 = vld [vmem:[#allocation7] sm:$0xff]
        %v381 = vld [vmem:[#allocation7 + $0x8] sm:$0xff]
        %v382 = vld [vmem:[#allocation7 + $0x10] sm:$0xff]
        %v383 = vld [vmem:[#allocation7 + $0x18] sm:$0xff]
        %v384 = vld [vmem:[#allocation7 + $0x20] sm:$0xff]
        %v385 = vld [vmem:[#allocation7 + $0x28] sm:$0xff]
        %v386 = vld [vmem:[#allocation7 + $0x30] sm:$0xff]
        %v387 = vld [vmem:[#allocation7 + $0x38] sm:$0xff]
        %v388 = vld [vmem:[%s311] sm:$0xff]
        %v389 = vld [vmem:[%s311 + $0x8] sm:$0xff]
        %v390 = vld [vmem:[%s311 + $0x10] sm:$0xff]
        %v391 = vld [vmem:[%s311 + $0x18] sm:$0xff]
        %v392 = vld [vmem:[%s311 + $0x20] sm:$0xff]
        %v393 = vld [vmem:[%s311 + $0x28] sm:$0xff]
        %v394 = vld [vmem:[%s311 + $0x30] sm:$0xff]
        %v395 = vld [vmem:[%s311 + $0x38] sm:$0xff]
        %v396 = vld [vmem:[%s311 + $0x40] sm:$0xff]
        %v397 = vld [vmem:[%s311 + $0x48] sm:$0xff]
        %v398 = vld [vmem:[%s311 + $0x50] sm:$0xff]
        %v399 = vld [vmem:[%s311 + $0x58] sm:$0xff]
        %v400 = vld [vmem:[%s311 + $0x60] sm:$0xff]
        %v401 = vld [vmem:[%s311 + $0x68] sm:$0xff]
        %v402 = vld [vmem:[%s311 + $0x70] sm:$0xff]
        %v403 = vld [vmem:[%s311 + $0x78] sm:$0xff]
        %v404 = vld [vmem:[%s311 + $0x80] sm:$0xff]
        %v405 = vld [vmem:[%s311 + $0x88] sm:$0xff]
        %v406 = vld [vmem:[%s311 + $0x90] sm:$0xff]
        %v407 = vld [vmem:[%s311 + $0x98] sm:$0xff]
        %v408 = vld [vmem:[%s311 + $0xa0] sm:$0xff]
        %v409 = vld [vmem:[%s311 + $0xa8] sm:$0xff]
        %v410 = vld [vmem:[%s311 + $0xb0] sm:$0xff]
        %v411 = vld [vmem:[%s311 + $0xb8] sm:$0xff]
        %v412 = vld [vmem:[%s311 + $0xc0] sm:$0xff]
        %v413 = vld [vmem:[%s311 + $0xc8] sm:$0xff]
        %v414 = vld [vmem:[%s311 + $0xd0] sm:$0xff]
        %v415 = vld [vmem:[%s311 + $0xd8] sm:$0xff]
        %v416 = vld [vmem:[%s311 + $0xe0] sm:$0xff]
        %v417 = vld [vmem:[%s311 + $0xe8] sm:$0xff]
        %v418 = vld [vmem:[%s311 + $0xf0] sm:$0xff]
        %v419 = vld [vmem:[%s311 + $0xf8] sm:$0xff]
        %v420 = vld [vmem:[%s311 + $0x100] sm:$0xff]
        %v421 = vld [vmem:[%s311 + $0x108] sm:$0xff]
        %v422 = vld [vmem:[%s311 + $0x110] sm:$0xff]
        %v423 = vld [vmem:[%s311 + $0x118] sm:$0xff]
        %v424 = vld [vmem:[%s311 + $0x120] sm:$0xff]
        %v425 = vld [vmem:[%s311 + $0x128] sm:$0xff]
        %v426 = vld [vmem:[%s311 + $0x130] sm:$0xff]
        %v427 = vld [vmem:[%s311 + $0x138] sm:$0xff]
        %v428 = vld [vmem:[%s311 + $0x140] sm:$0xff]
        %v429 = vld [vmem:[%s311 + $0x148] sm:$0xff]
        %v430 = vld [vmem:[%s311 + $0x150] sm:$0xff]
        %v431 = vld [vmem:[%s311 + $0x158] sm:$0xff]
        %v432 = vld [vmem:[%s311 + $0x160] sm:$0xff]
        %v433 = vld [vmem:[%s311 + $0x168] sm:$0xff]
        %v434 = vld [vmem:[%s311 + $0x170] sm:$0xff]
        %v435 = vld [vmem:[%s311 + $0x178] sm:$0xff]
        %v436 = vld [vmem:[%s311 + $0x180] sm:$0xff]
        %v437 = vld [vmem:[%s311 + $0x188] sm:$0xff]
        %v438 = vld [vmem:[%s311 + $0x190] sm:$0xff]
        %v439 = vld [vmem:[%s311 + $0x198] sm:$0xff]
        %v440 = vld [vmem:[%s311 + $0x1a0] sm:$0xff]
        %v441 = vld [vmem:[%s311 + $0x1a8] sm:$0xff]
        %v442 = vld [vmem:[%s311 + $0x1b0] sm:$0xff]
        %v443 = vld [vmem:[%s311 + $0x1b8] sm:$0xff]
        %v444 = vld [vmem:[%s311 + $0x1c0] sm:$0xff]
        %v445 = vld [vmem:[%s311 + $0x1c8] sm:$0xff]
        %v446 = vld [vmem:[%s311 + $0x1d0] sm:$0xff]
        %v447 = vld [vmem:[%s311 + $0x1d8] sm:$0xff]
        %v448 = vld [vmem:[%s311 + $0x1e0] sm:$0xff]
        %v449 = vld [vmem:[%s311 + $0x1e8] sm:$0xff]
        %v450 = vld [vmem:[%s311 + $0x1f0] sm:$0xff]
        %v451 = vld [vmem:[%s311 + $0x1f8] sm:$0xff]
        %v452 = vld [vmem:[%s311 + $0x200] sm:$0xff]
        %v453 = vld [vmem:[%s311 + $0x208] sm:$0xff]
        %v454 = vld [vmem:[%s311 + $0x210] sm:$0xff]
        %v455 = vld [vmem:[%s311 + $0x218] sm:$0xff]
        %v456 = vld [vmem:[%s311 + $0x220] sm:$0xff]
        %v457 = vld [vmem:[%s311 + $0x228] sm:$0xff]
        %v458 = vld [vmem:[%s311 + $0x230] sm:$0xff]
        %v459 = vld [vmem:[%s311 + $0x238] sm:$0xff]
        %v460 = vld [vmem:[%s311 + $0x240] sm:$0xff]
        %v461 = vld [vmem:[%s311 + $0x248] sm:$0xff]
        %v462 = vld [vmem:[%s311 + $0x250] sm:$0xff]
        %v463 = vld [vmem:[%s311 + $0x258] sm:$0xff]
        %v464 = vld [vmem:[%s311 + $0x260] sm:$0xff]
        %v465 = vld [vmem:[%s311 + $0x268] sm:$0xff]
        %v466 = vld [vmem:[%s311 + $0x270] sm:$0xff]
        %v467 = vld [vmem:[%s311 + $0x278] sm:$0xff]
        %v468 = vld [vmem:[%s311 + $0x280] sm:$0xff]
        %v469 = vld [vmem:[%s311 + $0x288] sm:$0xff]
        %v470 = vld [vmem:[%s311 + $0x290] sm:$0xff]
        %v471 = vld [vmem:[%s311 + $0x298] sm:$0xff]
        %v472 = vld [vmem:[%s311 + $0x2a0] sm:$0xff]
        %v473 = vld [vmem:[%s311 + $0x2a8] sm:$0xff]
        %v474 = vld [vmem:[%s311 + $0x2b0] sm:$0xff]
        %v475 = vld [vmem:[%s311 + $0x2b8] sm:$0xff]
        %v476 = vld [vmem:[%s311 + $0x2c0] sm:$0xff]
        %v477 = vld [vmem:[%s311 + $0x2c8] sm:$0xff]
        %v478 = vld [vmem:[%s311 + $0x2d0] sm:$0xff]
        %v479 = vld [vmem:[%s311 + $0x2d8] sm:$0xff]
        %v480 = vld [vmem:[%s311 + $0x2e0] sm:$0xff]
        %v481 = vld [vmem:[%s311 + $0x2e8] sm:$0xff]
        %v482 = vld [vmem:[%s311 + $0x2f0] sm:$0xff]
        %v483 = vld [vmem:[%s311 + $0x2f8] sm:$0xff]
        %v484 = vld [vmem:[%s311 + $0x300] sm:$0xff]
        %v485 = vld [vmem:[%s311 + $0x308] sm:$0xff]
        %v486 = vld [vmem:[%s311 + $0x310] sm:$0xff]
        %v487 = vld [vmem:[%s311 + $0x318] sm:$0xff]
        %v488 = vld [vmem:[%s311 + $0x320] sm:$0xff]
        %v489 = vld [vmem:[%s311 + $0x328] sm:$0xff]
        %v490 = vld [vmem:[%s311 + $0x330] sm:$0xff]
        %v491 = vld [vmem:[%s311 + $0x338] sm:$0xff]
        %v492 = vld [vmem:[%s311 + $0x340] sm:$0xff]
        %v493 = vld [vmem:[%s311 + $0x348] sm:$0xff]
        %v494 = vld [vmem:[%s311 + $0x350] sm:$0xff]
        %v495 = vld [vmem:[%s311 + $0x358] sm:$0xff]
        %v496 = vld [vmem:[%s311 + $0x360] sm:$0xff]
        %v497 = vld [vmem:[%s311 + $0x368] sm:$0xff]
        %v498 = vld [vmem:[%s311 + $0x370] sm:$0xff]
        %v499 = vld [vmem:[%s311 + $0x378] sm:$0xff]
        %v500 = vld [vmem:[%s311 + $0x380] sm:$0xff]
        %v501 = vld [vmem:[%s311 + $0x388] sm:$0xff]
        %v502 = vld [vmem:[%s311 + $0x390] sm:$0xff]
        %v503 = vld [vmem:[%s311 + $0x398] sm:$0xff]
        %v504 = vld [vmem:[%s311 + $0x3a0] sm:$0xff]
        %v505 = vld [vmem:[%s311 + $0x3a8] sm:$0xff]
        %v506 = vld [vmem:[%s311 + $0x3b0] sm:$0xff]
        %v507 = vld [vmem:[%s311 + $0x3b8] sm:$0xff]
        %v508 = vld [vmem:[%s311 + $0x3c0] sm:$0xff]
        %v509 = vld [vmem:[%s311 + $0x3c8] sm:$0xff]
        %v510 = vld [vmem:[%s311 + $0x3d0] sm:$0xff]
        %v511 = vld [vmem:[%s311 + $0x3d8] sm:$0xff]
        %v512 = vld [vmem:[%s311 + $0x3e0] sm:$0xff]
        %v513 = vld [vmem:[%s311 + $0x3e8] sm:$0xff]
        %v514 = vld [vmem:[%s311 + $0x3f0] sm:$0xff]
        %v515 = vld [vmem:[%s311 + $0x3f8] sm:$0xff]
        %v516 = vld [vmem:[%s311 + $0x400] sm:$0xff]
        %v517 = vld [vmem:[%s311 + $0x408] sm:$0xff]
        %v518 = vld [vmem:[%s311 + $0x410] sm:$0xff]
        %v519 = vld [vmem:[%s311 + $0x418] sm:$0xff]
        %v520 = vld [vmem:[%s311 + $0x420] sm:$0xff]
        %v521 = vld [vmem:[%s311 + $0x428] sm:$0xff]
        %v522 = vld [vmem:[%s311 + $0x430] sm:$0xff]
        %v523 = vld [vmem:[%s311 + $0x438] sm:$0xff]
        %v524 = vld [vmem:[%s311 + $0x440] sm:$0xff]
        %v525 = vld [vmem:[%s311 + $0x448] sm:$0xff]
        %v526 = vld [vmem:[%s311 + $0x450] sm:$0xff]
        %v527 = vld [vmem:[%s311 + $0x458] sm:$0xff]
        %v528 = vld [vmem:[%s311 + $0x460] sm:$0xff]
        %v529 = vld [vmem:[%s311 + $0x468] sm:$0xff]
        %v530 = vld [vmem:[%s311 + $0x470] sm:$0xff]
        %v531 = vld [vmem:[%s311 + $0x478] sm:$0xff]
        %v532 = vld [vmem:[%s311 + $0x480] sm:$0xff]
        %v533 = vld [vmem:[%s311 + $0x488] sm:$0xff]
        %v534 = vld [vmem:[%s311 + $0x490] sm:$0xff]
        %v535 = vld [vmem:[%s311 + $0x498] sm:$0xff]
        %v536 = vld [vmem:[%s311 + $0x4a0] sm:$0xff]
        %v537 = vld [vmem:[%s311 + $0x4a8] sm:$0xff]
        %v538 = vld [vmem:[%s311 + $0x4b0] sm:$0xff]
        %v539 = vld [vmem:[%s311 + $0x4b8] sm:$0xff]
        %v540 = vld [vmem:[%s311 + $0x4c0] sm:$0xff]
        %v541 = vld [vmem:[%s311 + $0x4c8] sm:$0xff]
        %v542 = vld [vmem:[%s311 + $0x4d0] sm:$0xff]
        %v543 = vld [vmem:[%s311 + $0x4d8] sm:$0xff]
        %v544 = vld [vmem:[%s311 + $0x4e0] sm:$0xff]
        %v545 = vld [vmem:[%s311 + $0x4e8] sm:$0xff]
        %v546 = vld [vmem:[%s311 + $0x4f0] sm:$0xff]
        %v547 = vld [vmem:[%s311 + $0x4f8] sm:$0xff]
        %v548 = vld [vmem:[%s311 + $0x500] sm:$0xff]
        %v549 = vld [vmem:[%s311 + $0x508] sm:$0xff]
        %v550 = vld [vmem:[%s311 + $0x510] sm:$0xff]
        %v551 = vld [vmem:[%s311 + $0x518] sm:$0xff]
        %v552 = vld [vmem:[%s311 + $0x520] sm:$0xff]
        %v553 = vld [vmem:[%s311 + $0x528] sm:$0xff]
        %v554 = vld [vmem:[%s311 + $0x530] sm:$0xff]
        %v555 = vld [vmem:[%s311 + $0x538] sm:$0xff]
        %v556 = vld [vmem:[%s311 + $0x540] sm:$0xff]
        %v557 = vld [vmem:[%s311 + $0x548] sm:$0xff]
        %v558 = vld [vmem:[%s311 + $0x550] sm:$0xff]
        %v559 = vld [vmem:[%s311 + $0x558] sm:$0xff]
        %v560 = vld [vmem:[%s311 + $0x560] sm:$0xff]
        %v561 = vld [vmem:[%s311 + $0x568] sm:$0xff]
        %v562 = vld [vmem:[%s311 + $0x570] sm:$0xff]
        %v563 = vld [vmem:[%s311 + $0x578] sm:$0xff]
        %v564 = vld [vmem:[%s311 + $0x580] sm:$0xff]
        %v565 = vld [vmem:[%s311 + $0x588] sm:$0xff]
        %v566 = vld [vmem:[%s311 + $0x590] sm:$0xff]
        %v567 = vld [vmem:[%s311 + $0x598] sm:$0xff]
        %v568 = vld [vmem:[%s311 + $0x5a0] sm:$0xff]
        %v569 = vld [vmem:[%s311 + $0x5a8] sm:$0xff]
        %v570 = vld [vmem:[%s311 + $0x5b0] sm:$0xff]
        %v571 = vld [vmem:[%s311 + $0x5b8] sm:$0xff]
        %v572 = vld [vmem:[%s311 + $0x5c0] sm:$0xff]
        %v573 = vld [vmem:[%s311 + $0x5c8] sm:$0xff]
        %v574 = vld [vmem:[%s311 + $0x5d0] sm:$0xff]
        %v575 = vld [vmem:[%s311 + $0x5d8] sm:$0xff]
        %v576 = vld [vmem:[%s311 + $0x5e0] sm:$0xff]
        %v577 = vld [vmem:[%s311 + $0x5e8] sm:$0xff]
        %v578 = vld [vmem:[%s311 + $0x5f0] sm:$0xff]
        %v579 = vld [vmem:[%s311 + $0x5f8] sm:$0xff]
        %v580 = vld [vmem:[%s311 + $0x600] sm:$0xff]
        %v581 = vld [vmem:[%s311 + $0x608] sm:$0xff]
        %v582 = vld [vmem:[%s311 + $0x610] sm:$0xff]
        %v583 = vld [vmem:[%s311 + $0x618] sm:$0xff]
        %v584 = vld [vmem:[%s311 + $0x620] sm:$0xff]
        %v585 = vld [vmem:[%s311 + $0x628] sm:$0xff]
        %v586 = vld [vmem:[%s311 + $0x630] sm:$0xff]
        %v587 = vld [vmem:[%s311 + $0x638] sm:$0xff]
        %v588 = vld [vmem:[%s311 + $0x640] sm:$0xff]
        %v589 = vld [vmem:[%s311 + $0x648] sm:$0xff]
        %v590 = vld [vmem:[%s311 + $0x650] sm:$0xff]
        %v591 = vld [vmem:[%s311 + $0x658] sm:$0xff]
        %v592 = vld [vmem:[%s311 + $0x660] sm:$0xff]
        %v593 = vld [vmem:[%s311 + $0x668] sm:$0xff]
        %v594 = vld [vmem:[%s311 + $0x670] sm:$0xff]
        %v595 = vld [vmem:[%s311 + $0x678] sm:$0xff]
        %v596 = vld [vmem:[%s311 + $0x680] sm:$0xff]
        %v597 = vld [vmem:[%s311 + $0x688] sm:$0xff]
        %v598 = vld [vmem:[%s311 + $0x690] sm:$0xff]
        %v599 = vld [vmem:[%s311 + $0x698] sm:$0xff]
        %v600 = vld [vmem:[%s311 + $0x6a0] sm:$0xff]
        %v601 = vld [vmem:[%s311 + $0x6a8] sm:$0xff]
        %v602 = vld [vmem:[%s311 + $0x6b0] sm:$0xff]
        %v603 = vld [vmem:[%s311 + $0x6b8] sm:$0xff]
        %v604 = vld [vmem:[%s311 + $0x6c0] sm:$0xff]
        %v605 = vld [vmem:[%s311 + $0x6c8] sm:$0xff]
        %v606 = vld [vmem:[%s311 + $0x6d0] sm:$0xff]
        %v607 = vld [vmem:[%s311 + $0x6d8] sm:$0xff]
        %v608 = vld [vmem:[%s311 + $0x6e0] sm:$0xff]
        %v609 = vld [vmem:[%s311 + $0x6e8] sm:$0xff]
        %v610 = vld [vmem:[%s311 + $0x6f0] sm:$0xff]
        %v611 = vld [vmem:[%s311 + $0x6f8] sm:$0xff]
        %v612 = vld [vmem:[%s311 + $0x700] sm:$0xff]
        %v613 = vld [vmem:[%s311 + $0x708] sm:$0xff]
        %v614 = vld [vmem:[%s311 + $0x710] sm:$0xff]
        %v615 = vld [vmem:[%s311 + $0x718] sm:$0xff]
        %v616 = vld [vmem:[%s311 + $0x720] sm:$0xff]
        %v617 = vld [vmem:[%s311 + $0x728] sm:$0xff]
        %v618 = vld [vmem:[%s311 + $0x730] sm:$0xff]
        %v619 = vld [vmem:[%s311 + $0x738] sm:$0xff]
        %v620 = vld [vmem:[%s311 + $0x740] sm:$0xff]
        %v621 = vld [vmem:[%s311 + $0x748] sm:$0xff]
        %v622 = vld [vmem:[%s311 + $0x750] sm:$0xff]
        %v623 = vld [vmem:[%s311 + $0x758] sm:$0xff]
        %v624 = vld [vmem:[%s311 + $0x760] sm:$0xff]
        %v625 = vld [vmem:[%s311 + $0x768] sm:$0xff]
        %v626 = vld [vmem:[%s311 + $0x770] sm:$0xff]
        %v627 = vld [vmem:[%s311 + $0x778] sm:$0xff]
        %v628 = vld [vmem:[%s311 + $0x780] sm:$0xff]
        %v629 = vld [vmem:[%s311 + $0x788] sm:$0xff]
        %v630 = vld [vmem:[%s311 + $0x790] sm:$0xff]
        %v631 = vld [vmem:[%s311 + $0x798] sm:$0xff]
        %v632 = vld [vmem:[%s311 + $0x7a0] sm:$0xff]
        %v633 = vld [vmem:[%s311 + $0x7a8] sm:$0xff]
        %v634 = vld [vmem:[%s311 + $0x7b0] sm:$0xff]
        %v635 = vld [vmem:[%s311 + $0x7b8] sm:$0xff]
        %v636 = vld [vmem:[%s311 + $0x7c0] sm:$0xff]
        %v637 = vld [vmem:[%s311 + $0x7c8] sm:$0xff]
        %v638 = vld [vmem:[%s311 + $0x7d0] sm:$0xff]
        %v639 = vld [vmem:[%s311 + $0x7d8] sm:$0xff]
        %v640 = vld [vmem:[%s311 + $0x7e0] sm:$0xff]
        %v641 = vld [vmem:[%s311 + $0x7e8] sm:$0xff]
        %v642 = vld [vmem:[%s311 + $0x7f0] sm:$0xff]
        %v643 = vld [vmem:[%s311 + $0x7f8] sm:$0xff]
        %v644 = vadd.f32 %v380, %v388
        %v645 = vadd.f32 %v381, %v389
        %v646 = vadd.f32 %v382, %v390
        %v647 = vadd.f32 %v383, %v391
        %v648 = vadd.f32 %v384, %v392
        %v649 = vadd.f32 %v385, %v393
        %v650 = vadd.f32 %v386, %v394
        %v651 = vadd.f32 %v387, %v395
        %v652 = vadd.f32 %v380, %v396
        %v653 = vadd.f32 %v381, %v397
        %v654 = vadd.f32 %v382, %v398
        %v655 = vadd.f32 %v383, %v399
        %v656 = vadd.f32 %v384, %v400
        %v657 = vadd.f32 %v385, %v401
        %v658 = vadd.f32 %v386, %v402
        %v659 = vadd.f32 %v387, %v403
        %v660 = vadd.f32 %v380, %v404
        %v661 = vadd.f32 %v381, %v405
        %v662 = vadd.f32 %v382, %v406
        %v663 = vadd.f32 %v383, %v407
        %v664 = vadd.f32 %v384, %v408
        %v665 = vadd.f32 %v385, %v409
        %v666 = vadd.f32 %v386, %v410
        %v667 = vadd.f32 %v387, %v411
        %v668 = vadd.f32 %v380, %v412
        %v669 = vadd.f32 %v381, %v413
        %v670 = vadd.f32 %v382, %v414
        %v671 = vadd.f32 %v383, %v415
        %v672 = vadd.f32 %v384, %v416
        %v673 = vadd.f32 %v385, %v417
        %v674 = vadd.f32 %v386, %v418
        %v675 = vadd.f32 %v387, %v419
        %v676 = vadd.f32 %v380, %v420
        %v677 = vadd.f32 %v381, %v421
        %v678 = vadd.f32 %v382, %v422
        %v679 = vadd.f32 %v383, %v423
        %v680 = vadd.f32 %v384, %v424
        %v681 = vadd.f32 %v385, %v425
        %v682 = vadd.f32 %v386, %v426
        %v683 = vadd.f32 %v387, %v427
        %v684 = vadd.f32 %v380, %v428
        %v685 = vadd.f32 %v381, %v429
        %v686 = vadd.f32 %v382, %v430
        %v687 = vadd.f32 %v383, %v431
        %v688 = vadd.f32 %v384, %v432
        %v689 = vadd.f32 %v385, %v433
        %v690 = vadd.f32 %v386, %v434
        %v691 = vadd.f32 %v387, %v435
        %v692 = vadd.f32 %v380, %v436
        %v693 = vadd.f32 %v381, %v437
        %v694 = vadd.f32 %v382, %v438
        %v695 = vadd.f32 %v383, %v439
        %v696 = vadd.f32 %v384, %v440
        %v697 = vadd.f32 %v385, %v441
        %v698 = vadd.f32 %v386, %v442
        %v699 = vadd.f32 %v387, %v443
        %v700 = vadd.f32 %v380, %v444
        %v701 = vadd.f32 %v381, %v445
        %v702 = vadd.f32 %v382, %v446
        %v703 = vadd.f32 %v383, %v447
        %v704 = vadd.f32 %v384, %v448
        %v705 = vadd.f32 %v385, %v449
        %v706 = vadd.f32 %v386, %v450
        %v707 = vadd.f32 %v387, %v451
        %v708 = vadd.f32 %v380, %v452
        %v709 = vadd.f32 %v381, %v453
        %v710 = vadd.f32 %v382, %v454
        %v711 = vadd.f32 %v383, %v455
        %v712 = vadd.f32 %v384, %v456
        %v713 = vadd.f32 %v385, %v457
        %v714 = vadd.f32 %v386, %v458
        %v715 = vadd.f32 %v387, %v459
        %v716 = vadd.f32 %v380, %v460
        %v717 = vadd.f32 %v381, %v461
        %v718 = vadd.f32 %v382, %v462
        %v719 = vadd.f32 %v383, %v463
        %v720 = vadd.f32 %v384, %v464
        %v721 = vadd.f32 %v385, %v465
        %v722 = vadd.f32 %v386, %v466
        %v723 = vadd.f32 %v387, %v467
        %v724 = vadd.f32 %v380, %v468
        %v725 = vadd.f32 %v381, %v469
        %v726 = vadd.f32 %v382, %v470
        %v727 = vadd.f32 %v383, %v471
        %v728 = vadd.f32 %v384, %v472
        %v729 = vadd.f32 %v385, %v473
        %v730 = vadd.f32 %v386, %v474
        %v731 = vadd.f32 %v387, %v475
        %v732 = vadd.f32 %v380, %v476
        %v733 = vadd.f32 %v381, %v477
        %v734 = vadd.f32 %v382, %v478
        %v735 = vadd.f32 %v383, %v479
        %v736 = vadd.f32 %v384, %v480
        %v737 = vadd.f32 %v385, %v481
        %v738 = vadd.f32 %v386, %v482
        %v739 = vadd.f32 %v387, %v483
        %v740 = vadd.f32 %v380, %v484
        %v741 = vadd.f32 %v381, %v485
        %v742 = vadd.f32 %v382, %v486
        %v743 = vadd.f32 %v383, %v487
        %v744 = vadd.f32 %v384, %v488
        %v745 = vadd.f32 %v385, %v489
        %v746 = vadd.f32 %v386, %v490
        %v747 = vadd.f32 %v387, %v491
        %v748 = vadd.f32 %v380, %v492
        %v749 = vadd.f32 %v381, %v493
        %v750 = vadd.f32 %v382, %v494
        %v751 = vadd.f32 %v383, %v495
        %v752 = vadd.f32 %v384, %v496
        %v753 = vadd.f32 %v385, %v497
        %v754 = vadd.f32 %v386, %v498
        %v755 = vadd.f32 %v387, %v499
        %v756 = vadd.f32 %v380, %v500
        %v757 = vadd.f32 %v381, %v501
        %v758 = vadd.f32 %v382, %v502
        %v759 = vadd.f32 %v383, %v503
        %v760 = vadd.f32 %v384, %v504
        %v761 = vadd.f32 %v385, %v505
        %v762 = vadd.f32 %v386, %v506
        %v763 = vadd.f32 %v387, %v507
        %v764 = vadd.f32 %v380, %v508
        %v765 = vadd.f32 %v381, %v509
        %v766 = vadd.f32 %v382, %v510
        %v767 = vadd.f32 %v383, %v511
        %v768 = vadd.f32 %v384, %v512
        %v769 = vadd.f32 %v385, %v513
        %v770 = vadd.f32 %v386, %v514
        %v771 = vadd.f32 %v387, %v515
        %v772 = vadd.f32 %v380, %v516
        %v773 = vadd.f32 %v381, %v517
        %v774 = vadd.f32 %v382, %v518
        %v775 = vadd.f32 %v383, %v519
        %v776 = vadd.f32 %v384, %v520
        %v777 = vadd.f32 %v385, %v521
        %v778 = vadd.f32 %v386, %v522
        %v779 = vadd.f32 %v387, %v523
        %v780 = vadd.f32 %v380, %v524
        %v781 = vadd.f32 %v381, %v525
        %v782 = vadd.f32 %v382, %v526
        %v783 = vadd.f32 %v383, %v527
        %v784 = vadd.f32 %v384, %v528
        %v785 = vadd.f32 %v385, %v529
        %v786 = vadd.f32 %v386, %v530
        %v787 = vadd.f32 %v387, %v531
        %v788 = vadd.f32 %v380, %v532
        %v789 = vadd.f32 %v381, %v533
        %v790 = vadd.f32 %v382, %v534
        %v791 = vadd.f32 %v383, %v535
        %v792 = vadd.f32 %v384, %v536
        %v793 = vadd.f32 %v385, %v537
        %v794 = vadd.f32 %v386, %v538
        %v795 = vadd.f32 %v387, %v539
        %v796 = vadd.f32 %v380, %v540
        %v797 = vadd.f32 %v381, %v541
        %v798 = vadd.f32 %v382, %v542
        %v799 = vadd.f32 %v383, %v543
        %v800 = vadd.f32 %v384, %v544
        %v801 = vadd.f32 %v385, %v545
        %v802 = vadd.f32 %v386, %v546
        %v803 = vadd.f32 %v387, %v547
        %v804 = vadd.f32 %v380, %v548
        %v805 = vadd.f32 %v381, %v549
        %v806 = vadd.f32 %v382, %v550
        %v807 = vadd.f32 %v383, %v551
        %v808 = vadd.f32 %v384, %v552
        %v809 = vadd.f32 %v385, %v553
        %v810 = vadd.f32 %v386, %v554
        %v811 = vadd.f32 %v387, %v555
        %v812 = vadd.f32 %v380, %v556
        %v813 = vadd.f32 %v381, %v557
        %v814 = vadd.f32 %v382, %v558
        %v815 = vadd.f32 %v383, %v559
        %v816 = vadd.f32 %v384, %v560
        %v817 = vadd.f32 %v385, %v561
        %v818 = vadd.f32 %v386, %v562
        %v819 = vadd.f32 %v387, %v563
        %v820 = vadd.f32 %v380, %v564
        %v821 = vadd.f32 %v381, %v565
        %v822 = vadd.f32 %v382, %v566
        %v823 = vadd.f32 %v383, %v567
        %v824 = vadd.f32 %v384, %v568
        %v825 = vadd.f32 %v385, %v569
        %v826 = vadd.f32 %v386, %v570
        %v827 = vadd.f32 %v387, %v571
        %v828 = vadd.f32 %v380, %v572
        %v829 = vadd.f32 %v381, %v573
        %v830 = vadd.f32 %v382, %v574
        %v831 = vadd.f32 %v383, %v575
        %v832 = vadd.f32 %v384, %v576
        %v833 = vadd.f32 %v385, %v577
        %v834 = vadd.f32 %v386, %v578
        %v835 = vadd.f32 %v387, %v579
        %v836 = vadd.f32 %v380, %v580
        %v837 = vadd.f32 %v381, %v581
        %v838 = vadd.f32 %v382, %v582
        %v839 = vadd.f32 %v383, %v583
        %v840 = vadd.f32 %v384, %v584
        %v841 = vadd.f32 %v385, %v585
        %v842 = vadd.f32 %v386, %v586
        %v843 = vadd.f32 %v387, %v587
        %v844 = vadd.f32 %v380, %v588
        %v845 = vadd.f32 %v381, %v589
        %v846 = vadd.f32 %v382, %v590
        %v847 = vadd.f32 %v383, %v591
        %v848 = vadd.f32 %v384, %v592
        %v849 = vadd.f32 %v385, %v593
        %v850 = vadd.f32 %v386, %v594
        %v851 = vadd.f32 %v387, %v595
        %v852 = vadd.f32 %v380, %v596
        %v853 = vadd.f32 %v381, %v597
        %v854 = vadd.f32 %v382, %v598
        %v855 = vadd.f32 %v383, %v599
        %v856 = vadd.f32 %v384, %v600
        %v857 = vadd.f32 %v385, %v601
        %v858 = vadd.f32 %v386, %v602
        %v859 = vadd.f32 %v387, %v603
        %v860 = vadd.f32 %v380, %v604
        %v861 = vadd.f32 %v381, %v605
        %v862 = vadd.f32 %v382, %v606
        %v863 = vadd.f32 %v383, %v607
        %v864 = vadd.f32 %v384, %v608
        %v865 = vadd.f32 %v385, %v609
        %v866 = vadd.f32 %v386, %v610
        %v867 = vadd.f32 %v387, %v611
        %v868 = vadd.f32 %v380, %v612
        %v869 = vadd.f32 %v381, %v613
        %v870 = vadd.f32 %v382, %v614
        %v871 = vadd.f32 %v383, %v615
        %v872 = vadd.f32 %v384, %v616
        %v873 = vadd.f32 %v385, %v617
        %v874 = vadd.f32 %v386, %v618
        %v875 = vadd.f32 %v387, %v619
        %v876 = vadd.f32 %v380, %v620
        %v877 = vadd.f32 %v381, %v621
        %v878 = vadd.f32 %v382, %v622
        %v879 = vadd.f32 %v383, %v623
        %v880 = vadd.f32 %v384, %v624
        %v881 = vadd.f32 %v385, %v625
        %v882 = vadd.f32 %v386, %v626
        %v883 = vadd.f32 %v387, %v627
        %v884 = vadd.f32 %v380, %v628
        %v885 = vadd.f32 %v381, %v629
        %v886 = vadd.f32 %v382, %v630
        %v887 = vadd.f32 %v383, %v631
        %v888 = vadd.f32 %v384, %v632
        %v889 = vadd.f32 %v385, %v633
        %v890 = vadd.f32 %v386, %v634
        %v891 = vadd.f32 %v387, %v635
        %v892 = vadd.f32 %v380, %v636
        %v893 = vadd.f32 %v381, %v637
        %v894 = vadd.f32 %v382, %v638
        %v895 = vadd.f32 %v383, %v639
        %v896 = vadd.f32 %v384, %v640
        %v897 = vadd.f32 %v385, %v641
        %v898 = vadd.f32 %v386, %v642
        %v899 = vadd.f32 %v387, %v643
        %v900 = vmul.f32 %v644, 2.0
        %v901 = vmul.f32 %v645, 2.0
        %v902 = vmul.f32 %v646, 2.0
        %v903 = vmul.f32 %v647, 2.0
        %v904 = vmul.f32 %v648, 2.0
        %v905 = vmul.f32 %v649, 2.0
        %v906 = vmul.f32 %v650, 2.0
        %v907 = vmul.f32 %v651, 2.0
        %v908 = vmul.f32 %v652, 2.0
        %v909 = vmul.f32 %v653, 2.0
        %v910 = vmul.f32 %v654, 2.0
        %v911 = vmul.f32 %v655, 2.0
        %v912 = vmul.f32 %v656, 2.0
        %v913 = vmul.f32 %v657, 2.0
        %v914 = vmul.f32 %v658, 2.0
        %v915 = vmul.f32 %v659, 2.0
        %v916 = vmul.f32 %v660, 2.0
        %v917 = vmul.f32 %v661, 2.0
        %v918 = vmul.f32 %v662, 2.0
        %v919 = vmul.f32 %v663, 2.0
        %v920 = vmul.f32 %v664, 2.0
        %v921 = vmul.f32 %v665, 2.0
        %v922 = vmul.f32 %v666, 2.0
        %v923 = vmul.f32 %v667, 2.0
        %v924 = vmul.f32 %v668, 2.0
        %v925 = vmul.f32 %v669, 2.0
        %v926 = vmul.f32 %v670, 2.0
        %v927 = vmul.f32 %v671, 2.0
        %v928 = vmul.f32 %v672, 2.0
        %v929 = vmul.f32 %v673, 2.0
        %v930 = vmul.f32 %v674, 2.0
        %v931 = vmul.f32 %v675, 2.0
        %v932 = vmul.f32 %v676, 2.0
        %v933 = vmul.f32 %v677, 2.0
        %v934 = vmul.f32 %v678, 2.0
        %v935 = vmul.f32 %v679, 2.0
        %v936 = vmul.f32 %v680, 2.0
        %v937 = vmul.f32 %v681, 2.0
        %v938 = vmul.f32 %v682, 2.0
        %v939 = vmul.f32 %v683, 2.0
        %v940 = vmul.f32 %v684, 2.0
        %v941 = vmul.f32 %v685, 2.0
        %v942 = vmul.f32 %v686, 2.0
        %v943 = vmul.f32 %v687, 2.0
        %v944 = vmul.f32 %v688, 2.0
        %v945 = vmul.f32 %v689, 2.0
        %v946 = vmul.f32 %v690, 2.0
        %v947 = vmul.f32 %v691, 2.0
        %v948 = vmul.f32 %v692, 2.0
        %v949 = vmul.f32 %v693, 2.0
        %v950 = vmul.f32 %v694, 2.0
        %v951 = vmul.f32 %v695, 2.0
        %v952 = vmul.f32 %v696, 2.0
        %v953 = vmul.f32 %v697, 2.0
        %v954 = vmul.f32 %v698, 2.0
        %v955 = vmul.f32 %v699, 2.0
        %v956 = vmul.f32 %v700, 2.0
        %v957 = vmul.f32 %v701, 2.0
        %v958 = vmul.f32 %v702, 2.0
        %v959 = vmul.f32 %v703, 2.0
        %v960 = vmul.f32 %v704, 2.0
        %v961 = vmul.f32 %v705, 2.0
        %v962 = vmul.f32 %v706, 2.0
        %v963 = vmul.f32 %v707, 2.0
        %v964 = vmul.f32 %v708, 2.0
        %v965 = vmul.f32 %v709, 2.0
        %v966 = vmul.f32 %v710, 2.0
        %v967 = vmul.f32 %v711, 2.0
        %v968 = vmul.f32 %v712, 2.0
        %v969 = vmul.f32 %v713, 2.0
        %v970 = vmul.f32 %v714, 2.0
        %v971 = vmul.f32 %v715, 2.0
        %v972 = vmul.f32 %v716, 2.0
        %v973 = vmul.f32 %v717, 2.0
        %v974 = vmul.f32 %v718, 2.0
        %v975 = vmul.f32 %v719, 2.0
        %v976 = vmul.f32 %v720, 2.0
        %v977 = vmul.f32 %v721, 2.0
        %v978 = vmul.f32 %v722, 2.0
        %v979 = vmul.f32 %v723, 2.0
        %v980 = vmul.f32 %v724, 2.0
        %v981 = vmul.f32 %v725, 2.0
        %v982 = vmul.f32 %v726, 2.0
        %v983 = vmul.f32 %v727, 2.0
        %v984 = vmul.f32 %v728, 2.0
        %v985 = vmul.f32 %v729, 2.0
        %v986 = vmul.f32 %v730, 2.0
        %v987 = vmul.f32 %v731, 2.0
        %v988 = vmul.f32 %v732, 2.0
        %v989 = vmul.f32 %v733, 2.0
        %v990 = vmul.f32 %v734, 2.0
        %v991 = vmul.f32 %v735, 2.0
        %v992 = vmul.f32 %v736, 2.0
        %v993 = vmul.f32 %v737, 2.0
        %v994 = vmul.f32 %v738, 2.0
        %v995 = vmul.f32 %v739, 2.0
        %v996 = vmul.f32 %v740, 2.0
        %v997 = vmul.f32 %v741, 2.0
        %v998 = vmul.f32 %v742, 2.0
        %v999 = vmul.f32 %v743, 2.0
        %v1000 = vmul.f32 %v744, 2.0
        %v1001 = vmul.f32 %v745, 2.0
        %v1002 = vmul.f32 %v746, 2.0
        %v1003 = vmul.f32 %v747, 2.0
        %v1004 = vmul.f32 %v748, 2.0
        %v1005 = vmul.f32 %v749, 2.0
        %v1006 = vmul.f32 %v750, 2.0
        %v1007 = vmul.f32 %v751, 2.0
        %v1008 = vmul.f32 %v752, 2.0
        %v1009 = vmul.f32 %v753, 2.0
        %v1010 = vmul.f32 %v754, 2.0
        %v1011 = vmul.f32 %v755, 2.0
        %v1012 = vmul.f32 %v756, 2.0
        %v1013 = vmul.f32 %v757, 2.0
        %v1014 = vmul.f32 %v758, 2.0
        %v1015 = vmul.f32 %v759, 2.0
        %v1016 = vmul.f32 %v760, 2.0
        %v1017 = vmul.f32 %v761, 2.0
        %v1018 = vmul.f32 %v762, 2.0
        %v1019 = vmul.f32 %v763, 2.0
        %v1020 = vmul.f32 %v764, 2.0
        %v1021 = vmul.f32 %v765, 2.0
        %v1022 = vmul.f32 %v766, 2.0
        %v1023 = vmul.f32 %v767, 2.0
        %v1024 = vmul.f32 %v768, 2.0
        %v1025 = vmul.f32 %v769, 2.0
        %v1026 = vmul.f32 %v770, 2.0
        %v1027 = vmul.f32 %v771, 2.0
        %v1028 = vmul.f32 %v772, 2.0
        %v1029 = vmul.f32 %v773, 2.0
        %v1030 = vmul.f32 %v774, 2.0
        %v1031 = vmul.f32 %v775, 2.0
        %v1032 = vmul.f32 %v776, 2.0
        %v1033 = vmul.f32 %v777, 2.0
        %v1034 = vmul.f32 %v778, 2.0
        %v1035 = vmul.f32 %v779, 2.0
        %v1036 = vmul.f32 %v780, 2.0
        %v1037 = vmul.f32 %v781, 2.0
        %v1038 = vmul.f32 %v782, 2.0
        %v1039 = vmul.f32 %v783, 2.0
        %v1040 = vmul.f32 %v784, 2.0
        %v1041 = vmul.f32 %v785, 2.0
        %v1042 = vmul.f32 %v786, 2.0
        %v1043 = vmul.f32 %v787, 2.0
        %v1044 = vmul.f32 %v788, 2.0
        %v1045 = vmul.f32 %v789, 2.0
        %v1046 = vmul.f32 %v790, 2.0
        %v1047 = vmul.f32 %v791, 2.0
        %v1048 = vmul.f32 %v792, 2.0
        %v1049 = vmul.f32 %v793, 2.0
        %v1050 = vmul.f32 %v794, 2.0
        %v1051 = vmul.f32 %v795, 2.0
        %v1052 = vmul.f32 %v796, 2.0
        %v1053 = vmul.f32 %v797, 2.0
        %v1054 = vmul.f32 %v798, 2.0
        %v1055 = vmul.f32 %v799, 2.0
        %v1056 = vmul.f32 %v800, 2.0
        %v1057 = vmul.f32 %v801, 2.0
        %v1058 = vmul.f32 %v802, 2.0
        %v1059 = vmul.f32 %v803, 2.0
        %v1060 = vmul.f32 %v804, 2.0
        %v1061 = vmul.f32 %v805, 2.0
        %v1062 = vmul.f32 %v806, 2.0
        %v1063 = vmul.f32 %v807, 2.0
        %v1064 = vmul.f32 %v808, 2.0
        %v1065 = vmul.f32 %v809, 2.0
        %v1066 = vmul.f32 %v810, 2.0
        %v1067 = vmul.f32 %v811, 2.0
        %v1068 = vmul.f32 %v812, 2.0
        %v1069 = vmul.f32 %v813, 2.0
        %v1070 = vmul.f32 %v814, 2.0
        %v1071 = vmul.f32 %v815, 2.0
        %v1072 = vmul.f32 %v816, 2.0
        %v1073 = vmul.f32 %v817, 2.0
        %v1074 = vmul.f32 %v818, 2.0
        %v1075 = vmul.f32 %v819, 2.0
        %v1076 = vmul.f32 %v820, 2.0
        %v1077 = vmul.f32 %v821, 2.0
        %v1078 = vmul.f32 %v822, 2.0
        %v1079 = vmul.f32 %v823, 2.0
        %v1080 = vmul.f32 %v824, 2.0
        %v1081 = vmul.f32 %v825, 2.0
        %v1082 = vmul.f32 %v826, 2.0
        %v1083 = vmul.f32 %v827, 2.0
        %v1084 = vmul.f32 %v828, 2.0
        %v1085 = vmul.f32 %v829, 2.0
        %v1086 = vmul.f32 %v830, 2.0
        %v1087 = vmul.f32 %v831, 2.0
        %v1088 = vmul.f32 %v832, 2.0
        %v1089 = vmul.f32 %v833, 2.0
        %v1090 = vmul.f32 %v834, 2.0
        %v1091 = vmul.f32 %v835, 2.0
        %v1092 = vmul.f32 %v836, 2.0
        %v1093 = vmul.f32 %v837, 2.0
        %v1094 = vmul.f32 %v838, 2.0
        %v1095 = vmul.f32 %v839, 2.0
        %v1096 = vmul.f32 %v840, 2.0
        %v1097 = vmul.f32 %v841, 2.0
        %v1098 = vmul.f32 %v842, 2.0
        %v1099 = vmul.f32 %v843, 2.0
        %v1100 = vmul.f32 %v844, 2.0
        %v1101 = vmul.f32 %v845, 2.0
        %v1102 = vmul.f32 %v846, 2.0
        %v1103 = vmul.f32 %v847, 2.0
        %v1104 = vmul.f32 %v848, 2.0
        %v1105 = vmul.f32 %v849, 2.0
        %v1106 = vmul.f32 %v850, 2.0
        %v1107 = vmul.f32 %v851, 2.0
        %v1108 = vmul.f32 %v852, 2.0
        %v1109 = vmul.f32 %v853, 2.0
        %v1110 = vmul.f32 %v854, 2.0
        %v1111 = vmul.f32 %v855, 2.0
        %v1112 = vmul.f32 %v856, 2.0
        %v1113 = vmul.f32 %v857, 2.0
        %v1114 = vmul.f32 %v858, 2.0
        %v1115 = vmul.f32 %v859, 2.0
        %v1116 = vmul.f32 %v860, 2.0
        %v1117 = vmul.f32 %v861, 2.0
        %v1118 = vmul.f32 %v862, 2.0
        %v1119 = vmul.f32 %v863, 2.0
        %v1120 = vmul.f32 %v864, 2.0
        %v1121 = vmul.f32 %v865, 2.0
        %v1122 = vmul.f32 %v866, 2.0
        %v1123 = vmul.f32 %v867, 2.0
        %v1124 = vmul.f32 %v868, 2.0
        %v1125 = vmul.f32 %v869, 2.0
        %v1126 = vmul.f32 %v870, 2.0
        %v1127 = vmul.f32 %v871, 2.0
        %v1128 = vmul.f32 %v872, 2.0
        %v1129 = vmul.f32 %v873, 2.0
        %v1130 = vmul.f32 %v874, 2.0
        %v1131 = vmul.f32 %v875, 2.0
        %v1132 = vmul.f32 %v876, 2.0
        %v1133 = vmul.f32 %v877, 2.0
        %v1134 = vmul.f32 %v878, 2.0
        %v1135 = vmul.f32 %v879, 2.0
        %v1136 = vmul.f32 %v880, 2.0
        %v1137 = vmul.f32 %v881, 2.0
        %v1138 = vmul.f32 %v882, 2.0
        %v1139 = vmul.f32 %v883, 2.0
        %v1140 = vmul.f32 %v884, 2.0
        %v1141 = vmul.f32 %v885, 2.0
        %v1142 = vmul.f32 %v886, 2.0
        %v1143 = vmul.f32 %v887, 2.0
        %v1144 = vmul.f32 %v888, 2.0
        %v1145 = vmul.f32 %v889, 2.0
        %v1146 = vmul.f32 %v890, 2.0
        %v1147 = vmul.f32 %v891, 2.0
        %v1148 = vmul.f32 %v892, 2.0
        %v1149 = vmul.f32 %v893, 2.0
        %v1150 = vmul.f32 %v894, 2.0
        %v1151 = vmul.f32 %v895, 2.0
        %v1152 = vmul.f32 %v896, 2.0
        %v1153 = vmul.f32 %v897, 2.0
        %v1154 = vmul.f32 %v898, 2.0
        %v1155 = vmul.f32 %v899, 2.0
        %v1156 = vrot.slane %v900, 4
        %v1157 = vmax.f32 %v900, %v1156
        %v1158 = vrot.slane %v1157, 2
        %v1159 = vmax.f32 %v1157, %v1158
        %v1160 = vrot.slane %v1159, 1
        %v1161 = vmax.f32 %v1159, %v1160
        %v1162 = vrot.slane %v901, 4
        %v1163 = vmax.f32 %v901, %v1162
        %v1164 = vrot.slane %v1163, 2
        %v1165 = vmax.f32 %v1163, %v1164
        %v1166 = vrot.slane %v1165, 1
        %v1167 = vmax.f32 %v1165, %v1166
        %v1168 = vrot.slane %v902, 4
        %v1169 = vmax.f32 %v902, %v1168
        %v1170 = vrot.slane %v1169, 2
        %v1171 = vmax.f32 %v1169, %v1170
        %v1172 = vrot.slane %v1171, 1
        %v1173 = vmax.f32 %v1171, %v1172
        %v1174 = vrot.slane %v903, 4
        %v1175 = vmax.f32 %v903, %v1174
        %v1176 = vrot.slane %v1175, 2
        %v1177 = vmax.f32 %v1175, %v1176
        %v1178 = vrot.slane %v1177, 1
        %v1179 = vmax.f32 %v1177, %v1178
        %v1180 = vrot.slane %v904, 4
        %v1181 = vmax.f32 %v904, %v1180
        %v1182 = vrot.slane %v1181, 2
        %v1183 = vmax.f32 %v1181, %v1182
        %v1184 = vrot.slane %v1183, 1
        %v1185 = vmax.f32 %v1183, %v1184
        %v1186 = vrot.slane %v905, 4
        %v1187 = vmax.f32 %v905, %v1186
        %v1188 = vrot.slane %v1187, 2
        %v1189 = vmax.f32 %v1187, %v1188
        %v1190 = vrot.slane %v1189, 1
        %v1191 = vmax.f32 %v1189, %v1190
        %v1192 = vrot.slane %v906, 4
        %v1193 = vmax.f32 %v906, %v1192
        %v1194 = vrot.slane %v1193, 2
        %v1195 = vmax.f32 %v1193, %v1194
        %v1196 = vrot.slane %v1195, 1
        %v1197 = vmax.f32 %v1195, %v1196
        %v1198 = vrot.slane %v907, 4
        %v1199 = vmax.f32 %v907, %v1198
        %v1200 = vrot.slane %v1199, 2
        %v1201 = vmax.f32 %v1199, %v1200
        %v1202 = vrot.slane %v1201, 1
        %v1203 = vmax.f32 %v1201, %v1202
        %v1204 = vrot.slane %v908, 4
        %v1205 = vmax.f32 %v908, %v1204
        %v1206 = vrot.slane %v1205, 2
        %v1207 = vmax.f32 %v1205, %v1206
        %v1208 = vrot.slane %v1207, 1
        %v1209 = vmax.f32 %v1207, %v1208
        %v1210 = vrot.slane %v909, 4
        %v1211 = vmax.f32 %v909, %v1210
        %v1212 = vrot.slane %v1211, 2
        %v1213 = vmax.f32 %v1211, %v1212
        %v1214 = vrot.slane %v1213, 1
        %v1215 = vmax.f32 %v1213, %v1214
        %v1216 = vrot.slane %v910, 4
        %v1217 = vmax.f32 %v910, %v1216
        %v1218 = vrot.slane %v1217, 2
        %v1219 = vmax.f32 %v1217, %v1218
        %v1220 = vrot.slane %v1219, 1
        %v1221 = vmax.f32 %v1219, %v1220
        %v1222 = vrot.slane %v911, 4
        %v1223 = vmax.f32 %v911, %v1222
        %v1224 = vrot.slane %v1223, 2
        %v1225 = vmax.f32 %v1223, %v1224
        %v1226 = vrot.slane %v1225, 1
        %v1227 = vmax.f32 %v1225, %v1226
        %v1228 = vrot.slane %v912, 4
        %v1229 = vmax.f32 %v912, %v1228
        %v1230 = vrot.slane %v1229, 2
        %v1231 = vmax.f32 %v1229, %v1230
        %v1232 = vrot.slane %v1231, 1
        %v1233 = vmax.f32 %v1231, %v1232
        %v1234 = vrot.slane %v913, 4
        %v1235 = vmax.f32 %v913, %v1234
        %v1236 = vrot.slane %v1235, 2
        %v1237 = vmax.f32 %v1235, %v1236
        %v1238 = vrot.slane %v1237, 1
        %v1239 = vmax.f32 %v1237, %v1238
        %v1240 = vrot.slane %v914, 4
        %v1241 = vmax.f32 %v914, %v1240
        %v1242 = vrot.slane %v1241, 2
        %v1243 = vmax.f32 %v1241, %v1242
        %v1244 = vrot.slane %v1243, 1
        %v1245 = vmax.f32 %v1243, %v1244
        %v1246 = vrot.slane %v915, 4
        %v1247 = vmax.f32 %v915, %v1246
        %v1248 = vrot.slane %v1247, 2
        %v1249 = vmax.f32 %v1247, %v1248
        %v1250 = vrot.slane %v1249, 1
        %v1251 = vmax.f32 %v1249, %v1250
        %v1252 = vrot.slane %v916, 4
        %v1253 = vmax.f32 %v916, %v1252
        %v1254 = vrot.slane %v1253, 2
        %v1255 = vmax.f32 %v1253, %v1254
        %v1256 = vrot.slane %v1255, 1
        %v1257 = vmax.f32 %v1255, %v1256
        %v1258 = vrot.slane %v917, 4
        %v1259 = vmax.f32 %v917, %v1258
        %v1260 = vrot.slane %v1259, 2
        %v1261 = vmax.f32 %v1259, %v1260
        %v1262 = vrot.slane %v1261, 1
        %v1263 = vmax.f32 %v1261, %v1262
        %v1264 = vrot.slane %v918, 4
        %v1265 = vmax.f32 %v918, %v1264
        %v1266 = vrot.slane %v1265, 2
        %v1267 = vmax.f32 %v1265, %v1266
        %v1268 = vrot.slane %v1267, 1
        %v1269 = vmax.f32 %v1267, %v1268
        %v1270 = vrot.slane %v919, 4
        %v1271 = vmax.f32 %v919, %v1270
        %v1272 = vrot.slane %v1271, 2
        %v1273 = vmax.f32 %v1271, %v1272
        %v1274 = vrot.slane %v1273, 1
        %v1275 = vmax.f32 %v1273, %v1274
        %v1276 = vrot.slane %v920, 4
        %v1277 = vmax.f32 %v920, %v1276
        %v1278 = vrot.slane %v1277, 2
        %v1279 = vmax.f32 %v1277, %v1278
        %v1280 = vrot.slane %v1279, 1
        %v1281 = vmax.f32 %v1279, %v1280
        %v1282 = vrot.slane %v921, 4
        %v1283 = vmax.f32 %v921, %v1282
        %v1284 = vrot.slane %v1283, 2
        %v1285 = vmax.f32 %v1283, %v1284
        %v1286 = vrot.slane %v1285, 1
        %v1287 = vmax.f32 %v1285, %v1286
        %v1288 = vrot.slane %v922, 4
        %v1289 = vmax.f32 %v922, %v1288
        %v1290 = vrot.slane %v1289, 2
        %v1291 = vmax.f32 %v1289, %v1290
        %v1292 = vrot.slane %v1291, 1
        %v1293 = vmax.f32 %v1291, %v1292
        %v1294 = vrot.slane %v923, 4
        %v1295 = vmax.f32 %v923, %v1294
        %v1296 = vrot.slane %v1295, 2
        %v1297 = vmax.f32 %v1295, %v1296
        %v1298 = vrot.slane %v1297, 1
        %v1299 = vmax.f32 %v1297, %v1298
        %v1300 = vrot.slane %v924, 4
        %v1301 = vmax.f32 %v924, %v1300
        %v1302 = vrot.slane %v1301, 2
        %v1303 = vmax.f32 %v1301, %v1302
        %v1304 = vrot.slane %v1303, 1
        %v1305 = vmax.f32 %v1303, %v1304
        %v1306 = vrot.slane %v925, 4
        %v1307 = vmax.f32 %v925, %v1306
        %v1308 = vrot.slane %v1307, 2
        %v1309 = vmax.f32 %v1307, %v1308
        %v1310 = vrot.slane %v1309, 1
        %v1311 = vmax.f32 %v1309, %v1310
        %v1312 = vrot.slane %v926, 4
        %v1313 = vmax.f32 %v926, %v1312
        %v1314 = vrot.slane %v1313, 2
        %v1315 = vmax.f32 %v1313, %v1314
        %v1316 = vrot.slane %v1315, 1
        %v1317 = vmax.f32 %v1315, %v1316
        %v1318 = vrot.slane %v927, 4
        %v1319 = vmax.f32 %v927, %v1318
        %v1320 = vrot.slane %v1319, 2
        %v1321 = vmax.f32 %v1319, %v1320
        %v1322 = vrot.slane %v1321, 1
        %v1323 = vmax.f32 %v1321, %v1322
        %v1324 = vrot.slane %v928, 4
        %v1325 = vmax.f32 %v928, %v1324
        %v1326 = vrot.slane %v1325, 2
        %v1327 = vmax.f32 %v1325, %v1326
        %v1328 = vrot.slane %v1327, 1
        %v1329 = vmax.f32 %v1327, %v1328
        %v1330 = vrot.slane %v929, 4
        %v1331 = vmax.f32 %v929, %v1330
        %v1332 = vrot.slane %v1331, 2
        %v1333 = vmax.f32 %v1331, %v1332
        %v1334 = vrot.slane %v1333, 1
        %v1335 = vmax.f32 %v1333, %v1334
        %v1336 = vrot.slane %v930, 4
        %v1337 = vmax.f32 %v930, %v1336
        %v1338 = vrot.slane %v1337, 2
        %v1339 = vmax.f32 %v1337, %v1338
        %v1340 = vrot.slane %v1339, 1
        %v1341 = vmax.f32 %v1339, %v1340
        %v1342 = vrot.slane %v931, 4
        %v1343 = vmax.f32 %v931, %v1342
        %v1344 = vrot.slane %v1343, 2
        %v1345 = vmax.f32 %v1343, %v1344
        %v1346 = vrot.slane %v1345, 1
        %v1347 = vmax.f32 %v1345, %v1346
        %v1348 = vrot.slane %v932, 4
        %v1349 = vmax.f32 %v932, %v1348
        %v1350 = vrot.slane %v1349, 2
        %v1351 = vmax.f32 %v1349, %v1350
        %v1352 = vrot.slane %v1351, 1
        %v1353 = vmax.f32 %v1351, %v1352
        %v1354 = vrot.slane %v933, 4
        %v1355 = vmax.f32 %v933, %v1354
        %v1356 = vrot.slane %v1355, 2
        %v1357 = vmax.f32 %v1355, %v1356
        %v1358 = vrot.slane %v1357, 1
        %v1359 = vmax.f32 %v1357, %v1358
        %v1360 = vrot.slane %v934, 4
        %v1361 = vmax.f32 %v934, %v1360
        %v1362 = vrot.slane %v1361, 2
        %v1363 = vmax.f32 %v1361, %v1362
        %v1364 = vrot.slane %v1363, 1
        %v1365 = vmax.f32 %v1363, %v1364
        %v1366 = vrot.slane %v935, 4
        %v1367 = vmax.f32 %v935, %v1366
        %v1368 = vrot.slane %v1367, 2
        %v1369 = vmax.f32 %v1367, %v1368
        %v1370 = vrot.slane %v1369, 1
        %v1371 = vmax.f32 %v1369, %v1370
        %v1372 = vrot.slane %v936, 4
        %v1373 = vmax.f32 %v936, %v1372
        %v1374 = vrot.slane %v1373, 2
        %v1375 = vmax.f32 %v1373, %v1374
        %v1376 = vrot.slane %v1375, 1
        %v1377 = vmax.f32 %v1375, %v1376
        %v1378 = vrot.slane %v937, 4
        %v1379 = vmax.f32 %v937, %v1378
        %v1380 = vrot.slane %v1379, 2
        %v1381 = vmax.f32 %v1379, %v1380
        %v1382 = vrot.slane %v1381, 1
        %v1383 = vmax.f32 %v1381, %v1382
        %v1384 = vrot.slane %v938, 4
        %v1385 = vmax.f32 %v938, %v1384
        %v1386 = vrot.slane %v1385, 2
        %v1387 = vmax.f32 %v1385, %v1386
        %v1388 = vrot.slane %v1387, 1
        %v1389 = vmax.f32 %v1387, %v1388
        %v1390 = vrot.slane %v939, 4
        %v1391 = vmax.f32 %v939, %v1390
        %v1392 = vrot.slane %v1391, 2
        %v1393 = vmax.f32 %v1391, %v1392
        %v1394 = vrot.slane %v1393, 1
        %v1395 = vmax.f32 %v1393, %v1394
        %v1396 = vrot.slane %v940, 4
        %v1397 = vmax.f32 %v940, %v1396
        %v1398 = vrot.slane %v1397, 2
        %v1399 = vmax.f32 %v1397, %v1398
        %v1400 = vrot.slane %v1399, 1
        %v1401 = vmax.f32 %v1399, %v1400
        %v1402 = vrot.slane %v941, 4
        %v1403 = vmax.f32 %v941, %v1402
        %v1404 = vrot.slane %v1403, 2
        %v1405 = vmax.f32 %v1403, %v1404
        %v1406 = vrot.slane %v1405, 1
        %v1407 = vmax.f32 %v1405, %v1406
        %v1408 = vrot.slane %v942, 4
        %v1409 = vmax.f32 %v942, %v1408
        %v1410 = vrot.slane %v1409, 2
        %v1411 = vmax.f32 %v1409, %v1410
        %v1412 = vrot.slane %v1411, 1
        %v1413 = vmax.f32 %v1411, %v1412
        %v1414 = vrot.slane %v943, 4
        %v1415 = vmax.f32 %v943, %v1414
        %v1416 = vrot.slane %v1415, 2
        %v1417 = vmax.f32 %v1415, %v1416
        %v1418 = vrot.slane %v1417, 1
        %v1419 = vmax.f32 %v1417, %v1418
        %v1420 = vrot.slane %v944, 4
        %v1421 = vmax.f32 %v944, %v1420
        %v1422 = vrot.slane %v1421, 2
        %v1423 = vmax.f32 %v1421, %v1422
        %v1424 = vrot.slane %v1423, 1
        %v1425 = vmax.f32 %v1423, %v1424
        %v1426 = vrot.slane %v945, 4
        %v1427 = vmax.f32 %v945, %v1426
        %v1428 = vrot.slane %v1427, 2
        %v1429 = vmax.f32 %v1427, %v1428
        %v1430 = vrot.slane %v1429, 1
        %v1431 = vmax.f32 %v1429, %v1430
        %v1432 = vrot.slane %v946, 4
        %v1433 = vmax.f32 %v946, %v1432
        %v1434 = vrot.slane %v1433, 2
        %v1435 = vmax.f32 %v1433, %v1434
        %v1436 = vrot.slane %v1435, 1
        %v1437 = vmax.f32 %v1435, %v1436
        %v1438 = vrot.slane %v947, 4
        %v1439 = vmax.f32 %v947, %v1438
        %v1440 = vrot.slane %v1439, 2
        %v1441 = vmax.f32 %v1439, %v1440
        %v1442 = vrot.slane %v1441, 1
        %v1443 = vmax.f32 %v1441, %v1442
        %v1444 = vrot.slane %v948, 4
        %v1445 = vmax.f32 %v948, %v1444
        %v1446 = vrot.slane %v1445, 2
        %v1447 = vmax.f32 %v1445, %v1446
        %v1448 = vrot.slane %v1447, 1
        %v1449 = vmax.f32 %v1447, %v1448
        %v1450 = vrot.slane %v949, 4
        %v1451 = vmax.f32 %v949, %v1450
        %v1452 = vrot.slane %v1451, 2
        %v1453 = vmax.f32 %v1451, %v1452
        %v1454 = vrot.slane %v1453, 1
        %v1455 = vmax.f32 %v1453, %v1454
        %v1456 = vrot.slane %v950, 4
        %v1457 = vmax.f32 %v950, %v1456
        %v1458 = vrot.slane %v1457, 2
        %v1459 = vmax.f32 %v1457, %v1458
        %v1460 = vrot.slane %v1459, 1
        %v1461 = vmax.f32 %v1459, %v1460
        %v1462 = vrot.slane %v951, 4
        %v1463 = vmax.f32 %v951, %v1462
        %v1464 = vrot.slane %v1463, 2
        %v1465 = vmax.f32 %v1463, %v1464
        %v1466 = vrot.slane %v1465, 1
        %v1467 = vmax.f32 %v1465, %v1466
        %v1468 = vrot.slane %v952, 4
        %v1469 = vmax.f32 %v952, %v1468
        %v1470 = vrot.slane %v1469, 2
        %v1471 = vmax.f32 %v1469, %v1470
        %v1472 = vrot.slane %v1471, 1
        %v1473 = vmax.f32 %v1471, %v1472
        %v1474 = vrot.slane %v953, 4
        %v1475 = vmax.f32 %v953, %v1474
        %v1476 = vrot.slane %v1475, 2
        %v1477 = vmax.f32 %v1475, %v1476
        %v1478 = vrot.slane %v1477, 1
        %v1479 = vmax.f32 %v1477, %v1478
        %v1480 = vrot.slane %v954, 4
        %v1481 = vmax.f32 %v954, %v1480
        %v1482 = vrot.slane %v1481, 2
        %v1483 = vmax.f32 %v1481, %v1482
        %v1484 = vrot.slane %v1483, 1
        %v1485 = vmax.f32 %v1483, %v1484
        %v1486 = vrot.slane %v955, 4
        %v1487 = vmax.f32 %v955, %v1486
        %v1488 = vrot.slane %v1487, 2
        %v1489 = vmax.f32 %v1487, %v1488
        %v1490 = vrot.slane %v1489, 1
        %v1491 = vmax.f32 %v1489, %v1490
        %v1492 = vrot.slane %v956, 4
        %v1493 = vmax.f32 %v956, %v1492
        %v1494 = vrot.slane %v1493, 2
        %v1495 = vmax.f32 %v1493, %v1494
        %v1496 = vrot.slane %v1495, 1
        %v1497 = vmax.f32 %v1495, %v1496
        %v1498 = vrot.slane %v957, 4
        %v1499 = vmax.f32 %v957, %v1498
        %v1500 = vrot.slane %v1499, 2
        %v1501 = vmax.f32 %v1499, %v1500
        %v1502 = vrot.slane %v1501, 1
        %v1503 = vmax.f32 %v1501, %v1502
        %v1504 = vrot.slane %v958, 4
        %v1505 = vmax.f32 %v958, %v1504
        %v1506 = vrot.slane %v1505, 2
        %v1507 = vmax.f32 %v1505, %v1506
        %v1508 = vrot.slane %v1507, 1
        %v1509 = vmax.f32 %v1507, %v1508
        %v1510 = vrot.slane %v959, 4
        %v1511 = vmax.f32 %v959, %v1510
        %v1512 = vrot.slane %v1511, 2
        %v1513 = vmax.f32 %v1511, %v1512
        %v1514 = vrot.slane %v1513, 1
        %v1515 = vmax.f32 %v1513, %v1514
        %v1516 = vrot.slane %v960, 4
        %v1517 = vmax.f32 %v960, %v1516
        %v1518 = vrot.slane %v1517, 2
        %v1519 = vmax.f32 %v1517, %v1518
        %v1520 = vrot.slane %v1519, 1
        %v1521 = vmax.f32 %v1519, %v1520
        %v1522 = vrot.slane %v961, 4
        %v1523 = vmax.f32 %v961, %v1522
        %v1524 = vrot.slane %v1523, 2
        %v1525 = vmax.f32 %v1523, %v1524
        %v1526 = vrot.slane %v1525, 1
        %v1527 = vmax.f32 %v1525, %v1526
        %v1528 = vrot.slane %v962, 4
        %v1529 = vmax.f32 %v962, %v1528
        %v1530 = vrot.slane %v1529, 2
        %v1531 = vmax.f32 %v1529, %v1530
        %v1532 = vrot.slane %v1531, 1
        %v1533 = vmax.f32 %v1531, %v1532
        %v1534 = vrot.slane %v963, 4
        %v1535 = vmax.f32 %v963, %v1534
        %v1536 = vrot.slane %v1535, 2
        %v1537 = vmax.f32 %v1535, %v1536
        %v1538 = vrot.slane %v1537, 1
        %v1539 = vmax.f32 %v1537, %v1538
        %v1540 = vrot.slane %v964, 4
        %v1541 = vmax.f32 %v964, %v1540
        %v1542 = vrot.slane %v1541, 2
        %v1543 = vmax.f32 %v1541, %v1542
        %v1544 = vrot.slane %v1543, 1
        %v1545 = vmax.f32 %v1543, %v1544
        %v1546 = vrot.slane %v965, 4
        %v1547 = vmax.f32 %v965, %v1546
        %v1548 = vrot.slane %v1547, 2
        %v1549 = vmax.f32 %v1547, %v1548
        %v1550 = vrot.slane %v1549, 1
        %v1551 = vmax.f32 %v1549, %v1550
        %v1552 = vrot.slane %v966, 4
        %v1553 = vmax.f32 %v966, %v1552
        %v1554 = vrot.slane %v1553, 2
        %v1555 = vmax.f32 %v1553, %v1554
        %v1556 = vrot.slane %v1555, 1
        %v1557 = vmax.f32 %v1555, %v1556
        %v1558 = vrot.slane %v967, 4
        %v1559 = vmax.f32 %v967, %v1558
        %v1560 = vrot.slane %v1559, 2
        %v1561 = vmax.f32 %v1559, %v1560
        %v1562 = vrot.slane %v1561, 1
        %v1563 = vmax.f32 %v1561, %v1562
        %v1564 = vrot.slane %v968, 4
        %v1565 = vmax.f32 %v968, %v1564
        %v1566 = vrot.slane %v1565, 2
        %v1567 = vmax.f32 %v1565, %v1566
        %v1568 = vrot.slane %v1567, 1
        %v1569 = vmax.f32 %v1567, %v1568
        %v1570 = vrot.slane %v969, 4
        %v1571 = vmax.f32 %v969, %v1570
        %v1572 = vrot.slane %v1571, 2
        %v1573 = vmax.f32 %v1571, %v1572
        %v1574 = vrot.slane %v1573, 1
        %v1575 = vmax.f32 %v1573, %v1574
        %v1576 = vrot.slane %v970, 4
        %v1577 = vmax.f32 %v970, %v1576
        %v1578 = vrot.slane %v1577, 2
        %v1579 = vmax.f32 %v1577, %v1578
        %v1580 = vrot.slane %v1579, 1
        %v1581 = vmax.f32 %v1579, %v1580
        %v1582 = vrot.slane %v971, 4
        %v1583 = vmax.f32 %v971, %v1582
        %v1584 = vrot.slane %v1583, 2
        %v1585 = vmax.f32 %v1583, %v1584
        %v1586 = vrot.slane %v1585, 1
        %v1587 = vmax.f32 %v1585, %v1586
        %v1588 = vrot.slane %v972, 4
        %v1589 = vmax.f32 %v972, %v1588
        %v1590 = vrot.slane %v1589, 2
        %v1591 = vmax.f32 %v1589, %v1590
        %v1592 = vrot.slane %v1591, 1
        %v1593 = vmax.f32 %v1591, %v1592
        %v1594 = vrot.slane %v973, 4
        %v1595 = vmax.f32 %v973, %v1594
        %v1596 = vrot.slane %v1595, 2
        %v1597 = vmax.f32 %v1595, %v1596
        %v1598 = vrot.slane %v1597, 1
        %v1599 = vmax.f32 %v1597, %v1598
        %v1600 = vrot.slane %v974, 4
        %v1601 = vmax.f32 %v974, %v1600
        %v1602 = vrot.slane %v1601, 2
        %v1603 = vmax.f32 %v1601, %v1602
        %v1604 = vrot.slane %v1603, 1
        %v1605 = vmax.f32 %v1603, %v1604
        %v1606 = vrot.slane %v975, 4
        %v1607 = vmax.f32 %v975, %v1606
        %v1608 = vrot.slane %v1607, 2
        %v1609 = vmax.f32 %v1607, %v1608
        %v1610 = vrot.slane %v1609, 1
        %v1611 = vmax.f32 %v1609, %v1610
        %v1612 = vrot.slane %v976, 4
        %v1613 = vmax.f32 %v976, %v1612
        %v1614 = vrot.slane %v1613, 2
        %v1615 = vmax.f32 %v1613, %v1614
        %v1616 = vrot.slane %v1615, 1
        %v1617 = vmax.f32 %v1615, %v1616
        %v1618 = vrot.slane %v977, 4
        %v1619 = vmax.f32 %v977, %v1618
        %v1620 = vrot.slane %v1619, 2
        %v1621 = vmax.f32 %v1619, %v1620
        %v1622 = vrot.slane %v1621, 1
        %v1623 = vmax.f32 %v1621, %v1622
        %v1624 = vrot.slane %v978, 4
        %v1625 = vmax.f32 %v978, %v1624
        %v1626 = vrot.slane %v1625, 2
        %v1627 = vmax.f32 %v1625, %v1626
        %v1628 = vrot.slane %v1627, 1
        %v1629 = vmax.f32 %v1627, %v1628
        %v1630 = vrot.slane %v979, 4
        %v1631 = vmax.f32 %v979, %v1630
        %v1632 = vrot.slane %v1631, 2
        %v1633 = vmax.f32 %v1631, %v1632
        %v1634 = vrot.slane %v1633, 1
        %v1635 = vmax.f32 %v1633, %v1634
        %v1636 = vrot.slane %v980, 4
        %v1637 = vmax.f32 %v980, %v1636
        %v1638 = vrot.slane %v1637, 2
        %v1639 = vmax.f32 %v1637, %v1638
        %v1640 = vrot.slane %v1639, 1
        %v1641 = vmax.f32 %v1639, %v1640
        %v1642 = vrot.slane %v981, 4
        %v1643 = vmax.f32 %v981, %v1642
        %v1644 = vrot.slane %v1643, 2
        %v1645 = vmax.f32 %v1643, %v1644
        %v1646 = vrot.slane %v1645, 1
        %v1647 = vmax.f32 %v1645, %v1646
        %v1648 = vrot.slane %v982, 4
        %v1649 = vmax.f32 %v982, %v1648
        %v1650 = vrot.slane %v1649, 2
        %v1651 = vmax.f32 %v1649, %v1650
        %v1652 = vrot.slane %v1651, 1
        %v1653 = vmax.f32 %v1651, %v1652
        %v1654 = vrot.slane %v983, 4
        %v1655 = vmax.f32 %v983, %v1654
        %v1656 = vrot.slane %v1655, 2
        %v1657 = vmax.f32 %v1655, %v1656
        %v1658 = vrot.slane %v1657, 1
        %v1659 = vmax.f32 %v1657, %v1658
        %v1660 = vrot.slane %v984, 4
        %v1661 = vmax.f32 %v984, %v1660
        %v1662 = vrot.slane %v1661, 2
        %v1663 = vmax.f32 %v1661, %v1662
        %v1664 = vrot.slane %v1663, 1
        %v1665 = vmax.f32 %v1663, %v1664
        %v1666 = vrot.slane %v985, 4
        %v1667 = vmax.f32 %v985, %v1666
        %v1668 = vrot.slane %v1667, 2
        %v1669 = vmax.f32 %v1667, %v1668
        %v1670 = vrot.slane %v1669, 1
        %v1671 = vmax.f32 %v1669, %v1670
        %v1672 = vrot.slane %v986, 4
        %v1673 = vmax.f32 %v986, %v1672
        %v1674 = vrot.slane %v1673, 2
        %v1675 = vmax.f32 %v1673, %v1674
        %v1676 = vrot.slane %v1675, 1
        %v1677 = vmax.f32 %v1675, %v1676
        %v1678 = vrot.slane %v987, 4
        %v1679 = vmax.f32 %v987, %v1678
        %v1680 = vrot.slane %v1679, 2
        %v1681 = vmax.f32 %v1679, %v1680
        %v1682 = vrot.slane %v1681, 1
        %v1683 = vmax.f32 %v1681, %v1682
        %v1684 = vrot.slane %v988, 4
        %v1685 = vmax.f32 %v988, %v1684
        %v1686 = vrot.slane %v1685, 2
        %v1687 = vmax.f32 %v1685, %v1686
        %v1688 = vrot.slane %v1687, 1
        %v1689 = vmax.f32 %v1687, %v1688
        %v1690 = vrot.slane %v989, 4
        %v1691 = vmax.f32 %v989, %v1690
        %v1692 = vrot.slane %v1691, 2
        %v1693 = vmax.f32 %v1691, %v1692
        %v1694 = vrot.slane %v1693, 1
        %v1695 = vmax.f32 %v1693, %v1694
        %v1696 = vrot.slane %v990, 4
        %v1697 = vmax.f32 %v990, %v1696
        %v1698 = vrot.slane %v1697, 2
        %v1699 = vmax.f32 %v1697, %v1698
        %v1700 = vrot.slane %v1699, 1
        %v1701 = vmax.f32 %v1699, %v1700
        %v1702 = vrot.slane %v991, 4
        %v1703 = vmax.f32 %v991, %v1702
        %v1704 = vrot.slane %v1703, 2
        %v1705 = vmax.f32 %v1703, %v1704
        %v1706 = vrot.slane %v1705, 1
        %v1707 = vmax.f32 %v1705, %v1706
        %v1708 = vrot.slane %v992, 4
        %v1709 = vmax.f32 %v992, %v1708
        %v1710 = vrot.slane %v1709, 2
        %v1711 = vmax.f32 %v1709, %v1710
        %v1712 = vrot.slane %v1711, 1
        %v1713 = vmax.f32 %v1711, %v1712
        %v1714 = vrot.slane %v993, 4
        %v1715 = vmax.f32 %v993, %v1714
        %v1716 = vrot.slane %v1715, 2
        %v1717 = vmax.f32 %v1715, %v1716
        %v1718 = vrot.slane %v1717, 1
        %v1719 = vmax.f32 %v1717, %v1718
        %v1720 = vrot.slane %v994, 4
        %v1721 = vmax.f32 %v994, %v1720
        %v1722 = vrot.slane %v1721, 2
        %v1723 = vmax.f32 %v1721, %v1722
        %v1724 = vrot.slane %v1723, 1
        %v1725 = vmax.f32 %v1723, %v1724
        %v1726 = vrot.slane %v995, 4
        %v1727 = vmax.f32 %v995, %v1726
        %v1728 = vrot.slane %v1727, 2
        %v1729 = vmax.f32 %v1727, %v1728
        %v1730 = vrot.slane %v1729, 1
        %v1731 = vmax.f32 %v1729, %v1730
        %v1732 = vrot.slane %v996, 4
        %v1733 = vmax.f32 %v996, %v1732
        %v1734 = vrot.slane %v1733, 2
        %v1735 = vmax.f32 %v1733, %v1734
        %v1736 = vrot.slane %v1735, 1
        %v1737 = vmax.f32 %v1735, %v1736
        %v1738 = vrot.slane %v997, 4
        %v1739 = vmax.f32 %v997, %v1738
        %v1740 = vrot.slane %v1739, 2
        %v1741 = vmax.f32 %v1739, %v1740
        %v1742 = vrot.slane %v1741, 1
        %v1743 = vmax.f32 %v1741, %v1742
        %v1744 = vrot.slane %v998, 4
        %v1745 = vmax.f32 %v998, %v1744
        %v1746 = vrot.slane %v1745, 2
        %v1747 = vmax.f32 %v1745, %v1746
        %v1748 = vrot.slane %v1747, 1
        %v1749 = vmax.f32 %v1747, %v1748
        %v1750 = vrot.slane %v999, 4
        %v1751 = vmax.f32 %v999, %v1750
        %v1752 = vrot.slane %v1751, 2
        %v1753 = vmax.f32 %v1751, %v1752
        %v1754 = vrot.slane %v1753, 1
        %v1755 = vmax.f32 %v1753, %v1754
        %v1756 = vrot.slane %v1000, 4
        %v1757 = vmax.f32 %v1000, %v1756
        %v1758 = vrot.slane %v1757, 2
        %v1759 = vmax.f32 %v1757, %v1758
        %v1760 = vrot.slane %v1759, 1
        %v1761 = vmax.f32 %v1759, %v1760
        %v1762 = vrot.slane %v1001, 4
        %v1763 = vmax.f32 %v1001, %v1762
        %v1764 = vrot.slane %v1763, 2
        %v1765 = vmax.f32 %v1763, %v1764
        %v1766 = vrot.slane %v1765, 1
        %v1767 = vmax.f32 %v1765, %v1766
        %v1768 = vrot.slane %v1002, 4
        %v1769 = vmax.f32 %v1002, %v1768
        %v1770 = vrot.slane %v1769, 2
        %v1771 = vmax.f32 %v1769, %v1770
        %v1772 = vrot.slane %v1771, 1
        %v1773 = vmax.f32 %v1771, %v1772
        %v1774 = vrot.slane %v1003, 4
        %v1775 = vmax.f32 %v1003, %v1774
        %v1776 = vrot.slane %v1775, 2
        %v1777 = vmax.f32 %v1775, %v1776
        %v1778 = vrot.slane %v1777, 1
        %v1779 = vmax.f32 %v1777, %v1778
        %v1780 = vrot.slane %v1004, 4
        %v1781 = vmax.f32 %v1004, %v1780
        %v1782 = vrot.slane %v1781, 2
        %v1783 = vmax.f32 %v1781, %v1782
        %v1784 = vrot.slane %v1783, 1
        %v1785 = vmax.f32 %v1783, %v1784
        %v1786 = vrot.slane %v1005, 4
        %v1787 = vmax.f32 %v1005, %v1786
        %v1788 = vrot.slane %v1787, 2
        %v1789 = vmax.f32 %v1787, %v1788
        %v1790 = vrot.slane %v1789, 1
        %v1791 = vmax.f32 %v1789, %v1790
        %v1792 = vrot.slane %v1006, 4
        %v1793 = vmax.f32 %v1006, %v1792
        %v1794 = vrot.slane %v1793, 2
        %v1795 = vmax.f32 %v1793, %v1794
        %v1796 = vrot.slane %v1795, 1
        %v1797 = vmax.f32 %v1795, %v1796
        %v1798 = vrot.slane %v1007, 4
        %v1799 = vmax.f32 %v1007, %v1798
        %v1800 = vrot.slane %v1799, 2
        %v1801 = vmax.f32 %v1799, %v1800
        %v1802 = vrot.slane %v1801, 1
        %v1803 = vmax.f32 %v1801, %v1802
        %v1804 = vrot.slane %v1008, 4
        %v1805 = vmax.f32 %v1008, %v1804
        %v1806 = vrot.slane %v1805, 2
        %v1807 = vmax.f32 %v1805, %v1806
        %v1808 = vrot.slane %v1807, 1
        %v1809 = vmax.f32 %v1807, %v1808
        %v1810 = vrot.slane %v1009, 4
        %v1811 = vmax.f32 %v1009, %v1810
        %v1812 = vrot.slane %v1811, 2
        %v1813 = vmax.f32 %v1811, %v1812
        %v1814 = vrot.slane %v1813, 1
        %v1815 = vmax.f32 %v1813, %v1814
        %v1816 = vrot.slane %v1010, 4
        %v1817 = vmax.f32 %v1010, %v1816
        %v1818 = vrot.slane %v1817, 2
        %v1819 = vmax.f32 %v1817, %v1818
        %v1820 = vrot.slane %v1819, 1
        %v1821 = vmax.f32 %v1819, %v1820
        %v1822 = vrot.slane %v1011, 4
        %v1823 = vmax.f32 %v1011, %v1822
        %v1824 = vrot.slane %v1823, 2
        %v1825 = vmax.f32 %v1823, %v1824
        %v1826 = vrot.slane %v1825, 1
        %v1827 = vmax.f32 %v1825, %v1826
        %v1828 = vrot.slane %v1012, 4
        %v1829 = vmax.f32 %v1012, %v1828
        %v1830 = vrot.slane %v1829, 2
        %v1831 = vmax.f32 %v1829, %v1830
        %v1832 = vrot.slane %v1831, 1
        %v1833 = vmax.f32 %v1831, %v1832
        %v1834 = vrot.slane %v1013, 4
        %v1835 = vmax.f32 %v1013, %v1834
        %v1836 = vrot.slane %v1835, 2
        %v1837 = vmax.f32 %v1835, %v1836
        %v1838 = vrot.slane %v1837, 1
        %v1839 = vmax.f32 %v1837, %v1838
        %v1840 = vrot.slane %v1014, 4
        %v1841 = vmax.f32 %v1014, %v1840
        %v1842 = vrot.slane %v1841, 2
        %v1843 = vmax.f32 %v1841, %v1842
        %v1844 = vrot.slane %v1843, 1
        %v1845 = vmax.f32 %v1843, %v1844
        %v1846 = vrot.slane %v1015, 4
        %v1847 = vmax.f32 %v1015, %v1846
        %v1848 = vrot.slane %v1847, 2
        %v1849 = vmax.f32 %v1847, %v1848
        %v1850 = vrot.slane %v1849, 1
        %v1851 = vmax.f32 %v1849, %v1850
        %v1852 = vrot.slane %v1016, 4
        %v1853 = vmax.f32 %v1016, %v1852
        %v1854 = vrot.slane %v1853, 2
        %v1855 = vmax.f32 %v1853, %v1854
        %v1856 = vrot.slane %v1855, 1
        %v1857 = vmax.f32 %v1855, %v1856
        %v1858 = vrot.slane %v1017, 4
        %v1859 = vmax.f32 %v1017, %v1858
        %v1860 = vrot.slane %v1859, 2
        %v1861 = vmax.f32 %v1859, %v1860
        %v1862 = vrot.slane %v1861, 1
        %v1863 = vmax.f32 %v1861, %v1862
        %v1864 = vrot.slane %v1018, 4
        %v1865 = vmax.f32 %v1018, %v1864
        %v1866 = vrot.slane %v1865, 2
        %v1867 = vmax.f32 %v1865, %v1866
        %v1868 = vrot.slane %v1867, 1
        %v1869 = vmax.f32 %v1867, %v1868
        %v1870 = vrot.slane %v1019, 4
        %v1871 = vmax.f32 %v1019, %v1870
        %v1872 = vrot.slane %v1871, 2
        %v1873 = vmax.f32 %v1871, %v1872
        %v1874 = vrot.slane %v1873, 1
        %v1875 = vmax.f32 %v1873, %v1874
        %v1876 = vrot.slane %v1020, 4
        %v1877 = vmax.f32 %v1020, %v1876
        %v1878 = vrot.slane %v1877, 2
        %v1879 = vmax.f32 %v1877, %v1878
        %v1880 = vrot.slane %v1879, 1
        %v1881 = vmax.f32 %v1879, %v1880
        %v1882 = vrot.slane %v1021, 4
        %v1883 = vmax.f32 %v1021, %v1882
        %v1884 = vrot.slane %v1883, 2
        %v1885 = vmax.f32 %v1883, %v1884
        %v1886 = vrot.slane %v1885, 1
        %v1887 = vmax.f32 %v1885, %v1886
        %v1888 = vrot.slane %v1022, 4
        %v1889 = vmax.f32 %v1022, %v1888
        %v1890 = vrot.slane %v1889, 2
        %v1891 = vmax.f32 %v1889, %v1890
        %v1892 = vrot.slane %v1891, 1
        %v1893 = vmax.f32 %v1891, %v1892
        %v1894 = vrot.slane %v1023, 4
        %v1895 = vmax.f32 %v1023, %v1894
        %v1896 = vrot.slane %v1895, 2
        %v1897 = vmax.f32 %v1895, %v1896
        %v1898 = vrot.slane %v1897, 1
        %v1899 = vmax.f32 %v1897, %v1898
        %v1900 = vrot.slane %v1024, 4
        %v1901 = vmax.f32 %v1024, %v1900
        %v1902 = vrot.slane %v1901, 2
        %v1903 = vmax.f32 %v1901, %v1902
        %v1904 = vrot.slane %v1903, 1
        %v1905 = vmax.f32 %v1903, %v1904
        %v1906 = vrot.slane %v1025, 4
        %v1907 = vmax.f32 %v1025, %v1906
        %v1908 = vrot.slane %v1907, 2
        %v1909 = vmax.f32 %v1907, %v1908
        %v1910 = vrot.slane %v1909, 1
        %v1911 = vmax.f32 %v1909, %v1910
        %v1912 = vrot.slane %v1026, 4
        %v1913 = vmax.f32 %v1026, %v1912
        %v1914 = vrot.slane %v1913, 2
        %v1915 = vmax.f32 %v1913, %v1914
        %v1916 = vrot.slane %v1915, 1
        %v1917 = vmax.f32 %v1915, %v1916
        %v1918 = vrot.slane %v1027, 4
        %v1919 = vmax.f32 %v1027, %v1918
        %v1920 = vrot.slane %v1919, 2
        %v1921 = vmax.f32 %v1919, %v1920
        %v1922 = vrot.slane %v1921, 1
        %v1923 = vmax.f32 %v1921, %v1922
        %v1924 = vrot.slane %v1028, 4
        %v1925 = vmax.f32 %v1028, %v1924
        %v1926 = vrot.slane %v1925, 2
        %v1927 = vmax.f32 %v1925, %v1926
        %v1928 = vrot.slane %v1927, 1
        %v1929 = vmax.f32 %v1927, %v1928
        %v1930 = vrot.slane %v1029, 4
        %v1931 = vmax.f32 %v1029, %v1930
        %v1932 = vrot.slane %v1931, 2
        %v1933 = vmax.f32 %v1931, %v1932
        %v1934 = vrot.slane %v1933, 1
        %v1935 = vmax.f32 %v1933, %v1934
        %v1936 = vrot.slane %v1030, 4
        %v1937 = vmax.f32 %v1030, %v1936
        %v1938 = vrot.slane %v1937, 2
        %v1939 = vmax.f32 %v1937, %v1938
        %v1940 = vrot.slane %v1939, 1
        %v1941 = vmax.f32 %v1939, %v1940
        %v1942 = vrot.slane %v1031, 4
        %v1943 = vmax.f32 %v1031, %v1942
        %v1944 = vrot.slane %v1943, 2
        %v1945 = vmax.f32 %v1943, %v1944
        %v1946 = vrot.slane %v1945, 1
        %v1947 = vmax.f32 %v1945, %v1946
        %v1948 = vrot.slane %v1032, 4
        %v1949 = vmax.f32 %v1032, %v1948
        %v1950 = vrot.slane %v1949, 2
        %v1951 = vmax.f32 %v1949, %v1950
        %v1952 = vrot.slane %v1951, 1
        %v1953 = vmax.f32 %v1951, %v1952
        %v1954 = vrot.slane %v1033, 4
        %v1955 = vmax.f32 %v1033, %v1954
        %v1956 = vrot.slane %v1955, 2
        %v1957 = vmax.f32 %v1955, %v1956
        %v1958 = vrot.slane %v1957, 1
        %v1959 = vmax.f32 %v1957, %v1958
        %v1960 = vrot.slane %v1034, 4
        %v1961 = vmax.f32 %v1034, %v1960
        %v1962 = vrot.slane %v1961, 2
        %v1963 = vmax.f32 %v1961, %v1962
        %v1964 = vrot.slane %v1963, 1
        %v1965 = vmax.f32 %v1963, %v1964
        %v1966 = vrot.slane %v1035, 4
        %v1967 = vmax.f32 %v1035, %v1966
        %v1968 = vrot.slane %v1967, 2
        %v1969 = vmax.f32 %v1967, %v1968
        %v1970 = vrot.slane %v1969, 1
        %v1971 = vmax.f32 %v1969, %v1970
        %v1972 = vrot.slane %v1036, 4
        %v1973 = vmax.f32 %v1036, %v1972
        %v1974 = vrot.slane %v1973, 2
        %v1975 = vmax.f32 %v1973, %v1974
        %v1976 = vrot.slane %v1975, 1
        %v1977 = vmax.f32 %v1975, %v1976
        %v1978 = vrot.slane %v1037, 4
        %v1979 = vmax.f32 %v1037, %v1978
        %v1980 = vrot.slane %v1979, 2
        %v1981 = vmax.f32 %v1979, %v1980
        %v1982 = vrot.slane %v1981, 1
        %v1983 = vmax.f32 %v1981, %v1982
        %v1984 = vrot.slane %v1038, 4
        %v1985 = vmax.f32 %v1038, %v1984
        %v1986 = vrot.slane %v1985, 2
        %v1987 = vmax.f32 %v1985, %v1986
        %v1988 = vrot.slane %v1987, 1
        %v1989 = vmax.f32 %v1987, %v1988
        %v1990 = vrot.slane %v1039, 4
        %v1991 = vmax.f32 %v1039, %v1990
        %v1992 = vrot.slane %v1991, 2
        %v1993 = vmax.f32 %v1991, %v1992
        %v1994 = vrot.slane %v1993, 1
        %v1995 = vmax.f32 %v1993, %v1994
        %v1996 = vrot.slane %v1040, 4
        %v1997 = vmax.f32 %v1040, %v1996
        %v1998 = vrot.slane %v1997, 2
        %v1999 = vmax.f32 %v1997, %v1998
        %v2000 = vrot.slane %v1999, 1
        %v2001 = vmax.f32 %v1999, %v2000
        %v2002 = vrot.slane %v1041, 4
        %v2003 = vmax.f32 %v1041, %v2002
        %v2004 = vrot.slane %v2003, 2
        %v2005 = vmax.f32 %v2003, %v2004
        %v2006 = vrot.slane %v2005, 1
        %v2007 = vmax.f32 %v2005, %v2006
        %v2008 = vrot.slane %v1042, 4
        %v2009 = vmax.f32 %v1042, %v2008
        %v2010 = vrot.slane %v2009, 2
        %v2011 = vmax.f32 %v2009, %v2010
        %v2012 = vrot.slane %v2011, 1
        %v2013 = vmax.f32 %v2011, %v2012
        %v2014 = vrot.slane %v1043, 4
        %v2015 = vmax.f32 %v1043, %v2014
        %v2016 = vrot.slane %v2015, 2
        %v2017 = vmax.f32 %v2015, %v2016
        %v2018 = vrot.slane %v2017, 1
        %v2019 = vmax.f32 %v2017, %v2018
        %v2020 = vrot.slane %v1044, 4
        %v2021 = vmax.f32 %v1044, %v2020
        %v2022 = vrot.slane %v2021, 2
        %v2023 = vmax.f32 %v2021, %v2022
        %v2024 = vrot.slane %v2023, 1
        %v2025 = vmax.f32 %v2023, %v2024
        %v2026 = vrot.slane %v1045, 4
        %v2027 = vmax.f32 %v1045, %v2026
        %v2028 = vrot.slane %v2027, 2
        %v2029 = vmax.f32 %v2027, %v2028
        %v2030 = vrot.slane %v2029, 1
        %v2031 = vmax.f32 %v2029, %v2030
        %v2032 = vrot.slane %v1046, 4
        %v2033 = vmax.f32 %v1046, %v2032
        %v2034 = vrot.slane %v2033, 2
        %v2035 = vmax.f32 %v2033, %v2034
        %v2036 = vrot.slane %v2035, 1
        %v2037 = vmax.f32 %v2035, %v2036
        %v2038 = vrot.slane %v1047, 4
        %v2039 = vmax.f32 %v1047, %v2038
        %v2040 = vrot.slane %v2039, 2
        %v2041 = vmax.f32 %v2039, %v2040
        %v2042 = vrot.slane %v2041, 1
        %v2043 = vmax.f32 %v2041, %v2042
        %v2044 = vrot.slane %v1048, 4
        %v2045 = vmax.f32 %v1048, %v2044
        %v2046 = vrot.slane %v2045, 2
        %v2047 = vmax.f32 %v2045, %v2046
        %v2048 = vrot.slane %v2047, 1
        %v2049 = vmax.f32 %v2047, %v2048
        %v2050 = vrot.slane %v1049, 4
        %v2051 = vmax.f32 %v1049, %v2050
        %v2052 = vrot.slane %v2051, 2
        %v2053 = vmax.f32 %v2051, %v2052
        %v2054 = vrot.slane %v2053, 1
        %v2055 = vmax.f32 %v2053, %v2054
        %v2056 = vrot.slane %v1050, 4
        %v2057 = vmax.f32 %v1050, %v2056
        %v2058 = vrot.slane %v2057, 2
        %v2059 = vmax.f32 %v2057, %v2058
        %v2060 = vrot.slane %v2059, 1
        %v2061 = vmax.f32 %v2059, %v2060
        %v2062 = vrot.slane %v1051, 4
        %v2063 = vmax.f32 %v1051, %v2062
        %v2064 = vrot.slane %v2063, 2
        %v2065 = vmax.f32 %v2063, %v2064
        %v2066 = vrot.slane %v2065, 1
        %v2067 = vmax.f32 %v2065, %v2066
        %v2068 = vrot.slane %v1052, 4
        %v2069 = vmax.f32 %v1052, %v2068
        %v2070 = vrot.slane %v2069, 2
        %v2071 = vmax.f32 %v2069, %v2070
        %v2072 = vrot.slane %v2071, 1
        %v2073 = vmax.f32 %v2071, %v2072
        %v2074 = vrot.slane %v1053, 4
        %v2075 = vmax.f32 %v1053, %v2074
        %v2076 = vrot.slane %v2075, 2
        %v2077 = vmax.f32 %v2075, %v2076
        %v2078 = vrot.slane %v2077, 1
        %v2079 = vmax.f32 %v2077, %v2078
        %v2080 = vrot.slane %v1054, 4
        %v2081 = vmax.f32 %v1054, %v2080
        %v2082 = vrot.slane %v2081, 2
        %v2083 = vmax.f32 %v2081, %v2082
        %v2084 = vrot.slane %v2083, 1
        %v2085 = vmax.f32 %v2083, %v2084
        %v2086 = vrot.slane %v1055, 4
        %v2087 = vmax.f32 %v1055, %v2086
        %v2088 = vrot.slane %v2087, 2
        %v2089 = vmax.f32 %v2087, %v2088
        %v2090 = vrot.slane %v2089, 1
        %v2091 = vmax.f32 %v2089, %v2090
        %v2092 = vrot.slane %v1056, 4
        %v2093 = vmax.f32 %v1056, %v2092
        %v2094 = vrot.slane %v2093, 2
        %v2095 = vmax.f32 %v2093, %v2094
        %v2096 = vrot.slane %v2095, 1
        %v2097 = vmax.f32 %v2095, %v2096
        %v2098 = vrot.slane %v1057, 4
        %v2099 = vmax.f32 %v1057, %v2098
        %v2100 = vrot.slane %v2099, 2
        %v2101 = vmax.f32 %v2099, %v2100
        %v2102 = vrot.slane %v2101, 1
        %v2103 = vmax.f32 %v2101, %v2102
        %v2104 = vrot.slane %v1058, 4
        %v2105 = vmax.f32 %v1058, %v2104
        %v2106 = vrot.slane %v2105, 2
        %v2107 = vmax.f32 %v2105, %v2106
        %v2108 = vrot.slane %v2107, 1
        %v2109 = vmax.f32 %v2107, %v2108
        %v2110 = vrot.slane %v1059, 4
        %v2111 = vmax.f32 %v1059, %v2110
        %v2112 = vrot.slane %v2111, 2
        %v2113 = vmax.f32 %v2111, %v2112
        %v2114 = vrot.slane %v2113, 1
        %v2115 = vmax.f32 %v2113, %v2114
        %v2116 = vrot.slane %v1060, 4
        %v2117 = vmax.f32 %v1060, %v2116
        %v2118 = vrot.slane %v2117, 2
        %v2119 = vmax.f32 %v2117, %v2118
        %v2120 = vrot.slane %v2119, 1
        %v2121 = vmax.f32 %v2119, %v2120
        %v2122 = vrot.slane %v1061, 4
        %v2123 = vmax.f32 %v1061, %v2122
        %v2124 = vrot.slane %v2123, 2
        %v2125 = vmax.f32 %v2123, %v2124
        %v2126 = vrot.slane %v2125, 1
        %v2127 = vmax.f32 %v2125, %v2126
        %v2128 = vrot.slane %v1062, 4
        %v2129 = vmax.f32 %v1062, %v2128
        %v2130 = vrot.slane %v2129, 2
        %v2131 = vmax.f32 %v2129, %v2130
        %v2132 = vrot.slane %v2131, 1
        %v2133 = vmax.f32 %v2131, %v2132
        %v2134 = vrot.slane %v1063, 4
        %v2135 = vmax.f32 %v1063, %v2134
        %v2136 = vrot.slane %v2135, 2
        %v2137 = vmax.f32 %v2135, %v2136
        %v2138 = vrot.slane %v2137, 1
        %v2139 = vmax.f32 %v2137, %v2138
        %v2140 = vrot.slane %v1064, 4
        %v2141 = vmax.f32 %v1064, %v2140
        %v2142 = vrot.slane %v2141, 2
        %v2143 = vmax.f32 %v2141, %v2142
        %v2144 = vrot.slane %v2143, 1
        %v2145 = vmax.f32 %v2143, %v2144
        %v2146 = vrot.slane %v1065, 4
        %v2147 = vmax.f32 %v1065, %v2146
        %v2148 = vrot.slane %v2147, 2
        %v2149 = vmax.f32 %v2147, %v2148
        %v2150 = vrot.slane %v2149, 1
        %v2151 = vmax.f32 %v2149, %v2150
        %v2152 = vrot.slane %v1066, 4
        %v2153 = vmax.f32 %v1066, %v2152
        %v2154 = vrot.slane %v2153, 2
        %v2155 = vmax.f32 %v2153, %v2154
        %v2156 = vrot.slane %v2155, 1
        %v2157 = vmax.f32 %v2155, %v2156
        %v2158 = vrot.slane %v1067, 4
        %v2159 = vmax.f32 %v1067, %v2158
        %v2160 = vrot.slane %v2159, 2
        %v2161 = vmax.f32 %v2159, %v2160
        %v2162 = vrot.slane %v2161, 1
        %v2163 = vmax.f32 %v2161, %v2162
        %v2164 = vrot.slane %v1068, 4
        %v2165 = vmax.f32 %v1068, %v2164
        %v2166 = vrot.slane %v2165, 2
        %v2167 = vmax.f32 %v2165, %v2166
        %v2168 = vrot.slane %v2167, 1
        %v2169 = vmax.f32 %v2167, %v2168
        %v2170 = vrot.slane %v1069, 4
        %v2171 = vmax.f32 %v1069, %v2170
        %v2172 = vrot.slane %v2171, 2
        %v2173 = vmax.f32 %v2171, %v2172
        %v2174 = vrot.slane %v2173, 1
        %v2175 = vmax.f32 %v2173, %v2174
        %v2176 = vrot.slane %v1070, 4
        %v2177 = vmax.f32 %v1070, %v2176
        %v2178 = vrot.slane %v2177, 2
        %v2179 = vmax.f32 %v2177, %v2178
        %v2180 = vrot.slane %v2179, 1
        %v2181 = vmax.f32 %v2179, %v2180
        %v2182 = vrot.slane %v1071, 4
        %v2183 = vmax.f32 %v1071, %v2182
        %v2184 = vrot.slane %v2183, 2
        %v2185 = vmax.f32 %v2183, %v2184
        %v2186 = vrot.slane %v2185, 1
        %v2187 = vmax.f32 %v2185, %v2186
        %v2188 = vrot.slane %v1072, 4
        %v2189 = vmax.f32 %v1072, %v2188
        %v2190 = vrot.slane %v2189, 2
        %v2191 = vmax.f32 %v2189, %v2190
        %v2192 = vrot.slane %v2191, 1
        %v2193 = vmax.f32 %v2191, %v2192
        %v2194 = vrot.slane %v1073, 4
        %v2195 = vmax.f32 %v1073, %v2194
        %v2196 = vrot.slane %v2195, 2
        %v2197 = vmax.f32 %v2195, %v2196
        %v2198 = vrot.slane %v2197, 1
        %v2199 = vmax.f32 %v2197, %v2198
        %v2200 = vrot.slane %v1074, 4
        %v2201 = vmax.f32 %v1074, %v2200
        %v2202 = vrot.slane %v2201, 2
        %v2203 = vmax.f32 %v2201, %v2202
        %v2204 = vrot.slane %v2203, 1
        %v2205 = vmax.f32 %v2203, %v2204
        %v2206 = vrot.slane %v1075, 4
        %v2207 = vmax.f32 %v1075, %v2206
        %v2208 = vrot.slane %v2207, 2
        %v2209 = vmax.f32 %v2207, %v2208
        %v2210 = vrot.slane %v2209, 1
        %v2211 = vmax.f32 %v2209, %v2210
        %v2212 = vrot.slane %v1076, 4
        %v2213 = vmax.f32 %v1076, %v2212
        %v2214 = vrot.slane %v2213, 2
        %v2215 = vmax.f32 %v2213, %v2214
        %v2216 = vrot.slane %v2215, 1
        %v2217 = vmax.f32 %v2215, %v2216
        %v2218 = vrot.slane %v1077, 4
        %v2219 = vmax.f32 %v1077, %v2218
        %v2220 = vrot.slane %v2219, 2
        %v2221 = vmax.f32 %v2219, %v2220
        %v2222 = vrot.slane %v2221, 1
        %v2223 = vmax.f32 %v2221, %v2222
        %v2224 = vrot.slane %v1078, 4
        %v2225 = vmax.f32 %v1078, %v2224
        %v2226 = vrot.slane %v2225, 2
        %v2227 = vmax.f32 %v2225, %v2226
        %v2228 = vrot.slane %v2227, 1
        %v2229 = vmax.f32 %v2227, %v2228
        %v2230 = vrot.slane %v1079, 4
        %v2231 = vmax.f32 %v1079, %v2230
        %v2232 = vrot.slane %v2231, 2
        %v2233 = vmax.f32 %v2231, %v2232
        %v2234 = vrot.slane %v2233, 1
        %v2235 = vmax.f32 %v2233, %v2234
        %v2236 = vrot.slane %v1080, 4
        %v2237 = vmax.f32 %v1080, %v2236
        %v2238 = vrot.slane %v2237, 2
        %v2239 = vmax.f32 %v2237, %v2238
        %v2240 = vrot.slane %v2239, 1
        %v2241 = vmax.f32 %v2239, %v2240
        %v2242 = vrot.slane %v1081, 4
        %v2243 = vmax.f32 %v1081, %v2242
        %v2244 = vrot.slane %v2243, 2
        %v2245 = vmax.f32 %v2243, %v2244
        %v2246 = vrot.slane %v2245, 1
        %v2247 = vmax.f32 %v2245, %v2246
        %v2248 = vrot.slane %v1082, 4
        %v2249 = vmax.f32 %v1082, %v2248
        %v2250 = vrot.slane %v2249, 2
        %v2251 = vmax.f32 %v2249, %v2250
        %v2252 = vrot.slane %v2251, 1
        %v2253 = vmax.f32 %v2251, %v2252
        %v2254 = vrot.slane %v1083, 4
        %v2255 = vmax.f32 %v1083, %v2254
        %v2256 = vrot.slane %v2255, 2
        %v2257 = vmax.f32 %v2255, %v2256
        %v2258 = vrot.slane %v2257, 1
        %v2259 = vmax.f32 %v2257, %v2258
        %v2260 = vrot.slane %v1084, 4
        %v2261 = vmax.f32 %v1084, %v2260
        %v2262 = vrot.slane %v2261, 2
        %v2263 = vmax.f32 %v2261, %v2262
        %v2264 = vrot.slane %v2263, 1
        %v2265 = vmax.f32 %v2263, %v2264
        %v2266 = vrot.slane %v1085, 4
        %v2267 = vmax.f32 %v1085, %v2266
        %v2268 = vrot.slane %v2267, 2
        %v2269 = vmax.f32 %v2267, %v2268
        %v2270 = vrot.slane %v2269, 1
        %v2271 = vmax.f32 %v2269, %v2270
        %v2272 = vrot.slane %v1086, 4
        %v2273 = vmax.f32 %v1086, %v2272
        %v2274 = vrot.slane %v2273, 2
        %v2275 = vmax.f32 %v2273, %v2274
        %v2276 = vrot.slane %v2275, 1
        %v2277 = vmax.f32 %v2275, %v2276
        %v2278 = vrot.slane %v1087, 4
        %v2279 = vmax.f32 %v1087, %v2278
        %v2280 = vrot.slane %v2279, 2
        %v2281 = vmax.f32 %v2279, %v2280
        %v2282 = vrot.slane %v2281, 1
        %v2283 = vmax.f32 %v2281, %v2282
        %v2284 = vrot.slane %v1088, 4
        %v2285 = vmax.f32 %v1088, %v2284
        %v2286 = vrot.slane %v2285, 2
        %v2287 = vmax.f32 %v2285, %v2286
        %v2288 = vrot.slane %v2287, 1
        %v2289 = vmax.f32 %v2287, %v2288
        %v2290 = vrot.slane %v1089, 4
        %v2291 = vmax.f32 %v1089, %v2290
        %v2292 = vrot.slane %v2291, 2
        %v2293 = vmax.f32 %v2291, %v2292
        %v2294 = vrot.slane %v2293, 1
        %v2295 = vmax.f32 %v2293, %v2294
        %v2296 = vrot.slane %v1090, 4
        %v2297 = vmax.f32 %v1090, %v2296
        %v2298 = vrot.slane %v2297, 2
        %v2299 = vmax.f32 %v2297, %v2298
        %v2300 = vrot.slane %v2299, 1
        %v2301 = vmax.f32 %v2299, %v2300
        %v2302 = vrot.slane %v1091, 4
        %v2303 = vmax.f32 %v1091, %v2302
        %v2304 = vrot.slane %v2303, 2
        %v2305 = vmax.f32 %v2303, %v2304
        %v2306 = vrot.slane %v2305, 1
        %v2307 = vmax.f32 %v2305, %v2306
        %v2308 = vrot.slane %v1092, 4
        %v2309 = vmax.f32 %v1092, %v2308
        %v2310 = vrot.slane %v2309, 2
        %v2311 = vmax.f32 %v2309, %v2310
        %v2312 = vrot.slane %v2311, 1
        %v2313 = vmax.f32 %v2311, %v2312
        %v2314 = vrot.slane %v1093, 4
        %v2315 = vmax.f32 %v1093, %v2314
        %v2316 = vrot.slane %v2315, 2
        %v2317 = vmax.f32 %v2315, %v2316
        %v2318 = vrot.slane %v2317, 1
        %v2319 = vmax.f32 %v2317, %v2318
        %v2320 = vrot.slane %v1094, 4
        %v2321 = vmax.f32 %v1094, %v2320
        %v2322 = vrot.slane %v2321, 2
        %v2323 = vmax.f32 %v2321, %v2322
        %v2324 = vrot.slane %v2323, 1
        %v2325 = vmax.f32 %v2323, %v2324
        %v2326 = vrot.slane %v1095, 4
        %v2327 = vmax.f32 %v1095, %v2326
        %v2328 = vrot.slane %v2327, 2
        %v2329 = vmax.f32 %v2327, %v2328
        %v2330 = vrot.slane %v2329, 1
        %v2331 = vmax.f32 %v2329, %v2330
        %v2332 = vrot.slane %v1096, 4
        %v2333 = vmax.f32 %v1096, %v2332
        %v2334 = vrot.slane %v2333, 2
        %v2335 = vmax.f32 %v2333, %v2334
        %v2336 = vrot.slane %v2335, 1
        %v2337 = vmax.f32 %v2335, %v2336
        %v2338 = vrot.slane %v1097, 4
        %v2339 = vmax.f32 %v1097, %v2338
        %v2340 = vrot.slane %v2339, 2
        %v2341 = vmax.f32 %v2339, %v2340
        %v2342 = vrot.slane %v2341, 1
        %v2343 = vmax.f32 %v2341, %v2342
        %v2344 = vrot.slane %v1098, 4
        %v2345 = vmax.f32 %v1098, %v2344
        %v2346 = vrot.slane %v2345, 2
        %v2347 = vmax.f32 %v2345, %v2346
        %v2348 = vrot.slane %v2347, 1
        %v2349 = vmax.f32 %v2347, %v2348
        %v2350 = vrot.slane %v1099, 4
        %v2351 = vmax.f32 %v1099, %v2350
        %v2352 = vrot.slane %v2351, 2
        %v2353 = vmax.f32 %v2351, %v2352
        %v2354 = vrot.slane %v2353, 1
        %v2355 = vmax.f32 %v2353, %v2354
        %v2356 = vrot.slane %v1100, 4
        %v2357 = vmax.f32 %v1100, %v2356
        %v2358 = vrot.slane %v2357, 2
        %v2359 = vmax.f32 %v2357, %v2358
        %v2360 = vrot.slane %v2359, 1
        %v2361 = vmax.f32 %v2359, %v2360
        %v2362 = vrot.slane %v1101, 4
        %v2363 = vmax.f32 %v1101, %v2362
        %v2364 = vrot.slane %v2363, 2
        %v2365 = vmax.f32 %v2363, %v2364
        %v2366 = vrot.slane %v2365, 1
        %v2367 = vmax.f32 %v2365, %v2366
        %v2368 = vrot.slane %v1102, 4
        %v2369 = vmax.f32 %v1102, %v2368
        %v2370 = vrot.slane %v2369, 2
        %v2371 = vmax.f32 %v2369, %v2370
        %v2372 = vrot.slane %v2371, 1
        %v2373 = vmax.f32 %v2371, %v2372
        %v2374 = vrot.slane %v1103, 4
        %v2375 = vmax.f32 %v1103, %v2374
        %v2376 = vrot.slane %v2375, 2
        %v2377 = vmax.f32 %v2375, %v2376
        %v2378 = vrot.slane %v2377, 1
        %v2379 = vmax.f32 %v2377, %v2378
        %v2380 = vrot.slane %v1104, 4
        %v2381 = vmax.f32 %v1104, %v2380
        %v2382 = vrot.slane %v2381, 2
        %v2383 = vmax.f32 %v2381, %v2382
        %v2384 = vrot.slane %v2383, 1
        %v2385 = vmax.f32 %v2383, %v2384
        %v2386 = vrot.slane %v1105, 4
        %v2387 = vmax.f32 %v1105, %v2386
        %v2388 = vrot.slane %v2387, 2
        %v2389 = vmax.f32 %v2387, %v2388
        %v2390 = vrot.slane %v2389, 1
        %v2391 = vmax.f32 %v2389, %v2390
        %v2392 = vrot.slane %v1106, 4
        %v2393 = vmax.f32 %v1106, %v2392
        %v2394 = vrot.slane %v2393, 2
        %v2395 = vmax.f32 %v2393, %v2394
        %v2396 = vrot.slane %v2395, 1
        %v2397 = vmax.f32 %v2395, %v2396
        %v2398 = vrot.slane %v1107, 4
        %v2399 = vmax.f32 %v1107, %v2398
        %v2400 = vrot.slane %v2399, 2
        %v2401 = vmax.f32 %v2399, %v2400
        %v2402 = vrot.slane %v2401, 1
        %v2403 = vmax.f32 %v2401, %v2402
        %v2404 = vrot.slane %v1108, 4
        %v2405 = vmax.f32 %v1108, %v2404
        %v2406 = vrot.slane %v2405, 2
        %v2407 = vmax.f32 %v2405, %v2406
        %v2408 = vrot.slane %v2407, 1
        %v2409 = vmax.f32 %v2407, %v2408
        %v2410 = vrot.slane %v1109, 4
        %v2411 = vmax.f32 %v1109, %v2410
        %v2412 = vrot.slane %v2411, 2
        %v2413 = vmax.f32 %v2411, %v2412
        %v2414 = vrot.slane %v2413, 1
        %v2415 = vmax.f32 %v2413, %v2414
        %v2416 = vrot.slane %v1110, 4
        %v2417 = vmax.f32 %v1110, %v2416
        %v2418 = vrot.slane %v2417, 2
        %v2419 = vmax.f32 %v2417, %v2418
        %v2420 = vrot.slane %v2419, 1
        %v2421 = vmax.f32 %v2419, %v2420
        %v2422 = vrot.slane %v1111, 4
        %v2423 = vmax.f32 %v1111, %v2422
        %v2424 = vrot.slane %v2423, 2
        %v2425 = vmax.f32 %v2423, %v2424
        %v2426 = vrot.slane %v2425, 1
        %v2427 = vmax.f32 %v2425, %v2426
        %v2428 = vrot.slane %v1112, 4
        %v2429 = vmax.f32 %v1112, %v2428
        %v2430 = vrot.slane %v2429, 2
        %v2431 = vmax.f32 %v2429, %v2430
        %v2432 = vrot.slane %v2431, 1
        %v2433 = vmax.f32 %v2431, %v2432
        %v2434 = vrot.slane %v1113, 4
        %v2435 = vmax.f32 %v1113, %v2434
        %v2436 = vrot.slane %v2435, 2
        %v2437 = vmax.f32 %v2435, %v2436
        %v2438 = vrot.slane %v2437, 1
        %v2439 = vmax.f32 %v2437, %v2438
        %v2440 = vrot.slane %v1114, 4
        %v2441 = vmax.f32 %v1114, %v2440
        %v2442 = vrot.slane %v2441, 2
        %v2443 = vmax.f32 %v2441, %v2442
        %v2444 = vrot.slane %v2443, 1
        %v2445 = vmax.f32 %v2443, %v2444
        %v2446 = vrot.slane %v1115, 4
        %v2447 = vmax.f32 %v1115, %v2446
        %v2448 = vrot.slane %v2447, 2
        %v2449 = vmax.f32 %v2447, %v2448
        %v2450 = vrot.slane %v2449, 1
        %v2451 = vmax.f32 %v2449, %v2450
        %v2452 = vrot.slane %v1116, 4
        %v2453 = vmax.f32 %v1116, %v2452
        %v2454 = vrot.slane %v2453, 2
        %v2455 = vmax.f32 %v2453, %v2454
        %v2456 = vrot.slane %v2455, 1
        %v2457 = vmax.f32 %v2455, %v2456
        %v2458 = vrot.slane %v1117, 4
        %v2459 = vmax.f32 %v1117, %v2458
        %v2460 = vrot.slane %v2459, 2
        %v2461 = vmax.f32 %v2459, %v2460
        %v2462 = vrot.slane %v2461, 1
        %v2463 = vmax.f32 %v2461, %v2462
        %v2464 = vrot.slane %v1118, 4
        %v2465 = vmax.f32 %v1118, %v2464
        %v2466 = vrot.slane %v2465, 2
        %v2467 = vmax.f32 %v2465, %v2466
        %v2468 = vrot.slane %v2467, 1
        %v2469 = vmax.f32 %v2467, %v2468
        %v2470 = vrot.slane %v1119, 4
        %v2471 = vmax.f32 %v1119, %v2470
        %v2472 = vrot.slane %v2471, 2
        %v2473 = vmax.f32 %v2471, %v2472
        %v2474 = vrot.slane %v2473, 1
        %v2475 = vmax.f32 %v2473, %v2474
        %v2476 = vrot.slane %v1120, 4
        %v2477 = vmax.f32 %v1120, %v2476
        %v2478 = vrot.slane %v2477, 2
        %v2479 = vmax.f32 %v2477, %v2478
        %v2480 = vrot.slane %v2479, 1
        %v2481 = vmax.f32 %v2479, %v2480
        %v2482 = vrot.slane %v1121, 4
        %v2483 = vmax.f32 %v1121, %v2482
        %v2484 = vrot.slane %v2483, 2
        %v2485 = vmax.f32 %v2483, %v2484
        %v2486 = vrot.slane %v2485, 1
        %v2487 = vmax.f32 %v2485, %v2486
        %v2488 = vrot.slane %v1122, 4
        %v2489 = vmax.f32 %v1122, %v2488
        %v2490 = vrot.slane %v2489, 2
        %v2491 = vmax.f32 %v2489, %v2490
        %v2492 = vrot.slane %v2491, 1
        %v2493 = vmax.f32 %v2491, %v2492
        %v2494 = vrot.slane %v1123, 4
        %v2495 = vmax.f32 %v1123, %v2494
        %v2496 = vrot.slane %v2495, 2
        %v2497 = vmax.f32 %v2495, %v2496
        %v2498 = vrot.slane %v2497, 1
        %v2499 = vmax.f32 %v2497, %v2498
        %v2500 = vrot.slane %v1124, 4
        %v2501 = vmax.f32 %v1124, %v2500
        %v2502 = vrot.slane %v2501, 2
        %v2503 = vmax.f32 %v2501, %v2502
        %v2504 = vrot.slane %v2503, 1
        %v2505 = vmax.f32 %v2503, %v2504
        %v2506 = vrot.slane %v1125, 4
        %v2507 = vmax.f32 %v1125, %v2506
        %v2508 = vrot.slane %v2507, 2
        %v2509 = vmax.f32 %v2507, %v2508
        %v2510 = vrot.slane %v2509, 1
        %v2511 = vmax.f32 %v2509, %v2510
        %v2512 = vrot.slane %v1126, 4
        %v2513 = vmax.f32 %v1126, %v2512
        %v2514 = vrot.slane %v2513, 2
        %v2515 = vmax.f32 %v2513, %v2514
        %v2516 = vrot.slane %v2515, 1
        %v2517 = vmax.f32 %v2515, %v2516
        %v2518 = vrot.slane %v1127, 4
        %v2519 = vmax.f32 %v1127, %v2518
        %v2520 = vrot.slane %v2519, 2
        %v2521 = vmax.f32 %v2519, %v2520
        %v2522 = vrot.slane %v2521, 1
        %v2523 = vmax.f32 %v2521, %v2522
        %v2524 = vrot.slane %v1128, 4
        %v2525 = vmax.f32 %v1128, %v2524
        %v2526 = vrot.slane %v2525, 2
        %v2527 = vmax.f32 %v2525, %v2526
        %v2528 = vrot.slane %v2527, 1
        %v2529 = vmax.f32 %v2527, %v2528
        %v2530 = vrot.slane %v1129, 4
        %v2531 = vmax.f32 %v1129, %v2530
        %v2532 = vrot.slane %v2531, 2
        %v2533 = vmax.f32 %v2531, %v2532
        %v2534 = vrot.slane %v2533, 1
        %v2535 = vmax.f32 %v2533, %v2534
        %v2536 = vrot.slane %v1130, 4
        %v2537 = vmax.f32 %v1130, %v2536
        %v2538 = vrot.slane %v2537, 2
        %v2539 = vmax.f32 %v2537, %v2538
        %v2540 = vrot.slane %v2539, 1
        %v2541 = vmax.f32 %v2539, %v2540
        %v2542 = vrot.slane %v1131, 4
        %v2543 = vmax.f32 %v1131, %v2542
        %v2544 = vrot.slane %v2543, 2
        %v2545 = vmax.f32 %v2543, %v2544
        %v2546 = vrot.slane %v2545, 1
        %v2547 = vmax.f32 %v2545, %v2546
        %v2548 = vrot.slane %v1132, 4
        %v2549 = vmax.f32 %v1132, %v2548
        %v2550 = vrot.slane %v2549, 2
        %v2551 = vmax.f32 %v2549, %v2550
        %v2552 = vrot.slane %v2551, 1
        %v2553 = vmax.f32 %v2551, %v2552
        %v2554 = vrot.slane %v1133, 4
        %v2555 = vmax.f32 %v1133, %v2554
        %v2556 = vrot.slane %v2555, 2
        %v2557 = vmax.f32 %v2555, %v2556
        %v2558 = vrot.slane %v2557, 1
        %v2559 = vmax.f32 %v2557, %v2558
        %v2560 = vrot.slane %v1134, 4
        %v2561 = vmax.f32 %v1134, %v2560
        %v2562 = vrot.slane %v2561, 2
        %v2563 = vmax.f32 %v2561, %v2562
        %v2564 = vrot.slane %v2563, 1
        %v2565 = vmax.f32 %v2563, %v2564
        %v2566 = vrot.slane %v1135, 4
        %v2567 = vmax.f32 %v1135, %v2566
        %v2568 = vrot.slane %v2567, 2
        %v2569 = vmax.f32 %v2567, %v2568
        %v2570 = vrot.slane %v2569, 1
        %v2571 = vmax.f32 %v2569, %v2570
        %v2572 = vrot.slane %v1136, 4
        %v2573 = vmax.f32 %v1136, %v2572
        %v2574 = vrot.slane %v2573, 2
        %v2575 = vmax.f32 %v2573, %v2574
        %v2576 = vrot.slane %v2575, 1
        %v2577 = vmax.f32 %v2575, %v2576
        %v2578 = vrot.slane %v1137, 4
        %v2579 = vmax.f32 %v1137, %v2578
        %v2580 = vrot.slane %v2579, 2
        %v2581 = vmax.f32 %v2579, %v2580
        %v2582 = vrot.slane %v2581, 1
        %v2583 = vmax.f32 %v2581, %v2582
        %v2584 = vrot.slane %v1138, 4
        %v2585 = vmax.f32 %v1138, %v2584
        %v2586 = vrot.slane %v2585, 2
        %v2587 = vmax.f32 %v2585, %v2586
        %v2588 = vrot.slane %v2587, 1
        %v2589 = vmax.f32 %v2587, %v2588
        %v2590 = vrot.slane %v1139, 4
        %v2591 = vmax.f32 %v1139, %v2590
        %v2592 = vrot.slane %v2591, 2
        %v2593 = vmax.f32 %v2591, %v2592
        %v2594 = vrot.slane %v2593, 1
        %v2595 = vmax.f32 %v2593, %v2594
        %v2596 = vrot.slane %v1140, 4
        %v2597 = vmax.f32 %v1140, %v2596
        %v2598 = vrot.slane %v2597, 2
        %v2599 = vmax.f32 %v2597, %v2598
        %v2600 = vrot.slane %v2599, 1
        %v2601 = vmax.f32 %v2599, %v2600
        %v2602 = vrot.slane %v1141, 4
        %v2603 = vmax.f32 %v1141, %v2602
        %v2604 = vrot.slane %v2603, 2
        %v2605 = vmax.f32 %v2603, %v2604
        %v2606 = vrot.slane %v2605, 1
        %v2607 = vmax.f32 %v2605, %v2606
        %v2608 = vrot.slane %v1142, 4
        %v2609 = vmax.f32 %v1142, %v2608
        %v2610 = vrot.slane %v2609, 2
        %v2611 = vmax.f32 %v2609, %v2610
        %v2612 = vrot.slane %v2611, 1
        %v2613 = vmax.f32 %v2611, %v2612
        %v2614 = vrot.slane %v1143, 4
        %v2615 = vmax.f32 %v1143, %v2614
        %v2616 = vrot.slane %v2615, 2
        %v2617 = vmax.f32 %v2615, %v2616
        %v2618 = vrot.slane %v2617, 1
        %v2619 = vmax.f32 %v2617, %v2618
        %v2620 = vrot.slane %v1144, 4
        %v2621 = vmax.f32 %v1144, %v2620
        %v2622 = vrot.slane %v2621, 2
        %v2623 = vmax.f32 %v2621, %v2622
        %v2624 = vrot.slane %v2623, 1
        %v2625 = vmax.f32 %v2623, %v2624
        %v2626 = vrot.slane %v1145, 4
        %v2627 = vmax.f32 %v1145, %v2626
        %v2628 = vrot.slane %v2627, 2
        %v2629 = vmax.f32 %v2627, %v2628
        %v2630 = vrot.slane %v2629, 1
        %v2631 = vmax.f32 %v2629, %v2630
        %v2632 = vrot.slane %v1146, 4
        %v2633 = vmax.f32 %v1146, %v2632
        %v2634 = vrot.slane %v2633, 2
        %v2635 = vmax.f32 %v2633, %v2634
        %v2636 = vrot.slane %v2635, 1
        %v2637 = vmax.f32 %v2635, %v2636
        %v2638 = vrot.slane %v1147, 4
        %v2639 = vmax.f32 %v1147, %v2638
        %v2640 = vrot.slane %v2639, 2
        %v2641 = vmax.f32 %v2639, %v2640
        %v2642 = vrot.slane %v2641, 1
        %v2643 = vmax.f32 %v2641, %v2642
        %v2644 = vrot.slane %v1148, 4
        %v2645 = vmax.f32 %v1148, %v2644
        %v2646 = vrot.slane %v2645, 2
        %v2647 = vmax.f32 %v2645, %v2646
        %v2648 = vrot.slane %v2647, 1
        %v2649 = vmax.f32 %v2647, %v2648
        %v2650 = vrot.slane %v1149, 4
        %v2651 = vmax.f32 %v1149, %v2650
        %v2652 = vrot.slane %v2651, 2
        %v2653 = vmax.f32 %v2651, %v2652
        %v2654 = vrot.slane %v2653, 1
        %v2655 = vmax.f32 %v2653, %v2654
        %v2656 = vrot.slane %v1150, 4
        %v2657 = vmax.f32 %v1150, %v2656
        %v2658 = vrot.slane %v2657, 2
        %v2659 = vmax.f32 %v2657, %v2658
        %v2660 = vrot.slane %v2659, 1
        %v2661 = vmax.f32 %v2659, %v2660
        %v2662 = vrot.slane %v1151, 4
        %v2663 = vmax.f32 %v1151, %v2662
        %v2664 = vrot.slane %v2663, 2
        %v2665 = vmax.f32 %v2663, %v2664
        %v2666 = vrot.slane %v2665, 1
        %v2667 = vmax.f32 %v2665, %v2666
        %v2668 = vrot.slane %v1152, 4
        %v2669 = vmax.f32 %v1152, %v2668
        %v2670 = vrot.slane %v2669, 2
        %v2671 = vmax.f32 %v2669, %v2670
        %v2672 = vrot.slane %v2671, 1
        %v2673 = vmax.f32 %v2671, %v2672
        %v2674 = vrot.slane %v1153, 4
        %v2675 = vmax.f32 %v1153, %v2674
        %v2676 = vrot.slane %v2675, 2
        %v2677 = vmax.f32 %v2675, %v2676
        %v2678 = vrot.slane %v2677, 1
        %v2679 = vmax.f32 %v2677, %v2678
        %v2680 = vrot.slane %v1154, 4
        %v2681 = vmax.f32 %v1154, %v2680
        %v2682 = vrot.slane %v2681, 2
        %v2683 = vmax.f32 %v2681, %v2682
        %v2684 = vrot.slane %v2683, 1
        %v2685 = vmax.f32 %v2683, %v2684
        %v2686 = vrot.slane %v1155, 4
        %v2687 = vmax.f32 %v1155, %v2686
        %v2688 = vrot.slane %v2687, 2
        %v2689 = vmax.f32 %v2687, %v2688
        %v2690 = vrot.slane %v2689, 1
        %v2691 = vmax.f32 %v2689, %v2690
        %v2692 = vsub.f32 %v900, %v1161
        %v2693 = vsub.f32 %v901, %v1167
        %v2694 = vsub.f32 %v902, %v1173
        %v2695 = vsub.f32 %v903, %v1179
        %v2696 = vsub.f32 %v904, %v1185
        %v2697 = vsub.f32 %v905, %v1191
        %v2698 = vsub.f32 %v906, %v1197
        %v2699 = vsub.f32 %v907, %v1203
        %v2700 = vsub.f32 %v908, %v1209
        %v2701 = vsub.f32 %v909, %v1215
        %v2702 = vsub.f32 %v910, %v1221
        %v2703 = vsub.f32 %v911, %v1227
        %v2704 = vsub.f32 %v912, %v1233
        %v2705 = vsub.f32 %v913, %v1239
        %v2706 = vsub.f32 %v914, %v1245
        %v2707 = vsub.f32 %v915, %v1251
        %v2708 = vsub.f32 %v916, %v1257
        %v2709 = vsub.f32 %v917, %v1263
        %v2710 = vsub.f32 %v918, %v1269
        %v2711 = vsub.f32 %v919, %v1275
        %v2712 = vsub.f32 %v920, %v1281
        %v2713 = vsub.f32 %v921, %v1287
        %v2714 = vsub.f32 %v922, %v1293
        %v2715 = vsub.f32 %v923, %v1299
        %v2716 = vsub.f32 %v924, %v1305
        %v2717 = vsub.f32 %v925, %v1311
        %v2718 = vsub.f32 %v926, %v1317
        %v2719 = vsub.f32 %v927, %v1323
        %v2720 = vsub.f32 %v928, %v1329
        %v2721 = vsub.f32 %v929, %v1335
        %v2722 = vsub.f32 %v930, %v1341
        %v2723 = vsub.f32 %v931, %v1347
        %v2724 = vsub.f32 %v932, %v1353
        %v2725 = vsub.f32 %v933, %v1359
        %v2726 = vsub.f32 %v934, %v1365
        %v2727 = vsub.f32 %v935, %v1371
        %v2728 = vsub.f32 %v936, %v1377
        %v2729 = vsub.f32 %v937, %v1383
        %v2730 = vsub.f32 %v938, %v1389
        %v2731 = vsub.f32 %v939, %v1395
        %v2732 = vsub.f32 %v940, %v1401
        %v2733 = vsub.f32 %v941, %v1407
        %v2734 = vsub.f32 %v942, %v1413
        %v2735 = vsub.f32 %v943, %v1419
        %v2736 = vsub.f32 %v944, %v1425
        %v2737 = vsub.f32 %v945, %v1431
        %v2738 = vsub.f32 %v946, %v1437
        %v2739 = vsub.f32 %v947, %v1443
        %v2740 = vsub.f32 %v948, %v1449
        %v2741 = vsub.f32 %v949, %v1455
        %v2742 = vsub.f32 %v950, %v1461
        %v2743 = vsub.f32 %v951, %v1467
        %v2744 = vsub.f32 %v952, %v1473
        %v2745 = vsub.f32 %v953, %v1479
        %v2746 = vsub.f32 %v954, %v1485
        %v2747 = vsub.f32 %v955, %v1491
        %v2748 = vsub.f32 %v956, %v1497
        %v2749 = vsub.f32 %v957, %v1503
        %v2750 = vsub.f32 %v958, %v1509
        %v2751 = vsub.f32 %v959, %v1515
        %v2752 = vsub.f32 %v960, %v1521
        %v2753 = vsub.f32 %v961, %v1527
        %v2754 = vsub.f32 %v962, %v1533
        %v2755 = vsub.f32 %v963, %v1539
        %v2756 = vsub.f32 %v964, %v1545
        %v2757 = vsub.f32 %v965, %v1551
        %v2758 = vsub.f32 %v966, %v1557
        %v2759 = vsub.f32 %v967, %v1563
        %v2760 = vsub.f32 %v968, %v1569
        %v2761 = vsub.f32 %v969, %v1575
        %v2762 = vsub.f32 %v970, %v1581
        %v2763 = vsub.f32 %v971, %v1587
        %v2764 = vsub.f32 %v972, %v1593
        %v2765 = vsub.f32 %v973, %v1599
        %v2766 = vsub.f32 %v974, %v1605
        %v2767 = vsub.f32 %v975, %v1611
        %v2768 = vsub.f32 %v976, %v1617
        %v2769 = vsub.f32 %v977, %v1623
        %v2770 = vsub.f32 %v978, %v1629
        %v2771 = vsub.f32 %v979, %v1635
        %v2772 = vsub.f32 %v980, %v1641
        %v2773 = vsub.f32 %v981, %v1647
        %v2774 = vsub.f32 %v982, %v1653
        %v2775 = vsub.f32 %v983, %v1659
        %v2776 = vsub.f32 %v984, %v1665
        %v2777 = vsub.f32 %v985, %v1671
        %v2778 = vsub.f32 %v986, %v1677
        %v2779 = vsub.f32 %v987, %v1683
        %v2780 = vsub.f32 %v988, %v1689
        %v2781 = vsub.f32 %v989, %v1695
        %v2782 = vsub.f32 %v990, %v1701
        %v2783 = vsub.f32 %v991, %v1707
        %v2784 = vsub.f32 %v992, %v1713
        %v2785 = vsub.f32 %v993, %v1719
        %v2786 = vsub.f32 %v994, %v1725
        %v2787 = vsub.f32 %v995, %v1731
        %v2788 = vsub.f32 %v996, %v1737
        %v2789 = vsub.f32 %v997, %v1743
        %v2790 = vsub.f32 %v998, %v1749
        %v2791 = vsub.f32 %v999, %v1755
        %v2792 = vsub.f32 %v1000, %v1761
        %v2793 = vsub.f32 %v1001, %v1767
        %v2794 = vsub.f32 %v1002, %v1773
        %v2795 = vsub.f32 %v1003, %v1779
        %v2796 = vsub.f32 %v1004, %v1785
        %v2797 = vsub.f32 %v1005, %v1791
        %v2798 = vsub.f32 %v1006, %v1797
        %v2799 = vsub.f32 %v1007, %v1803
        %v2800 = vsub.f32 %v1008, %v1809
        %v2801 = vsub.f32 %v1009, %v1815
        %v2802 = vsub.f32 %v1010, %v1821
        %v2803 = vsub.f32 %v1011, %v1827
        %v2804 = vsub.f32 %v1012, %v1833
        %v2805 = vsub.f32 %v1013, %v1839
        %v2806 = vsub.f32 %v1014, %v1845
        %v2807 = vsub.f32 %v1015, %v1851
        %v2808 = vsub.f32 %v1016, %v1857
        %v2809 = vsub.f32 %v1017, %v1863
        %v2810 = vsub.f32 %v1018, %v1869
        %v2811 = vsub.f32 %v1019, %v1875
        %v2812 = vsub.f32 %v1020, %v1881
        %v2813 = vsub.f32 %v1021, %v1887
        %v2814 = vsub.f32 %v1022, %v1893
        %v2815 = vsub.f32 %v1023, %v1899
        %v2816 = vsub.f32 %v1024, %v1905
        %v2817 = vsub.f32 %v1025, %v1911
        %v2818 = vsub.f32 %v1026, %v1917
        %v2819 = vsub.f32 %v1027, %v1923
        %v2820 = vsub.f32 %v1028, %v1929
        %v2821 = vsub.f32 %v1029, %v1935
        %v2822 = vsub.f32 %v1030, %v1941
        %v2823 = vsub.f32 %v1031, %v1947
        %v2824 = vsub.f32 %v1032, %v1953
        %v2825 = vsub.f32 %v1033, %v1959
        %v2826 = vsub.f32 %v1034, %v1965
        %v2827 = vsub.f32 %v1035, %v1971
        %v2828 = vsub.f32 %v1036, %v1977
        %v2829 = vsub.f32 %v1037, %v1983
        %v2830 = vsub.f32 %v1038, %v1989
        %v2831 = vsub.f32 %v1039, %v1995
        %v2832 = vsub.f32 %v1040, %v2001
        %v2833 = vsub.f32 %v1041, %v2007
        %v2834 = vsub.f32 %v1042, %v2013
        %v2835 = vsub.f32 %v1043, %v2019
        %v2836 = vsub.f32 %v1044, %v2025
        %v2837 = vsub.f32 %v1045, %v2031
        %v2838 = vsub.f32 %v1046, %v2037
        %v2839 = vsub.f32 %v1047, %v2043
        %v2840 = vsub.f32 %v1048, %v2049
        %v2841 = vsub.f32 %v1049, %v2055
        %v2842 = vsub.f32 %v1050, %v2061
        %v2843 = vsub.f32 %v1051, %v2067
        %v2844 = vsub.f32 %v1052, %v2073
        %v2845 = vsub.f32 %v1053, %v2079
        %v2846 = vsub.f32 %v1054, %v2085
        %v2847 = vsub.f32 %v1055, %v2091
        %v2848 = vsub.f32 %v1056, %v2097
        %v2849 = vsub.f32 %v1057, %v2103
        %v2850 = vsub.f32 %v1058, %v2109
        %v2851 = vsub.f32 %v1059, %v2115
        %v2852 = vsub.f32 %v1060, %v2121
        %v2853 = vsub.f32 %v1061, %v2127
        %v2854 = vsub.f32 %v1062, %v2133
        %v2855 = vsub.f32 %v1063, %v2139
        %v2856 = vsub.f32 %v1064, %v2145
        %v2857 = vsub.f32 %v1065, %v2151
        %v2858 = vsub.f32 %v1066, %v2157
        %v2859 = vsub.f32 %v1067, %v2163
        %v2860 = vsub.f32 %v1068, %v2169
        %v2861 = vsub.f32 %v1069, %v2175
        %v2862 = vsub.f32 %v1070, %v2181
        %v2863 = vsub.f32 %v1071, %v2187
        %v2864 = vsub.f32 %v1072, %v2193
        %v2865 = vsub.f32 %v1073, %v2199
        %v2866 = vsub.f32 %v1074, %v2205
        %v2867 = vsub.f32 %v1075, %v2211
        %v2868 = vsub.f32 %v1076, %v2217
        %v2869 = vsub.f32 %v1077, %v2223
        %v2870 = vsub.f32 %v1078, %v2229
        %v2871 = vsub.f32 %v1079, %v2235
        %v2872 = vsub.f32 %v1080, %v2241
        %v2873 = vsub.f32 %v1081, %v2247
        %v2874 = vsub.f32 %v1082, %v2253
        %v2875 = vsub.f32 %v1083, %v2259
        %v2876 = vsub.f32 %v1084, %v2265
        %v2877 = vsub.f32 %v1085, %v2271
        %v2878 = vsub.f32 %v1086, %v2277
        %v2879 = vsub.f32 %v1087, %v2283
        %v2880 = vsub.f32 %v1088, %v2289
        %v2881 = vsub.f32 %v1089, %v2295
        %v2882 = vsub.f32 %v1090, %v2301
        %v2883 = vsub.f32 %v1091, %v2307
        %v2884 = vsub.f32 %v1092, %v2313
        %v2885 = vsub.f32 %v1093, %v2319
        %v2886 = vsub.f32 %v1094, %v2325
        %v2887 = vsub.f32 %v1095, %v2331
        %v2888 = vsub.f32 %v1096, %v2337
        %v2889 = vsub.f32 %v1097, %v2343
        %v2890 = vsub.f32 %v1098, %v2349
        %v2891 = vsub.f32 %v1099, %v2355
        %v2892 = vsub.f32 %v1100, %v2361
        %v2893 = vsub.f32 %v1101, %v2367
        %v2894 = vsub.f32 %v1102, %v2373
        %v2895 = vsub.f32 %v1103, %v2379
        %v2896 = vsub.f32 %v1104, %v2385
        %v2897 = vsub.f32 %v1105, %v2391
        %v2898 = vsub.f32 %v1106, %v2397
        %v2899 = vsub.f32 %v1107, %v2403
        %v2900 = vsub.f32 %v1108, %v2409
        %v2901 = vsub.f32 %v1109, %v2415
        %v2902 = vsub.f32 %v1110, %v2421
        %v2903 = vsub.f32 %v1111, %v2427
        %v2904 = vsub.f32 %v1112, %v2433
        %v2905 = vsub.f32 %v1113, %v2439
        %v2906 = vsub.f32 %v1114, %v2445
        %v2907 = vsub.f32 %v1115, %v2451
        %v2908 = vsub.f32 %v1116, %v2457
        %v2909 = vsub.f32 %v1117, %v2463
        %v2910 = vsub.f32 %v1118, %v2469
        %v2911 = vsub.f32 %v1119, %v2475
        %v2912 = vsub.f32 %v1120, %v2481
        %v2913 = vsub.f32 %v1121, %v2487
        %v2914 = vsub.f32 %v1122, %v2493
        %v2915 = vsub.f32 %v1123, %v2499
        %v2916 = vsub.f32 %v1124, %v2505
        %v2917 = vsub.f32 %v1125, %v2511
        %v2918 = vsub.f32 %v1126, %v2517
        %v2919 = vsub.f32 %v1127, %v2523
        %v2920 = vsub.f32 %v1128, %v2529
        %v2921 = vsub.f32 %v1129, %v2535
        %v2922 = vsub.f32 %v1130, %v2541
        %v2923 = vsub.f32 %v1131, %v2547
        %v2924 = vsub.f32 %v1132, %v2553
        %v2925 = vsub.f32 %v1133, %v2559
        %v2926 = vsub.f32 %v1134, %v2565
        %v2927 = vsub.f32 %v1135, %v2571
        %v2928 = vsub.f32 %v1136, %v2577
        %v2929 = vsub.f32 %v1137, %v2583
        %v2930 = vsub.f32 %v1138, %v2589
        %v2931 = vsub.f32 %v1139, %v2595
        %v2932 = vsub.f32 %v1140, %v2601
        %v2933 = vsub.f32 %v1141, %v2607
        %v2934 = vsub.f32 %v1142, %v2613
        %v2935 = vsub.f32 %v1143, %v2619
        %v2936 = vsub.f32 %v1144, %v2625
        %v2937 = vsub.f32 %v1145, %v2631
        %v2938 = vsub.f32 %v1146, %v2637
        %v2939 = vsub.f32 %v1147, %v2643
        %v2940 = vsub.f32 %v1148, %v2649
        %v2941 = vsub.f32 %v1149, %v2655
        %v2942 = vsub.f32 %v1150, %v2661
        %v2943 = vsub.f32 %v1151, %v2667
        %v2944 = vsub.f32 %v1152, %v2673
        %v2945 = vsub.f32 %v1153, %v2679
        %v2946 = vsub.f32 %v1154, %v2685
        %v2947 = vsub.f32 %v1155, %v2691
        %v2948 = vmul.f32 %v2692, 1.442695
        %v2949 = vpow.pop %v2948
        %v2950 = vmul.f32 %v2693, 1.442695
        %v2951 = vpow.pop %v2950
        %v2952 = vmul.f32 %v2694, 1.442695
        %v2953 = vpow.pop %v2952
        %v2954 = vmul.f32 %v2695, 1.442695
        %v2955 = vpow.pop %v2954
        %v2956 = vmul.f32 %v2696, 1.442695
        %v2957 = vpow.pop %v2956
        %v2958 = vmul.f32 %v2697, 1.442695
        %v2959 = vpow.pop %v2958
        %v2960 = vmul.f32 %v2698, 1.442695
        %v2961 = vpow.pop %v2960
        %v2962 = vmul.f32 %v2699, 1.442695
        %v2963 = vpow.pop %v2962
        %v2964 = vmul.f32 %v2700, 1.442695
        %v2965 = vpow.pop %v2964
        %v2966 = vmul.f32 %v2701, 1.442695
        %v2967 = vpow.pop %v2966
        %v2968 = vmul.f32 %v2702, 1.442695
        %v2969 = vpow.pop %v2968
        %v2970 = vmul.f32 %v2703, 1.442695
        %v2971 = vpow.pop %v2970
        %v2972 = vmul.f32 %v2704, 1.442695
        %v2973 = vpow.pop %v2972
        %v2974 = vmul.f32 %v2705, 1.442695
        %v2975 = vpow.pop %v2974
        %v2976 = vmul.f32 %v2706, 1.442695
        %v2977 = vpow.pop %v2976
        %v2978 = vmul.f32 %v2707, 1.442695
        %v2979 = vpow.pop %v2978
        %v2980 = vmul.f32 %v2708, 1.442695
        %v2981 = vpow.pop %v2980
        %v2982 = vmul.f32 %v2709, 1.442695
        %v2983 = vpow.pop %v2982
        %v2984 = vmul.f32 %v2710, 1.442695
        %v2985 = vpow.pop %v2984
        %v2986 = vmul.f32 %v2711, 1.442695
        %v2987 = vpow.pop %v2986
        %v2988 = vmul.f32 %v2712, 1.442695
        %v2989 = vpow.pop %v2988
        %v2990 = vmul.f32 %v2713, 1.442695
        %v2991 = vpow.pop %v2990
        %v2992 = vmul.f32 %v2714, 1.442695
        %v2993 = vpow.pop %v2992
        %v2994 = vmul.f32 %v2715, 1.442695
        %v2995 = vpow.pop %v2994
        %v2996 = vmul.f32 %v2716, 1.442695
        %v2997 = vpow.pop %v2996
        %v2998 = vmul.f32 %v2717, 1.442695
        %v2999 = vpow.pop %v2998
        %v3000 = vmul.f32 %v2718, 1.442695
        %v3001 = vpow.pop %v3000
        %v3002 = vmul.f32 %v2719, 1.442695
        %v3003 = vpow.pop %v3002
        %v3004 = vmul.f32 %v2720, 1.442695
        %v3005 = vpow.pop %v3004
        %v3006 = vmul.f32 %v2721, 1.442695
        %v3007 = vpow.pop %v3006
        %v3008 = vmul.f32 %v2722, 1.442695
        %v3009 = vpow.pop %v3008
        %v3010 = vmul.f32 %v2723, 1.442695
        %v3011 = vpow.pop %v3010
        %v3012 = vmul.f32 %v2724, 1.442695
        %v3013 = vpow.pop %v3012
        %v3014 = vmul.f32 %v2725, 1.442695
        %v3015 = vpow.pop %v3014
        %v3016 = vmul.f32 %v2726, 1.442695
        %v3017 = vpow.pop %v3016
        %v3018 = vmul.f32 %v2727, 1.442695
        %v3019 = vpow.pop %v3018
        %v3020 = vmul.f32 %v2728, 1.442695
        %v3021 = vpow.pop %v3020
        %v3022 = vmul.f32 %v2729, 1.442695
        %v3023 = vpow.pop %v3022
        %v3024 = vmul.f32 %v2730, 1.442695
        %v3025 = vpow.pop %v3024
        %v3026 = vmul.f32 %v2731, 1.442695
        %v3027 = vpow.pop %v3026
        %v3028 = vmul.f32 %v2732, 1.442695
        %v3029 = vpow.pop %v3028
        %v3030 = vmul.f32 %v2733, 1.442695
        %v3031 = vpow.pop %v3030
        %v3032 = vmul.f32 %v2734, 1.442695
        %v3033 = vpow.pop %v3032
        %v3034 = vmul.f32 %v2735, 1.442695
        %v3035 = vpow.pop %v3034
        %v3036 = vmul.f32 %v2736, 1.442695
        %v3037 = vpow.pop %v3036
        %v3038 = vmul.f32 %v2737, 1.442695
        %v3039 = vpow.pop %v3038
        %v3040 = vmul.f32 %v2738, 1.442695
        %v3041 = vpow.pop %v3040
        %v3042 = vmul.f32 %v2739, 1.442695
        %v3043 = vpow.pop %v3042
        %v3044 = vmul.f32 %v2740, 1.442695
        %v3045 = vpow.pop %v3044
        %v3046 = vmul.f32 %v2741, 1.442695
        %v3047 = vpow.pop %v3046
        %v3048 = vmul.f32 %v2742, 1.442695
        %v3049 = vpow.pop %v3048
        %v3050 = vmul.f32 %v2743, 1.442695
        %v3051 = vpow.pop %v3050
        %v3052 = vmul.f32 %v2744, 1.442695
        %v3053 = vpow.pop %v3052
        %v3054 = vmul.f32 %v2745, 1.442695
        %v3055 = vpow.pop %v3054
        %v3056 = vmul.f32 %v2746, 1.442695
        %v3057 = vpow.pop %v3056
        %v3058 = vmul.f32 %v2747, 1.442695
        %v3059 = vpow.pop %v3058
        %v3060 = vmul.f32 %v2748, 1.442695
        %v3061 = vpow.pop %v3060
        %v3062 = vmul.f32 %v2749, 1.442695
        %v3063 = vpow.pop %v3062
        %v3064 = vmul.f32 %v2750, 1.442695
        %v3065 = vpow.pop %v3064
        %v3066 = vmul.f32 %v2751, 1.442695
        %v3067 = vpow.pop %v3066
        %v3068 = vmul.f32 %v2752, 1.442695
        %v3069 = vpow.pop %v3068
        %v3070 = vmul.f32 %v2753, 1.442695
        %v3071 = vpow.pop %v3070
        %v3072 = vmul.f32 %v2754, 1.442695
        %v3073 = vpow.pop %v3072
        %v3074 = vmul.f32 %v2755, 1.442695
        %v3075 = vpow.pop %v3074
        %v3076 = vmul.f32 %v2756, 1.442695
        %v3077 = vpow.pop %v3076
        %v3078 = vmul.f32 %v2757, 1.442695
        %v3079 = vpow.pop %v3078
        %v3080 = vmul.f32 %v2758, 1.442695
        %v3081 = vpow.pop %v3080
        %v3082 = vmul.f32 %v2759, 1.442695
        %v3083 = vpow.pop %v3082
        %v3084 = vmul.f32 %v2760, 1.442695
        %v3085 = vpow.pop %v3084
        %v3086 = vmul.f32 %v2761, 1.442695
        %v3087 = vpow.pop %v3086
        %v3088 = vmul.f32 %v2762, 1.442695
        %v3089 = vpow.pop %v3088
        %v3090 = vmul.f32 %v2763, 1.442695
        %v3091 = vpow.pop %v3090
        %v3092 = vmul.f32 %v2764, 1.442695
        %v3093 = vpow.pop %v3092
        %v3094 = vmul.f32 %v2765, 1.442695
        %v3095 = vpow.pop %v3094
        %v3096 = vmul.f32 %v2766, 1.442695
        %v3097 = vpow.pop %v3096
        %v3098 = vmul.f32 %v2767, 1.442695
        %v3099 = vpow.pop %v3098
        %v3100 = vmul.f32 %v2768, 1.442695
        %v3101 = vpow.pop %v3100
        %v3102 = vmul.f32 %v2769, 1.442695
        %v3103 = vpow.pop %v3102
        %v3104 = vmul.f32 %v2770, 1.442695
        %v3105 = vpow.pop %v3104
        %v3106 = vmul.f32 %v2771, 1.442695
        %v3107 = vpow.pop %v3106
        %v3108 = vmul.f32 %v2772, 1.442695
        %v3109 = vpow.pop %v3108
        %v3110 = vmul.f32 %v2773, 1.442695
        %v3111 = vpow.pop %v3110
        %v3112 = vmul.f32 %v2774, 1.442695
        %v3113 = vpow.pop %v3112
        %v3114 = vmul.f32 %v2775, 1.442695
        %v3115 = vpow.pop %v3114
        %v3116 = vmul.f32 %v2776, 1.442695
        %v3117 = vpow.pop %v3116
        %v3118 = vmul.f32 %v2777, 1.442695
        %v3119 = vpow.pop %v3118
        %v3120 = vmul.f32 %v2778, 1.442695
        %v3121 = vpow.pop %v3120
        %v3122 = vmul.f32 %v2779, 1.442695
        %v3123 = vpow.pop %v3122
        %v3124 = vmul.f32 %v2780, 1.442695
        %v3125 = vpow.pop %v3124
        %v3126 = vmul.f32 %v2781, 1.442695
        %v3127 = vpow.pop %v3126
        %v3128 = vmul.f32 %v2782, 1.442695
        %v3129 = vpow.pop %v3128
        %v3130 = vmul.f32 %v2783, 1.442695
        %v3131 = vpow.pop %v3130
        %v3132 = vmul.f32 %v2784, 1.442695
        %v3133 = vpow.pop %v3132
        %v3134 = vmul.f32 %v2785, 1.442695
        %v3135 = vpow.pop %v3134
        %v3136 = vmul.f32 %v2786, 1.442695
        %v3137 = vpow.pop %v3136
        %v3138 = vmul.f32 %v2787, 1.442695
        %v3139 = vpow.pop %v3138
        %v3140 = vmul.f32 %v2788, 1.442695
        %v3141 = vpow.pop %v3140
        %v3142 = vmul.f32 %v2789, 1.442695
        %v3143 = vpow.pop %v3142
        %v3144 = vmul.f32 %v2790, 1.442695
        %v3145 = vpow.pop %v3144
        %v3146 = vmul.f32 %v2791, 1.442695
        %v3147 = vpow.pop %v3146
        %v3148 = vmul.f32 %v2792, 1.442695
        %v3149 = vpow.pop %v3148
        %v3150 = vmul.f32 %v2793, 1.442695
        %v3151 = vpow.pop %v3150
        %v3152 = vmul.f32 %v2794, 1.442695
        %v3153 = vpow.pop %v3152
        %v3154 = vmul.f32 %v2795, 1.442695
        %v3155 = vpow.pop %v3154
        %v3156 = vmul.f32 %v2796, 1.442695
        %v3157 = vpow.pop %v3156
        %v3158 = vmul.f32 %v2797, 1.442695
        %v3159 = vpow.pop %v3158
        %v3160 = vmul.f32 %v2798, 1.442695
        %v3161 = vpow.pop %v3160
        %v3162 = vmul.f32 %v2799, 1.442695
        %v3163 = vpow.pop %v3162
        %v3164 = vmul.f32 %v2800, 1.442695
        %v3165 = vpow.pop %v3164
        %v3166 = vmul.f32 %v2801, 1.442695
        %v3167 = vpow.pop %v3166
        %v3168 = vmul.f32 %v2802, 1.442695
        %v3169 = vpow.pop %v3168
        %v3170 = vmul.f32 %v2803, 1.442695
        %v3171 = vpow.pop %v3170
        %v3172 = vmul.f32 %v2804, 1.442695
        %v3173 = vpow.pop %v3172
        %v3174 = vmul.f32 %v2805, 1.442695
        %v3175 = vpow.pop %v3174
        %v3176 = vmul.f32 %v2806, 1.442695
        %v3177 = vpow.pop %v3176
        %v3178 = vmul.f32 %v2807, 1.442695
        %v3179 = vpow.pop %v3178
        %v3180 = vmul.f32 %v2808, 1.442695
        %v3181 = vpow.pop %v3180
        %v3182 = vmul.f32 %v2809, 1.442695
        %v3183 = vpow.pop %v3182
        %v3184 = vmul.f32 %v2810, 1.442695
        %v3185 = vpow.pop %v3184
        %v3186 = vmul.f32 %v2811, 1.442695
        %v3187 = vpow.pop %v3186
        %v3188 = vmul.f32 %v2812, 1.442695
        %v3189 = vpow.pop %v3188
        %v3190 = vmul.f32 %v2813, 1.442695
        %v3191 = vpow.pop %v3190
        %v3192 = vmul.f32 %v2814, 1.442695
        %v3193 = vpow.pop %v3192
        %v3194 = vmul.f32 %v2815, 1.442695
        %v3195 = vpow.pop %v3194
        %v3196 = vmul.f32 %v2816, 1.442695
        %v3197 = vpow.pop %v3196
        %v3198 = vmul.f32 %v2817, 1.442695
        %v3199 = vpow.pop %v3198
        %v3200 = vmul.f32 %v2818, 1.442695
        %v3201 = vpow.pop %v3200
        %v3202 = vmul.f32 %v2819, 1.442695
        %v3203 = vpow.pop %v3202
        %v3204 = vmul.f32 %v2820, 1.442695
        %v3205 = vpow.pop %v3204
        %v3206 = vmul.f32 %v2821, 1.442695
        %v3207 = vpow.pop %v3206
        %v3208 = vmul.f32 %v2822, 1.442695
        %v3209 = vpow.pop %v3208
        %v3210 = vmul.f32 %v2823, 1.442695
        %v3211 = vpow.pop %v3210
        %v3212 = vmul.f32 %v2824, 1.442695
        %v3213 = vpow.pop %v3212
        %v3214 = vmul.f32 %v2825, 1.442695
        %v3215 = vpow.pop %v3214
        %v3216 = vmul.f32 %v2826, 1.442695
        %v3217 = vpow.pop %v3216
        %v3218 = vmul.f32 %v2827, 1.442695
        %v3219 = vpow.pop %v3218
        %v3220 = vmul.f32 %v2828, 1.442695
        %v3221 = vpow.pop %v3220
        %v3222 = vmul.f32 %v2829, 1.442695
        %v3223 = vpow.pop %v3222
        %v3224 = vmul.f32 %v2830, 1.442695
        %v3225 = vpow.pop %v3224
        %v3226 = vmul.f32 %v2831, 1.442695
        %v3227 = vpow.pop %v3226
        %v3228 = vmul.f32 %v2832, 1.442695
        %v3229 = vpow.pop %v3228
        %v3230 = vmul.f32 %v2833, 1.442695
        %v3231 = vpow.pop %v3230
        %v3232 = vmul.f32 %v2834, 1.442695
        %v3233 = vpow.pop %v3232
        %v3234 = vmul.f32 %v2835, 1.442695
        %v3235 = vpow.pop %v3234
        %v3236 = vmul.f32 %v2836, 1.442695
        %v3237 = vpow.pop %v3236
        %v3238 = vmul.f32 %v2837, 1.442695
        %v3239 = vpow.pop %v3238
        %v3240 = vmul.f32 %v2838, 1.442695
        %v3241 = vpow.pop %v3240
        %v3242 = vmul.f32 %v2839, 1.442695
        %v3243 = vpow.pop %v3242
        %v3244 = vmul.f32 %v2840, 1.442695
        %v3245 = vpow.pop %v3244
        %v3246 = vmul.f32 %v2841, 1.442695
        %v3247 = vpow.pop %v3246
        %v3248 = vmul.f32 %v2842, 1.442695
        %v3249 = vpow.pop %v3248
        %v3250 = vmul.f32 %v2843, 1.442695
        %v3251 = vpow.pop %v3250
        %v3252 = vmul.f32 %v2844, 1.442695
        %v3253 = vpow.pop %v3252
        %v3254 = vmul.f32 %v2845, 1.442695
        %v3255 = vpow.pop %v3254
        %v3256 = vmul.f32 %v2846, 1.442695
        %v3257 = vpow.pop %v3256
        %v3258 = vmul.f32 %v2847, 1.442695
        %v3259 = vpow.pop %v3258
        %v3260 = vmul.f32 %v2848, 1.442695
        %v3261 = vpow.pop %v3260
        %v3262 = vmul.f32 %v2849, 1.442695
        %v3263 = vpow.pop %v3262
        %v3264 = vmul.f32 %v2850, 1.442695
        %v3265 = vpow.pop %v3264
        %v3266 = vmul.f32 %v2851, 1.442695
        %v3267 = vpow.pop %v3266
        %v3268 = vmul.f32 %v2852, 1.442695
        %v3269 = vpow.pop %v3268
        %v3270 = vmul.f32 %v2853, 1.442695
        %v3271 = vpow.pop %v3270
        %v3272 = vmul.f32 %v2854, 1.442695
        %v3273 = vpow.pop %v3272
        %v3274 = vmul.f32 %v2855, 1.442695
        %v3275 = vpow.pop %v3274
        %v3276 = vmul.f32 %v2856, 1.442695
        %v3277 = vpow.pop %v3276
        %v3278 = vmul.f32 %v2857, 1.442695
        %v3279 = vpow.pop %v3278
        %v3280 = vmul.f32 %v2858, 1.442695
        %v3281 = vpow.pop %v3280
        %v3282 = vmul.f32 %v2859, 1.442695
        %v3283 = vpow.pop %v3282
        %v3284 = vmul.f32 %v2860, 1.442695
        %v3285 = vpow.pop %v3284
        %v3286 = vmul.f32 %v2861, 1.442695
        %v3287 = vpow.pop %v3286
        %v3288 = vmul.f32 %v2862, 1.442695
        %v3289 = vpow.pop %v3288
        %v3290 = vmul.f32 %v2863, 1.442695
        %v3291 = vpow.pop %v3290
        %v3292 = vmul.f32 %v2864, 1.442695
        %v3293 = vpow.pop %v3292
        %v3294 = vmul.f32 %v2865, 1.442695
        %v3295 = vpow.pop %v3294
        %v3296 = vmul.f32 %v2866, 1.442695
        %v3297 = vpow.pop %v3296
        %v3298 = vmul.f32 %v2867, 1.442695
        %v3299 = vpow.pop %v3298
        %v3300 = vmul.f32 %v2868, 1.442695
        %v3301 = vpow.pop %v3300
        %v3302 = vmul.f32 %v2869, 1.442695
        %v3303 = vpow.pop %v3302
        %v3304 = vmul.f32 %v2870, 1.442695
        %v3305 = vpow.pop %v3304
        %v3306 = vmul.f32 %v2871, 1.442695
        %v3307 = vpow.pop %v3306
        %v3308 = vmul.f32 %v2872, 1.442695
        %v3309 = vpow.pop %v3308
        %v3310 = vmul.f32 %v2873, 1.442695
        %v3311 = vpow.pop %v3310
        %v3312 = vmul.f32 %v2874, 1.442695
        %v3313 = vpow.pop %v3312
        %v3314 = vmul.f32 %v2875, 1.442695
        %v3315 = vpow.pop %v3314
        %v3316 = vmul.f32 %v2876, 1.442695
        %v3317 = vpow.pop %v3316
        %v3318 = vmul.f32 %v2877, 1.442695
        %v3319 = vpow.pop %v3318
        %v3320 = vmul.f32 %v2878, 1.442695
        %v3321 = vpow.pop %v3320
        %v3322 = vmul.f32 %v2879, 1.442695
        %v3323 = vpow.pop %v3322
        %v3324 = vmul.f32 %v2880, 1.442695
        %v3325 = vpow.pop %v3324
        %v3326 = vmul.f32 %v2881, 1.442695
        %v3327 = vpow.pop %v3326
        %v3328 = vmul.f32 %v2882, 1.442695
        %v3329 = vpow.pop %v3328
        %v3330 = vmul.f32 %v2883, 1.442695
        %v3331 = vpow.pop %v3330
        %v3332 = vmul.f32 %v2884, 1.442695
        %v3333 = vpow.pop %v3332
        %v3334 = vmul.f32 %v2885, 1.442695
        %v3335 = vpow.pop %v3334
        %v3336 = vmul.f32 %v2886, 1.442695
        %v3337 = vpow.pop %v3336
        %v3338 = vmul.f32 %v2887, 1.442695
        %v3339 = vpow.pop %v3338
        %v3340 = vmul.f32 %v2888, 1.442695
        %v3341 = vpow.pop %v3340
        %v3342 = vmul.f32 %v2889, 1.442695
        %v3343 = vpow.pop %v3342
        %v3344 = vmul.f32 %v2890, 1.442695
        %v3345 = vpow.pop %v3344
        %v3346 = vmul.f32 %v2891, 1.442695
        %v3347 = vpow.pop %v3346
        %v3348 = vmul.f32 %v2892, 1.442695
        %v3349 = vpow.pop %v3348
        %v3350 = vmul.f32 %v2893, 1.442695
        %v3351 = vpow.pop %v3350
        %v3352 = vmul.f32 %v2894, 1.442695
        %v3353 = vpow.pop %v3352
        %v3354 = vmul.f32 %v2895, 1.442695
        %v3355 = vpow.pop %v3354
        %v3356 = vmul.f32 %v2896, 1.442695
        %v3357 = vpow.pop %v3356
        %v3358 = vmul.f32 %v2897, 1.442695
        %v3359 = vpow.pop %v3358
        %v3360 = vmul.f32 %v2898, 1.442695
        %v3361 = vpow.pop %v3360
        %v3362 = vmul.f32 %v2899, 1.442695
        %v3363 = vpow.pop %v3362
        %v3364 = vmul.f32 %v2900, 1.442695
        %v3365 = vpow.pop %v3364
        %v3366 = vmul.f32 %v2901, 1.442695
        %v3367 = vpow.pop %v3366
        %v3368 = vmul.f32 %v2902, 1.442695
        %v3369 = vpow.pop %v3368
        %v3370 = vmul.f32 %v2903, 1.442695
        %v3371 = vpow.pop %v3370
        %v3372 = vmul.f32 %v2904, 1.442695
        %v3373 = vpow.pop %v3372
        %v3374 = vmul.f32 %v2905, 1.442695
        %v3375 = vpow.pop %v3374
        %v3376 = vmul.f32 %v2906, 1.442695
        %v3377 = vpow.pop %v3376
        %v3378 = vmul.f32 %v2907, 1.442695
        %v3379 = vpow.pop %v3378
        %v3380 = vmul.f32 %v2908, 1.442695
        %v3381 = vpow.pop %v3380
        %v3382 = vmul.f32 %v2909, 1.442695
        %v3383 = vpow.pop %v3382
        %v3384 = vmul.f32 %v2910, 1.442695
        %v3385 = vpow.pop %v3384
        %v3386 = vmul.f32 %v2911, 1.442695
        %v3387 = vpow.pop %v3386
        %v3388 = vmul.f32 %v2912, 1.442695
        %v3389 = vpow.pop %v3388
        %v3390 = vmul.f32 %v2913, 1.442695
        %v3391 = vpow.pop %v3390
        %v3392 = vmul.f32 %v2914, 1.442695
        %v3393 = vpow.pop %v3392
        %v3394 = vmul.f32 %v2915, 1.442695
        %v3395 = vpow.pop %v3394
        %v3396 = vmul.f32 %v2916, 1.442695
        %v3397 = vpow.pop %v3396
        %v3398 = vmul.f32 %v2917, 1.442695
        %v3399 = vpow.pop %v3398
        %v3400 = vmul.f32 %v2918, 1.442695
        %v3401 = vpow.pop %v3400
        %v3402 = vmul.f32 %v2919, 1.442695
        %v3403 = vpow.pop %v3402
        %v3404 = vmul.f32 %v2920, 1.442695
        %v3405 = vpow.pop %v3404
        %v3406 = vmul.f32 %v2921, 1.442695
        %v3407 = vpow.pop %v3406
        %v3408 = vmul.f32 %v2922, 1.442695
        %v3409 = vpow.pop %v3408
        %v3410 = vmul.f32 %v2923, 1.442695
        %v3411 = vpow.pop %v3410
        %v3412 = vmul.f32 %v2924, 1.442695
        %v3413 = vpow.pop %v3412
        %v3414 = vmul.f32 %v2925, 1.442695
        %v3415 = vpow.pop %v3414
        %v3416 = vmul.f32 %v2926, 1.442695
        %v3417 = vpow.pop %v3416
        %v3418 = vmul.f32 %v2927, 1.442695
        %v3419 = vpow.pop %v3418
        %v3420 = vmul.f32 %v2928, 1.442695
        %v3421 = vpow.pop %v3420
        %v3422 = vmul.f32 %v2929, 1.442695
        %v3423 = vpow.pop %v3422
        %v3424 = vmul.f32 %v2930, 1.442695
        %v3425 = vpow.pop %v3424
        %v3426 = vmul.f32 %v2931, 1.442695
        %v3427 = vpow.pop %v3426
        %v3428 = vmul.f32 %v2932, 1.442695
        %v3429 = vpow.pop %v3428
        %v3430 = vmul.f32 %v2933, 1.442695
        %v3431 = vpow.pop %v3430
        %v3432 = vmul.f32 %v2934, 1.442695
        %v3433 = vpow.pop %v3432
        %v3434 = vmul.f32 %v2935, 1.442695
        %v3435 = vpow.pop %v3434
        %v3436 = vmul.f32 %v2936, 1.442695
        %v3437 = vpow.pop %v3436
        %v3438 = vmul.f32 %v2937, 1.442695
        %v3439 = vpow.pop %v3438
        %v3440 = vmul.f32 %v2938, 1.442695
        %v3441 = vpow.pop %v3440
        %v3442 = vmul.f32 %v2939, 1.442695
        %v3443 = vpow.pop %v3442
        %v3444 = vmul.f32 %v2940, 1.442695
        %v3445 = vpow.pop %v3444
        %v3446 = vmul.f32 %v2941, 1.442695
        %v3447 = vpow.pop %v3446
        %v3448 = vmul.f32 %v2942, 1.442695
        %v3449 = vpow.pop %v3448
        %v3450 = vmul.f32 %v2943, 1.442695
        %v3451 = vpow.pop %v3450
        %v3452 = vmul.f32 %v2944, 1.442695
        %v3453 = vpow.pop %v3452
        %v3454 = vmul.f32 %v2945, 1.442695
        %v3455 = vpow.pop %v3454
        %v3456 = vmul.f32 %v2946, 1.442695
        %v3457 = vpow.pop %v3456
        %v3458 = vmul.f32 %v2947, 1.442695
        %v3459 = vpow.pop %v3458
        %v3460 = vld [vmem:[#allocation8] sm:$0xff]
        %v3461 = vld [vmem:[#allocation8 + $0x8] sm:$0xff]
        %v3462 = vld [vmem:[#allocation8 + $0x10] sm:$0xff]
        %v3463 = vld [vmem:[#allocation8 + $0x18] sm:$0xff]
        %v3464 = vld [vmem:[#allocation8 + $0x20] sm:$0xff]
        %v3465 = vld [vmem:[#allocation8 + $0x28] sm:$0xff]
        %v3466 = vld [vmem:[#allocation8 + $0x30] sm:$0xff]
        %v3467 = vld [vmem:[#allocation8 + $0x38] sm:$0xff]
        %v3468 = vld [vmem:[#allocation10] sm:$0xff]
        %v3469 = vld [vmem:[#allocation10 + $0x8] sm:$0xff]
        %v3470 = vld [vmem:[#allocation10 + $0x10] sm:$0xff]
        %v3471 = vld [vmem:[#allocation10 + $0x18] sm:$0xff]
        %v3472 = vld [vmem:[#allocation10 + $0x20] sm:$0xff]
        %v3473 = vld [vmem:[#allocation10 + $0x28] sm:$0xff]
        %v3474 = vld [vmem:[#allocation10 + $0x30] sm:$0xff]
        %v3475 = vld [vmem:[#allocation10 + $0x38] sm:$0xff]
        %v3476 = vld [vmem:[%s320] sm:$0xff]
        %v3477 = vld [vmem:[%s320 + $0x8] sm:$0xff]
        %v3478 = vld [vmem:[%s320 + $0x10] sm:$0xff]
        %v3479 = vld [vmem:[%s320 + $0x18] sm:$0xff]
        %v3480 = vld [vmem:[%s320 + $0x20] sm:$0xff]
        %v3481 = vld [vmem:[%s320 + $0x28] sm:$0xff]
        %v3482 = vld [vmem:[%s320 + $0x30] sm:$0xff]
        %v3483 = vld [vmem:[%s320 + $0x38] sm:$0xff]
        %v3484 = vld [vmem:[%s320 + $0x40] sm:$0xff]
        %v3485 = vld [vmem:[%s320 + $0x48] sm:$0xff]
        %v3486 = vld [vmem:[%s320 + $0x50] sm:$0xff]
        %v3487 = vld [vmem:[%s320 + $0x58] sm:$0xff]
        %v3488 = vld [vmem:[%s320 + $0x60] sm:$0xff]
        %v3489 = vld [vmem:[%s320 + $0x68] sm:$0xff]
        %v3490 = vld [vmem:[%s320 + $0x70] sm:$0xff]
        %v3491 = vld [vmem:[%s320 + $0x78] sm:$0xff]
        %v3492 = vld [vmem:[%s320 + $0x80] sm:$0xff]
        %v3493 = vld [vmem:[%s320 + $0x88] sm:$0xff]
        %v3494 = vld [vmem:[%s320 + $0x90] sm:$0xff]
        %v3495 = vld [vmem:[%s320 + $0x98] sm:$0xff]
        %v3496 = vld [vmem:[%s320 + $0xa0] sm:$0xff]
        %v3497 = vld [vmem:[%s320 + $0xa8] sm:$0xff]
        %v3498 = vld [vmem:[%s320 + $0xb0] sm:$0xff]
        %v3499 = vld [vmem:[%s320 + $0xb8] sm:$0xff]
        %v3500 = vld [vmem:[%s320 + $0xc0] sm:$0xff]
        %v3501 = vld [vmem:[%s320 + $0xc8] sm:$0xff]
        %v3502 = vld [vmem:[%s320 + $0xd0] sm:$0xff]
        %v3503 = vld [vmem:[%s320 + $0xd8] sm:$0xff]
        %v3504 = vld [vmem:[%s320 + $0xe0] sm:$0xff]
        %v3505 = vld [vmem:[%s320 + $0xe8] sm:$0xff]
        %v3506 = vld [vmem:[%s320 + $0xf0] sm:$0xff]
        %v3507 = vld [vmem:[%s320 + $0xf8] sm:$0xff]
        %v3508 = vld [vmem:[%s320 + $0x100] sm:$0xff]
        %v3509 = vld [vmem:[%s320 + $0x108] sm:$0xff]
        %v3510 = vld [vmem:[%s320 + $0x110] sm:$0xff]
        %v3511 = vld [vmem:[%s320 + $0x118] sm:$0xff]
        %v3512 = vld [vmem:[%s320 + $0x120] sm:$0xff]
        %v3513 = vld [vmem:[%s320 + $0x128] sm:$0xff]
        %v3514 = vld [vmem:[%s320 + $0x130] sm:$0xff]
        %v3515 = vld [vmem:[%s320 + $0x138] sm:$0xff]
        %v3516 = vld [vmem:[%s320 + $0x140] sm:$0xff]
        %v3517 = vld [vmem:[%s320 + $0x148] sm:$0xff]
        %v3518 = vld [vmem:[%s320 + $0x150] sm:$0xff]
        %v3519 = vld [vmem:[%s320 + $0x158] sm:$0xff]
        %v3520 = vld [vmem:[%s320 + $0x160] sm:$0xff]
        %v3521 = vld [vmem:[%s320 + $0x168] sm:$0xff]
        %v3522 = vld [vmem:[%s320 + $0x170] sm:$0xff]
        %v3523 = vld [vmem:[%s320 + $0x178] sm:$0xff]
        %v3524 = vld [vmem:[%s320 + $0x180] sm:$0xff]
        %v3525 = vld [vmem:[%s320 + $0x188] sm:$0xff]
        %v3526 = vld [vmem:[%s320 + $0x190] sm:$0xff]
        %v3527 = vld [vmem:[%s320 + $0x198] sm:$0xff]
        %v3528 = vld [vmem:[%s320 + $0x1a0] sm:$0xff]
        %v3529 = vld [vmem:[%s320 + $0x1a8] sm:$0xff]
        %v3530 = vld [vmem:[%s320 + $0x1b0] sm:$0xff]
        %v3531 = vld [vmem:[%s320 + $0x1b8] sm:$0xff]
        %v3532 = vld [vmem:[%s320 + $0x1c0] sm:$0xff]
        %v3533 = vld [vmem:[%s320 + $0x1c8] sm:$0xff]
        %v3534 = vld [vmem:[%s320 + $0x1d0] sm:$0xff]
        %v3535 = vld [vmem:[%s320 + $0x1d8] sm:$0xff]
        %v3536 = vld [vmem:[%s320 + $0x1e0] sm:$0xff]
        %v3537 = vld [vmem:[%s320 + $0x1e8] sm:$0xff]
        %v3538 = vld [vmem:[%s320 + $0x1f0] sm:$0xff]
        %v3539 = vld [vmem:[%s320 + $0x1f8] sm:$0xff]
        %v3540 = vld [vmem:[%s320 + $0x200] sm:$0xff]
        %v3541 = vld [vmem:[%s320 + $0x208] sm:$0xff]
        %v3542 = vld [vmem:[%s320 + $0x210] sm:$0xff]
        %v3543 = vld [vmem:[%s320 + $0x218] sm:$0xff]
        %v3544 = vld [vmem:[%s320 + $0x220] sm:$0xff]
        %v3545 = vld [vmem:[%s320 + $0x228] sm:$0xff]
        %v3546 = vld [vmem:[%s320 + $0x230] sm:$0xff]
        %v3547 = vld [vmem:[%s320 + $0x238] sm:$0xff]
        %v3548 = vld [vmem:[%s320 + $0x240] sm:$0xff]
        %v3549 = vld [vmem:[%s320 + $0x248] sm:$0xff]
        %v3550 = vld [vmem:[%s320 + $0x250] sm:$0xff]
        %v3551 = vld [vmem:[%s320 + $0x258] sm:$0xff]
        %v3552 = vld [vmem:[%s320 + $0x260] sm:$0xff]
        %v3553 = vld [vmem:[%s320 + $0x268] sm:$0xff]
        %v3554 = vld [vmem:[%s320 + $0x270] sm:$0xff]
        %v3555 = vld [vmem:[%s320 + $0x278] sm:$0xff]
        %v3556 = vld [vmem:[%s320 + $0x280] sm:$0xff]
        %v3557 = vld [vmem:[%s320 + $0x288] sm:$0xff]
        %v3558 = vld [vmem:[%s320 + $0x290] sm:$0xff]
        %v3559 = vld [vmem:[%s320 + $0x298] sm:$0xff]
        %v3560 = vld [vmem:[%s320 + $0x2a0] sm:$0xff]
        %v3561 = vld [vmem:[%s320 + $0x2a8] sm:$0xff]
        %v3562 = vld [vmem:[%s320 + $0x2b0] sm:$0xff]
        %v3563 = vld [vmem:[%s320 + $0x2b8] sm:$0xff]
        %v3564 = vld [vmem:[%s320 + $0x2c0] sm:$0xff]
        %v3565 = vld [vmem:[%s320 + $0x2c8] sm:$0xff]
        %v3566 = vld [vmem:[%s320 + $0x2d0] sm:$0xff]
        %v3567 = vld [vmem:[%s320 + $0x2d8] sm:$0xff]
        %v3568 = vld [vmem:[%s320 + $0x2e0] sm:$0xff]
        %v3569 = vld [vmem:[%s320 + $0x2e8] sm:$0xff]
        %v3570 = vld [vmem:[%s320 + $0x2f0] sm:$0xff]
        %v3571 = vld [vmem:[%s320 + $0x2f8] sm:$0xff]
        %v3572 = vld [vmem:[%s320 + $0x300] sm:$0xff]
        %v3573 = vld [vmem:[%s320 + $0x308] sm:$0xff]
        %v3574 = vld [vmem:[%s320 + $0x310] sm:$0xff]
        %v3575 = vld [vmem:[%s320 + $0x318] sm:$0xff]
        %v3576 = vld [vmem:[%s320 + $0x320] sm:$0xff]
        %v3577 = vld [vmem:[%s320 + $0x328] sm:$0xff]
        %v3578 = vld [vmem:[%s320 + $0x330] sm:$0xff]
        %v3579 = vld [vmem:[%s320 + $0x338] sm:$0xff]
        %v3580 = vld [vmem:[%s320 + $0x340] sm:$0xff]
        %v3581 = vld [vmem:[%s320 + $0x348] sm:$0xff]
        %v3582 = vld [vmem:[%s320 + $0x350] sm:$0xff]
        %v3583 = vld [vmem:[%s320 + $0x358] sm:$0xff]
        %v3584 = vld [vmem:[%s320 + $0x360] sm:$0xff]
        %v3585 = vld [vmem:[%s320 + $0x368] sm:$0xff]
        %v3586 = vld [vmem:[%s320 + $0x370] sm:$0xff]
        %v3587 = vld [vmem:[%s320 + $0x378] sm:$0xff]
        %v3588 = vld [vmem:[%s320 + $0x380] sm:$0xff]
        %v3589 = vld [vmem:[%s320 + $0x388] sm:$0xff]
        %v3590 = vld [vmem:[%s320 + $0x390] sm:$0xff]
        %v3591 = vld [vmem:[%s320 + $0x398] sm:$0xff]
        %v3592 = vld [vmem:[%s320 + $0x3a0] sm:$0xff]
        %v3593 = vld [vmem:[%s320 + $0x3a8] sm:$0xff]
        %v3594 = vld [vmem:[%s320 + $0x3b0] sm:$0xff]
        %v3595 = vld [vmem:[%s320 + $0x3b8] sm:$0xff]
        %v3596 = vld [vmem:[%s320 + $0x3c0] sm:$0xff]
        %v3597 = vld [vmem:[%s320 + $0x3c8] sm:$0xff]
        %v3598 = vld [vmem:[%s320 + $0x3d0] sm:$0xff]
        %v3599 = vld [vmem:[%s320 + $0x3d8] sm:$0xff]
        %v3600 = vld [vmem:[%s320 + $0x3e0] sm:$0xff]
        %v3601 = vld [vmem:[%s320 + $0x3e8] sm:$0xff]
        %v3602 = vld [vmem:[%s320 + $0x3f0] sm:$0xff]
        %v3603 = vld [vmem:[%s320 + $0x3f8] sm:$0xff]
        %v3604 = vld [vmem:[%s320 + $0x400] sm:$0xff]
        %v3605 = vld [vmem:[%s320 + $0x408] sm:$0xff]
        %v3606 = vld [vmem:[%s320 + $0x410] sm:$0xff]
        %v3607 = vld [vmem:[%s320 + $0x418] sm:$0xff]
        %v3608 = vld [vmem:[%s320 + $0x420] sm:$0xff]
        %v3609 = vld [vmem:[%s320 + $0x428] sm:$0xff]
        %v3610 = vld [vmem:[%s320 + $0x430] sm:$0xff]
        %v3611 = vld [vmem:[%s320 + $0x438] sm:$0xff]
        %v3612 = vld [vmem:[%s320 + $0x440] sm:$0xff]
        %v3613 = vld [vmem:[%s320 + $0x448] sm:$0xff]
        %v3614 = vld [vmem:[%s320 + $0x450] sm:$0xff]
        %v3615 = vld [vmem:[%s320 + $0x458] sm:$0xff]
        %v3616 = vld [vmem:[%s320 + $0x460] sm:$0xff]
        %v3617 = vld [vmem:[%s320 + $0x468] sm:$0xff]
        %v3618 = vld [vmem:[%s320 + $0x470] sm:$0xff]
        %v3619 = vld [vmem:[%s320 + $0x478] sm:$0xff]
        %v3620 = vld [vmem:[%s320 + $0x480] sm:$0xff]
        %v3621 = vld [vmem:[%s320 + $0x488] sm:$0xff]
        %v3622 = vld [vmem:[%s320 + $0x490] sm:$0xff]
        %v3623 = vld [vmem:[%s320 + $0x498] sm:$0xff]
        %v3624 = vld [vmem:[%s320 + $0x4a0] sm:$0xff]
        %v3625 = vld [vmem:[%s320 + $0x4a8] sm:$0xff]
        %v3626 = vld [vmem:[%s320 + $0x4b0] sm:$0xff]
        %v3627 = vld [vmem:[%s320 + $0x4b8] sm:$0xff]
        %v3628 = vld [vmem:[%s320 + $0x4c0] sm:$0xff]
        %v3629 = vld [vmem:[%s320 + $0x4c8] sm:$0xff]
        %v3630 = vld [vmem:[%s320 + $0x4d0] sm:$0xff]
        %v3631 = vld [vmem:[%s320 + $0x4d8] sm:$0xff]
        %v3632 = vld [vmem:[%s320 + $0x4e0] sm:$0xff]
        %v3633 = vld [vmem:[%s320 + $0x4e8] sm:$0xff]
        %v3634 = vld [vmem:[%s320 + $0x4f0] sm:$0xff]
        %v3635 = vld [vmem:[%s320 + $0x4f8] sm:$0xff]
        %v3636 = vld [vmem:[%s320 + $0x500] sm:$0xff]
        %v3637 = vld [vmem:[%s320 + $0x508] sm:$0xff]
        %v3638 = vld [vmem:[%s320 + $0x510] sm:$0xff]
        %v3639 = vld [vmem:[%s320 + $0x518] sm:$0xff]
        %v3640 = vld [vmem:[%s320 + $0x520] sm:$0xff]
        %v3641 = vld [vmem:[%s320 + $0x528] sm:$0xff]
        %v3642 = vld [vmem:[%s320 + $0x530] sm:$0xff]
        %v3643 = vld [vmem:[%s320 + $0x538] sm:$0xff]
        %v3644 = vld [vmem:[%s320 + $0x540] sm:$0xff]
        %v3645 = vld [vmem:[%s320 + $0x548] sm:$0xff]
        %v3646 = vld [vmem:[%s320 + $0x550] sm:$0xff]
        %v3647 = vld [vmem:[%s320 + $0x558] sm:$0xff]
        %v3648 = vld [vmem:[%s320 + $0x560] sm:$0xff]
        %v3649 = vld [vmem:[%s320 + $0x568] sm:$0xff]
        %v3650 = vld [vmem:[%s320 + $0x570] sm:$0xff]
        %v3651 = vld [vmem:[%s320 + $0x578] sm:$0xff]
        %v3652 = vld [vmem:[%s320 + $0x580] sm:$0xff]
        %v3653 = vld [vmem:[%s320 + $0x588] sm:$0xff]
        %v3654 = vld [vmem:[%s320 + $0x590] sm:$0xff]
        %v3655 = vld [vmem:[%s320 + $0x598] sm:$0xff]
        %v3656 = vld [vmem:[%s320 + $0x5a0] sm:$0xff]
        %v3657 = vld [vmem:[%s320 + $0x5a8] sm:$0xff]
        %v3658 = vld [vmem:[%s320 + $0x5b0] sm:$0xff]
        %v3659 = vld [vmem:[%s320 + $0x5b8] sm:$0xff]
        %v3660 = vld [vmem:[%s320 + $0x5c0] sm:$0xff]
        %v3661 = vld [vmem:[%s320 + $0x5c8] sm:$0xff]
        %v3662 = vld [vmem:[%s320 + $0x5d0] sm:$0xff]
        %v3663 = vld [vmem:[%s320 + $0x5d8] sm:$0xff]
        %v3664 = vld [vmem:[%s320 + $0x5e0] sm:$0xff]
        %v3665 = vld [vmem:[%s320 + $0x5e8] sm:$0xff]
        %v3666 = vld [vmem:[%s320 + $0x5f0] sm:$0xff]
        %v3667 = vld [vmem:[%s320 + $0x5f8] sm:$0xff]
        %v3668 = vld [vmem:[%s320 + $0x600] sm:$0xff]
        %v3669 = vld [vmem:[%s320 + $0x608] sm:$0xff]
        %v3670 = vld [vmem:[%s320 + $0x610] sm:$0xff]
        %v3671 = vld [vmem:[%s320 + $0x618] sm:$0xff]
        %v3672 = vld [vmem:[%s320 + $0x620] sm:$0xff]
        %v3673 = vld [vmem:[%s320 + $0x628] sm:$0xff]
        %v3674 = vld [vmem:[%s320 + $0x630] sm:$0xff]
        %v3675 = vld [vmem:[%s320 + $0x638] sm:$0xff]
        %v3676 = vld [vmem:[%s320 + $0x640] sm:$0xff]
        %v3677 = vld [vmem:[%s320 + $0x648] sm:$0xff]
        %v3678 = vld [vmem:[%s320 + $0x650] sm:$0xff]
        %v3679 = vld [vmem:[%s320 + $0x658] sm:$0xff]
        %v3680 = vld [vmem:[%s320 + $0x660] sm:$0xff]
        %v3681 = vld [vmem:[%s320 + $0x668] sm:$0xff]
        %v3682 = vld [vmem:[%s320 + $0x670] sm:$0xff]
        %v3683 = vld [vmem:[%s320 + $0x678] sm:$0xff]
        %v3684 = vld [vmem:[%s320 + $0x680] sm:$0xff]
        %v3685 = vld [vmem:[%s320 + $0x688] sm:$0xff]
        %v3686 = vld [vmem:[%s320 + $0x690] sm:$0xff]
        %v3687 = vld [vmem:[%s320 + $0x698] sm:$0xff]
        %v3688 = vld [vmem:[%s320 + $0x6a0] sm:$0xff]
        %v3689 = vld [vmem:[%s320 + $0x6a8] sm:$0xff]
        %v3690 = vld [vmem:[%s320 + $0x6b0] sm:$0xff]
        %v3691 = vld [vmem:[%s320 + $0x6b8] sm:$0xff]
        %v3692 = vld [vmem:[%s320 + $0x6c0] sm:$0xff]
        %v3693 = vld [vmem:[%s320 + $0x6c8] sm:$0xff]
        %v3694 = vld [vmem:[%s320 + $0x6d0] sm:$0xff]
        %v3695 = vld [vmem:[%s320 + $0x6d8] sm:$0xff]
        %v3696 = vld [vmem:[%s320 + $0x6e0] sm:$0xff]
        %v3697 = vld [vmem:[%s320 + $0x6e8] sm:$0xff]
        %v3698 = vld [vmem:[%s320 + $0x6f0] sm:$0xff]
        %v3699 = vld [vmem:[%s320 + $0x6f8] sm:$0xff]
        %v3700 = vld [vmem:[%s320 + $0x700] sm:$0xff]
        %v3701 = vld [vmem:[%s320 + $0x708] sm:$0xff]
        %v3702 = vld [vmem:[%s320 + $0x710] sm:$0xff]
        %v3703 = vld [vmem:[%s320 + $0x718] sm:$0xff]
        %v3704 = vld [vmem:[%s320 + $0x720] sm:$0xff]
        %v3705 = vld [vmem:[%s320 + $0x728] sm:$0xff]
        %v3706 = vld [vmem:[%s320 + $0x730] sm:$0xff]
        %v3707 = vld [vmem:[%s320 + $0x738] sm:$0xff]
        %v3708 = vld [vmem:[%s320 + $0x740] sm:$0xff]
        %v3709 = vld [vmem:[%s320 + $0x748] sm:$0xff]
        %v3710 = vld [vmem:[%s320 + $0x750] sm:$0xff]
        %v3711 = vld [vmem:[%s320 + $0x758] sm:$0xff]
        %v3712 = vld [vmem:[%s320 + $0x760] sm:$0xff]
        %v3713 = vld [vmem:[%s320 + $0x768] sm:$0xff]
        %v3714 = vld [vmem:[%s320 + $0x770] sm:$0xff]
        %v3715 = vld [vmem:[%s320 + $0x778] sm:$0xff]
        %v3716 = vld [vmem:[%s320 + $0x780] sm:$0xff]
        %v3717 = vld [vmem:[%s320 + $0x788] sm:$0xff]
        %v3718 = vld [vmem:[%s320 + $0x790] sm:$0xff]
        %v3719 = vld [vmem:[%s320 + $0x798] sm:$0xff]
        %v3720 = vld [vmem:[%s320 + $0x7a0] sm:$0xff]
        %v3721 = vld [vmem:[%s320 + $0x7a8] sm:$0xff]
        %v3722 = vld [vmem:[%s320 + $0x7b0] sm:$0xff]
        %v3723 = vld [vmem:[%s320 + $0x7b8] sm:$0xff]
        %v3724 = vld [vmem:[%s320 + $0x7c0] sm:$0xff]
        %v3725 = vld [vmem:[%s320 + $0x7c8] sm:$0xff]
        %v3726 = vld [vmem:[%s320 + $0x7d0] sm:$0xff]
        %v3727 = vld [vmem:[%s320 + $0x7d8] sm:$0xff]
        %v3728 = vld [vmem:[%s320 + $0x7e0] sm:$0xff]
        %v3729 = vld [vmem:[%s320 + $0x7e8] sm:$0xff]
        %v3730 = vld [vmem:[%s320 + $0x7f0] sm:$0xff]
        %v3731 = vld [vmem:[%s320 + $0x7f8] sm:$0xff]
        %v3732 = vmul.f32 %v3468, %v3476
        %v3733 = vmul.f32 %v3469, %v3477
        %v3734 = vmul.f32 %v3470, %v3478
        %v3735 = vmul.f32 %v3471, %v3479
        %v3736 = vmul.f32 %v3472, %v3480
        %v3737 = vmul.f32 %v3473, %v3481
        %v3738 = vmul.f32 %v3474, %v3482
        %v3739 = vmul.f32 %v3475, %v3483
        %v3740 = vmul.f32 %v3468, %v3484
        %v3741 = vmul.f32 %v3469, %v3485
        %v3742 = vmul.f32 %v3470, %v3486
        %v3743 = vmul.f32 %v3471, %v3487
        %v3744 = vmul.f32 %v3472, %v3488
        %v3745 = vmul.f32 %v3473, %v3489
        %v3746 = vmul.f32 %v3474, %v3490
        %v3747 = vmul.f32 %v3475, %v3491
        %v3748 = vmul.f32 %v3468, %v3492
        %v3749 = vmul.f32 %v3469, %v3493
        %v3750 = vmul.f32 %v3470, %v3494
        %v3751 = vmul.f32 %v3471, %v3495
        %v3752 = vmul.f32 %v3472, %v3496
        %v3753 = vmul.f32 %v3473, %v3497
        %v3754 = vmul.f32 %v3474, %v3498
        %v3755 = vmul.f32 %v3475, %v3499
        %v3756 = vmul.f32 %v3468, %v3500
        %v3757 = vmul.f32 %v3469, %v3501
        %v3758 = vmul.f32 %v3470, %v3502
        %v3759 = vmul.f32 %v3471, %v3503
        %v3760 = vmul.f32 %v3472, %v3504
        %v3761 = vmul.f32 %v3473, %v3505
        %v3762 = vmul.f32 %v3474, %v3506
        %v3763 = vmul.f32 %v3475, %v3507
        %v3764 = vmul.f32 %v3468, %v3508
        %v3765 = vmul.f32 %v3469, %v3509
        %v3766 = vmul.f32 %v3470, %v3510
        %v3767 = vmul.f32 %v3471, %v3511
        %v3768 = vmul.f32 %v3472, %v3512
        %v3769 = vmul.f32 %v3473, %v3513
        %v3770 = vmul.f32 %v3474, %v3514
        %v3771 = vmul.f32 %v3475, %v3515
        %v3772 = vmul.f32 %v3468, %v3516
        %v3773 = vmul.f32 %v3469, %v3517
        %v3774 = vmul.f32 %v3470, %v3518
        %v3775 = vmul.f32 %v3471, %v3519
        %v3776 = vmul.f32 %v3472, %v3520
        %v3777 = vmul.f32 %v3473, %v3521
        %v3778 = vmul.f32 %v3474, %v3522
        %v3779 = vmul.f32 %v3475, %v3523
        %v3780 = vmul.f32 %v3468, %v3524
        %v3781 = vmul.f32 %v3469, %v3525
        %v3782 = vmul.f32 %v3470, %v3526
        %v3783 = vmul.f32 %v3471, %v3527
        %v3784 = vmul.f32 %v3472, %v3528
        %v3785 = vmul.f32 %v3473, %v3529
        %v3786 = vmul.f32 %v3474, %v3530
        %v3787 = vmul.f32 %v3475, %v3531
        %v3788 = vmul.f32 %v3468, %v3532
        %v3789 = vmul.f32 %v3469, %v3533
        %v3790 = vmul.f32 %v3470, %v3534
        %v3791 = vmul.f32 %v3471, %v3535
        %v3792 = vmul.f32 %v3472, %v3536
        %v3793 = vmul.f32 %v3473, %v3537
        %v3794 = vmul.f32 %v3474, %v3538
        %v3795 = vmul.f32 %v3475, %v3539
        %v3796 = vmul.f32 %v3468, %v3540
        %v3797 = vmul.f32 %v3469, %v3541
        %v3798 = vmul.f32 %v3470, %v3542
        %v3799 = vmul.f32 %v3471, %v3543
        %v3800 = vmul.f32 %v3472, %v3544
        %v3801 = vmul.f32 %v3473, %v3545
        %v3802 = vmul.f32 %v3474, %v3546
        %v3803 = vmul.f32 %v3475, %v3547
        %v3804 = vmul.f32 %v3468, %v3548
        %v3805 = vmul.f32 %v3469, %v3549
        %v3806 = vmul.f32 %v3470, %v3550
        %v3807 = vmul.f32 %v3471, %v3551
        %v3808 = vmul.f32 %v3472, %v3552
        %v3809 = vmul.f32 %v3473, %v3553
        %v3810 = vmul.f32 %v3474, %v3554
        %v3811 = vmul.f32 %v3475, %v3555
        %v3812 = vmul.f32 %v3468, %v3556
        %v3813 = vmul.f32 %v3469, %v3557
        %v3814 = vmul.f32 %v3470, %v3558
        %v3815 = vmul.f32 %v3471, %v3559
        %v3816 = vmul.f32 %v3472, %v3560
        %v3817 = vmul.f32 %v3473, %v3561
        %v3818 = vmul.f32 %v3474, %v3562
        %v3819 = vmul.f32 %v3475, %v3563
        %v3820 = vmul.f32 %v3468, %v3564
        %v3821 = vmul.f32 %v3469, %v3565
        %v3822 = vmul.f32 %v3470, %v3566
        %v3823 = vmul.f32 %v3471, %v3567
        %v3824 = vmul.f32 %v3472, %v3568
        %v3825 = vmul.f32 %v3473, %v3569
        %v3826 = vmul.f32 %v3474, %v3570
        %v3827 = vmul.f32 %v3475, %v3571
        %v3828 = vmul.f32 %v3468, %v3572
        %v3829 = vmul.f32 %v3469, %v3573
        %v3830 = vmul.f32 %v3470, %v3574
        %v3831 = vmul.f32 %v3471, %v3575
        %v3832 = vmul.f32 %v3472, %v3576
        %v3833 = vmul.f32 %v3473, %v3577
        %v3834 = vmul.f32 %v3474, %v3578
        %v3835 = vmul.f32 %v3475, %v3579
        %v3836 = vmul.f32 %v3468, %v3580
        %v3837 = vmul.f32 %v3469, %v3581
        %v3838 = vmul.f32 %v3470, %v3582
        %v3839 = vmul.f32 %v3471, %v3583
        %v3840 = vmul.f32 %v3472, %v3584
        %v3841 = vmul.f32 %v3473, %v3585
        %v3842 = vmul.f32 %v3474, %v3586
        %v3843 = vmul.f32 %v3475, %v3587
        %v3844 = vmul.f32 %v3468, %v3588
        %v3845 = vmul.f32 %v3469, %v3589
        %v3846 = vmul.f32 %v3470, %v3590
        %v3847 = vmul.f32 %v3471, %v3591
        %v3848 = vmul.f32 %v3472, %v3592
        %v3849 = vmul.f32 %v3473, %v3593
        %v3850 = vmul.f32 %v3474, %v3594
        %v3851 = vmul.f32 %v3475, %v3595
        %v3852 = vmul.f32 %v3468, %v3596
        %v3853 = vmul.f32 %v3469, %v3597
        %v3854 = vmul.f32 %v3470, %v3598
        %v3855 = vmul.f32 %v3471, %v3599
        %v3856 = vmul.f32 %v3472, %v3600
        %v3857 = vmul.f32 %v3473, %v3601
        %v3858 = vmul.f32 %v3474, %v3602
        %v3859 = vmul.f32 %v3475, %v3603
        %v3860 = vmul.f32 %v3468, %v3604
        %v3861 = vmul.f32 %v3469, %v3605
        %v3862 = vmul.f32 %v3470, %v3606
        %v3863 = vmul.f32 %v3471, %v3607
        %v3864 = vmul.f32 %v3472, %v3608
        %v3865 = vmul.f32 %v3473, %v3609
        %v3866 = vmul.f32 %v3474, %v3610
        %v3867 = vmul.f32 %v3475, %v3611
        %v3868 = vmul.f32 %v3468, %v3612
        %v3869 = vmul.f32 %v3469, %v3613
        %v3870 = vmul.f32 %v3470, %v3614
        %v3871 = vmul.f32 %v3471, %v3615
        %v3872 = vmul.f32 %v3472, %v3616
        %v3873 = vmul.f32 %v3473, %v3617
        %v3874 = vmul.f32 %v3474, %v3618
        %v3875 = vmul.f32 %v3475, %v3619
        %v3876 = vmul.f32 %v3468, %v3620
        %v3877 = vmul.f32 %v3469, %v3621
        %v3878 = vmul.f32 %v3470, %v3622
        %v3879 = vmul.f32 %v3471, %v3623
        %v3880 = vmul.f32 %v3472, %v3624
        %v3881 = vmul.f32 %v3473, %v3625
        %v3882 = vmul.f32 %v3474, %v3626
        %v3883 = vmul.f32 %v3475, %v3627
        %v3884 = vmul.f32 %v3468, %v3628
        %v3885 = vmul.f32 %v3469, %v3629
        %v3886 = vmul.f32 %v3470, %v3630
        %v3887 = vmul.f32 %v3471, %v3631
        %v3888 = vmul.f32 %v3472, %v3632
        %v3889 = vmul.f32 %v3473, %v3633
        %v3890 = vmul.f32 %v3474, %v3634
        %v3891 = vmul.f32 %v3475, %v3635
        %v3892 = vmul.f32 %v3468, %v3636
        %v3893 = vmul.f32 %v3469, %v3637
        %v3894 = vmul.f32 %v3470, %v3638
        %v3895 = vmul.f32 %v3471, %v3639
        %v3896 = vmul.f32 %v3472, %v3640
        %v3897 = vmul.f32 %v3473, %v3641
        %v3898 = vmul.f32 %v3474, %v3642
        %v3899 = vmul.f32 %v3475, %v3643
        %v3900 = vmul.f32 %v3468, %v3644
        %v3901 = vmul.f32 %v3469, %v3645
        %v3902 = vmul.f32 %v3470, %v3646
        %v3903 = vmul.f32 %v3471, %v3647
        %v3904 = vmul.f32 %v3472, %v3648
        %v3905 = vmul.f32 %v3473, %v3649
        %v3906 = vmul.f32 %v3474, %v3650
        %v3907 = vmul.f32 %v3475, %v3651
        %v3908 = vmul.f32 %v3468, %v3652
        %v3909 = vmul.f32 %v3469, %v3653
        %v3910 = vmul.f32 %v3470, %v3654
        %v3911 = vmul.f32 %v3471, %v3655
        %v3912 = vmul.f32 %v3472, %v3656
        %v3913 = vmul.f32 %v3473, %v3657
        %v3914 = vmul.f32 %v3474, %v3658
        %v3915 = vmul.f32 %v3475, %v3659
        %v3916 = vmul.f32 %v3468, %v3660
        %v3917 = vmul.f32 %v3469, %v3661
        %v3918 = vmul.f32 %v3470, %v3662
        %v3919 = vmul.f32 %v3471, %v3663
        %v3920 = vmul.f32 %v3472, %v3664
        %v3921 = vmul.f32 %v3473, %v3665
        %v3922 = vmul.f32 %v3474, %v3666
        %v3923 = vmul.f32 %v3475, %v3667
        %v3924 = vmul.f32 %v3468, %v3668
        %v3925 = vmul.f32 %v3469, %v3669
        %v3926 = vmul.f32 %v3470, %v3670
        %v3927 = vmul.f32 %v3471, %v3671
        %v3928 = vmul.f32 %v3472, %v3672
        %v3929 = vmul.f32 %v3473, %v3673
        %v3930 = vmul.f32 %v3474, %v3674
        %v3931 = vmul.f32 %v3475, %v3675
        %v3932 = vmul.f32 %v3468, %v3676
        %v3933 = vmul.f32 %v3469, %v3677
        %v3934 = vmul.f32 %v3470, %v3678
        %v3935 = vmul.f32 %v3471, %v3679
        %v3936 = vmul.f32 %v3472, %v3680
        %v3937 = vmul.f32 %v3473, %v3681
        %v3938 = vmul.f32 %v3474, %v3682
        %v3939 = vmul.f32 %v3475, %v3683
        %v3940 = vmul.f32 %v3468, %v3684
        %v3941 = vmul.f32 %v3469, %v3685
        %v3942 = vmul.f32 %v3470, %v3686
        %v3943 = vmul.f32 %v3471, %v3687
        %v3944 = vmul.f32 %v3472, %v3688
        %v3945 = vmul.f32 %v3473, %v3689
        %v3946 = vmul.f32 %v3474, %v3690
        %v3947 = vmul.f32 %v3475, %v3691
        %v3948 = vmul.f32 %v3468, %v3692
        %v3949 = vmul.f32 %v3469, %v3693
        %v3950 = vmul.f32 %v3470, %v3694
        %v3951 = vmul.f32 %v3471, %v3695
        %v3952 = vmul.f32 %v3472, %v3696
        %v3953 = vmul.f32 %v3473, %v3697
        %v3954 = vmul.f32 %v3474, %v3698
        %v3955 = vmul.f32 %v3475, %v3699
        %v3956 = vmul.f32 %v3468, %v3700
        %v3957 = vmul.f32 %v3469, %v3701
        %v3958 = vmul.f32 %v3470, %v3702
        %v3959 = vmul.f32 %v3471, %v3703
        %v3960 = vmul.f32 %v3472, %v3704
        %v3961 = vmul.f32 %v3473, %v3705
        %v3962 = vmul.f32 %v3474, %v3706
        %v3963 = vmul.f32 %v3475, %v3707
        %v3964 = vmul.f32 %v3468, %v3708
        %v3965 = vmul.f32 %v3469, %v3709
        %v3966 = vmul.f32 %v3470, %v3710
        %v3967 = vmul.f32 %v3471, %v3711
        %v3968 = vmul.f32 %v3472, %v3712
        %v3969 = vmul.f32 %v3473, %v3713
        %v3970 = vmul.f32 %v3474, %v3714
        %v3971 = vmul.f32 %v3475, %v3715
        %v3972 = vmul.f32 %v3468, %v3716
        %v3973 = vmul.f32 %v3469, %v3717
        %v3974 = vmul.f32 %v3470, %v3718
        %v3975 = vmul.f32 %v3471, %v3719
        %v3976 = vmul.f32 %v3472, %v3720
        %v3977 = vmul.f32 %v3473, %v3721
        %v3978 = vmul.f32 %v3474, %v3722
        %v3979 = vmul.f32 %v3475, %v3723
        %v3980 = vmul.f32 %v3468, %v3724
        %v3981 = vmul.f32 %v3469, %v3725
        %v3982 = vmul.f32 %v3470, %v3726
        %v3983 = vmul.f32 %v3471, %v3727
        %v3984 = vmul.f32 %v3472, %v3728
        %v3985 = vmul.f32 %v3473, %v3729
        %v3986 = vmul.f32 %v3474, %v3730
        %v3987 = vmul.f32 %v3475, %v3731
        %v3988 = vadd.f32 %v3460, %v3732
        %v3989 = vadd.f32 %v3461, %v3733
        %v3990 = vadd.f32 %v3462, %v3734
        %v3991 = vadd.f32 %v3463, %v3735
        %v3992 = vadd.f32 %v3464, %v3736
        %v3993 = vadd.f32 %v3465, %v3737
        %v3994 = vadd.f32 %v3466, %v3738
        %v3995 = vadd.f32 %v3467, %v3739
        %v3996 = vadd.f32 %v3460, %v3740
        %v3997 = vadd.f32 %v3461, %v3741
        %v3998 = vadd.f32 %v3462, %v3742
        %v3999 = vadd.f32 %v3463, %v3743
        %v4000 = vadd.f32 %v3464, %v3744
        %v4001 = vadd.f32 %v3465, %v3745
        %v4002 = vadd.f32 %v3466, %v3746
        %v4003 = vadd.f32 %v3467, %v3747
        %v4004 = vadd.f32 %v3460, %v3748
        %v4005 = vadd.f32 %v3461, %v3749
        %v4006 = vadd.f32 %v3462, %v3750
        %v4007 = vadd.f32 %v3463, %v3751
        %v4008 = vadd.f32 %v3464, %v3752
        %v4009 = vadd.f32 %v3465, %v3753
        %v4010 = vadd.f32 %v3466, %v3754
        %v4011 = vadd.f32 %v3467, %v3755
        %v4012 = vadd.f32 %v3460, %v3756
        %v4013 = vadd.f32 %v3461, %v3757
        %v4014 = vadd.f32 %v3462, %v3758
        %v4015 = vadd.f32 %v3463, %v3759
        %v4016 = vadd.f32 %v3464, %v3760
        %v4017 = vadd.f32 %v3465, %v3761
        %v4018 = vadd.f32 %v3466, %v3762
        %v4019 = vadd.f32 %v3467, %v3763
        %v4020 = vadd.f32 %v3460, %v3764
        %v4021 = vadd.f32 %v3461, %v3765
        %v4022 = vadd.f32 %v3462, %v3766
        %v4023 = vadd.f32 %v3463, %v3767
        %v4024 = vadd.f32 %v3464, %v3768
        %v4025 = vadd.f32 %v3465, %v3769
        %v4026 = vadd.f32 %v3466, %v3770
        %v4027 = vadd.f32 %v3467, %v3771
        %v4028 = vadd.f32 %v3460, %v3772
        %v4029 = vadd.f32 %v3461, %v3773
        %v4030 = vadd.f32 %v3462, %v3774
        %v4031 = vadd.f32 %v3463, %v3775
        %v4032 = vadd.f32 %v3464, %v3776
        %v4033 = vadd.f32 %v3465, %v3777
        %v4034 = vadd.f32 %v3466, %v3778
        %v4035 = vadd.f32 %v3467, %v3779
        %v4036 = vadd.f32 %v3460, %v3780
        %v4037 = vadd.f32 %v3461, %v3781
        %v4038 = vadd.f32 %v3462, %v3782
        %v4039 = vadd.f32 %v3463, %v3783
        %v4040 = vadd.f32 %v3464, %v3784
        %v4041 = vadd.f32 %v3465, %v3785
        %v4042 = vadd.f32 %v3466, %v3786
        %v4043 = vadd.f32 %v3467, %v3787
        %v4044 = vadd.f32 %v3460, %v3788
        %v4045 = vadd.f32 %v3461, %v3789
        %v4046 = vadd.f32 %v3462, %v3790
        %v4047 = vadd.f32 %v3463, %v3791
        %v4048 = vadd.f32 %v3464, %v3792
        %v4049 = vadd.f32 %v3465, %v3793
        %v4050 = vadd.f32 %v3466, %v3794
        %v4051 = vadd.f32 %v3467, %v3795
        %v4052 = vadd.f32 %v3460, %v3796
        %v4053 = vadd.f32 %v3461, %v3797
        %v4054 = vadd.f32 %v3462, %v3798
        %v4055 = vadd.f32 %v3463, %v3799
        %v4056 = vadd.f32 %v3464, %v3800
        %v4057 = vadd.f32 %v3465, %v3801
        %v4058 = vadd.f32 %v3466, %v3802
        %v4059 = vadd.f32 %v3467, %v3803
        %v4060 = vadd.f32 %v3460, %v3804
        %v4061 = vadd.f32 %v3461, %v3805
        %v4062 = vadd.f32 %v3462, %v3806
        %v4063 = vadd.f32 %v3463, %v3807
        %v4064 = vadd.f32 %v3464, %v3808
        %v4065 = vadd.f32 %v3465, %v3809
        %v4066 = vadd.f32 %v3466, %v3810
        %v4067 = vadd.f32 %v3467, %v3811
        %v4068 = vadd.f32 %v3460, %v3812
        %v4069 = vadd.f32 %v3461, %v3813
        %v4070 = vadd.f32 %v3462, %v3814
        %v4071 = vadd.f32 %v3463, %v3815
        %v4072 = vadd.f32 %v3464, %v3816
        %v4073 = vadd.f32 %v3465, %v3817
        %v4074 = vadd.f32 %v3466, %v3818
        %v4075 = vadd.f32 %v3467, %v3819
        %v4076 = vadd.f32 %v3460, %v3820
        %v4077 = vadd.f32 %v3461, %v3821
        %v4078 = vadd.f32 %v3462, %v3822
        %v4079 = vadd.f32 %v3463, %v3823
        %v4080 = vadd.f32 %v3464, %v3824
        %v4081 = vadd.f32 %v3465, %v3825
        %v4082 = vadd.f32 %v3466, %v3826
        %v4083 = vadd.f32 %v3467, %v3827
        %v4084 = vadd.f32 %v3460, %v3828
        %v4085 = vadd.f32 %v3461, %v3829
        %v4086 = vadd.f32 %v3462, %v3830
        %v4087 = vadd.f32 %v3463, %v3831
        %v4088 = vadd.f32 %v3464, %v3832
        %v4089 = vadd.f32 %v3465, %v3833
        %v4090 = vadd.f32 %v3466, %v3834
        %v4091 = vadd.f32 %v3467, %v3835
        %v4092 = vadd.f32 %v3460, %v3836
        %v4093 = vadd.f32 %v3461, %v3837
        %v4094 = vadd.f32 %v3462, %v3838
        %v4095 = vadd.f32 %v3463, %v3839
        %v4096 = vadd.f32 %v3464, %v3840
        %v4097 = vadd.f32 %v3465, %v3841
        %v4098 = vadd.f32 %v3466, %v3842
        %v4099 = vadd.f32 %v3467, %v3843
        %v4100 = vadd.f32 %v3460, %v3844
        %v4101 = vadd.f32 %v3461, %v3845
        %v4102 = vadd.f32 %v3462, %v3846
        %v4103 = vadd.f32 %v3463, %v3847
        %v4104 = vadd.f32 %v3464, %v3848
        %v4105 = vadd.f32 %v3465, %v3849
        %v4106 = vadd.f32 %v3466, %v3850
        %v4107 = vadd.f32 %v3467, %v3851
        %v4108 = vadd.f32 %v3460, %v3852
        %v4109 = vadd.f32 %v3461, %v3853
        %v4110 = vadd.f32 %v3462, %v3854
        %v4111 = vadd.f32 %v3463, %v3855
        %v4112 = vadd.f32 %v3464, %v3856
        %v4113 = vadd.f32 %v3465, %v3857
        %v4114 = vadd.f32 %v3466, %v3858
        %v4115 = vadd.f32 %v3467, %v3859
        %v4116 = vadd.f32 %v3460, %v3860
        %v4117 = vadd.f32 %v3461, %v3861
        %v4118 = vadd.f32 %v3462, %v3862
        %v4119 = vadd.f32 %v3463, %v3863
        %v4120 = vadd.f32 %v3464, %v3864
        %v4121 = vadd.f32 %v3465, %v3865
        %v4122 = vadd.f32 %v3466, %v3866
        %v4123 = vadd.f32 %v3467, %v3867
        %v4124 = vadd.f32 %v3460, %v3868
        %v4125 = vadd.f32 %v3461, %v3869
        %v4126 = vadd.f32 %v3462, %v3870
        %v4127 = vadd.f32 %v3463, %v3871
        %v4128 = vadd.f32 %v3464, %v3872
        %v4129 = vadd.f32 %v3465, %v3873
        %v4130 = vadd.f32 %v3466, %v3874
        %v4131 = vadd.f32 %v3467, %v3875
        %v4132 = vadd.f32 %v3460, %v3876
        %v4133 = vadd.f32 %v3461, %v3877
        %v4134 = vadd.f32 %v3462, %v3878
        %v4135 = vadd.f32 %v3463, %v3879
        %v4136 = vadd.f32 %v3464, %v3880
        %v4137 = vadd.f32 %v3465, %v3881
        %v4138 = vadd.f32 %v3466, %v3882
        %v4139 = vadd.f32 %v3467, %v3883
        %v4140 = vadd.f32 %v3460, %v3884
        %v4141 = vadd.f32 %v3461, %v3885
        %v4142 = vadd.f32 %v3462, %v3886
        %v4143 = vadd.f32 %v3463, %v3887
        %v4144 = vadd.f32 %v3464, %v3888
        %v4145 = vadd.f32 %v3465, %v3889
        %v4146 = vadd.f32 %v3466, %v3890
        %v4147 = vadd.f32 %v3467, %v3891
        %v4148 = vadd.f32 %v3460, %v3892
        %v4149 = vadd.f32 %v3461, %v3893
        %v4150 = vadd.f32 %v3462, %v3894
        %v4151 = vadd.f32 %v3463, %v3895
        %v4152 = vadd.f32 %v3464, %v3896
        %v4153 = vadd.f32 %v3465, %v3897
        %v4154 = vadd.f32 %v3466, %v3898
        %v4155 = vadd.f32 %v3467, %v3899
        %v4156 = vadd.f32 %v3460, %v3900
        %v4157 = vadd.f32 %v3461, %v3901
        %v4158 = vadd.f32 %v3462, %v3902
        %v4159 = vadd.f32 %v3463, %v3903
        %v4160 = vadd.f32 %v3464, %v3904
        %v4161 = vadd.f32 %v3465, %v3905
        %v4162 = vadd.f32 %v3466, %v3906
        %v4163 = vadd.f32 %v3467, %v3907
        %v4164 = vadd.f32 %v3460, %v3908
        %v4165 = vadd.f32 %v3461, %v3909
        %v4166 = vadd.f32 %v3462, %v3910
        %v4167 = vadd.f32 %v3463, %v3911
        %v4168 = vadd.f32 %v3464, %v3912
        %v4169 = vadd.f32 %v3465, %v3913
        %v4170 = vadd.f32 %v3466, %v3914
        %v4171 = vadd.f32 %v3467, %v3915
        %v4172 = vadd.f32 %v3460, %v3916
        %v4173 = vadd.f32 %v3461, %v3917
        %v4174 = vadd.f32 %v3462, %v3918
        %v4175 = vadd.f32 %v3463, %v3919
        %v4176 = vadd.f32 %v3464, %v3920
        %v4177 = vadd.f32 %v3465, %v3921
        %v4178 = vadd.f32 %v3466, %v3922
        %v4179 = vadd.f32 %v3467, %v3923
        %v4180 = vadd.f32 %v3460, %v3924
        %v4181 = vadd.f32 %v3461, %v3925
        %v4182 = vadd.f32 %v3462, %v3926
        %v4183 = vadd.f32 %v3463, %v3927
        %v4184 = vadd.f32 %v3464, %v3928
        %v4185 = vadd.f32 %v3465, %v3929
        %v4186 = vadd.f32 %v3466, %v3930
        %v4187 = vadd.f32 %v3467, %v3931
        %v4188 = vadd.f32 %v3460, %v3932
        %v4189 = vadd.f32 %v3461, %v3933
        %v4190 = vadd.f32 %v3462, %v3934
        %v4191 = vadd.f32 %v3463, %v3935
        %v4192 = vadd.f32 %v3464, %v3936
        %v4193 = vadd.f32 %v3465, %v3937
        %v4194 = vadd.f32 %v3466, %v3938
        %v4195 = vadd.f32 %v3467, %v3939
        %v4196 = vadd.f32 %v3460, %v3940
        %v4197 = vadd.f32 %v3461, %v3941
        %v4198 = vadd.f32 %v3462, %v3942
        %v4199 = vadd.f32 %v3463, %v3943
        %v4200 = vadd.f32 %v3464, %v3944
        %v4201 = vadd.f32 %v3465, %v3945
        %v4202 = vadd.f32 %v3466, %v3946
        %v4203 = vadd.f32 %v3467, %v3947
        %v4204 = vadd.f32 %v3460, %v3948
        %v4205 = vadd.f32 %v3461, %v3949
        %v4206 = vadd.f32 %v3462, %v3950
        %v4207 = vadd.f32 %v3463, %v3951
        %v4208 = vadd.f32 %v3464, %v3952
        %v4209 = vadd.f32 %v3465, %v3953
        %v4210 = vadd.f32 %v3466, %v3954
        %v4211 = vadd.f32 %v3467, %v3955
        %v4212 = vadd.f32 %v3460, %v3956
        %v4213 = vadd.f32 %v3461, %v3957
        %v4214 = vadd.f32 %v3462, %v3958
        %v4215 = vadd.f32 %v3463, %v3959
        %v4216 = vadd.f32 %v3464, %v3960
        %v4217 = vadd.f32 %v3465, %v3961
        %v4218 = vadd.f32 %v3466, %v3962
        %v4219 = vadd.f32 %v3467, %v3963
        %v4220 = vadd.f32 %v3460, %v3964
        %v4221 = vadd.f32 %v3461, %v3965
        %v4222 = vadd.f32 %v3462, %v3966
        %v4223 = vadd.f32 %v3463, %v3967
        %v4224 = vadd.f32 %v3464, %v3968
        %v4225 = vadd.f32 %v3465, %v3969
        %v4226 = vadd.f32 %v3466, %v3970
        %v4227 = vadd.f32 %v3467, %v3971
        %v4228 = vadd.f32 %v3460, %v3972
        %v4229 = vadd.f32 %v3461, %v3973
        %v4230 = vadd.f32 %v3462, %v3974
        %v4231 = vadd.f32 %v3463, %v3975
        %v4232 = vadd.f32 %v3464, %v3976
        %v4233 = vadd.f32 %v3465, %v3977
        %v4234 = vadd.f32 %v3466, %v3978
        %v4235 = vadd.f32 %v3467, %v3979
        %v4236 = vadd.f32 %v3460, %v3980
        %v4237 = vadd.f32 %v3461, %v3981
        %v4238 = vadd.f32 %v3462, %v3982
        %v4239 = vadd.f32 %v3463, %v3983
        %v4240 = vadd.f32 %v3464, %v3984
        %v4241 = vadd.f32 %v3465, %v3985
        %v4242 = vadd.f32 %v3466, %v3986
        %v4243 = vadd.f32 %v3467, %v3987
        %v4244 = vmul.f32 %v2949, %v3988
        %v4245 = vmul.f32 %v2951, %v3989
        %v4246 = vmul.f32 %v2953, %v3990
        %v4247 = vmul.f32 %v2955, %v3991
        %v4248 = vmul.f32 %v2957, %v3992
        %v4249 = vmul.f32 %v2959, %v3993
        %v4250 = vmul.f32 %v2961, %v3994
        %v4251 = vmul.f32 %v2963, %v3995
        %v4252 = vmul.f32 %v2965, %v3996
        %v4253 = vmul.f32 %v2967, %v3997
        %v4254 = vmul.f32 %v2969, %v3998
        %v4255 = vmul.f32 %v2971, %v3999
        %v4256 = vmul.f32 %v2973, %v4000
        %v4257 = vmul.f32 %v2975, %v4001
        %v4258 = vmul.f32 %v2977, %v4002
        %v4259 = vmul.f32 %v2979, %v4003
        %v4260 = vmul.f32 %v2981, %v4004
        %v4261 = vmul.f32 %v2983, %v4005
        %v4262 = vmul.f32 %v2985, %v4006
        %v4263 = vmul.f32 %v2987, %v4007
        %v4264 = vmul.f32 %v2989, %v4008
        %v4265 = vmul.f32 %v2991, %v4009
        %v4266 = vmul.f32 %v2993, %v4010
        %v4267 = vmul.f32 %v2995, %v4011
        %v4268 = vmul.f32 %v2997, %v4012
        %v4269 = vmul.f32 %v2999, %v4013
        %v4270 = vmul.f32 %v3001, %v4014
        %v4271 = vmul.f32 %v3003, %v4015
        %v4272 = vmul.f32 %v3005, %v4016
        %v4273 = vmul.f32 %v3007, %v4017
        %v4274 = vmul.f32 %v3009, %v4018
        %v4275 = vmul.f32 %v3011, %v4019
        %v4276 = vmul.f32 %v3013, %v4020
        %v4277 = vmul.f32 %v3015, %v4021
        %v4278 = vmul.f32 %v3017, %v4022
        %v4279 = vmul.f32 %v3019, %v4023
        %v4280 = vmul.f32 %v3021, %v4024
        %v4281 = vmul.f32 %v3023, %v4025
        %v4282 = vmul.f32 %v3025, %v4026
        %v4283 = vmul.f32 %v3027, %v4027
        %v4284 = vmul.f32 %v3029, %v4028
        %v4285 = vmul.f32 %v3031, %v4029
        %v4286 = vmul.f32 %v3033, %v4030
        %v4287 = vmul.f32 %v3035, %v4031
        %v4288 = vmul.f32 %v3037, %v4032
        %v4289 = vmul.f32 %v3039, %v4033
        %v4290 = vmul.f32 %v3041, %v4034
        %v4291 = vmul.f32 %v3043, %v4035
        %v4292 = vmul.f32 %v3045, %v4036
        %v4293 = vmul.f32 %v3047, %v4037
        %v4294 = vmul.f32 %v3049, %v4038
        %v4295 = vmul.f32 %v3051, %v4039
        %v4296 = vmul.f32 %v3053, %v4040
        %v4297 = vmul.f32 %v3055, %v4041
        %v4298 = vmul.f32 %v3057, %v4042
        %v4299 = vmul.f32 %v3059, %v4043
        %v4300 = vmul.f32 %v3061, %v4044
        %v4301 = vmul.f32 %v3063, %v4045
        %v4302 = vmul.f32 %v3065, %v4046
        %v4303 = vmul.f32 %v3067, %v4047
        %v4304 = vmul.f32 %v3069, %v4048
        %v4305 = vmul.f32 %v3071, %v4049
        %v4306 = vmul.f32 %v3073, %v4050
        %v4307 = vmul.f32 %v3075, %v4051
        %v4308 = vmul.f32 %v3077, %v4052
        %v4309 = vmul.f32 %v3079, %v4053
        %v4310 = vmul.f32 %v3081, %v4054
        %v4311 = vmul.f32 %v3083, %v4055
        %v4312 = vmul.f32 %v3085, %v4056
        %v4313 = vmul.f32 %v3087, %v4057
        %v4314 = vmul.f32 %v3089, %v4058
        %v4315 = vmul.f32 %v3091, %v4059
        %v4316 = vmul.f32 %v3093, %v4060
        %v4317 = vmul.f32 %v3095, %v4061
        %v4318 = vmul.f32 %v3097, %v4062
        %v4319 = vmul.f32 %v3099, %v4063
        %v4320 = vmul.f32 %v3101, %v4064
        %v4321 = vmul.f32 %v3103, %v4065
        %v4322 = vmul.f32 %v3105, %v4066
        %v4323 = vmul.f32 %v3107, %v4067
        %v4324 = vmul.f32 %v3109, %v4068
        %v4325 = vmul.f32 %v3111, %v4069
        %v4326 = vmul.f32 %v3113, %v4070
        %v4327 = vmul.f32 %v3115, %v4071
        %v4328 = vmul.f32 %v3117, %v4072
        %v4329 = vmul.f32 %v3119, %v4073
        %v4330 = vmul.f32 %v3121, %v4074
        %v4331 = vmul.f32 %v3123, %v4075
        %v4332 = vmul.f32 %v3125, %v4076
        %v4333 = vmul.f32 %v3127, %v4077
        %v4334 = vmul.f32 %v3129, %v4078
        %v4335 = vmul.f32 %v3131, %v4079
        %v4336 = vmul.f32 %v3133, %v4080
        %v4337 = vmul.f32 %v3135, %v4081
        %v4338 = vmul.f32 %v3137, %v4082
        %v4339 = vmul.f32 %v3139, %v4083
        %v4340 = vmul.f32 %v3141, %v4084
        %v4341 = vmul.f32 %v3143, %v4085
        %v4342 = vmul.f32 %v3145, %v4086
        %v4343 = vmul.f32 %v3147, %v4087
        %v4344 = vmul.f32 %v3149, %v4088
        %v4345 = vmul.f32 %v3151, %v4089
        %v4346 = vmul.f32 %v3153, %v4090
        %v4347 = vmul.f32 %v3155, %v4091
        %v4348 = vmul.f32 %v3157, %v4092
        %v4349 = vmul.f32 %v3159, %v4093
        %v4350 = vmul.f32 %v3161, %v4094
        %v4351 = vmul.f32 %v3163, %v4095
        %v4352 = vmul.f32 %v3165, %v4096
        %v4353 = vmul.f32 %v3167, %v4097
        %v4354 = vmul.f32 %v3169, %v4098
        %v4355 = vmul.f32 %v3171, %v4099
        %v4356 = vmul.f32 %v3173, %v4100
        %v4357 = vmul.f32 %v3175, %v4101
        %v4358 = vmul.f32 %v3177, %v4102
        %v4359 = vmul.f32 %v3179, %v4103
        %v4360 = vmul.f32 %v3181, %v4104
        %v4361 = vmul.f32 %v3183, %v4105
        %v4362 = vmul.f32 %v3185, %v4106
        %v4363 = vmul.f32 %v3187, %v4107
        %v4364 = vmul.f32 %v3189, %v4108
        %v4365 = vmul.f32 %v3191, %v4109
        %v4366 = vmul.f32 %v3193, %v4110
        %v4367 = vmul.f32 %v3195, %v4111
        %v4368 = vmul.f32 %v3197, %v4112
        %v4369 = vmul.f32 %v3199, %v4113
        %v4370 = vmul.f32 %v3201, %v4114
        %v4371 = vmul.f32 %v3203, %v4115
        %v4372 = vmul.f32 %v3205, %v4116
        %v4373 = vmul.f32 %v3207, %v4117
        %v4374 = vmul.f32 %v3209, %v4118
        %v4375 = vmul.f32 %v3211, %v4119
        %v4376 = vmul.f32 %v3213, %v4120
        %v4377 = vmul.f32 %v3215, %v4121
        %v4378 = vmul.f32 %v3217, %v4122
        %v4379 = vmul.f32 %v3219, %v4123
        %v4380 = vmul.f32 %v3221, %v4124
        %v4381 = vmul.f32 %v3223, %v4125
        %v4382 = vmul.f32 %v3225, %v4126
        %v4383 = vmul.f32 %v3227, %v4127
        %v4384 = vmul.f32 %v3229, %v4128
        %v4385 = vmul.f32 %v3231, %v4129
        %v4386 = vmul.f32 %v3233, %v4130
        %v4387 = vmul.f32 %v3235, %v4131
        %v4388 = vmul.f32 %v3237, %v4132
        %v4389 = vmul.f32 %v3239, %v4133
        %v4390 = vmul.f32 %v3241, %v4134
        %v4391 = vmul.f32 %v3243, %v4135
        %v4392 = vmul.f32 %v3245, %v4136
        %v4393 = vmul.f32 %v3247, %v4137
        %v4394 = vmul.f32 %v3249, %v4138
        %v4395 = vmul.f32 %v3251, %v4139
        %v4396 = vmul.f32 %v3253, %v4140
        %v4397 = vmul.f32 %v3255, %v4141
        %v4398 = vmul.f32 %v3257, %v4142
        %v4399 = vmul.f32 %v3259, %v4143
        %v4400 = vmul.f32 %v3261, %v4144
        %v4401 = vmul.f32 %v3263, %v4145
        %v4402 = vmul.f32 %v3265, %v4146
        %v4403 = vmul.f32 %v3267, %v4147
        %v4404 = vmul.f32 %v3269, %v4148
        %v4405 = vmul.f32 %v3271, %v4149
        %v4406 = vmul.f32 %v3273, %v4150
        %v4407 = vmul.f32 %v3275, %v4151
        %v4408 = vmul.f32 %v3277, %v4152
        %v4409 = vmul.f32 %v3279, %v4153
        %v4410 = vmul.f32 %v3281, %v4154
        %v4411 = vmul.f32 %v3283, %v4155
        %v4412 = vmul.f32 %v3285, %v4156
        %v4413 = vmul.f32 %v3287, %v4157
        %v4414 = vmul.f32 %v3289, %v4158
        %v4415 = vmul.f32 %v3291, %v4159
        %v4416 = vmul.f32 %v3293, %v4160
        %v4417 = vmul.f32 %v3295, %v4161
        %v4418 = vmul.f32 %v3297, %v4162
        %v4419 = vmul.f32 %v3299, %v4163
        %v4420 = vmul.f32 %v3301, %v4164
        %v4421 = vmul.f32 %v3303, %v4165
        %v4422 = vmul.f32 %v3305, %v4166
        %v4423 = vmul.f32 %v3307, %v4167
        %v4424 = vmul.f32 %v3309, %v4168
        %v4425 = vmul.f32 %v3311, %v4169
        %v4426 = vmul.f32 %v3313, %v4170
        %v4427 = vmul.f32 %v3315, %v4171
        %v4428 = vmul.f32 %v3317, %v4172
        %v4429 = vmul.f32 %v3319, %v4173
        %v4430 = vmul.f32 %v3321, %v4174
        %v4431 = vmul.f32 %v3323, %v4175
        %v4432 = vmul.f32 %v3325, %v4176
        %v4433 = vmul.f32 %v3327, %v4177
        %v4434 = vmul.f32 %v3329, %v4178
        %v4435 = vmul.f32 %v3331, %v4179
        %v4436 = vmul.f32 %v3333, %v4180
        %v4437 = vmul.f32 %v3335, %v4181
        %v4438 = vmul.f32 %v3337, %v4182
        %v4439 = vmul.f32 %v3339, %v4183
        %v4440 = vmul.f32 %v3341, %v4184
        %v4441 = vmul.f32 %v3343, %v4185
        %v4442 = vmul.f32 %v3345, %v4186
        %v4443 = vmul.f32 %v3347, %v4187
        %v4444 = vmul.f32 %v3349, %v4188
        %v4445 = vmul.f32 %v3351, %v4189
        %v4446 = vmul.f32 %v3353, %v4190
        %v4447 = vmul.f32 %v3355, %v4191
        %v4448 = vmul.f32 %v3357, %v4192
        %v4449 = vmul.f32 %v3359, %v4193
        %v4450 = vmul.f32 %v3361, %v4194
        %v4451 = vmul.f32 %v3363, %v4195
        %v4452 = vmul.f32 %v3365, %v4196
        %v4453 = vmul.f32 %v3367, %v4197
        %v4454 = vmul.f32 %v3369, %v4198
        %v4455 = vmul.f32 %v3371, %v4199
        %v4456 = vmul.f32 %v3373, %v4200
        %v4457 = vmul.f32 %v3375, %v4201
        %v4458 = vmul.f32 %v3377, %v4202
        %v4459 = vmul.f32 %v3379, %v4203
        %v4460 = vmul.f32 %v3381, %v4204
        %v4461 = vmul.f32 %v3383, %v4205
        %v4462 = vmul.f32 %v3385, %v4206
        %v4463 = vmul.f32 %v3387, %v4207
        %v4464 = vmul.f32 %v3389, %v4208
        %v4465 = vmul.f32 %v3391, %v4209
        %v4466 = vmul.f32 %v3393, %v4210
        %v4467 = vmul.f32 %v3395, %v4211
        %v4468 = vmul.f32 %v3397, %v4212
        %v4469 = vmul.f32 %v3399, %v4213
        %v4470 = vmul.f32 %v3401, %v4214
        %v4471 = vmul.f32 %v3403, %v4215
        %v4472 = vmul.f32 %v3405, %v4216
        %v4473 = vmul.f32 %v3407, %v4217
        %v4474 = vmul.f32 %v3409, %v4218
        %v4475 = vmul.f32 %v3411, %v4219
        %v4476 = vmul.f32 %v3413, %v4220
        %v4477 = vmul.f32 %v3415, %v4221
        %v4478 = vmul.f32 %v3417, %v4222
        %v4479 = vmul.f32 %v3419, %v4223
        %v4480 = vmul.f32 %v3421, %v4224
        %v4481 = vmul.f32 %v3423, %v4225
        %v4482 = vmul.f32 %v3425, %v4226
        %v4483 = vmul.f32 %v3427, %v4227
        %v4484 = vmul.f32 %v3429, %v4228
        %v4485 = vmul.f32 %v3431, %v4229
        %v4486 = vmul.f32 %v3433, %v4230
        %v4487 = vmul.f32 %v3435, %v4231
        %v4488 = vmul.f32 %v3437, %v4232
        %v4489 = vmul.f32 %v3439, %v4233
        %v4490 = vmul.f32 %v3441, %v4234
        %v4491 = vmul.f32 %v3443, %v4235
        %v4492 = vmul.f32 %v3445, %v4236
        %v4493 = vmul.f32 %v3447, %v4237
        %v4494 = vmul.f32 %v3449, %v4238
        %v4495 = vmul.f32 %v3451, %v4239
        %v4496 = vmul.f32 %v3453, %v4240
        %v4497 = vmul.f32 %v3455, %v4241
        %v4498 = vmul.f32 %v3457, %v4242
        %v4499 = vmul.f32 %v3459, %v4243
        %v4500 = vrot.slane %v4244, 4
        %v4501 = vadd.f32 %v4244, %v4500
        %v4502 = vrot.slane %v4501, 2
        %v4503 = vadd.f32 %v4501, %v4502
        %v4504 = vrot.slane %v4503, 1
        %v4505 = vadd.f32 %v4503, %v4504
        %v4506 = vrot.slane %v4245, 4
        %v4507 = vadd.f32 %v4245, %v4506
        %v4508 = vrot.slane %v4507, 2
        %v4509 = vadd.f32 %v4507, %v4508
        %v4510 = vrot.slane %v4509, 1
        %v4511 = vadd.f32 %v4509, %v4510
        %v4512 = vrot.slane %v4246, 4
        %v4513 = vadd.f32 %v4246, %v4512
        %v4514 = vrot.slane %v4513, 2
        %v4515 = vadd.f32 %v4513, %v4514
        %v4516 = vrot.slane %v4515, 1
        %v4517 = vadd.f32 %v4515, %v4516
        %v4518 = vrot.slane %v4247, 4
        %v4519 = vadd.f32 %v4247, %v4518
        %v4520 = vrot.slane %v4519, 2
        %v4521 = vadd.f32 %v4519, %v4520
        %v4522 = vrot.slane %v4521, 1
        %v4523 = vadd.f32 %v4521, %v4522
        %v4524 = vrot.slane %v4248, 4
        %v4525 = vadd.f32 %v4248, %v4524
        %v4526 = vrot.slane %v4525, 2
        %v4527 = vadd.f32 %v4525, %v4526
        %v4528 = vrot.slane %v4527, 1
        %v4529 = vadd.f32 %v4527, %v4528
        %v4530 = vrot.slane %v4249, 4
        %v4531 = vadd.f32 %v4249, %v4530
        %v4532 = vrot.slane %v4531, 2
        %v4533 = vadd.f32 %v4531, %v4532
        %v4534 = vrot.slane %v4533, 1
        %v4535 = vadd.f32 %v4533, %v4534
        %v4536 = vrot.slane %v4250, 4
        %v4537 = vadd.f32 %v4250, %v4536
        %v4538 = vrot.slane %v4537, 2
        %v4539 = vadd.f32 %v4537, %v4538
        %v4540 = vrot.slane %v4539, 1
        %v4541 = vadd.f32 %v4539, %v4540
        %v4542 = vrot.slane %v4251, 4
        %v4543 = vadd.f32 %v4251, %v4542
        %v4544 = vrot.slane %v4543, 2
        %v4545 = vadd.f32 %v4543, %v4544
        %v4546 = vrot.slane %v4545, 1
        %v4547 = vadd.f32 %v4545, %v4546
        %v4548 = vrot.slane %v4252, 4
        %v4549 = vadd.f32 %v4252, %v4548
        %v4550 = vrot.slane %v4549, 2
        %v4551 = vadd.f32 %v4549, %v4550
        %v4552 = vrot.slane %v4551, 1
        %v4553 = vadd.f32 %v4551, %v4552
        %v4554 = vrot.slane %v4253, 4
        %v4555 = vadd.f32 %v4253, %v4554
        %v4556 = vrot.slane %v4555, 2
        %v4557 = vadd.f32 %v4555, %v4556
        %v4558 = vrot.slane %v4557, 1
        %v4559 = vadd.f32 %v4557, %v4558
        %v4560 = vrot.slane %v4254, 4
        %v4561 = vadd.f32 %v4254, %v4560
        %v4562 = vrot.slane %v4561, 2
        %v4563 = vadd.f32 %v4561, %v4562
        %v4564 = vrot.slane %v4563, 1
        %v4565 = vadd.f32 %v4563, %v4564
        %v4566 = vrot.slane %v4255, 4
        %v4567 = vadd.f32 %v4255, %v4566
        %v4568 = vrot.slane %v4567, 2
        %v4569 = vadd.f32 %v4567, %v4568
        %v4570 = vrot.slane %v4569, 1
        %v4571 = vadd.f32 %v4569, %v4570
        %v4572 = vrot.slane %v4256, 4
        %v4573 = vadd.f32 %v4256, %v4572
        %v4574 = vrot.slane %v4573, 2
        %v4575 = vadd.f32 %v4573, %v4574
        %v4576 = vrot.slane %v4575, 1
        %v4577 = vadd.f32 %v4575, %v4576
        %v4578 = vrot.slane %v4257, 4
        %v4579 = vadd.f32 %v4257, %v4578
        %v4580 = vrot.slane %v4579, 2
        %v4581 = vadd.f32 %v4579, %v4580
        %v4582 = vrot.slane %v4581, 1
        %v4583 = vadd.f32 %v4581, %v4582
        %v4584 = vrot.slane %v4258, 4
        %v4585 = vadd.f32 %v4258, %v4584
        %v4586 = vrot.slane %v4585, 2
        %v4587 = vadd.f32 %v4585, %v4586
        %v4588 = vrot.slane %v4587, 1
        %v4589 = vadd.f32 %v4587, %v4588
        %v4590 = vrot.slane %v4259, 4
        %v4591 = vadd.f32 %v4259, %v4590
        %v4592 = vrot.slane %v4591, 2
        %v4593 = vadd.f32 %v4591, %v4592
        %v4594 = vrot.slane %v4593, 1
        %v4595 = vadd.f32 %v4593, %v4594
        %v4596 = vrot.slane %v4260, 4
        %v4597 = vadd.f32 %v4260, %v4596
        %v4598 = vrot.slane %v4597, 2
        %v4599 = vadd.f32 %v4597, %v4598
        %v4600 = vrot.slane %v4599, 1
        %v4601 = vadd.f32 %v4599, %v4600
        %v4602 = vrot.slane %v4261, 4
        %v4603 = vadd.f32 %v4261, %v4602
        %v4604 = vrot.slane %v4603, 2
        %v4605 = vadd.f32 %v4603, %v4604
        %v4606 = vrot.slane %v4605, 1
        %v4607 = vadd.f32 %v4605, %v4606
        %v4608 = vrot.slane %v4262, 4
        %v4609 = vadd.f32 %v4262, %v4608
        %v4610 = vrot.slane %v4609, 2
        %v4611 = vadd.f32 %v4609, %v4610
        %v4612 = vrot.slane %v4611, 1
        %v4613 = vadd.f32 %v4611, %v4612
        %v4614 = vrot.slane %v4263, 4
        %v4615 = vadd.f32 %v4263, %v4614
        %v4616 = vrot.slane %v4615, 2
        %v4617 = vadd.f32 %v4615, %v4616
        %v4618 = vrot.slane %v4617, 1
        %v4619 = vadd.f32 %v4617, %v4618
        %v4620 = vrot.slane %v4264, 4
        %v4621 = vadd.f32 %v4264, %v4620
        %v4622 = vrot.slane %v4621, 2
        %v4623 = vadd.f32 %v4621, %v4622
        %v4624 = vrot.slane %v4623, 1
        %v4625 = vadd.f32 %v4623, %v4624
        %v4626 = vrot.slane %v4265, 4
        %v4627 = vadd.f32 %v4265, %v4626
        %v4628 = vrot.slane %v4627, 2
        %v4629 = vadd.f32 %v4627, %v4628
        %v4630 = vrot.slane %v4629, 1
        %v4631 = vadd.f32 %v4629, %v4630
        %v4632 = vrot.slane %v4266, 4
        %v4633 = vadd.f32 %v4266, %v4632
        %v4634 = vrot.slane %v4633, 2
        %v4635 = vadd.f32 %v4633, %v4634
        %v4636 = vrot.slane %v4635, 1
        %v4637 = vadd.f32 %v4635, %v4636
        %v4638 = vrot.slane %v4267, 4
        %v4639 = vadd.f32 %v4267, %v4638
        %v4640 = vrot.slane %v4639, 2
        %v4641 = vadd.f32 %v4639, %v4640
        %v4642 = vrot.slane %v4641, 1
        %v4643 = vadd.f32 %v4641, %v4642
        %v4644 = vrot.slane %v4268, 4
        %v4645 = vadd.f32 %v4268, %v4644
        %v4646 = vrot.slane %v4645, 2
        %v4647 = vadd.f32 %v4645, %v4646
        %v4648 = vrot.slane %v4647, 1
        %v4649 = vadd.f32 %v4647, %v4648
        %v4650 = vrot.slane %v4269, 4
        %v4651 = vadd.f32 %v4269, %v4650
        %v4652 = vrot.slane %v4651, 2
        %v4653 = vadd.f32 %v4651, %v4652
        %v4654 = vrot.slane %v4653, 1
        %v4655 = vadd.f32 %v4653, %v4654
        %v4656 = vrot.slane %v4270, 4
        %v4657 = vadd.f32 %v4270, %v4656
        %v4658 = vrot.slane %v4657, 2
        %v4659 = vadd.f32 %v4657, %v4658
        %v4660 = vrot.slane %v4659, 1
        %v4661 = vadd.f32 %v4659, %v4660
        %v4662 = vrot.slane %v4271, 4
        %v4663 = vadd.f32 %v4271, %v4662
        %v4664 = vrot.slane %v4663, 2
        %v4665 = vadd.f32 %v4663, %v4664
        %v4666 = vrot.slane %v4665, 1
        %v4667 = vadd.f32 %v4665, %v4666
        %v4668 = vrot.slane %v4272, 4
        %v4669 = vadd.f32 %v4272, %v4668
        %v4670 = vrot.slane %v4669, 2
        %v4671 = vadd.f32 %v4669, %v4670
        %v4672 = vrot.slane %v4671, 1
        %v4673 = vadd.f32 %v4671, %v4672
        %v4674 = vrot.slane %v4273, 4
        %v4675 = vadd.f32 %v4273, %v4674
        %v4676 = vrot.slane %v4675, 2
        %v4677 = vadd.f32 %v4675, %v4676
        %v4678 = vrot.slane %v4677, 1
        %v4679 = vadd.f32 %v4677, %v4678
        %v4680 = vrot.slane %v4274, 4
        %v4681 = vadd.f32 %v4274, %v4680
        %v4682 = vrot.slane %v4681, 2
        %v4683 = vadd.f32 %v4681, %v4682
        %v4684 = vrot.slane %v4683, 1
        %v4685 = vadd.f32 %v4683, %v4684
        %v4686 = vrot.slane %v4275, 4
        %v4687 = vadd.f32 %v4275, %v4686
        %v4688 = vrot.slane %v4687, 2
        %v4689 = vadd.f32 %v4687, %v4688
        %v4690 = vrot.slane %v4689, 1
        %v4691 = vadd.f32 %v4689, %v4690
        %v4692 = vrot.slane %v4276, 4
        %v4693 = vadd.f32 %v4276, %v4692
        %v4694 = vrot.slane %v4693, 2
        %v4695 = vadd.f32 %v4693, %v4694
        %v4696 = vrot.slane %v4695, 1
        %v4697 = vadd.f32 %v4695, %v4696
        %v4698 = vrot.slane %v4277, 4
        %v4699 = vadd.f32 %v4277, %v4698
        %v4700 = vrot.slane %v4699, 2
        %v4701 = vadd.f32 %v4699, %v4700
        %v4702 = vrot.slane %v4701, 1
        %v4703 = vadd.f32 %v4701, %v4702
        %v4704 = vrot.slane %v4278, 4
        %v4705 = vadd.f32 %v4278, %v4704
        %v4706 = vrot.slane %v4705, 2
        %v4707 = vadd.f32 %v4705, %v4706
        %v4708 = vrot.slane %v4707, 1
        %v4709 = vadd.f32 %v4707, %v4708
        %v4710 = vrot.slane %v4279, 4
        %v4711 = vadd.f32 %v4279, %v4710
        %v4712 = vrot.slane %v4711, 2
        %v4713 = vadd.f32 %v4711, %v4712
        %v4714 = vrot.slane %v4713, 1
        %v4715 = vadd.f32 %v4713, %v4714
        %v4716 = vrot.slane %v4280, 4
        %v4717 = vadd.f32 %v4280, %v4716
        %v4718 = vrot.slane %v4717, 2
        %v4719 = vadd.f32 %v4717, %v4718
        %v4720 = vrot.slane %v4719, 1
        %v4721 = vadd.f32 %v4719, %v4720
        %v4722 = vrot.slane %v4281, 4
        %v4723 = vadd.f32 %v4281, %v4722
        %v4724 = vrot.slane %v4723, 2
        %v4725 = vadd.f32 %v4723, %v4724
        %v4726 = vrot.slane %v4725, 1
        %v4727 = vadd.f32 %v4725, %v4726
        %v4728 = vrot.slane %v4282, 4
        %v4729 = vadd.f32 %v4282, %v4728
        %v4730 = vrot.slane %v4729, 2
        %v4731 = vadd.f32 %v4729, %v4730
        %v4732 = vrot.slane %v4731, 1
        %v4733 = vadd.f32 %v4731, %v4732
        %v4734 = vrot.slane %v4283, 4
        %v4735 = vadd.f32 %v4283, %v4734
        %v4736 = vrot.slane %v4735, 2
        %v4737 = vadd.f32 %v4735, %v4736
        %v4738 = vrot.slane %v4737, 1
        %v4739 = vadd.f32 %v4737, %v4738
        %v4740 = vrot.slane %v4284, 4
        %v4741 = vadd.f32 %v4284, %v4740
        %v4742 = vrot.slane %v4741, 2
        %v4743 = vadd.f32 %v4741, %v4742
        %v4744 = vrot.slane %v4743, 1
        %v4745 = vadd.f32 %v4743, %v4744
        %v4746 = vrot.slane %v4285, 4
        %v4747 = vadd.f32 %v4285, %v4746
        %v4748 = vrot.slane %v4747, 2
        %v4749 = vadd.f32 %v4747, %v4748
        %v4750 = vrot.slane %v4749, 1
        %v4751 = vadd.f32 %v4749, %v4750
        %v4752 = vrot.slane %v4286, 4
        %v4753 = vadd.f32 %v4286, %v4752
        %v4754 = vrot.slane %v4753, 2
        %v4755 = vadd.f32 %v4753, %v4754
        %v4756 = vrot.slane %v4755, 1
        %v4757 = vadd.f32 %v4755, %v4756
        %v4758 = vrot.slane %v4287, 4
        %v4759 = vadd.f32 %v4287, %v4758
        %v4760 = vrot.slane %v4759, 2
        %v4761 = vadd.f32 %v4759, %v4760
        %v4762 = vrot.slane %v4761, 1
        %v4763 = vadd.f32 %v4761, %v4762
        %v4764 = vrot.slane %v4288, 4
        %v4765 = vadd.f32 %v4288, %v4764
        %v4766 = vrot.slane %v4765, 2
        %v4767 = vadd.f32 %v4765, %v4766
        %v4768 = vrot.slane %v4767, 1
        %v4769 = vadd.f32 %v4767, %v4768
        %v4770 = vrot.slane %v4289, 4
        %v4771 = vadd.f32 %v4289, %v4770
        %v4772 = vrot.slane %v4771, 2
        %v4773 = vadd.f32 %v4771, %v4772
        %v4774 = vrot.slane %v4773, 1
        %v4775 = vadd.f32 %v4773, %v4774
        %v4776 = vrot.slane %v4290, 4
        %v4777 = vadd.f32 %v4290, %v4776
        %v4778 = vrot.slane %v4777, 2
        %v4779 = vadd.f32 %v4777, %v4778
        %v4780 = vrot.slane %v4779, 1
        %v4781 = vadd.f32 %v4779, %v4780
        %v4782 = vrot.slane %v4291, 4
        %v4783 = vadd.f32 %v4291, %v4782
        %v4784 = vrot.slane %v4783, 2
        %v4785 = vadd.f32 %v4783, %v4784
        %v4786 = vrot.slane %v4785, 1
        %v4787 = vadd.f32 %v4785, %v4786
        %v4788 = vrot.slane %v4292, 4
        %v4789 = vadd.f32 %v4292, %v4788
        %v4790 = vrot.slane %v4789, 2
        %v4791 = vadd.f32 %v4789, %v4790
        %v4792 = vrot.slane %v4791, 1
        %v4793 = vadd.f32 %v4791, %v4792
        %v4794 = vrot.slane %v4293, 4
        %v4795 = vadd.f32 %v4293, %v4794
        %v4796 = vrot.slane %v4795, 2
        %v4797 = vadd.f32 %v4795, %v4796
        %v4798 = vrot.slane %v4797, 1
        %v4799 = vadd.f32 %v4797, %v4798
        %v4800 = vrot.slane %v4294, 4
        %v4801 = vadd.f32 %v4294, %v4800
        %v4802 = vrot.slane %v4801, 2
        %v4803 = vadd.f32 %v4801, %v4802
        %v4804 = vrot.slane %v4803, 1
        %v4805 = vadd.f32 %v4803, %v4804
        %v4806 = vrot.slane %v4295, 4
        %v4807 = vadd.f32 %v4295, %v4806
        %v4808 = vrot.slane %v4807, 2
        %v4809 = vadd.f32 %v4807, %v4808
        %v4810 = vrot.slane %v4809, 1
        %v4811 = vadd.f32 %v4809, %v4810
        %v4812 = vrot.slane %v4296, 4
        %v4813 = vadd.f32 %v4296, %v4812
        %v4814 = vrot.slane %v4813, 2
        %v4815 = vadd.f32 %v4813, %v4814
        %v4816 = vrot.slane %v4815, 1
        %v4817 = vadd.f32 %v4815, %v4816
        %v4818 = vrot.slane %v4297, 4
        %v4819 = vadd.f32 %v4297, %v4818
        %v4820 = vrot.slane %v4819, 2
        %v4821 = vadd.f32 %v4819, %v4820
        %v4822 = vrot.slane %v4821, 1
        %v4823 = vadd.f32 %v4821, %v4822
        %v4824 = vrot.slane %v4298, 4
        %v4825 = vadd.f32 %v4298, %v4824
        %v4826 = vrot.slane %v4825, 2
        %v4827 = vadd.f32 %v4825, %v4826
        %v4828 = vrot.slane %v4827, 1
        %v4829 = vadd.f32 %v4827, %v4828
        %v4830 = vrot.slane %v4299, 4
        %v4831 = vadd.f32 %v4299, %v4830
        %v4832 = vrot.slane %v4831, 2
        %v4833 = vadd.f32 %v4831, %v4832
        %v4834 = vrot.slane %v4833, 1
        %v4835 = vadd.f32 %v4833, %v4834
        %v4836 = vrot.slane %v4300, 4
        %v4837 = vadd.f32 %v4300, %v4836
        %v4838 = vrot.slane %v4837, 2
        %v4839 = vadd.f32 %v4837, %v4838
        %v4840 = vrot.slane %v4839, 1
        %v4841 = vadd.f32 %v4839, %v4840
        %v4842 = vrot.slane %v4301, 4
        %v4843 = vadd.f32 %v4301, %v4842
        %v4844 = vrot.slane %v4843, 2
        %v4845 = vadd.f32 %v4843, %v4844
        %v4846 = vrot.slane %v4845, 1
        %v4847 = vadd.f32 %v4845, %v4846
        %v4848 = vrot.slane %v4302, 4
        %v4849 = vadd.f32 %v4302, %v4848
        %v4850 = vrot.slane %v4849, 2
        %v4851 = vadd.f32 %v4849, %v4850
        %v4852 = vrot.slane %v4851, 1
        %v4853 = vadd.f32 %v4851, %v4852
        %v4854 = vrot.slane %v4303, 4
        %v4855 = vadd.f32 %v4303, %v4854
        %v4856 = vrot.slane %v4855, 2
        %v4857 = vadd.f32 %v4855, %v4856
        %v4858 = vrot.slane %v4857, 1
        %v4859 = vadd.f32 %v4857, %v4858
        %v4860 = vrot.slane %v4304, 4
        %v4861 = vadd.f32 %v4304, %v4860
        %v4862 = vrot.slane %v4861, 2
        %v4863 = vadd.f32 %v4861, %v4862
        %v4864 = vrot.slane %v4863, 1
        %v4865 = vadd.f32 %v4863, %v4864
        %v4866 = vrot.slane %v4305, 4
        %v4867 = vadd.f32 %v4305, %v4866
        %v4868 = vrot.slane %v4867, 2
        %v4869 = vadd.f32 %v4867, %v4868
        %v4870 = vrot.slane %v4869, 1
        %v4871 = vadd.f32 %v4869, %v4870
        %v4872 = vrot.slane %v4306, 4
        %v4873 = vadd.f32 %v4306, %v4872
        %v4874 = vrot.slane %v4873, 2
        %v4875 = vadd.f32 %v4873, %v4874
        %v4876 = vrot.slane %v4875, 1
        %v4877 = vadd.f32 %v4875, %v4876
        %v4878 = vrot.slane %v4307, 4
        %v4879 = vadd.f32 %v4307, %v4878
        %v4880 = vrot.slane %v4879, 2
        %v4881 = vadd.f32 %v4879, %v4880
        %v4882 = vrot.slane %v4881, 1
        %v4883 = vadd.f32 %v4881, %v4882
        %v4884 = vrot.slane %v4308, 4
        %v4885 = vadd.f32 %v4308, %v4884
        %v4886 = vrot.slane %v4885, 2
        %v4887 = vadd.f32 %v4885, %v4886
        %v4888 = vrot.slane %v4887, 1
        %v4889 = vadd.f32 %v4887, %v4888
        %v4890 = vrot.slane %v4309, 4
        %v4891 = vadd.f32 %v4309, %v4890
        %v4892 = vrot.slane %v4891, 2
        %v4893 = vadd.f32 %v4891, %v4892
        %v4894 = vrot.slane %v4893, 1
        %v4895 = vadd.f32 %v4893, %v4894
        %v4896 = vrot.slane %v4310, 4
        %v4897 = vadd.f32 %v4310, %v4896
        %v4898 = vrot.slane %v4897, 2
        %v4899 = vadd.f32 %v4897, %v4898
        %v4900 = vrot.slane %v4899, 1
        %v4901 = vadd.f32 %v4899, %v4900
        %v4902 = vrot.slane %v4311, 4
        %v4903 = vadd.f32 %v4311, %v4902
        %v4904 = vrot.slane %v4903, 2
        %v4905 = vadd.f32 %v4903, %v4904
        %v4906 = vrot.slane %v4905, 1
        %v4907 = vadd.f32 %v4905, %v4906
        %v4908 = vrot.slane %v4312, 4
        %v4909 = vadd.f32 %v4312, %v4908
        %v4910 = vrot.slane %v4909, 2
        %v4911 = vadd.f32 %v4909, %v4910
        %v4912 = vrot.slane %v4911, 1
        %v4913 = vadd.f32 %v4911, %v4912
        %v4914 = vrot.slane %v4313, 4
        %v4915 = vadd.f32 %v4313, %v4914
        %v4916 = vrot.slane %v4915, 2
        %v4917 = vadd.f32 %v4915, %v4916
        %v4918 = vrot.slane %v4917, 1
        %v4919 = vadd.f32 %v4917, %v4918
        %v4920 = vrot.slane %v4314, 4
        %v4921 = vadd.f32 %v4314, %v4920
        %v4922 = vrot.slane %v4921, 2
        %v4923 = vadd.f32 %v4921, %v4922
        %v4924 = vrot.slane %v4923, 1
        %v4925 = vadd.f32 %v4923, %v4924
        %v4926 = vrot.slane %v4315, 4
        %v4927 = vadd.f32 %v4315, %v4926
        %v4928 = vrot.slane %v4927, 2
        %v4929 = vadd.f32 %v4927, %v4928
        %v4930 = vrot.slane %v4929, 1
        %v4931 = vadd.f32 %v4929, %v4930
        %v4932 = vrot.slane %v4316, 4
        %v4933 = vadd.f32 %v4316, %v4932
        %v4934 = vrot.slane %v4933, 2
        %v4935 = vadd.f32 %v4933, %v4934
        %v4936 = vrot.slane %v4935, 1
        %v4937 = vadd.f32 %v4935, %v4936
        %v4938 = vrot.slane %v4317, 4
        %v4939 = vadd.f32 %v4317, %v4938
        %v4940 = vrot.slane %v4939, 2
        %v4941 = vadd.f32 %v4939, %v4940
        %v4942 = vrot.slane %v4941, 1
        %v4943 = vadd.f32 %v4941, %v4942
        %v4944 = vrot.slane %v4318, 4
        %v4945 = vadd.f32 %v4318, %v4944
        %v4946 = vrot.slane %v4945, 2
        %v4947 = vadd.f32 %v4945, %v4946
        %v4948 = vrot.slane %v4947, 1
        %v4949 = vadd.f32 %v4947, %v4948
        %v4950 = vrot.slane %v4319, 4
        %v4951 = vadd.f32 %v4319, %v4950
        %v4952 = vrot.slane %v4951, 2
        %v4953 = vadd.f32 %v4951, %v4952
        %v4954 = vrot.slane %v4953, 1
        %v4955 = vadd.f32 %v4953, %v4954
        %v4956 = vrot.slane %v4320, 4
        %v4957 = vadd.f32 %v4320, %v4956
        %v4958 = vrot.slane %v4957, 2
        %v4959 = vadd.f32 %v4957, %v4958
        %v4960 = vrot.slane %v4959, 1
        %v4961 = vadd.f32 %v4959, %v4960
        %v4962 = vrot.slane %v4321, 4
        %v4963 = vadd.f32 %v4321, %v4962
        %v4964 = vrot.slane %v4963, 2
        %v4965 = vadd.f32 %v4963, %v4964
        %v4966 = vrot.slane %v4965, 1
        %v4967 = vadd.f32 %v4965, %v4966
        %v4968 = vrot.slane %v4322, 4
        %v4969 = vadd.f32 %v4322, %v4968
        %v4970 = vrot.slane %v4969, 2
        %v4971 = vadd.f32 %v4969, %v4970
        %v4972 = vrot.slane %v4971, 1
        %v4973 = vadd.f32 %v4971, %v4972
        %v4974 = vrot.slane %v4323, 4
        %v4975 = vadd.f32 %v4323, %v4974
        %v4976 = vrot.slane %v4975, 2
        %v4977 = vadd.f32 %v4975, %v4976
        %v4978 = vrot.slane %v4977, 1
        %v4979 = vadd.f32 %v4977, %v4978
        %v4980 = vrot.slane %v4324, 4
        %v4981 = vadd.f32 %v4324, %v4980
        %v4982 = vrot.slane %v4981, 2
        %v4983 = vadd.f32 %v4981, %v4982
        %v4984 = vrot.slane %v4983, 1
        %v4985 = vadd.f32 %v4983, %v4984
        %v4986 = vrot.slane %v4325, 4
        %v4987 = vadd.f32 %v4325, %v4986
        %v4988 = vrot.slane %v4987, 2
        %v4989 = vadd.f32 %v4987, %v4988
        %v4990 = vrot.slane %v4989, 1
        %v4991 = vadd.f32 %v4989, %v4990
        %v4992 = vrot.slane %v4326, 4
        %v4993 = vadd.f32 %v4326, %v4992
        %v4994 = vrot.slane %v4993, 2
        %v4995 = vadd.f32 %v4993, %v4994
        %v4996 = vrot.slane %v4995, 1
        %v4997 = vadd.f32 %v4995, %v4996
        %v4998 = vrot.slane %v4327, 4
        %v4999 = vadd.f32 %v4327, %v4998
        %v5000 = vrot.slane %v4999, 2
        %v5001 = vadd.f32 %v4999, %v5000
        %v5002 = vrot.slane %v5001, 1
        %v5003 = vadd.f32 %v5001, %v5002
        %v5004 = vrot.slane %v4328, 4
        %v5005 = vadd.f32 %v4328, %v5004
        %v5006 = vrot.slane %v5005, 2
        %v5007 = vadd.f32 %v5005, %v5006
        %v5008 = vrot.slane %v5007, 1
        %v5009 = vadd.f32 %v5007, %v5008
        %v5010 = vrot.slane %v4329, 4
        %v5011 = vadd.f32 %v4329, %v5010
        %v5012 = vrot.slane %v5011, 2
        %v5013 = vadd.f32 %v5011, %v5012
        %v5014 = vrot.slane %v5013, 1
        %v5015 = vadd.f32 %v5013, %v5014
        %v5016 = vrot.slane %v4330, 4
        %v5017 = vadd.f32 %v4330, %v5016
        %v5018 = vrot.slane %v5017, 2
        %v5019 = vadd.f32 %v5017, %v5018
        %v5020 = vrot.slane %v5019, 1
        %v5021 = vadd.f32 %v5019, %v5020
        %v5022 = vrot.slane %v4331, 4
        %v5023 = vadd.f32 %v4331, %v5022
        %v5024 = vrot.slane %v5023, 2
        %v5025 = vadd.f32 %v5023, %v5024
        %v5026 = vrot.slane %v5025, 1
        %v5027 = vadd.f32 %v5025, %v5026
        %v5028 = vrot.slane %v4332, 4
        %v5029 = vadd.f32 %v4332, %v5028
        %v5030 = vrot.slane %v5029, 2
        %v5031 = vadd.f32 %v5029, %v5030
        %v5032 = vrot.slane %v5031, 1
        %v5033 = vadd.f32 %v5031, %v5032
        %v5034 = vrot.slane %v4333, 4
        %v5035 = vadd.f32 %v4333, %v5034
        %v5036 = vrot.slane %v5035, 2
        %v5037 = vadd.f32 %v5035, %v5036
        %v5038 = vrot.slane %v5037, 1
        %v5039 = vadd.f32 %v5037, %v5038
        %v5040 = vrot.slane %v4334, 4
        %v5041 = vadd.f32 %v4334, %v5040
        %v5042 = vrot.slane %v5041, 2
        %v5043 = vadd.f32 %v5041, %v5042
        %v5044 = vrot.slane %v5043, 1
        %v5045 = vadd.f32 %v5043, %v5044
        %v5046 = vrot.slane %v4335, 4
        %v5047 = vadd.f32 %v4335, %v5046
        %v5048 = vrot.slane %v5047, 2
        %v5049 = vadd.f32 %v5047, %v5048
        %v5050 = vrot.slane %v5049, 1
        %v5051 = vadd.f32 %v5049, %v5050
        %v5052 = vrot.slane %v4336, 4
        %v5053 = vadd.f32 %v4336, %v5052
        %v5054 = vrot.slane %v5053, 2
        %v5055 = vadd.f32 %v5053, %v5054
        %v5056 = vrot.slane %v5055, 1
        %v5057 = vadd.f32 %v5055, %v5056
        %v5058 = vrot.slane %v4337, 4
        %v5059 = vadd.f32 %v4337, %v5058
        %v5060 = vrot.slane %v5059, 2
        %v5061 = vadd.f32 %v5059, %v5060
        %v5062 = vrot.slane %v5061, 1
        %v5063 = vadd.f32 %v5061, %v5062
        %v5064 = vrot.slane %v4338, 4
        %v5065 = vadd.f32 %v4338, %v5064
        %v5066 = vrot.slane %v5065, 2
        %v5067 = vadd.f32 %v5065, %v5066
        %v5068 = vrot.slane %v5067, 1
        %v5069 = vadd.f32 %v5067, %v5068
        %v5070 = vrot.slane %v4339, 4
        %v5071 = vadd.f32 %v4339, %v5070
        %v5072 = vrot.slane %v5071, 2
        %v5073 = vadd.f32 %v5071, %v5072
        %v5074 = vrot.slane %v5073, 1
        %v5075 = vadd.f32 %v5073, %v5074
        %v5076 = vrot.slane %v4340, 4
        %v5077 = vadd.f32 %v4340, %v5076
        %v5078 = vrot.slane %v5077, 2
        %v5079 = vadd.f32 %v5077, %v5078
        %v5080 = vrot.slane %v5079, 1
        %v5081 = vadd.f32 %v5079, %v5080
        %v5082 = vrot.slane %v4341, 4
        %v5083 = vadd.f32 %v4341, %v5082
        %v5084 = vrot.slane %v5083, 2
        %v5085 = vadd.f32 %v5083, %v5084
        %v5086 = vrot.slane %v5085, 1
        %v5087 = vadd.f32 %v5085, %v5086
        %v5088 = vrot.slane %v4342, 4
        %v5089 = vadd.f32 %v4342, %v5088
        %v5090 = vrot.slane %v5089, 2
        %v5091 = vadd.f32 %v5089, %v5090
        %v5092 = vrot.slane %v5091, 1
        %v5093 = vadd.f32 %v5091, %v5092
        %v5094 = vrot.slane %v4343, 4
        %v5095 = vadd.f32 %v4343, %v5094
        %v5096 = vrot.slane %v5095, 2
        %v5097 = vadd.f32 %v5095, %v5096
        %v5098 = vrot.slane %v5097, 1
        %v5099 = vadd.f32 %v5097, %v5098
        %v5100 = vrot.slane %v4344, 4
        %v5101 = vadd.f32 %v4344, %v5100
        %v5102 = vrot.slane %v5101, 2
        %v5103 = vadd.f32 %v5101, %v5102
        %v5104 = vrot.slane %v5103, 1
        %v5105 = vadd.f32 %v5103, %v5104
        %v5106 = vrot.slane %v4345, 4
        %v5107 = vadd.f32 %v4345, %v5106
        %v5108 = vrot.slane %v5107, 2
        %v5109 = vadd.f32 %v5107, %v5108
        %v5110 = vrot.slane %v5109, 1
        %v5111 = vadd.f32 %v5109, %v5110
        %v5112 = vrot.slane %v4346, 4
        %v5113 = vadd.f32 %v4346, %v5112
        %v5114 = vrot.slane %v5113, 2
        %v5115 = vadd.f32 %v5113, %v5114
        %v5116 = vrot.slane %v5115, 1
        %v5117 = vadd.f32 %v5115, %v5116
        %v5118 = vrot.slane %v4347, 4
        %v5119 = vadd.f32 %v4347, %v5118
        %v5120 = vrot.slane %v5119, 2
        %v5121 = vadd.f32 %v5119, %v5120
        %v5122 = vrot.slane %v5121, 1
        %v5123 = vadd.f32 %v5121, %v5122
        %v5124 = vrot.slane %v4348, 4
        %v5125 = vadd.f32 %v4348, %v5124
        %v5126 = vrot.slane %v5125, 2
        %v5127 = vadd.f32 %v5125, %v5126
        %v5128 = vrot.slane %v5127, 1
        %v5129 = vadd.f32 %v5127, %v5128
        %v5130 = vrot.slane %v4349, 4
        %v5131 = vadd.f32 %v4349, %v5130
        %v5132 = vrot.slane %v5131, 2
        %v5133 = vadd.f32 %v5131, %v5132
        %v5134 = vrot.slane %v5133, 1
        %v5135 = vadd.f32 %v5133, %v5134
        %v5136 = vrot.slane %v4350, 4
        %v5137 = vadd.f32 %v4350, %v5136
        %v5138 = vrot.slane %v5137, 2
        %v5139 = vadd.f32 %v5137, %v5138
        %v5140 = vrot.slane %v5139, 1
        %v5141 = vadd.f32 %v5139, %v5140
        %v5142 = vrot.slane %v4351, 4
        %v5143 = vadd.f32 %v4351, %v5142
        %v5144 = vrot.slane %v5143, 2
        %v5145 = vadd.f32 %v5143, %v5144
        %v5146 = vrot.slane %v5145, 1
        %v5147 = vadd.f32 %v5145, %v5146
        %v5148 = vrot.slane %v4352, 4
        %v5149 = vadd.f32 %v4352, %v5148
        %v5150 = vrot.slane %v5149, 2
        %v5151 = vadd.f32 %v5149, %v5150
        %v5152 = vrot.slane %v5151, 1
        %v5153 = vadd.f32 %v5151, %v5152
        %v5154 = vrot.slane %v4353, 4
        %v5155 = vadd.f32 %v4353, %v5154
        %v5156 = vrot.slane %v5155, 2
        %v5157 = vadd.f32 %v5155, %v5156
        %v5158 = vrot.slane %v5157, 1
        %v5159 = vadd.f32 %v5157, %v5158
        %v5160 = vrot.slane %v4354, 4
        %v5161 = vadd.f32 %v4354, %v5160
        %v5162 = vrot.slane %v5161, 2
        %v5163 = vadd.f32 %v5161, %v5162
        %v5164 = vrot.slane %v5163, 1
        %v5165 = vadd.f32 %v5163, %v5164
        %v5166 = vrot.slane %v4355, 4
        %v5167 = vadd.f32 %v4355, %v5166
        %v5168 = vrot.slane %v5167, 2
        %v5169 = vadd.f32 %v5167, %v5168
        %v5170 = vrot.slane %v5169, 1
        %v5171 = vadd.f32 %v5169, %v5170
        %v5172 = vrot.slane %v4356, 4
        %v5173 = vadd.f32 %v4356, %v5172
        %v5174 = vrot.slane %v5173, 2
        %v5175 = vadd.f32 %v5173, %v5174
        %v5176 = vrot.slane %v5175, 1
        %v5177 = vadd.f32 %v5175, %v5176
        %v5178 = vrot.slane %v4357, 4
        %v5179 = vadd.f32 %v4357, %v5178
        %v5180 = vrot.slane %v5179, 2
        %v5181 = vadd.f32 %v5179, %v5180
        %v5182 = vrot.slane %v5181, 1
        %v5183 = vadd.f32 %v5181, %v5182
        %v5184 = vrot.slane %v4358, 4
        %v5185 = vadd.f32 %v4358, %v5184
        %v5186 = vrot.slane %v5185, 2
        %v5187 = vadd.f32 %v5185, %v5186
        %v5188 = vrot.slane %v5187, 1
        %v5189 = vadd.f32 %v5187, %v5188
        %v5190 = vrot.slane %v4359, 4
        %v5191 = vadd.f32 %v4359, %v5190
        %v5192 = vrot.slane %v5191, 2
        %v5193 = vadd.f32 %v5191, %v5192
        %v5194 = vrot.slane %v5193, 1
        %v5195 = vadd.f32 %v5193, %v5194
        %v5196 = vrot.slane %v4360, 4
        %v5197 = vadd.f32 %v4360, %v5196
        %v5198 = vrot.slane %v5197, 2
        %v5199 = vadd.f32 %v5197, %v5198
        %v5200 = vrot.slane %v5199, 1
        %v5201 = vadd.f32 %v5199, %v5200
        %v5202 = vrot.slane %v4361, 4
        %v5203 = vadd.f32 %v4361, %v5202
        %v5204 = vrot.slane %v5203, 2
        %v5205 = vadd.f32 %v5203, %v5204
        %v5206 = vrot.slane %v5205, 1
        %v5207 = vadd.f32 %v5205, %v5206
        %v5208 = vrot.slane %v4362, 4
        %v5209 = vadd.f32 %v4362, %v5208
        %v5210 = vrot.slane %v5209, 2
        %v5211 = vadd.f32 %v5209, %v5210
        %v5212 = vrot.slane %v5211, 1
        %v5213 = vadd.f32 %v5211, %v5212
        %v5214 = vrot.slane %v4363, 4
        %v5215 = vadd.f32 %v4363, %v5214
        %v5216 = vrot.slane %v5215, 2
        %v5217 = vadd.f32 %v5215, %v5216
        %v5218 = vrot.slane %v5217, 1
        %v5219 = vadd.f32 %v5217, %v5218
        %v5220 = vrot.slane %v4364, 4
        %v5221 = vadd.f32 %v4364, %v5220
        %v5222 = vrot.slane %v5221, 2
        %v5223 = vadd.f32 %v5221, %v5222
        %v5224 = vrot.slane %v5223, 1
        %v5225 = vadd.f32 %v5223, %v5224
        %v5226 = vrot.slane %v4365, 4
        %v5227 = vadd.f32 %v4365, %v5226
        %v5228 = vrot.slane %v5227, 2
        %v5229 = vadd.f32 %v5227, %v5228
        %v5230 = vrot.slane %v5229, 1
        %v5231 = vadd.f32 %v5229, %v5230
        %v5232 = vrot.slane %v4366, 4
        %v5233 = vadd.f32 %v4366, %v5232
        %v5234 = vrot.slane %v5233, 2
        %v5235 = vadd.f32 %v5233, %v5234
        %v5236 = vrot.slane %v5235, 1
        %v5237 = vadd.f32 %v5235, %v5236
        %v5238 = vrot.slane %v4367, 4
        %v5239 = vadd.f32 %v4367, %v5238
        %v5240 = vrot.slane %v5239, 2
        %v5241 = vadd.f32 %v5239, %v5240
        %v5242 = vrot.slane %v5241, 1
        %v5243 = vadd.f32 %v5241, %v5242
        %v5244 = vrot.slane %v4368, 4
        %v5245 = vadd.f32 %v4368, %v5244
        %v5246 = vrot.slane %v5245, 2
        %v5247 = vadd.f32 %v5245, %v5246
        %v5248 = vrot.slane %v5247, 1
        %v5249 = vadd.f32 %v5247, %v5248
        %v5250 = vrot.slane %v4369, 4
        %v5251 = vadd.f32 %v4369, %v5250
        %v5252 = vrot.slane %v5251, 2
        %v5253 = vadd.f32 %v5251, %v5252
        %v5254 = vrot.slane %v5253, 1
        %v5255 = vadd.f32 %v5253, %v5254
        %v5256 = vrot.slane %v4370, 4
        %v5257 = vadd.f32 %v4370, %v5256
        %v5258 = vrot.slane %v5257, 2
        %v5259 = vadd.f32 %v5257, %v5258
        %v5260 = vrot.slane %v5259, 1
        %v5261 = vadd.f32 %v5259, %v5260
        %v5262 = vrot.slane %v4371, 4
        %v5263 = vadd.f32 %v4371, %v5262
        %v5264 = vrot.slane %v5263, 2
        %v5265 = vadd.f32 %v5263, %v5264
        %v5266 = vrot.slane %v5265, 1
        %v5267 = vadd.f32 %v5265, %v5266
        %v5268 = vrot.slane %v4372, 4
        %v5269 = vadd.f32 %v4372, %v5268
        %v5270 = vrot.slane %v5269, 2
        %v5271 = vadd.f32 %v5269, %v5270
        %v5272 = vrot.slane %v5271, 1
        %v5273 = vadd.f32 %v5271, %v5272
        %v5274 = vrot.slane %v4373, 4
        %v5275 = vadd.f32 %v4373, %v5274
        %v5276 = vrot.slane %v5275, 2
        %v5277 = vadd.f32 %v5275, %v5276
        %v5278 = vrot.slane %v5277, 1
        %v5279 = vadd.f32 %v5277, %v5278
        %v5280 = vrot.slane %v4374, 4
        %v5281 = vadd.f32 %v4374, %v5280
        %v5282 = vrot.slane %v5281, 2
        %v5283 = vadd.f32 %v5281, %v5282
        %v5284 = vrot.slane %v5283, 1
        %v5285 = vadd.f32 %v5283, %v5284
        %v5286 = vrot.slane %v4375, 4
        %v5287 = vadd.f32 %v4375, %v5286
        %v5288 = vrot.slane %v5287, 2
        %v5289 = vadd.f32 %v5287, %v5288
        %v5290 = vrot.slane %v5289, 1
        %v5291 = vadd.f32 %v5289, %v5290
        %v5292 = vrot.slane %v4376, 4
        %v5293 = vadd.f32 %v4376, %v5292
        %v5294 = vrot.slane %v5293, 2
        %v5295 = vadd.f32 %v5293, %v5294
        %v5296 = vrot.slane %v5295, 1
        %v5297 = vadd.f32 %v5295, %v5296
        %v5298 = vrot.slane %v4377, 4
        %v5299 = vadd.f32 %v4377, %v5298
        %v5300 = vrot.slane %v5299, 2
        %v5301 = vadd.f32 %v5299, %v5300
        %v5302 = vrot.slane %v5301, 1
        %v5303 = vadd.f32 %v5301, %v5302
        %v5304 = vrot.slane %v4378, 4
        %v5305 = vadd.f32 %v4378, %v5304
        %v5306 = vrot.slane %v5305, 2
        %v5307 = vadd.f32 %v5305, %v5306
        %v5308 = vrot.slane %v5307, 1
        %v5309 = vadd.f32 %v5307, %v5308
        %v5310 = vrot.slane %v4379, 4
        %v5311 = vadd.f32 %v4379, %v5310
        %v5312 = vrot.slane %v5311, 2
        %v5313 = vadd.f32 %v5311, %v5312
        %v5314 = vrot.slane %v5313, 1
        %v5315 = vadd.f32 %v5313, %v5314
        %v5316 = vrot.slane %v4380, 4
        %v5317 = vadd.f32 %v4380, %v5316
        %v5318 = vrot.slane %v5317, 2
        %v5319 = vadd.f32 %v5317, %v5318
        %v5320 = vrot.slane %v5319, 1
        %v5321 = vadd.f32 %v5319, %v5320
        %v5322 = vrot.slane %v4381, 4
        %v5323 = vadd.f32 %v4381, %v5322
        %v5324 = vrot.slane %v5323, 2
        %v5325 = vadd.f32 %v5323, %v5324
        %v5326 = vrot.slane %v5325, 1
        %v5327 = vadd.f32 %v5325, %v5326
        %v5328 = vrot.slane %v4382, 4
        %v5329 = vadd.f32 %v4382, %v5328
        %v5330 = vrot.slane %v5329, 2
        %v5331 = vadd.f32 %v5329, %v5330
        %v5332 = vrot.slane %v5331, 1
        %v5333 = vadd.f32 %v5331, %v5332
        %v5334 = vrot.slane %v4383, 4
        %v5335 = vadd.f32 %v4383, %v5334
        %v5336 = vrot.slane %v5335, 2
        %v5337 = vadd.f32 %v5335, %v5336
        %v5338 = vrot.slane %v5337, 1
        %v5339 = vadd.f32 %v5337, %v5338
        %v5340 = vrot.slane %v4384, 4
        %v5341 = vadd.f32 %v4384, %v5340
        %v5342 = vrot.slane %v5341, 2
        %v5343 = vadd.f32 %v5341, %v5342
        %v5344 = vrot.slane %v5343, 1
        %v5345 = vadd.f32 %v5343, %v5344
        %v5346 = vrot.slane %v4385, 4
        %v5347 = vadd.f32 %v4385, %v5346
        %v5348 = vrot.slane %v5347, 2
        %v5349 = vadd.f32 %v5347, %v5348
        %v5350 = vrot.slane %v5349, 1
        %v5351 = vadd.f32 %v5349, %v5350
        %v5352 = vrot.slane %v4386, 4
        %v5353 = vadd.f32 %v4386, %v5352
        %v5354 = vrot.slane %v5353, 2
        %v5355 = vadd.f32 %v5353, %v5354
        %v5356 = vrot.slane %v5355, 1
        %v5357 = vadd.f32 %v5355, %v5356
        %v5358 = vrot.slane %v4387, 4
        %v5359 = vadd.f32 %v4387, %v5358
        %v5360 = vrot.slane %v5359, 2
        %v5361 = vadd.f32 %v5359, %v5360
        %v5362 = vrot.slane %v5361, 1
        %v5363 = vadd.f32 %v5361, %v5362
        %v5364 = vrot.slane %v4388, 4
        %v5365 = vadd.f32 %v4388, %v5364
        %v5366 = vrot.slane %v5365, 2
        %v5367 = vadd.f32 %v5365, %v5366
        %v5368 = vrot.slane %v5367, 1
        %v5369 = vadd.f32 %v5367, %v5368
        %v5370 = vrot.slane %v4389, 4
        %v5371 = vadd.f32 %v4389, %v5370
        %v5372 = vrot.slane %v5371, 2
        %v5373 = vadd.f32 %v5371, %v5372
        %v5374 = vrot.slane %v5373, 1
        %v5375 = vadd.f32 %v5373, %v5374
        %v5376 = vrot.slane %v4390, 4
        %v5377 = vadd.f32 %v4390, %v5376
        %v5378 = vrot.slane %v5377, 2
        %v5379 = vadd.f32 %v5377, %v5378
        %v5380 = vrot.slane %v5379, 1
        %v5381 = vadd.f32 %v5379, %v5380
        %v5382 = vrot.slane %v4391, 4
        %v5383 = vadd.f32 %v4391, %v5382
        %v5384 = vrot.slane %v5383, 2
        %v5385 = vadd.f32 %v5383, %v5384
        %v5386 = vrot.slane %v5385, 1
        %v5387 = vadd.f32 %v5385, %v5386
        %v5388 = vrot.slane %v4392, 4
        %v5389 = vadd.f32 %v4392, %v5388
        %v5390 = vrot.slane %v5389, 2
        %v5391 = vadd.f32 %v5389, %v5390
        %v5392 = vrot.slane %v5391, 1
        %v5393 = vadd.f32 %v5391, %v5392
        %v5394 = vrot.slane %v4393, 4
        %v5395 = vadd.f32 %v4393, %v5394
        %v5396 = vrot.slane %v5395, 2
        %v5397 = vadd.f32 %v5395, %v5396
        %v5398 = vrot.slane %v5397, 1
        %v5399 = vadd.f32 %v5397, %v5398
        %v5400 = vrot.slane %v4394, 4
        %v5401 = vadd.f32 %v4394, %v5400
        %v5402 = vrot.slane %v5401, 2
        %v5403 = vadd.f32 %v5401, %v5402
        %v5404 = vrot.slane %v5403, 1
        %v5405 = vadd.f32 %v5403, %v5404
        %v5406 = vrot.slane %v4395, 4
        %v5407 = vadd.f32 %v4395, %v5406
        %v5408 = vrot.slane %v5407, 2
        %v5409 = vadd.f32 %v5407, %v5408
        %v5410 = vrot.slane %v5409, 1
        %v5411 = vadd.f32 %v5409, %v5410
        %v5412 = vrot.slane %v4396, 4
        %v5413 = vadd.f32 %v4396, %v5412
        %v5414 = vrot.slane %v5413, 2
        %v5415 = vadd.f32 %v5413, %v5414
        %v5416 = vrot.slane %v5415, 1
        %v5417 = vadd.f32 %v5415, %v5416
        %v5418 = vrot.slane %v4397, 4
        %v5419 = vadd.f32 %v4397, %v5418
        %v5420 = vrot.slane %v5419, 2
        %v5421 = vadd.f32 %v5419, %v5420
        %v5422 = vrot.slane %v5421, 1
        %v5423 = vadd.f32 %v5421, %v5422
        %v5424 = vrot.slane %v4398, 4
        %v5425 = vadd.f32 %v4398, %v5424
        %v5426 = vrot.slane %v5425, 2
        %v5427 = vadd.f32 %v5425, %v5426
        %v5428 = vrot.slane %v5427, 1
        %v5429 = vadd.f32 %v5427, %v5428
        %v5430 = vrot.slane %v4399, 4
        %v5431 = vadd.f32 %v4399, %v5430
        %v5432 = vrot.slane %v5431, 2
        %v5433 = vadd.f32 %v5431, %v5432
        %v5434 = vrot.slane %v5433, 1
        %v5435 = vadd.f32 %v5433, %v5434
        %v5436 = vrot.slane %v4400, 4
        %v5437 = vadd.f32 %v4400, %v5436
        %v5438 = vrot.slane %v5437, 2
        %v5439 = vadd.f32 %v5437, %v5438
        %v5440 = vrot.slane %v5439, 1
        %v5441 = vadd.f32 %v5439, %v5440
        %v5442 = vrot.slane %v4401, 4
        %v5443 = vadd.f32 %v4401, %v5442
        %v5444 = vrot.slane %v5443, 2
        %v5445 = vadd.f32 %v5443, %v5444
        %v5446 = vrot.slane %v5445, 1
        %v5447 = vadd.f32 %v5445, %v5446
        %v5448 = vrot.slane %v4402, 4
        %v5449 = vadd.f32 %v4402, %v5448
        %v5450 = vrot.slane %v5449, 2
        %v5451 = vadd.f32 %v5449, %v5450
        %v5452 = vrot.slane %v5451, 1
        %v5453 = vadd.f32 %v5451, %v5452
        %v5454 = vrot.slane %v4403, 4
        %v5455 = vadd.f32 %v4403, %v5454
        %v5456 = vrot.slane %v5455, 2
        %v5457 = vadd.f32 %v5455, %v5456
        %v5458 = vrot.slane %v5457, 1
        %v5459 = vadd.f32 %v5457, %v5458
        %v5460 = vrot.slane %v4404, 4
        %v5461 = vadd.f32 %v4404, %v5460
        %v5462 = vrot.slane %v5461, 2
        %v5463 = vadd.f32 %v5461, %v5462
        %v5464 = vrot.slane %v5463, 1
        %v5465 = vadd.f32 %v5463, %v5464
        %v5466 = vrot.slane %v4405, 4
        %v5467 = vadd.f32 %v4405, %v5466
        %v5468 = vrot.slane %v5467, 2
        %v5469 = vadd.f32 %v5467, %v5468
        %v5470 = vrot.slane %v5469, 1
        %v5471 = vadd.f32 %v5469, %v5470
        %v5472 = vrot.slane %v4406, 4
        %v5473 = vadd.f32 %v4406, %v5472
        %v5474 = vrot.slane %v5473, 2
        %v5475 = vadd.f32 %v5473, %v5474
        %v5476 = vrot.slane %v5475, 1
        %v5477 = vadd.f32 %v5475, %v5476
        %v5478 = vrot.slane %v4407, 4
        %v5479 = vadd.f32 %v4407, %v5478
        %v5480 = vrot.slane %v5479, 2
        %v5481 = vadd.f32 %v5479, %v5480
        %v5482 = vrot.slane %v5481, 1
        %v5483 = vadd.f32 %v5481, %v5482
        %v5484 = vrot.slane %v4408, 4
        %v5485 = vadd.f32 %v4408, %v5484
        %v5486 = vrot.slane %v5485, 2
        %v5487 = vadd.f32 %v5485, %v5486
        %v5488 = vrot.slane %v5487, 1
        %v5489 = vadd.f32 %v5487, %v5488
        %v5490 = vrot.slane %v4409, 4
        %v5491 = vadd.f32 %v4409, %v5490
        %v5492 = vrot.slane %v5491, 2
        %v5493 = vadd.f32 %v5491, %v5492
        %v5494 = vrot.slane %v5493, 1
        %v5495 = vadd.f32 %v5493, %v5494
        %v5496 = vrot.slane %v4410, 4
        %v5497 = vadd.f32 %v4410, %v5496
        %v5498 = vrot.slane %v5497, 2
        %v5499 = vadd.f32 %v5497, %v5498
        %v5500 = vrot.slane %v5499, 1
        %v5501 = vadd.f32 %v5499, %v5500
        %v5502 = vrot.slane %v4411, 4
        %v5503 = vadd.f32 %v4411, %v5502
        %v5504 = vrot.slane %v5503, 2
        %v5505 = vadd.f32 %v5503, %v5504
        %v5506 = vrot.slane %v5505, 1
        %v5507 = vadd.f32 %v5505, %v5506
        %v5508 = vrot.slane %v4412, 4
        %v5509 = vadd.f32 %v4412, %v5508
        %v5510 = vrot.slane %v5509, 2
        %v5511 = vadd.f32 %v5509, %v5510
        %v5512 = vrot.slane %v5511, 1
        %v5513 = vadd.f32 %v5511, %v5512
        %v5514 = vrot.slane %v4413, 4
        %v5515 = vadd.f32 %v4413, %v5514
        %v5516 = vrot.slane %v5515, 2
        %v5517 = vadd.f32 %v5515, %v5516
        %v5518 = vrot.slane %v5517, 1
        %v5519 = vadd.f32 %v5517, %v5518
        %v5520 = vrot.slane %v4414, 4
        %v5521 = vadd.f32 %v4414, %v5520
        %v5522 = vrot.slane %v5521, 2
        %v5523 = vadd.f32 %v5521, %v5522
        %v5524 = vrot.slane %v5523, 1
        %v5525 = vadd.f32 %v5523, %v5524
        %v5526 = vrot.slane %v4415, 4
        %v5527 = vadd.f32 %v4415, %v5526
        %v5528 = vrot.slane %v5527, 2
        %v5529 = vadd.f32 %v5527, %v5528
        %v5530 = vrot.slane %v5529, 1
        %v5531 = vadd.f32 %v5529, %v5530
        %v5532 = vrot.slane %v4416, 4
        %v5533 = vadd.f32 %v4416, %v5532
        %v5534 = vrot.slane %v5533, 2
        %v5535 = vadd.f32 %v5533, %v5534
        %v5536 = vrot.slane %v5535, 1
        %v5537 = vadd.f32 %v5535, %v5536
        %v5538 = vrot.slane %v4417, 4
        %v5539 = vadd.f32 %v4417, %v5538
        %v5540 = vrot.slane %v5539, 2
        %v5541 = vadd.f32 %v5539, %v5540
        %v5542 = vrot.slane %v5541, 1
        %v5543 = vadd.f32 %v5541, %v5542
        %v5544 = vrot.slane %v4418, 4
        %v5545 = vadd.f32 %v4418, %v5544
        %v5546 = vrot.slane %v5545, 2
        %v5547 = vadd.f32 %v5545, %v5546
        %v5548 = vrot.slane %v5547, 1
        %v5549 = vadd.f32 %v5547, %v5548
        %v5550 = vrot.slane %v4419, 4
        %v5551 = vadd.f32 %v4419, %v5550
        %v5552 = vrot.slane %v5551, 2
        %v5553 = vadd.f32 %v5551, %v5552
        %v5554 = vrot.slane %v5553, 1
        %v5555 = vadd.f32 %v5553, %v5554
        %v5556 = vrot.slane %v4420, 4
        %v5557 = vadd.f32 %v4420, %v5556
        %v5558 = vrot.slane %v5557, 2
        %v5559 = vadd.f32 %v5557, %v5558
        %v5560 = vrot.slane %v5559, 1
        %v5561 = vadd.f32 %v5559, %v5560
        %v5562 = vrot.slane %v4421, 4
        %v5563 = vadd.f32 %v4421, %v5562
        %v5564 = vrot.slane %v5563, 2
        %v5565 = vadd.f32 %v5563, %v5564
        %v5566 = vrot.slane %v5565, 1
        %v5567 = vadd.f32 %v5565, %v5566
        %v5568 = vrot.slane %v4422, 4
        %v5569 = vadd.f32 %v4422, %v5568
        %v5570 = vrot.slane %v5569, 2
        %v5571 = vadd.f32 %v5569, %v5570
        %v5572 = vrot.slane %v5571, 1
        %v5573 = vadd.f32 %v5571, %v5572
        %v5574 = vrot.slane %v4423, 4
        %v5575 = vadd.f32 %v4423, %v5574
        %v5576 = vrot.slane %v5575, 2
        %v5577 = vadd.f32 %v5575, %v5576
        %v5578 = vrot.slane %v5577, 1
        %v5579 = vadd.f32 %v5577, %v5578
        %v5580 = vrot.slane %v4424, 4
        %v5581 = vadd.f32 %v4424, %v5580
        %v5582 = vrot.slane %v5581, 2
        %v5583 = vadd.f32 %v5581, %v5582
        %v5584 = vrot.slane %v5583, 1
        %v5585 = vadd.f32 %v5583, %v5584
        %v5586 = vrot.slane %v4425, 4
        %v5587 = vadd.f32 %v4425, %v5586
        %v5588 = vrot.slane %v5587, 2
        %v5589 = vadd.f32 %v5587, %v5588
        %v5590 = vrot.slane %v5589, 1
        %v5591 = vadd.f32 %v5589, %v5590
        %v5592 = vrot.slane %v4426, 4
        %v5593 = vadd.f32 %v4426, %v5592
        %v5594 = vrot.slane %v5593, 2
        %v5595 = vadd.f32 %v5593, %v5594
        %v5596 = vrot.slane %v5595, 1
        %v5597 = vadd.f32 %v5595, %v5596
        %v5598 = vrot.slane %v4427, 4
        %v5599 = vadd.f32 %v4427, %v5598
        %v5600 = vrot.slane %v5599, 2
        %v5601 = vadd.f32 %v5599, %v5600
        %v5602 = vrot.slane %v5601, 1
        %v5603 = vadd.f32 %v5601, %v5602
        %v5604 = vrot.slane %v4428, 4
        %v5605 = vadd.f32 %v4428, %v5604
        %v5606 = vrot.slane %v5605, 2
        %v5607 = vadd.f32 %v5605, %v5606
        %v5608 = vrot.slane %v5607, 1
        %v5609 = vadd.f32 %v5607, %v5608
        %v5610 = vrot.slane %v4429, 4
        %v5611 = vadd.f32 %v4429, %v5610
        %v5612 = vrot.slane %v5611, 2
        %v5613 = vadd.f32 %v5611, %v5612
        %v5614 = vrot.slane %v5613, 1
        %v5615 = vadd.f32 %v5613, %v5614
        %v5616 = vrot.slane %v4430, 4
        %v5617 = vadd.f32 %v4430, %v5616
        %v5618 = vrot.slane %v5617, 2
        %v5619 = vadd.f32 %v5617, %v5618
        %v5620 = vrot.slane %v5619, 1
        %v5621 = vadd.f32 %v5619, %v5620
        %v5622 = vrot.slane %v4431, 4
        %v5623 = vadd.f32 %v4431, %v5622
        %v5624 = vrot.slane %v5623, 2
        %v5625 = vadd.f32 %v5623, %v5624
        %v5626 = vrot.slane %v5625, 1
        %v5627 = vadd.f32 %v5625, %v5626
        %v5628 = vrot.slane %v4432, 4
        %v5629 = vadd.f32 %v4432, %v5628
        %v5630 = vrot.slane %v5629, 2
        %v5631 = vadd.f32 %v5629, %v5630
        %v5632 = vrot.slane %v5631, 1
        %v5633 = vadd.f32 %v5631, %v5632
        %v5634 = vrot.slane %v4433, 4
        %v5635 = vadd.f32 %v4433, %v5634
        %v5636 = vrot.slane %v5635, 2
        %v5637 = vadd.f32 %v5635, %v5636
        %v5638 = vrot.slane %v5637, 1
        %v5639 = vadd.f32 %v5637, %v5638
        %v5640 = vrot.slane %v4434, 4
        %v5641 = vadd.f32 %v4434, %v5640
        %v5642 = vrot.slane %v5641, 2
        %v5643 = vadd.f32 %v5641, %v5642
        %v5644 = vrot.slane %v5643, 1
        %v5645 = vadd.f32 %v5643, %v5644
        %v5646 = vrot.slane %v4435, 4
        %v5647 = vadd.f32 %v4435, %v5646
        %v5648 = vrot.slane %v5647, 2
        %v5649 = vadd.f32 %v5647, %v5648
        %v5650 = vrot.slane %v5649, 1
        %v5651 = vadd.f32 %v5649, %v5650
        %v5652 = vrot.slane %v4436, 4
        %v5653 = vadd.f32 %v4436, %v5652
        %v5654 = vrot.slane %v5653, 2
        %v5655 = vadd.f32 %v5653, %v5654
        %v5656 = vrot.slane %v5655, 1
        %v5657 = vadd.f32 %v5655, %v5656
        %v5658 = vrot.slane %v4437, 4
        %v5659 = vadd.f32 %v4437, %v5658
        %v5660 = vrot.slane %v5659, 2
        %v5661 = vadd.f32 %v5659, %v5660
        %v5662 = vrot.slane %v5661, 1
        %v5663 = vadd.f32 %v5661, %v5662
        %v5664 = vrot.slane %v4438, 4
        %v5665 = vadd.f32 %v4438, %v5664
        %v5666 = vrot.slane %v5665, 2
        %v5667 = vadd.f32 %v5665, %v5666
        %v5668 = vrot.slane %v5667, 1
        %v5669 = vadd.f32 %v5667, %v5668
        %v5670 = vrot.slane %v4439, 4
        %v5671 = vadd.f32 %v4439, %v5670
        %v5672 = vrot.slane %v5671, 2
        %v5673 = vadd.f32 %v5671, %v5672
        %v5674 = vrot.slane %v5673, 1
        %v5675 = vadd.f32 %v5673, %v5674
        %v5676 = vrot.slane %v4440, 4
        %v5677 = vadd.f32 %v4440, %v5676
        %v5678 = vrot.slane %v5677, 2
        %v5679 = vadd.f32 %v5677, %v5678
        %v5680 = vrot.slane %v5679, 1
        %v5681 = vadd.f32 %v5679, %v5680
        %v5682 = vrot.slane %v4441, 4
        %v5683 = vadd.f32 %v4441, %v5682
        %v5684 = vrot.slane %v5683, 2
        %v5685 = vadd.f32 %v5683, %v5684
        %v5686 = vrot.slane %v5685, 1
        %v5687 = vadd.f32 %v5685, %v5686
        %v5688 = vrot.slane %v4442, 4
        %v5689 = vadd.f32 %v4442, %v5688
        %v5690 = vrot.slane %v5689, 2
        %v5691 = vadd.f32 %v5689, %v5690
        %v5692 = vrot.slane %v5691, 1
        %v5693 = vadd.f32 %v5691, %v5692
        %v5694 = vrot.slane %v4443, 4
        %v5695 = vadd.f32 %v4443, %v5694
        %v5696 = vrot.slane %v5695, 2
        %v5697 = vadd.f32 %v5695, %v5696
        %v5698 = vrot.slane %v5697, 1
        %v5699 = vadd.f32 %v5697, %v5698
        %v5700 = vrot.slane %v4444, 4
        %v5701 = vadd.f32 %v4444, %v5700
        %v5702 = vrot.slane %v5701, 2
        %v5703 = vadd.f32 %v5701, %v5702
        %v5704 = vrot.slane %v5703, 1
        %v5705 = vadd.f32 %v5703, %v5704
        %v5706 = vrot.slane %v4445, 4
        %v5707 = vadd.f32 %v4445, %v5706
        %v5708 = vrot.slane %v5707, 2
        %v5709 = vadd.f32 %v5707, %v5708
        %v5710 = vrot.slane %v5709, 1
        %v5711 = vadd.f32 %v5709, %v5710
        %v5712 = vrot.slane %v4446, 4
        %v5713 = vadd.f32 %v4446, %v5712
        %v5714 = vrot.slane %v5713, 2
        %v5715 = vadd.f32 %v5713, %v5714
        %v5716 = vrot.slane %v5715, 1
        %v5717 = vadd.f32 %v5715, %v5716
        %v5718 = vrot.slane %v4447, 4
        %v5719 = vadd.f32 %v4447, %v5718
        %v5720 = vrot.slane %v5719, 2
        %v5721 = vadd.f32 %v5719, %v5720
        %v5722 = vrot.slane %v5721, 1
        %v5723 = vadd.f32 %v5721, %v5722
        %v5724 = vrot.slane %v4448, 4
        %v5725 = vadd.f32 %v4448, %v5724
        %v5726 = vrot.slane %v5725, 2
        %v5727 = vadd.f32 %v5725, %v5726
        %v5728 = vrot.slane %v5727, 1
        %v5729 = vadd.f32 %v5727, %v5728
        %v5730 = vrot.slane %v4449, 4
        %v5731 = vadd.f32 %v4449, %v5730
        %v5732 = vrot.slane %v5731, 2
        %v5733 = vadd.f32 %v5731, %v5732
        %v5734 = vrot.slane %v5733, 1
        %v5735 = vadd.f32 %v5733, %v5734
        %v5736 = vrot.slane %v4450, 4
        %v5737 = vadd.f32 %v4450, %v5736
        %v5738 = vrot.slane %v5737, 2
        %v5739 = vadd.f32 %v5737, %v5738
        %v5740 = vrot.slane %v5739, 1
        %v5741 = vadd.f32 %v5739, %v5740
        %v5742 = vrot.slane %v4451, 4
        %v5743 = vadd.f32 %v4451, %v5742
        %v5744 = vrot.slane %v5743, 2
        %v5745 = vadd.f32 %v5743, %v5744
        %v5746 = vrot.slane %v5745, 1
        %v5747 = vadd.f32 %v5745, %v5746
        %v5748 = vrot.slane %v4452, 4
        %v5749 = vadd.f32 %v4452, %v5748
        %v5750 = vrot.slane %v5749, 2
        %v5751 = vadd.f32 %v5749, %v5750
        %v5752 = vrot.slane %v5751, 1
        %v5753 = vadd.f32 %v5751, %v5752
        %v5754 = vrot.slane %v4453, 4
        %v5755 = vadd.f32 %v4453, %v5754
        %v5756 = vrot.slane %v5755, 2
        %v5757 = vadd.f32 %v5755, %v5756
        %v5758 = vrot.slane %v5757, 1
        %v5759 = vadd.f32 %v5757, %v5758
        %v5760 = vrot.slane %v4454, 4
        %v5761 = vadd.f32 %v4454, %v5760
        %v5762 = vrot.slane %v5761, 2
        %v5763 = vadd.f32 %v5761, %v5762
        %v5764 = vrot.slane %v5763, 1
        %v5765 = vadd.f32 %v5763, %v5764
        %v5766 = vrot.slane %v4455, 4
        %v5767 = vadd.f32 %v4455, %v5766
        %v5768 = vrot.slane %v5767, 2
        %v5769 = vadd.f32 %v5767, %v5768
        %v5770 = vrot.slane %v5769, 1
        %v5771 = vadd.f32 %v5769, %v5770
        %v5772 = vrot.slane %v4456, 4
        %v5773 = vadd.f32 %v4456, %v5772
        %v5774 = vrot.slane %v5773, 2
        %v5775 = vadd.f32 %v5773, %v5774
        %v5776 = vrot.slane %v5775, 1
        %v5777 = vadd.f32 %v5775, %v5776
        %v5778 = vrot.slane %v4457, 4
        %v5779 = vadd.f32 %v4457, %v5778
        %v5780 = vrot.slane %v5779, 2
        %v5781 = vadd.f32 %v5779, %v5780
        %v5782 = vrot.slane %v5781, 1
        %v5783 = vadd.f32 %v5781, %v5782
        %v5784 = vrot.slane %v4458, 4
        %v5785 = vadd.f32 %v4458, %v5784
        %v5786 = vrot.slane %v5785, 2
        %v5787 = vadd.f32 %v5785, %v5786
        %v5788 = vrot.slane %v5787, 1
        %v5789 = vadd.f32 %v5787, %v5788
        %v5790 = vrot.slane %v4459, 4
        %v5791 = vadd.f32 %v4459, %v5790
        %v5792 = vrot.slane %v5791, 2
        %v5793 = vadd.f32 %v5791, %v5792
        %v5794 = vrot.slane %v5793, 1
        %v5795 = vadd.f32 %v5793, %v5794
        %v5796 = vrot.slane %v4460, 4
        %v5797 = vadd.f32 %v4460, %v5796
        %v5798 = vrot.slane %v5797, 2
        %v5799 = vadd.f32 %v5797, %v5798
        %v5800 = vrot.slane %v5799, 1
        %v5801 = vadd.f32 %v5799, %v5800
        %v5802 = vrot.slane %v4461, 4
        %v5803 = vadd.f32 %v4461, %v5802
        %v5804 = vrot.slane %v5803, 2
        %v5805 = vadd.f32 %v5803, %v5804
        %v5806 = vrot.slane %v5805, 1
        %v5807 = vadd.f32 %v5805, %v5806
        %v5808 = vrot.slane %v4462, 4
        %v5809 = vadd.f32 %v4462, %v5808
        %v5810 = vrot.slane %v5809, 2
        %v5811 = vadd.f32 %v5809, %v5810
        %v5812 = vrot.slane %v5811, 1
        %v5813 = vadd.f32 %v5811, %v5812
        %v5814 = vrot.slane %v4463, 4
        %v5815 = vadd.f32 %v4463, %v5814
        %v5816 = vrot.slane %v5815, 2
        %v5817 = vadd.f32 %v5815, %v5816
        %v5818 = vrot.slane %v5817, 1
        %v5819 = vadd.f32 %v5817, %v5818
        %v5820 = vrot.slane %v4464, 4
        %v5821 = vadd.f32 %v4464, %v5820
        %v5822 = vrot.slane %v5821, 2
        %v5823 = vadd.f32 %v5821, %v5822
        %v5824 = vrot.slane %v5823, 1
        %v5825 = vadd.f32 %v5823, %v5824
        %v5826 = vrot.slane %v4465, 4
        %v5827 = vadd.f32 %v4465, %v5826
        %v5828 = vrot.slane %v5827, 2
        %v5829 = vadd.f32 %v5827, %v5828
        %v5830 = vrot.slane %v5829, 1
        %v5831 = vadd.f32 %v5829, %v5830
        %v5832 = vrot.slane %v4466, 4
        %v5833 = vadd.f32 %v4466, %v5832
        %v5834 = vrot.slane %v5833, 2
        %v5835 = vadd.f32 %v5833, %v5834
        %v5836 = vrot.slane %v5835, 1
        %v5837 = vadd.f32 %v5835, %v5836
        %v5838 = vrot.slane %v4467, 4
        %v5839 = vadd.f32 %v4467, %v5838
        %v5840 = vrot.slane %v5839, 2
        %v5841 = vadd.f32 %v5839, %v5840
        %v5842 = vrot.slane %v5841, 1
        %v5843 = vadd.f32 %v5841, %v5842
        %v5844 = vrot.slane %v4468, 4
        %v5845 = vadd.f32 %v4468, %v5844
        %v5846 = vrot.slane %v5845, 2
        %v5847 = vadd.f32 %v5845, %v5846
        %v5848 = vrot.slane %v5847, 1
        %v5849 = vadd.f32 %v5847, %v5848
        %v5850 = vrot.slane %v4469, 4
        %v5851 = vadd.f32 %v4469, %v5850
        %v5852 = vrot.slane %v5851, 2
        %v5853 = vadd.f32 %v5851, %v5852
        %v5854 = vrot.slane %v5853, 1
        %v5855 = vadd.f32 %v5853, %v5854
        %v5856 = vrot.slane %v4470, 4
        %v5857 = vadd.f32 %v4470, %v5856
        %v5858 = vrot.slane %v5857, 2
        %v5859 = vadd.f32 %v5857, %v5858
        %v5860 = vrot.slane %v5859, 1
        %v5861 = vadd.f32 %v5859, %v5860
        %v5862 = vrot.slane %v4471, 4
        %v5863 = vadd.f32 %v4471, %v5862
        %v5864 = vrot.slane %v5863, 2
        %v5865 = vadd.f32 %v5863, %v5864
        %v5866 = vrot.slane %v5865, 1
        %v5867 = vadd.f32 %v5865, %v5866
        %v5868 = vrot.slane %v4472, 4
        %v5869 = vadd.f32 %v4472, %v5868
        %v5870 = vrot.slane %v5869, 2
        %v5871 = vadd.f32 %v5869, %v5870
        %v5872 = vrot.slane %v5871, 1
        %v5873 = vadd.f32 %v5871, %v5872
        %v5874 = vrot.slane %v4473, 4
        %v5875 = vadd.f32 %v4473, %v5874
        %v5876 = vrot.slane %v5875, 2
        %v5877 = vadd.f32 %v5875, %v5876
        %v5878 = vrot.slane %v5877, 1
        %v5879 = vadd.f32 %v5877, %v5878
        %v5880 = vrot.slane %v4474, 4
        %v5881 = vadd.f32 %v4474, %v5880
        %v5882 = vrot.slane %v5881, 2
        %v5883 = vadd.f32 %v5881, %v5882
        %v5884 = vrot.slane %v5883, 1
        %v5885 = vadd.f32 %v5883, %v5884
        %v5886 = vrot.slane %v4475, 4
        %v5887 = vadd.f32 %v4475, %v5886
        %v5888 = vrot.slane %v5887, 2
        %v5889 = vadd.f32 %v5887, %v5888
        %v5890 = vrot.slane %v5889, 1
        %v5891 = vadd.f32 %v5889, %v5890
        %v5892 = vrot.slane %v4476, 4
        %v5893 = vadd.f32 %v4476, %v5892
        %v5894 = vrot.slane %v5893, 2
        %v5895 = vadd.f32 %v5893, %v5894
        %v5896 = vrot.slane %v5895, 1
        %v5897 = vadd.f32 %v5895, %v5896
        %v5898 = vrot.slane %v4477, 4
        %v5899 = vadd.f32 %v4477, %v5898
        %v5900 = vrot.slane %v5899, 2
        %v5901 = vadd.f32 %v5899, %v5900
        %v5902 = vrot.slane %v5901, 1
        %v5903 = vadd.f32 %v5901, %v5902
        %v5904 = vrot.slane %v4478, 4
        %v5905 = vadd.f32 %v4478, %v5904
        %v5906 = vrot.slane %v5905, 2
        %v5907 = vadd.f32 %v5905, %v5906
        %v5908 = vrot.slane %v5907, 1
        %v5909 = vadd.f32 %v5907, %v5908
        %v5910 = vrot.slane %v4479, 4
        %v5911 = vadd.f32 %v4479, %v5910
        %v5912 = vrot.slane %v5911, 2
        %v5913 = vadd.f32 %v5911, %v5912
        %v5914 = vrot.slane %v5913, 1
        %v5915 = vadd.f32 %v5913, %v5914
        %v5916 = vrot.slane %v4480, 4
        %v5917 = vadd.f32 %v4480, %v5916
        %v5918 = vrot.slane %v5917, 2
        %v5919 = vadd.f32 %v5917, %v5918
        %v5920 = vrot.slane %v5919, 1
        %v5921 = vadd.f32 %v5919, %v5920
        %v5922 = vrot.slane %v4481, 4
        %v5923 = vadd.f32 %v4481, %v5922
        %v5924 = vrot.slane %v5923, 2
        %v5925 = vadd.f32 %v5923, %v5924
        %v5926 = vrot.slane %v5925, 1
        %v5927 = vadd.f32 %v5925, %v5926
        %v5928 = vrot.slane %v4482, 4
        %v5929 = vadd.f32 %v4482, %v5928
        %v5930 = vrot.slane %v5929, 2
        %v5931 = vadd.f32 %v5929, %v5930
        %v5932 = vrot.slane %v5931, 1
        %v5933 = vadd.f32 %v5931, %v5932
        %v5934 = vrot.slane %v4483, 4
        %v5935 = vadd.f32 %v4483, %v5934
        %v5936 = vrot.slane %v5935, 2
        %v5937 = vadd.f32 %v5935, %v5936
        %v5938 = vrot.slane %v5937, 1
        %v5939 = vadd.f32 %v5937, %v5938
        %v5940 = vrot.slane %v4484, 4
        %v5941 = vadd.f32 %v4484, %v5940
        %v5942 = vrot.slane %v5941, 2
        %v5943 = vadd.f32 %v5941, %v5942
        %v5944 = vrot.slane %v5943, 1
        %v5945 = vadd.f32 %v5943, %v5944
        %v5946 = vrot.slane %v4485, 4
        %v5947 = vadd.f32 %v4485, %v5946
        %v5948 = vrot.slane %v5947, 2
        %v5949 = vadd.f32 %v5947, %v5948
        %v5950 = vrot.slane %v5949, 1
        %v5951 = vadd.f32 %v5949, %v5950
        %v5952 = vrot.slane %v4486, 4
        %v5953 = vadd.f32 %v4486, %v5952
        %v5954 = vrot.slane %v5953, 2
        %v5955 = vadd.f32 %v5953, %v5954
        %v5956 = vrot.slane %v5955, 1
        %v5957 = vadd.f32 %v5955, %v5956
        %v5958 = vrot.slane %v4487, 4
        %v5959 = vadd.f32 %v4487, %v5958
        %v5960 = vrot.slane %v5959, 2
        %v5961 = vadd.f32 %v5959, %v5960
        %v5962 = vrot.slane %v5961, 1
        %v5963 = vadd.f32 %v5961, %v5962
        %v5964 = vrot.slane %v4488, 4
        %v5965 = vadd.f32 %v4488, %v5964
        %v5966 = vrot.slane %v5965, 2
        %v5967 = vadd.f32 %v5965, %v5966
        %v5968 = vrot.slane %v5967, 1
        %v5969 = vadd.f32 %v5967, %v5968
        %v5970 = vrot.slane %v4489, 4
        %v5971 = vadd.f32 %v4489, %v5970
        %v5972 = vrot.slane %v5971, 2
        %v5973 = vadd.f32 %v5971, %v5972
        %v5974 = vrot.slane %v5973, 1
        %v5975 = vadd.f32 %v5973, %v5974
        %v5976 = vrot.slane %v4490, 4
        %v5977 = vadd.f32 %v4490, %v5976
        %v5978 = vrot.slane %v5977, 2
        %v5979 = vadd.f32 %v5977, %v5978
        %v5980 = vrot.slane %v5979, 1
        %v5981 = vadd.f32 %v5979, %v5980
        %v5982 = vrot.slane %v4491, 4
        %v5983 = vadd.f32 %v4491, %v5982
        %v5984 = vrot.slane %v5983, 2
        %v5985 = vadd.f32 %v5983, %v5984
        %v5986 = vrot.slane %v5985, 1
        %v5987 = vadd.f32 %v5985, %v5986
        %v5988 = vrot.slane %v4492, 4
        %v5989 = vadd.f32 %v4492, %v5988
        %v5990 = vrot.slane %v5989, 2
        %v5991 = vadd.f32 %v5989, %v5990
        %v5992 = vrot.slane %v5991, 1
        %v5993 = vadd.f32 %v5991, %v5992
        %v5994 = vrot.slane %v4493, 4
        %v5995 = vadd.f32 %v4493, %v5994
        %v5996 = vrot.slane %v5995, 2
        %v5997 = vadd.f32 %v5995, %v5996
        %v5998 = vrot.slane %v5997, 1
        %v5999 = vadd.f32 %v5997, %v5998
        %v6000 = vrot.slane %v4494, 4
        %v6001 = vadd.f32 %v4494, %v6000
        %v6002 = vrot.slane %v6001, 2
        %v6003 = vadd.f32 %v6001, %v6002
        %v6004 = vrot.slane %v6003, 1
        %v6005 = vadd.f32 %v6003, %v6004
        %v6006 = vrot.slane %v4495, 4
        %v6007 = vadd.f32 %v4495, %v6006
        %v6008 = vrot.slane %v6007, 2
        %v6009 = vadd.f32 %v6007, %v6008
        %v6010 = vrot.slane %v6009, 1
        %v6011 = vadd.f32 %v6009, %v6010
        %v6012 = vrot.slane %v4496, 4
        %v6013 = vadd.f32 %v4496, %v6012
        %v6014 = vrot.slane %v6013, 2
        %v6015 = vadd.f32 %v6013, %v6014
        %v6016 = vrot.slane %v6015, 1
        %v6017 = vadd.f32 %v6015, %v6016
        %v6018 = vrot.slane %v4497, 4
        %v6019 = vadd.f32 %v4497, %v6018
        %v6020 = vrot.slane %v6019, 2
        %v6021 = vadd.f32 %v6019, %v6020
        %v6022 = vrot.slane %v6021, 1
        %v6023 = vadd.f32 %v6021, %v6022
        %v6024 = vrot.slane %v4498, 4
        %v6025 = vadd.f32 %v4498, %v6024
        %v6026 = vrot.slane %v6025, 2
        %v6027 = vadd.f32 %v6025, %v6026
        %v6028 = vrot.slane %v6027, 1
        %v6029 = vadd.f32 %v6027, %v6028
        %v6030 = vrot.slane %v4499, 4
        %v6031 = vadd.f32 %v4499, %v6030
        %v6032 = vrot.slane %v6031, 2
        %v6033 = vadd.f32 %v6031, %v6032
        %v6034 = vrot.slane %v6033, 1
        %v6035 = vadd.f32 %v6033, %v6034
        %v6036 = vrot.slane %v2949, 4
        %v6037 = vadd.f32 %v2949, %v6036
        %v6038 = vrot.slane %v6037, 2
        %v6039 = vadd.f32 %v6037, %v6038
        %v6040 = vrot.slane %v6039, 1
        %v6041 = vadd.f32 %v6039, %v6040
        %v6042 = vrot.slane %v2951, 4
        %v6043 = vadd.f32 %v2951, %v6042
        %v6044 = vrot.slane %v6043, 2
        %v6045 = vadd.f32 %v6043, %v6044
        %v6046 = vrot.slane %v6045, 1
        %v6047 = vadd.f32 %v6045, %v6046
        %v6048 = vrot.slane %v2953, 4
        %v6049 = vadd.f32 %v2953, %v6048
        %v6050 = vrot.slane %v6049, 2
        %v6051 = vadd.f32 %v6049, %v6050
        %v6052 = vrot.slane %v6051, 1
        %v6053 = vadd.f32 %v6051, %v6052
        %v6054 = vrot.slane %v2955, 4
        %v6055 = vadd.f32 %v2955, %v6054
        %v6056 = vrot.slane %v6055, 2
        %v6057 = vadd.f32 %v6055, %v6056
        %v6058 = vrot.slane %v6057, 1
        %v6059 = vadd.f32 %v6057, %v6058
        %v6060 = vrot.slane %v2957, 4
        %v6061 = vadd.f32 %v2957, %v6060
        %v6062 = vrot.slane %v6061, 2
        %v6063 = vadd.f32 %v6061, %v6062
        %v6064 = vrot.slane %v6063, 1
        %v6065 = vadd.f32 %v6063, %v6064
        %v6066 = vrot.slane %v2959, 4
        %v6067 = vadd.f32 %v2959, %v6066
        %v6068 = vrot.slane %v6067, 2
        %v6069 = vadd.f32 %v6067, %v6068
        %v6070 = vrot.slane %v6069, 1
        %v6071 = vadd.f32 %v6069, %v6070
        %v6072 = vrot.slane %v2961, 4
        %v6073 = vadd.f32 %v2961, %v6072
        %v6074 = vrot.slane %v6073, 2
        %v6075 = vadd.f32 %v6073, %v6074
        %v6076 = vrot.slane %v6075, 1
        %v6077 = vadd.f32 %v6075, %v6076
        %v6078 = vrot.slane %v2963, 4
        %v6079 = vadd.f32 %v2963, %v6078
        %v6080 = vrot.slane %v6079, 2
        %v6081 = vadd.f32 %v6079, %v6080
        %v6082 = vrot.slane %v6081, 1
        %v6083 = vadd.f32 %v6081, %v6082
        %v6084 = vrot.slane %v2965, 4
        %v6085 = vadd.f32 %v2965, %v6084
        %v6086 = vrot.slane %v6085, 2
        %v6087 = vadd.f32 %v6085, %v6086
        %v6088 = vrot.slane %v6087, 1
        %v6089 = vadd.f32 %v6087, %v6088
        %v6090 = vrot.slane %v2967, 4
        %v6091 = vadd.f32 %v2967, %v6090
        %v6092 = vrot.slane %v6091, 2
        %v6093 = vadd.f32 %v6091, %v6092
        %v6094 = vrot.slane %v6093, 1
        %v6095 = vadd.f32 %v6093, %v6094
        %v6096 = vrot.slane %v2969, 4
        %v6097 = vadd.f32 %v2969, %v6096
        %v6098 = vrot.slane %v6097, 2
        %v6099 = vadd.f32 %v6097, %v6098
        %v6100 = vrot.slane %v6099, 1
        %v6101 = vadd.f32 %v6099, %v6100
        %v6102 = vrot.slane %v2971, 4
        %v6103 = vadd.f32 %v2971, %v6102
        %v6104 = vrot.slane %v6103, 2
        %v6105 = vadd.f32 %v6103, %v6104
        %v6106 = vrot.slane %v6105, 1
        %v6107 = vadd.f32 %v6105, %v6106
        %v6108 = vrot.slane %v2973, 4
        %v6109 = vadd.f32 %v2973, %v6108
        %v6110 = vrot.slane %v6109, 2
        %v6111 = vadd.f32 %v6109, %v6110
        %v6112 = vrot.slane %v6111, 1
        %v6113 = vadd.f32 %v6111, %v6112
        %v6114 = vrot.slane %v2975, 4
        %v6115 = vadd.f32 %v2975, %v6114
        %v6116 = vrot.slane %v6115, 2
        %v6117 = vadd.f32 %v6115, %v6116
        %v6118 = vrot.slane %v6117, 1
        %v6119 = vadd.f32 %v6117, %v6118
        %v6120 = vrot.slane %v2977, 4
        %v6121 = vadd.f32 %v2977, %v6120
        %v6122 = vrot.slane %v6121, 2
        %v6123 = vadd.f32 %v6121, %v6122
        %v6124 = vrot.slane %v6123, 1
        %v6125 = vadd.f32 %v6123, %v6124
        %v6126 = vrot.slane %v2979, 4
        %v6127 = vadd.f32 %v2979, %v6126
        %v6128 = vrot.slane %v6127, 2
        %v6129 = vadd.f32 %v6127, %v6128
        %v6130 = vrot.slane %v6129, 1
        %v6131 = vadd.f32 %v6129, %v6130
        %v6132 = vrot.slane %v2981, 4
        %v6133 = vadd.f32 %v2981, %v6132
        %v6134 = vrot.slane %v6133, 2
        %v6135 = vadd.f32 %v6133, %v6134
        %v6136 = vrot.slane %v6135, 1
        %v6137 = vadd.f32 %v6135, %v6136
        %v6138 = vrot.slane %v2983, 4
        %v6139 = vadd.f32 %v2983, %v6138
        %v6140 = vrot.slane %v6139, 2
        %v6141 = vadd.f32 %v6139, %v6140
        %v6142 = vrot.slane %v6141, 1
        %v6143 = vadd.f32 %v6141, %v6142
        %v6144 = vrot.slane %v2985, 4
        %v6145 = vadd.f32 %v2985, %v6144
        %v6146 = vrot.slane %v6145, 2
        %v6147 = vadd.f32 %v6145, %v6146
        %v6148 = vrot.slane %v6147, 1
        %v6149 = vadd.f32 %v6147, %v6148
        %v6150 = vrot.slane %v2987, 4
        %v6151 = vadd.f32 %v2987, %v6150
        %v6152 = vrot.slane %v6151, 2
        %v6153 = vadd.f32 %v6151, %v6152
        %v6154 = vrot.slane %v6153, 1
        %v6155 = vadd.f32 %v6153, %v6154
        %v6156 = vrot.slane %v2989, 4
        %v6157 = vadd.f32 %v2989, %v6156
        %v6158 = vrot.slane %v6157, 2
        %v6159 = vadd.f32 %v6157, %v6158
        %v6160 = vrot.slane %v6159, 1
        %v6161 = vadd.f32 %v6159, %v6160
        %v6162 = vrot.slane %v2991, 4
        %v6163 = vadd.f32 %v2991, %v6162
        %v6164 = vrot.slane %v6163, 2
        %v6165 = vadd.f32 %v6163, %v6164
        %v6166 = vrot.slane %v6165, 1
        %v6167 = vadd.f32 %v6165, %v6166
        %v6168 = vrot.slane %v2993, 4
        %v6169 = vadd.f32 %v2993, %v6168
        %v6170 = vrot.slane %v6169, 2
        %v6171 = vadd.f32 %v6169, %v6170
        %v6172 = vrot.slane %v6171, 1
        %v6173 = vadd.f32 %v6171, %v6172
        %v6174 = vrot.slane %v2995, 4
        %v6175 = vadd.f32 %v2995, %v6174
        %v6176 = vrot.slane %v6175, 2
        %v6177 = vadd.f32 %v6175, %v6176
        %v6178 = vrot.slane %v6177, 1
        %v6179 = vadd.f32 %v6177, %v6178
        %v6180 = vrot.slane %v2997, 4
        %v6181 = vadd.f32 %v2997, %v6180
        %v6182 = vrot.slane %v6181, 2
        %v6183 = vadd.f32 %v6181, %v6182
        %v6184 = vrot.slane %v6183, 1
        %v6185 = vadd.f32 %v6183, %v6184
        %v6186 = vrot.slane %v2999, 4
        %v6187 = vadd.f32 %v2999, %v6186
        %v6188 = vrot.slane %v6187, 2
        %v6189 = vadd.f32 %v6187, %v6188
        %v6190 = vrot.slane %v6189, 1
        %v6191 = vadd.f32 %v6189, %v6190
        %v6192 = vrot.slane %v3001, 4
        %v6193 = vadd.f32 %v3001, %v6192
        %v6194 = vrot.slane %v6193, 2
        %v6195 = vadd.f32 %v6193, %v6194
        %v6196 = vrot.slane %v6195, 1
        %v6197 = vadd.f32 %v6195, %v6196
        %v6198 = vrot.slane %v3003, 4
        %v6199 = vadd.f32 %v3003, %v6198
        %v6200 = vrot.slane %v6199, 2
        %v6201 = vadd.f32 %v6199, %v6200
        %v6202 = vrot.slane %v6201, 1
        %v6203 = vadd.f32 %v6201, %v6202
        %v6204 = vrot.slane %v3005, 4
        %v6205 = vadd.f32 %v3005, %v6204
        %v6206 = vrot.slane %v6205, 2
        %v6207 = vadd.f32 %v6205, %v6206
        %v6208 = vrot.slane %v6207, 1
        %v6209 = vadd.f32 %v6207, %v6208
        %v6210 = vrot.slane %v3007, 4
        %v6211 = vadd.f32 %v3007, %v6210
        %v6212 = vrot.slane %v6211, 2
        %v6213 = vadd.f32 %v6211, %v6212
        %v6214 = vrot.slane %v6213, 1
        %v6215 = vadd.f32 %v6213, %v6214
        %v6216 = vrot.slane %v3009, 4
        %v6217 = vadd.f32 %v3009, %v6216
        %v6218 = vrot.slane %v6217, 2
        %v6219 = vadd.f32 %v6217, %v6218
        %v6220 = vrot.slane %v6219, 1
        %v6221 = vadd.f32 %v6219, %v6220
        %v6222 = vrot.slane %v3011, 4
        %v6223 = vadd.f32 %v3011, %v6222
        %v6224 = vrot.slane %v6223, 2
        %v6225 = vadd.f32 %v6223, %v6224
        %v6226 = vrot.slane %v6225, 1
        %v6227 = vadd.f32 %v6225, %v6226
        %v6228 = vrot.slane %v3013, 4
        %v6229 = vadd.f32 %v3013, %v6228
        %v6230 = vrot.slane %v6229, 2
        %v6231 = vadd.f32 %v6229, %v6230
        %v6232 = vrot.slane %v6231, 1
        %v6233 = vadd.f32 %v6231, %v6232
        %v6234 = vrot.slane %v3015, 4
        %v6235 = vadd.f32 %v3015, %v6234
        %v6236 = vrot.slane %v6235, 2
        %v6237 = vadd.f32 %v6235, %v6236
        %v6238 = vrot.slane %v6237, 1
        %v6239 = vadd.f32 %v6237, %v6238
        %v6240 = vrot.slane %v3017, 4
        %v6241 = vadd.f32 %v3017, %v6240
        %v6242 = vrot.slane %v6241, 2
        %v6243 = vadd.f32 %v6241, %v6242
        %v6244 = vrot.slane %v6243, 1
        %v6245 = vadd.f32 %v6243, %v6244
        %v6246 = vrot.slane %v3019, 4
        %v6247 = vadd.f32 %v3019, %v6246
        %v6248 = vrot.slane %v6247, 2
        %v6249 = vadd.f32 %v6247, %v6248
        %v6250 = vrot.slane %v6249, 1
        %v6251 = vadd.f32 %v6249, %v6250
        %v6252 = vrot.slane %v3021, 4
        %v6253 = vadd.f32 %v3021, %v6252
        %v6254 = vrot.slane %v6253, 2
        %v6255 = vadd.f32 %v6253, %v6254
        %v6256 = vrot.slane %v6255, 1
        %v6257 = vadd.f32 %v6255, %v6256
        %v6258 = vrot.slane %v3023, 4
        %v6259 = vadd.f32 %v3023, %v6258
        %v6260 = vrot.slane %v6259, 2
        %v6261 = vadd.f32 %v6259, %v6260
        %v6262 = vrot.slane %v6261, 1
        %v6263 = vadd.f32 %v6261, %v6262
        %v6264 = vrot.slane %v3025, 4
        %v6265 = vadd.f32 %v3025, %v6264
        %v6266 = vrot.slane %v6265, 2
        %v6267 = vadd.f32 %v6265, %v6266
        %v6268 = vrot.slane %v6267, 1
        %v6269 = vadd.f32 %v6267, %v6268
        %v6270 = vrot.slane %v3027, 4
        %v6271 = vadd.f32 %v3027, %v6270
        %v6272 = vrot.slane %v6271, 2
        %v6273 = vadd.f32 %v6271, %v6272
        %v6274 = vrot.slane %v6273, 1
        %v6275 = vadd.f32 %v6273, %v6274
        %v6276 = vrot.slane %v3029, 4
        %v6277 = vadd.f32 %v3029, %v6276
        %v6278 = vrot.slane %v6277, 2
        %v6279 = vadd.f32 %v6277, %v6278
        %v6280 = vrot.slane %v6279, 1
        %v6281 = vadd.f32 %v6279, %v6280
        %v6282 = vrot.slane %v3031, 4
        %v6283 = vadd.f32 %v3031, %v6282
        %v6284 = vrot.slane %v6283, 2
        %v6285 = vadd.f32 %v6283, %v6284
        %v6286 = vrot.slane %v6285, 1
        %v6287 = vadd.f32 %v6285, %v6286
        %v6288 = vrot.slane %v3033, 4
        %v6289 = vadd.f32 %v3033, %v6288
        %v6290 = vrot.slane %v6289, 2
        %v6291 = vadd.f32 %v6289, %v6290
        %v6292 = vrot.slane %v6291, 1
        %v6293 = vadd.f32 %v6291, %v6292
        %v6294 = vrot.slane %v3035, 4
        %v6295 = vadd.f32 %v3035, %v6294
        %v6296 = vrot.slane %v6295, 2
        %v6297 = vadd.f32 %v6295, %v6296
        %v6298 = vrot.slane %v6297, 1
        %v6299 = vadd.f32 %v6297, %v6298
        %v6300 = vrot.slane %v3037, 4
        %v6301 = vadd.f32 %v3037, %v6300
        %v6302 = vrot.slane %v6301, 2
        %v6303 = vadd.f32 %v6301, %v6302
        %v6304 = vrot.slane %v6303, 1
        %v6305 = vadd.f32 %v6303, %v6304
        %v6306 = vrot.slane %v3039, 4
        %v6307 = vadd.f32 %v3039, %v6306
        %v6308 = vrot.slane %v6307, 2
        %v6309 = vadd.f32 %v6307, %v6308
        %v6310 = vrot.slane %v6309, 1
        %v6311 = vadd.f32 %v6309, %v6310
        %v6312 = vrot.slane %v3041, 4
        %v6313 = vadd.f32 %v3041, %v6312
        %v6314 = vrot.slane %v6313, 2
        %v6315 = vadd.f32 %v6313, %v6314
        %v6316 = vrot.slane %v6315, 1
        %v6317 = vadd.f32 %v6315, %v6316
        %v6318 = vrot.slane %v3043, 4
        %v6319 = vadd.f32 %v3043, %v6318
        %v6320 = vrot.slane %v6319, 2
        %v6321 = vadd.f32 %v6319, %v6320
        %v6322 = vrot.slane %v6321, 1
        %v6323 = vadd.f32 %v6321, %v6322
        %v6324 = vrot.slane %v3045, 4
        %v6325 = vadd.f32 %v3045, %v6324
        %v6326 = vrot.slane %v6325, 2
        %v6327 = vadd.f32 %v6325, %v6326
        %v6328 = vrot.slane %v6327, 1
        %v6329 = vadd.f32 %v6327, %v6328
        %v6330 = vrot.slane %v3047, 4
        %v6331 = vadd.f32 %v3047, %v6330
        %v6332 = vrot.slane %v6331, 2
        %v6333 = vadd.f32 %v6331, %v6332
        %v6334 = vrot.slane %v6333, 1
        %v6335 = vadd.f32 %v6333, %v6334
        %v6336 = vrot.slane %v3049, 4
        %v6337 = vadd.f32 %v3049, %v6336
        %v6338 = vrot.slane %v6337, 2
        %v6339 = vadd.f32 %v6337, %v6338
        %v6340 = vrot.slane %v6339, 1
        %v6341 = vadd.f32 %v6339, %v6340
        %v6342 = vrot.slane %v3051, 4
        %v6343 = vadd.f32 %v3051, %v6342
        %v6344 = vrot.slane %v6343, 2
        %v6345 = vadd.f32 %v6343, %v6344
        %v6346 = vrot.slane %v6345, 1
        %v6347 = vadd.f32 %v6345, %v6346
        %v6348 = vrot.slane %v3053, 4
        %v6349 = vadd.f32 %v3053, %v6348
        %v6350 = vrot.slane %v6349, 2
        %v6351 = vadd.f32 %v6349, %v6350
        %v6352 = vrot.slane %v6351, 1
        %v6353 = vadd.f32 %v6351, %v6352
        %v6354 = vrot.slane %v3055, 4
        %v6355 = vadd.f32 %v3055, %v6354
        %v6356 = vrot.slane %v6355, 2
        %v6357 = vadd.f32 %v6355, %v6356
        %v6358 = vrot.slane %v6357, 1
        %v6359 = vadd.f32 %v6357, %v6358
        %v6360 = vrot.slane %v3057, 4
        %v6361 = vadd.f32 %v3057, %v6360
        %v6362 = vrot.slane %v6361, 2
        %v6363 = vadd.f32 %v6361, %v6362
        %v6364 = vrot.slane %v6363, 1
        %v6365 = vadd.f32 %v6363, %v6364
        %v6366 = vrot.slane %v3059, 4
        %v6367 = vadd.f32 %v3059, %v6366
        %v6368 = vrot.slane %v6367, 2
        %v6369 = vadd.f32 %v6367, %v6368
        %v6370 = vrot.slane %v6369, 1
        %v6371 = vadd.f32 %v6369, %v6370
        %v6372 = vrot.slane %v3061, 4
        %v6373 = vadd.f32 %v3061, %v6372
        %v6374 = vrot.slane %v6373, 2
        %v6375 = vadd.f32 %v6373, %v6374
        %v6376 = vrot.slane %v6375, 1
        %v6377 = vadd.f32 %v6375, %v6376
        %v6378 = vrot.slane %v3063, 4
        %v6379 = vadd.f32 %v3063, %v6378
        %v6380 = vrot.slane %v6379, 2
        %v6381 = vadd.f32 %v6379, %v6380
        %v6382 = vrot.slane %v6381, 1
        %v6383 = vadd.f32 %v6381, %v6382
        %v6384 = vrot.slane %v3065, 4
        %v6385 = vadd.f32 %v3065, %v6384
        %v6386 = vrot.slane %v6385, 2
        %v6387 = vadd.f32 %v6385, %v6386
        %v6388 = vrot.slane %v6387, 1
        %v6389 = vadd.f32 %v6387, %v6388
        %v6390 = vrot.slane %v3067, 4
        %v6391 = vadd.f32 %v3067, %v6390
        %v6392 = vrot.slane %v6391, 2
        %v6393 = vadd.f32 %v6391, %v6392
        %v6394 = vrot.slane %v6393, 1
        %v6395 = vadd.f32 %v6393, %v6394
        %v6396 = vrot.slane %v3069, 4
        %v6397 = vadd.f32 %v3069, %v6396
        %v6398 = vrot.slane %v6397, 2
        %v6399 = vadd.f32 %v6397, %v6398
        %v6400 = vrot.slane %v6399, 1
        %v6401 = vadd.f32 %v6399, %v6400
        %v6402 = vrot.slane %v3071, 4
        %v6403 = vadd.f32 %v3071, %v6402
        %v6404 = vrot.slane %v6403, 2
        %v6405 = vadd.f32 %v6403, %v6404
        %v6406 = vrot.slane %v6405, 1
        %v6407 = vadd.f32 %v6405, %v6406
        %v6408 = vrot.slane %v3073, 4
        %v6409 = vadd.f32 %v3073, %v6408
        %v6410 = vrot.slane %v6409, 2
        %v6411 = vadd.f32 %v6409, %v6410
        %v6412 = vrot.slane %v6411, 1
        %v6413 = vadd.f32 %v6411, %v6412
        %v6414 = vrot.slane %v3075, 4
        %v6415 = vadd.f32 %v3075, %v6414
        %v6416 = vrot.slane %v6415, 2
        %v6417 = vadd.f32 %v6415, %v6416
        %v6418 = vrot.slane %v6417, 1
        %v6419 = vadd.f32 %v6417, %v6418
        %v6420 = vrot.slane %v3077, 4
        %v6421 = vadd.f32 %v3077, %v6420
        %v6422 = vrot.slane %v6421, 2
        %v6423 = vadd.f32 %v6421, %v6422
        %v6424 = vrot.slane %v6423, 1
        %v6425 = vadd.f32 %v6423, %v6424
        %v6426 = vrot.slane %v3079, 4
        %v6427 = vadd.f32 %v3079, %v6426
        %v6428 = vrot.slane %v6427, 2
        %v6429 = vadd.f32 %v6427, %v6428
        %v6430 = vrot.slane %v6429, 1
        %v6431 = vadd.f32 %v6429, %v6430
        %v6432 = vrot.slane %v3081, 4
        %v6433 = vadd.f32 %v3081, %v6432
        %v6434 = vrot.slane %v6433, 2
        %v6435 = vadd.f32 %v6433, %v6434
        %v6436 = vrot.slane %v6435, 1
        %v6437 = vadd.f32 %v6435, %v6436
        %v6438 = vrot.slane %v3083, 4
        %v6439 = vadd.f32 %v3083, %v6438
        %v6440 = vrot.slane %v6439, 2
        %v6441 = vadd.f32 %v6439, %v6440
        %v6442 = vrot.slane %v6441, 1
        %v6443 = vadd.f32 %v6441, %v6442
        %v6444 = vrot.slane %v3085, 4
        %v6445 = vadd.f32 %v3085, %v6444
        %v6446 = vrot.slane %v6445, 2
        %v6447 = vadd.f32 %v6445, %v6446
        %v6448 = vrot.slane %v6447, 1
        %v6449 = vadd.f32 %v6447, %v6448
        %v6450 = vrot.slane %v3087, 4
        %v6451 = vadd.f32 %v3087, %v6450
        %v6452 = vrot.slane %v6451, 2
        %v6453 = vadd.f32 %v6451, %v6452
        %v6454 = vrot.slane %v6453, 1
        %v6455 = vadd.f32 %v6453, %v6454
        %v6456 = vrot.slane %v3089, 4
        %v6457 = vadd.f32 %v3089, %v6456
        %v6458 = vrot.slane %v6457, 2
        %v6459 = vadd.f32 %v6457, %v6458
        %v6460 = vrot.slane %v6459, 1
        %v6461 = vadd.f32 %v6459, %v6460
        %v6462 = vrot.slane %v3091, 4
        %v6463 = vadd.f32 %v3091, %v6462
        %v6464 = vrot.slane %v6463, 2
        %v6465 = vadd.f32 %v6463, %v6464
        %v6466 = vrot.slane %v6465, 1
        %v6467 = vadd.f32 %v6465, %v6466
        %v6468 = vrot.slane %v3093, 4
        %v6469 = vadd.f32 %v3093, %v6468
        %v6470 = vrot.slane %v6469, 2
        %v6471 = vadd.f32 %v6469, %v6470
        %v6472 = vrot.slane %v6471, 1
        %v6473 = vadd.f32 %v6471, %v6472
        %v6474 = vrot.slane %v3095, 4
        %v6475 = vadd.f32 %v3095, %v6474
        %v6476 = vrot.slane %v6475, 2
        %v6477 = vadd.f32 %v6475, %v6476
        %v6478 = vrot.slane %v6477, 1
        %v6479 = vadd.f32 %v6477, %v6478
        %v6480 = vrot.slane %v3097, 4
        %v6481 = vadd.f32 %v3097, %v6480
        %v6482 = vrot.slane %v6481, 2
        %v6483 = vadd.f32 %v6481, %v6482
        %v6484 = vrot.slane %v6483, 1
        %v6485 = vadd.f32 %v6483, %v6484
        %v6486 = vrot.slane %v3099, 4
        %v6487 = vadd.f32 %v3099, %v6486
        %v6488 = vrot.slane %v6487, 2
        %v6489 = vadd.f32 %v6487, %v6488
        %v6490 = vrot.slane %v6489, 1
        %v6491 = vadd.f32 %v6489, %v6490
        %v6492 = vrot.slane %v3101, 4
        %v6493 = vadd.f32 %v3101, %v6492
        %v6494 = vrot.slane %v6493, 2
        %v6495 = vadd.f32 %v6493, %v6494
        %v6496 = vrot.slane %v6495, 1
        %v6497 = vadd.f32 %v6495, %v6496
        %v6498 = vrot.slane %v3103, 4
        %v6499 = vadd.f32 %v3103, %v6498
        %v6500 = vrot.slane %v6499, 2
        %v6501 = vadd.f32 %v6499, %v6500
        %v6502 = vrot.slane %v6501, 1
        %v6503 = vadd.f32 %v6501, %v6502
        %v6504 = vrot.slane %v3105, 4
        %v6505 = vadd.f32 %v3105, %v6504
        %v6506 = vrot.slane %v6505, 2
        %v6507 = vadd.f32 %v6505, %v6506
        %v6508 = vrot.slane %v6507, 1
        %v6509 = vadd.f32 %v6507, %v6508
        %v6510 = vrot.slane %v3107, 4
        %v6511 = vadd.f32 %v3107, %v6510
        %v6512 = vrot.slane %v6511, 2
        %v6513 = vadd.f32 %v6511, %v6512
        %v6514 = vrot.slane %v6513, 1
        %v6515 = vadd.f32 %v6513, %v6514
        %v6516 = vrot.slane %v3109, 4
        %v6517 = vadd.f32 %v3109, %v6516
        %v6518 = vrot.slane %v6517, 2
        %v6519 = vadd.f32 %v6517, %v6518
        %v6520 = vrot.slane %v6519, 1
        %v6521 = vadd.f32 %v6519, %v6520
        %v6522 = vrot.slane %v3111, 4
        %v6523 = vadd.f32 %v3111, %v6522
        %v6524 = vrot.slane %v6523, 2
        %v6525 = vadd.f32 %v6523, %v6524
        %v6526 = vrot.slane %v6525, 1
        %v6527 = vadd.f32 %v6525, %v6526
        %v6528 = vrot.slane %v3113, 4
        %v6529 = vadd.f32 %v3113, %v6528
        %v6530 = vrot.slane %v6529, 2
        %v6531 = vadd.f32 %v6529, %v6530
        %v6532 = vrot.slane %v6531, 1
        %v6533 = vadd.f32 %v6531, %v6532
        %v6534 = vrot.slane %v3115, 4
        %v6535 = vadd.f32 %v3115, %v6534
        %v6536 = vrot.slane %v6535, 2
        %v6537 = vadd.f32 %v6535, %v6536
        %v6538 = vrot.slane %v6537, 1
        %v6539 = vadd.f32 %v6537, %v6538
        %v6540 = vrot.slane %v3117, 4
        %v6541 = vadd.f32 %v3117, %v6540
        %v6542 = vrot.slane %v6541, 2
        %v6543 = vadd.f32 %v6541, %v6542
        %v6544 = vrot.slane %v6543, 1
        %v6545 = vadd.f32 %v6543, %v6544
        %v6546 = vrot.slane %v3119, 4
        %v6547 = vadd.f32 %v3119, %v6546
        %v6548 = vrot.slane %v6547, 2
        %v6549 = vadd.f32 %v6547, %v6548
        %v6550 = vrot.slane %v6549, 1
        %v6551 = vadd.f32 %v6549, %v6550
        %v6552 = vrot.slane %v3121, 4
        %v6553 = vadd.f32 %v3121, %v6552
        %v6554 = vrot.slane %v6553, 2
        %v6555 = vadd.f32 %v6553, %v6554
        %v6556 = vrot.slane %v6555, 1
        %v6557 = vadd.f32 %v6555, %v6556
        %v6558 = vrot.slane %v3123, 4
        %v6559 = vadd.f32 %v3123, %v6558
        %v6560 = vrot.slane %v6559, 2
        %v6561 = vadd.f32 %v6559, %v6560
        %v6562 = vrot.slane %v6561, 1
        %v6563 = vadd.f32 %v6561, %v6562
        %v6564 = vrot.slane %v3125, 4
        %v6565 = vadd.f32 %v3125, %v6564
        %v6566 = vrot.slane %v6565, 2
        %v6567 = vadd.f32 %v6565, %v6566
        %v6568 = vrot.slane %v6567, 1
        %v6569 = vadd.f32 %v6567, %v6568
        %v6570 = vrot.slane %v3127, 4
        %v6571 = vadd.f32 %v3127, %v6570
        %v6572 = vrot.slane %v6571, 2
        %v6573 = vadd.f32 %v6571, %v6572
        %v6574 = vrot.slane %v6573, 1
        %v6575 = vadd.f32 %v6573, %v6574
        %v6576 = vrot.slane %v3129, 4
        %v6577 = vadd.f32 %v3129, %v6576
        %v6578 = vrot.slane %v6577, 2
        %v6579 = vadd.f32 %v6577, %v6578
        %v6580 = vrot.slane %v6579, 1
        %v6581 = vadd.f32 %v6579, %v6580
        %v6582 = vrot.slane %v3131, 4
        %v6583 = vadd.f32 %v3131, %v6582
        %v6584 = vrot.slane %v6583, 2
        %v6585 = vadd.f32 %v6583, %v6584
        %v6586 = vrot.slane %v6585, 1
        %v6587 = vadd.f32 %v6585, %v6586
        %v6588 = vrot.slane %v3133, 4
        %v6589 = vadd.f32 %v3133, %v6588
        %v6590 = vrot.slane %v6589, 2
        %v6591 = vadd.f32 %v6589, %v6590
        %v6592 = vrot.slane %v6591, 1
        %v6593 = vadd.f32 %v6591, %v6592
        %v6594 = vrot.slane %v3135, 4
        %v6595 = vadd.f32 %v3135, %v6594
        %v6596 = vrot.slane %v6595, 2
        %v6597 = vadd.f32 %v6595, %v6596
        %v6598 = vrot.slane %v6597, 1
        %v6599 = vadd.f32 %v6597, %v6598
        %v6600 = vrot.slane %v3137, 4
        %v6601 = vadd.f32 %v3137, %v6600
        %v6602 = vrot.slane %v6601, 2
        %v6603 = vadd.f32 %v6601, %v6602
        %v6604 = vrot.slane %v6603, 1
        %v6605 = vadd.f32 %v6603, %v6604
        %v6606 = vrot.slane %v3139, 4
        %v6607 = vadd.f32 %v3139, %v6606
        %v6608 = vrot.slane %v6607, 2
        %v6609 = vadd.f32 %v6607, %v6608
        %v6610 = vrot.slane %v6609, 1
        %v6611 = vadd.f32 %v6609, %v6610
        %v6612 = vrot.slane %v3141, 4
        %v6613 = vadd.f32 %v3141, %v6612
        %v6614 = vrot.slane %v6613, 2
        %v6615 = vadd.f32 %v6613, %v6614
        %v6616 = vrot.slane %v6615, 1
        %v6617 = vadd.f32 %v6615, %v6616
        %v6618 = vrot.slane %v3143, 4
        %v6619 = vadd.f32 %v3143, %v6618
        %v6620 = vrot.slane %v6619, 2
        %v6621 = vadd.f32 %v6619, %v6620
        %v6622 = vrot.slane %v6621, 1
        %v6623 = vadd.f32 %v6621, %v6622
        %v6624 = vrot.slane %v3145, 4
        %v6625 = vadd.f32 %v3145, %v6624
        %v6626 = vrot.slane %v6625, 2
        %v6627 = vadd.f32 %v6625, %v6626
        %v6628 = vrot.slane %v6627, 1
        %v6629 = vadd.f32 %v6627, %v6628
        %v6630 = vrot.slane %v3147, 4
        %v6631 = vadd.f32 %v3147, %v6630
        %v6632 = vrot.slane %v6631, 2
        %v6633 = vadd.f32 %v6631, %v6632
        %v6634 = vrot.slane %v6633, 1
        %v6635 = vadd.f32 %v6633, %v6634
        %v6636 = vrot.slane %v3149, 4
        %v6637 = vadd.f32 %v3149, %v6636
        %v6638 = vrot.slane %v6637, 2
        %v6639 = vadd.f32 %v6637, %v6638
        %v6640 = vrot.slane %v6639, 1
        %v6641 = vadd.f32 %v6639, %v6640
        %v6642 = vrot.slane %v3151, 4
        %v6643 = vadd.f32 %v3151, %v6642
        %v6644 = vrot.slane %v6643, 2
        %v6645 = vadd.f32 %v6643, %v6644
        %v6646 = vrot.slane %v6645, 1
        %v6647 = vadd.f32 %v6645, %v6646
        %v6648 = vrot.slane %v3153, 4
        %v6649 = vadd.f32 %v3153, %v6648
        %v6650 = vrot.slane %v6649, 2
        %v6651 = vadd.f32 %v6649, %v6650
        %v6652 = vrot.slane %v6651, 1
        %v6653 = vadd.f32 %v6651, %v6652
        %v6654 = vrot.slane %v3155, 4
        %v6655 = vadd.f32 %v3155, %v6654
        %v6656 = vrot.slane %v6655, 2
        %v6657 = vadd.f32 %v6655, %v6656
        %v6658 = vrot.slane %v6657, 1
        %v6659 = vadd.f32 %v6657, %v6658
        %v6660 = vrot.slane %v3157, 4
        %v6661 = vadd.f32 %v3157, %v6660
        %v6662 = vrot.slane %v6661, 2
        %v6663 = vadd.f32 %v6661, %v6662
        %v6664 = vrot.slane %v6663, 1
        %v6665 = vadd.f32 %v6663, %v6664
        %v6666 = vrot.slane %v3159, 4
        %v6667 = vadd.f32 %v3159, %v6666
        %v6668 = vrot.slane %v6667, 2
        %v6669 = vadd.f32 %v6667, %v6668
        %v6670 = vrot.slane %v6669, 1
        %v6671 = vadd.f32 %v6669, %v6670
        %v6672 = vrot.slane %v3161, 4
        %v6673 = vadd.f32 %v3161, %v6672
        %v6674 = vrot.slane %v6673, 2
        %v6675 = vadd.f32 %v6673, %v6674
        %v6676 = vrot.slane %v6675, 1
        %v6677 = vadd.f32 %v6675, %v6676
        %v6678 = vrot.slane %v3163, 4
        %v6679 = vadd.f32 %v3163, %v6678
        %v6680 = vrot.slane %v6679, 2
        %v6681 = vadd.f32 %v6679, %v6680
        %v6682 = vrot.slane %v6681, 1
        %v6683 = vadd.f32 %v6681, %v6682
        %v6684 = vrot.slane %v3165, 4
        %v6685 = vadd.f32 %v3165, %v6684
        %v6686 = vrot.slane %v6685, 2
        %v6687 = vadd.f32 %v6685, %v6686
        %v6688 = vrot.slane %v6687, 1
        %v6689 = vadd.f32 %v6687, %v6688
        %v6690 = vrot.slane %v3167, 4
        %v6691 = vadd.f32 %v3167, %v6690
        %v6692 = vrot.slane %v6691, 2
        %v6693 = vadd.f32 %v6691, %v6692
        %v6694 = vrot.slane %v6693, 1
        %v6695 = vadd.f32 %v6693, %v6694
        %v6696 = vrot.slane %v3169, 4
        %v6697 = vadd.f32 %v3169, %v6696
        %v6698 = vrot.slane %v6697, 2
        %v6699 = vadd.f32 %v6697, %v6698
        %v6700 = vrot.slane %v6699, 1
        %v6701 = vadd.f32 %v6699, %v6700
        %v6702 = vrot.slane %v3171, 4
        %v6703 = vadd.f32 %v3171, %v6702
        %v6704 = vrot.slane %v6703, 2
        %v6705 = vadd.f32 %v6703, %v6704
        %v6706 = vrot.slane %v6705, 1
        %v6707 = vadd.f32 %v6705, %v6706
        %v6708 = vrot.slane %v3173, 4
        %v6709 = vadd.f32 %v3173, %v6708
        %v6710 = vrot.slane %v6709, 2
        %v6711 = vadd.f32 %v6709, %v6710
        %v6712 = vrot.slane %v6711, 1
        %v6713 = vadd.f32 %v6711, %v6712
        %v6714 = vrot.slane %v3175, 4
        %v6715 = vadd.f32 %v3175, %v6714
        %v6716 = vrot.slane %v6715, 2
        %v6717 = vadd.f32 %v6715, %v6716
        %v6718 = vrot.slane %v6717, 1
        %v6719 = vadd.f32 %v6717, %v6718
        %v6720 = vrot.slane %v3177, 4
        %v6721 = vadd.f32 %v3177, %v6720
        %v6722 = vrot.slane %v6721, 2
        %v6723 = vadd.f32 %v6721, %v6722
        %v6724 = vrot.slane %v6723, 1
        %v6725 = vadd.f32 %v6723, %v6724
        %v6726 = vrot.slane %v3179, 4
        %v6727 = vadd.f32 %v3179, %v6726
        %v6728 = vrot.slane %v6727, 2
        %v6729 = vadd.f32 %v6727, %v6728
        %v6730 = vrot.slane %v6729, 1
        %v6731 = vadd.f32 %v6729, %v6730
        %v6732 = vrot.slane %v3181, 4
        %v6733 = vadd.f32 %v3181, %v6732
        %v6734 = vrot.slane %v6733, 2
        %v6735 = vadd.f32 %v6733, %v6734
        %v6736 = vrot.slane %v6735, 1
        %v6737 = vadd.f32 %v6735, %v6736
        %v6738 = vrot.slane %v3183, 4
        %v6739 = vadd.f32 %v3183, %v6738
        %v6740 = vrot.slane %v6739, 2
        %v6741 = vadd.f32 %v6739, %v6740
        %v6742 = vrot.slane %v6741, 1
        %v6743 = vadd.f32 %v6741, %v6742
        %v6744 = vrot.slane %v3185, 4
        %v6745 = vadd.f32 %v3185, %v6744
        %v6746 = vrot.slane %v6745, 2
        %v6747 = vadd.f32 %v6745, %v6746
        %v6748 = vrot.slane %v6747, 1
        %v6749 = vadd.f32 %v6747, %v6748
        %v6750 = vrot.slane %v3187, 4
        %v6751 = vadd.f32 %v3187, %v6750
        %v6752 = vrot.slane %v6751, 2
        %v6753 = vadd.f32 %v6751, %v6752
        %v6754 = vrot.slane %v6753, 1
        %v6755 = vadd.f32 %v6753, %v6754
        %v6756 = vrot.slane %v3189, 4
        %v6757 = vadd.f32 %v3189, %v6756
        %v6758 = vrot.slane %v6757, 2
        %v6759 = vadd.f32 %v6757, %v6758
        %v6760 = vrot.slane %v6759, 1
        %v6761 = vadd.f32 %v6759, %v6760
        %v6762 = vrot.slane %v3191, 4
        %v6763 = vadd.f32 %v3191, %v6762
        %v6764 = vrot.slane %v6763, 2
        %v6765 = vadd.f32 %v6763, %v6764
        %v6766 = vrot.slane %v6765, 1
        %v6767 = vadd.f32 %v6765, %v6766
        %v6768 = vrot.slane %v3193, 4
        %v6769 = vadd.f32 %v3193, %v6768
        %v6770 = vrot.slane %v6769, 2
        %v6771 = vadd.f32 %v6769, %v6770
        %v6772 = vrot.slane %v6771, 1
        %v6773 = vadd.f32 %v6771, %v6772
        %v6774 = vrot.slane %v3195, 4
        %v6775 = vadd.f32 %v3195, %v6774
        %v6776 = vrot.slane %v6775, 2
        %v6777 = vadd.f32 %v6775, %v6776
        %v6778 = vrot.slane %v6777, 1
        %v6779 = vadd.f32 %v6777, %v6778
        %v6780 = vrot.slane %v3197, 4
        %v6781 = vadd.f32 %v3197, %v6780
        %v6782 = vrot.slane %v6781, 2
        %v6783 = vadd.f32 %v6781, %v6782
        %v6784 = vrot.slane %v6783, 1
        %v6785 = vadd.f32 %v6783, %v6784
        %v6786 = vrot.slane %v3199, 4
        %v6787 = vadd.f32 %v3199, %v6786
        %v6788 = vrot.slane %v6787, 2
        %v6789 = vadd.f32 %v6787, %v6788
        %v6790 = vrot.slane %v6789, 1
        %v6791 = vadd.f32 %v6789, %v6790
        %v6792 = vrot.slane %v3201, 4
        %v6793 = vadd.f32 %v3201, %v6792
        %v6794 = vrot.slane %v6793, 2
        %v6795 = vadd.f32 %v6793, %v6794
        %v6796 = vrot.slane %v6795, 1
        %v6797 = vadd.f32 %v6795, %v6796
        %v6798 = vrot.slane %v3203, 4
        %v6799 = vadd.f32 %v3203, %v6798
        %v6800 = vrot.slane %v6799, 2
        %v6801 = vadd.f32 %v6799, %v6800
        %v6802 = vrot.slane %v6801, 1
        %v6803 = vadd.f32 %v6801, %v6802
        %v6804 = vrot.slane %v3205, 4
        %v6805 = vadd.f32 %v3205, %v6804
        %v6806 = vrot.slane %v6805, 2
        %v6807 = vadd.f32 %v6805, %v6806
        %v6808 = vrot.slane %v6807, 1
        %v6809 = vadd.f32 %v6807, %v6808
        %v6810 = vrot.slane %v3207, 4
        %v6811 = vadd.f32 %v3207, %v6810
        %v6812 = vrot.slane %v6811, 2
        %v6813 = vadd.f32 %v6811, %v6812
        %v6814 = vrot.slane %v6813, 1
        %v6815 = vadd.f32 %v6813, %v6814
        %v6816 = vrot.slane %v3209, 4
        %v6817 = vadd.f32 %v3209, %v6816
        %v6818 = vrot.slane %v6817, 2
        %v6819 = vadd.f32 %v6817, %v6818
        %v6820 = vrot.slane %v6819, 1
        %v6821 = vadd.f32 %v6819, %v6820
        %v6822 = vrot.slane %v3211, 4
        %v6823 = vadd.f32 %v3211, %v6822
        %v6824 = vrot.slane %v6823, 2
        %v6825 = vadd.f32 %v6823, %v6824
        %v6826 = vrot.slane %v6825, 1
        %v6827 = vadd.f32 %v6825, %v6826
        %v6828 = vrot.slane %v3213, 4
        %v6829 = vadd.f32 %v3213, %v6828
        %v6830 = vrot.slane %v6829, 2
        %v6831 = vadd.f32 %v6829, %v6830
        %v6832 = vrot.slane %v6831, 1
        %v6833 = vadd.f32 %v6831, %v6832
        %v6834 = vrot.slane %v3215, 4
        %v6835 = vadd.f32 %v3215, %v6834
        %v6836 = vrot.slane %v6835, 2
        %v6837 = vadd.f32 %v6835, %v6836
        %v6838 = vrot.slane %v6837, 1
        %v6839 = vadd.f32 %v6837, %v6838
        %v6840 = vrot.slane %v3217, 4
        %v6841 = vadd.f32 %v3217, %v6840
        %v6842 = vrot.slane %v6841, 2
        %v6843 = vadd.f32 %v6841, %v6842
        %v6844 = vrot.slane %v6843, 1
        %v6845 = vadd.f32 %v6843, %v6844
        %v6846 = vrot.slane %v3219, 4
        %v6847 = vadd.f32 %v3219, %v6846
        %v6848 = vrot.slane %v6847, 2
        %v6849 = vadd.f32 %v6847, %v6848
        %v6850 = vrot.slane %v6849, 1
        %v6851 = vadd.f32 %v6849, %v6850
        %v6852 = vrot.slane %v3221, 4
        %v6853 = vadd.f32 %v3221, %v6852
        %v6854 = vrot.slane %v6853, 2
        %v6855 = vadd.f32 %v6853, %v6854
        %v6856 = vrot.slane %v6855, 1
        %v6857 = vadd.f32 %v6855, %v6856
        %v6858 = vrot.slane %v3223, 4
        %v6859 = vadd.f32 %v3223, %v6858
        %v6860 = vrot.slane %v6859, 2
        %v6861 = vadd.f32 %v6859, %v6860
        %v6862 = vrot.slane %v6861, 1
        %v6863 = vadd.f32 %v6861, %v6862
        %v6864 = vrot.slane %v3225, 4
        %v6865 = vadd.f32 %v3225, %v6864
        %v6866 = vrot.slane %v6865, 2
        %v6867 = vadd.f32 %v6865, %v6866
        %v6868 = vrot.slane %v6867, 1
        %v6869 = vadd.f32 %v6867, %v6868
        %v6870 = vrot.slane %v3227, 4
        %v6871 = vadd.f32 %v3227, %v6870
        %v6872 = vrot.slane %v6871, 2
        %v6873 = vadd.f32 %v6871, %v6872
        %v6874 = vrot.slane %v6873, 1
        %v6875 = vadd.f32 %v6873, %v6874
        %v6876 = vrot.slane %v3229, 4
        %v6877 = vadd.f32 %v3229, %v6876
        %v6878 = vrot.slane %v6877, 2
        %v6879 = vadd.f32 %v6877, %v6878
        %v6880 = vrot.slane %v6879, 1
        %v6881 = vadd.f32 %v6879, %v6880
        %v6882 = vrot.slane %v3231, 4
        %v6883 = vadd.f32 %v3231, %v6882
        %v6884 = vrot.slane %v6883, 2
        %v6885 = vadd.f32 %v6883, %v6884
        %v6886 = vrot.slane %v6885, 1
        %v6887 = vadd.f32 %v6885, %v6886
        %v6888 = vrot.slane %v3233, 4
        %v6889 = vadd.f32 %v3233, %v6888
        %v6890 = vrot.slane %v6889, 2
        %v6891 = vadd.f32 %v6889, %v6890
        %v6892 = vrot.slane %v6891, 1
        %v6893 = vadd.f32 %v6891, %v6892
        %v6894 = vrot.slane %v3235, 4
        %v6895 = vadd.f32 %v3235, %v6894
        %v6896 = vrot.slane %v6895, 2
        %v6897 = vadd.f32 %v6895, %v6896
        %v6898 = vrot.slane %v6897, 1
        %v6899 = vadd.f32 %v6897, %v6898
        %v6900 = vrot.slane %v3237, 4
        %v6901 = vadd.f32 %v3237, %v6900
        %v6902 = vrot.slane %v6901, 2
        %v6903 = vadd.f32 %v6901, %v6902
        %v6904 = vrot.slane %v6903, 1
        %v6905 = vadd.f32 %v6903, %v6904
        %v6906 = vrot.slane %v3239, 4
        %v6907 = vadd.f32 %v3239, %v6906
        %v6908 = vrot.slane %v6907, 2
        %v6909 = vadd.f32 %v6907, %v6908
        %v6910 = vrot.slane %v6909, 1
        %v6911 = vadd.f32 %v6909, %v6910
        %v6912 = vrot.slane %v3241, 4
        %v6913 = vadd.f32 %v3241, %v6912
        %v6914 = vrot.slane %v6913, 2
        %v6915 = vadd.f32 %v6913, %v6914
        %v6916 = vrot.slane %v6915, 1
        %v6917 = vadd.f32 %v6915, %v6916
        %v6918 = vrot.slane %v3243, 4
        %v6919 = vadd.f32 %v3243, %v6918
        %v6920 = vrot.slane %v6919, 2
        %v6921 = vadd.f32 %v6919, %v6920
        %v6922 = vrot.slane %v6921, 1
        %v6923 = vadd.f32 %v6921, %v6922
        %v6924 = vrot.slane %v3245, 4
        %v6925 = vadd.f32 %v3245, %v6924
        %v6926 = vrot.slane %v6925, 2
        %v6927 = vadd.f32 %v6925, %v6926
        %v6928 = vrot.slane %v6927, 1
        %v6929 = vadd.f32 %v6927, %v6928
        %v6930 = vrot.slane %v3247, 4
        %v6931 = vadd.f32 %v3247, %v6930
        %v6932 = vrot.slane %v6931, 2
        %v6933 = vadd.f32 %v6931, %v6932
        %v6934 = vrot.slane %v6933, 1
        %v6935 = vadd.f32 %v6933, %v6934
        %v6936 = vrot.slane %v3249, 4
        %v6937 = vadd.f32 %v3249, %v6936
        %v6938 = vrot.slane %v6937, 2
        %v6939 = vadd.f32 %v6937, %v6938
        %v6940 = vrot.slane %v6939, 1
        %v6941 = vadd.f32 %v6939, %v6940
        %v6942 = vrot.slane %v3251, 4
        %v6943 = vadd.f32 %v3251, %v6942
        %v6944 = vrot.slane %v6943, 2
        %v6945 = vadd.f32 %v6943, %v6944
        %v6946 = vrot.slane %v6945, 1
        %v6947 = vadd.f32 %v6945, %v6946
        %v6948 = vrot.slane %v3253, 4
        %v6949 = vadd.f32 %v3253, %v6948
        %v6950 = vrot.slane %v6949, 2
        %v6951 = vadd.f32 %v6949, %v6950
        %v6952 = vrot.slane %v6951, 1
        %v6953 = vadd.f32 %v6951, %v6952
        %v6954 = vrot.slane %v3255, 4
        %v6955 = vadd.f32 %v3255, %v6954
        %v6956 = vrot.slane %v6955, 2
        %v6957 = vadd.f32 %v6955, %v6956
        %v6958 = vrot.slane %v6957, 1
        %v6959 = vadd.f32 %v6957, %v6958
        %v6960 = vrot.slane %v3257, 4
        %v6961 = vadd.f32 %v3257, %v6960
        %v6962 = vrot.slane %v6961, 2
        %v6963 = vadd.f32 %v6961, %v6962
        %v6964 = vrot.slane %v6963, 1
        %v6965 = vadd.f32 %v6963, %v6964
        %v6966 = vrot.slane %v3259, 4
        %v6967 = vadd.f32 %v3259, %v6966
        %v6968 = vrot.slane %v6967, 2
        %v6969 = vadd.f32 %v6967, %v6968
        %v6970 = vrot.slane %v6969, 1
        %v6971 = vadd.f32 %v6969, %v6970
        %v6972 = vrot.slane %v3261, 4
        %v6973 = vadd.f32 %v3261, %v6972
        %v6974 = vrot.slane %v6973, 2
        %v6975 = vadd.f32 %v6973, %v6974
        %v6976 = vrot.slane %v6975, 1
        %v6977 = vadd.f32 %v6975, %v6976
        %v6978 = vrot.slane %v3263, 4
        %v6979 = vadd.f32 %v3263, %v6978
        %v6980 = vrot.slane %v6979, 2
        %v6981 = vadd.f32 %v6979, %v6980
        %v6982 = vrot.slane %v6981, 1
        %v6983 = vadd.f32 %v6981, %v6982
        %v6984 = vrot.slane %v3265, 4
        %v6985 = vadd.f32 %v3265, %v6984
        %v6986 = vrot.slane %v6985, 2
        %v6987 = vadd.f32 %v6985, %v6986
        %v6988 = vrot.slane %v6987, 1
        %v6989 = vadd.f32 %v6987, %v6988
        %v6990 = vrot.slane %v3267, 4
        %v6991 = vadd.f32 %v3267, %v6990
        %v6992 = vrot.slane %v6991, 2
        %v6993 = vadd.f32 %v6991, %v6992
        %v6994 = vrot.slane %v6993, 1
        %v6995 = vadd.f32 %v6993, %v6994
        %v6996 = vrot.slane %v3269, 4
        %v6997 = vadd.f32 %v3269, %v6996
        %v6998 = vrot.slane %v6997, 2
        %v6999 = vadd.f32 %v6997, %v6998
        %v7000 = vrot.slane %v6999, 1
        %v7001 = vadd.f32 %v6999, %v7000
        %v7002 = vrot.slane %v3271, 4
        %v7003 = vadd.f32 %v3271, %v7002
        %v7004 = vrot.slane %v7003, 2
        %v7005 = vadd.f32 %v7003, %v7004
        %v7006 = vrot.slane %v7005, 1
        %v7007 = vadd.f32 %v7005, %v7006
        %v7008 = vrot.slane %v3273, 4
        %v7009 = vadd.f32 %v3273, %v7008
        %v7010 = vrot.slane %v7009, 2
        %v7011 = vadd.f32 %v7009, %v7010
        %v7012 = vrot.slane %v7011, 1
        %v7013 = vadd.f32 %v7011, %v7012
        %v7014 = vrot.slane %v3275, 4
        %v7015 = vadd.f32 %v3275, %v7014
        %v7016 = vrot.slane %v7015, 2
        %v7017 = vadd.f32 %v7015, %v7016
        %v7018 = vrot.slane %v7017, 1
        %v7019 = vadd.f32 %v7017, %v7018
        %v7020 = vrot.slane %v3277, 4
        %v7021 = vadd.f32 %v3277, %v7020
        %v7022 = vrot.slane %v7021, 2
        %v7023 = vadd.f32 %v7021, %v7022
        %v7024 = vrot.slane %v7023, 1
        %v7025 = vadd.f32 %v7023, %v7024
        %v7026 = vrot.slane %v3279, 4
        %v7027 = vadd.f32 %v3279, %v7026
        %v7028 = vrot.slane %v7027, 2
        %v7029 = vadd.f32 %v7027, %v7028
        %v7030 = vrot.slane %v7029, 1
        %v7031 = vadd.f32 %v7029, %v7030
        %v7032 = vrot.slane %v3281, 4
        %v7033 = vadd.f32 %v3281, %v7032
        %v7034 = vrot.slane %v7033, 2
        %v7035 = vadd.f32 %v7033, %v7034
        %v7036 = vrot.slane %v7035, 1
        %v7037 = vadd.f32 %v7035, %v7036
        %v7038 = vrot.slane %v3283, 4
        %v7039 = vadd.f32 %v3283, %v7038
        %v7040 = vrot.slane %v7039, 2
        %v7041 = vadd.f32 %v7039, %v7040
        %v7042 = vrot.slane %v7041, 1
        %v7043 = vadd.f32 %v7041, %v7042
        %v7044 = vrot.slane %v3285, 4
        %v7045 = vadd.f32 %v3285, %v7044
        %v7046 = vrot.slane %v7045, 2
        %v7047 = vadd.f32 %v7045, %v7046
        %v7048 = vrot.slane %v7047, 1
        %v7049 = vadd.f32 %v7047, %v7048
        %v7050 = vrot.slane %v3287, 4
        %v7051 = vadd.f32 %v3287, %v7050
        %v7052 = vrot.slane %v7051, 2
        %v7053 = vadd.f32 %v7051, %v7052
        %v7054 = vrot.slane %v7053, 1
        %v7055 = vadd.f32 %v7053, %v7054
        %v7056 = vrot.slane %v3289, 4
        %v7057 = vadd.f32 %v3289, %v7056
        %v7058 = vrot.slane %v7057, 2
        %v7059 = vadd.f32 %v7057, %v7058
        %v7060 = vrot.slane %v7059, 1
        %v7061 = vadd.f32 %v7059, %v7060
        %v7062 = vrot.slane %v3291, 4
        %v7063 = vadd.f32 %v3291, %v7062
        %v7064 = vrot.slane %v7063, 2
        %v7065 = vadd.f32 %v7063, %v7064
        %v7066 = vrot.slane %v7065, 1
        %v7067 = vadd.f32 %v7065, %v7066
        %v7068 = vrot.slane %v3293, 4
        %v7069 = vadd.f32 %v3293, %v7068
        %v7070 = vrot.slane %v7069, 2
        %v7071 = vadd.f32 %v7069, %v7070
        %v7072 = vrot.slane %v7071, 1
        %v7073 = vadd.f32 %v7071, %v7072
        %v7074 = vrot.slane %v3295, 4
        %v7075 = vadd.f32 %v3295, %v7074
        %v7076 = vrot.slane %v7075, 2
        %v7077 = vadd.f32 %v7075, %v7076
        %v7078 = vrot.slane %v7077, 1
        %v7079 = vadd.f32 %v7077, %v7078
        %v7080 = vrot.slane %v3297, 4
        %v7081 = vadd.f32 %v3297, %v7080
        %v7082 = vrot.slane %v7081, 2
        %v7083 = vadd.f32 %v7081, %v7082
        %v7084 = vrot.slane %v7083, 1
        %v7085 = vadd.f32 %v7083, %v7084
        %v7086 = vrot.slane %v3299, 4
        %v7087 = vadd.f32 %v3299, %v7086
        %v7088 = vrot.slane %v7087, 2
        %v7089 = vadd.f32 %v7087, %v7088
        %v7090 = vrot.slane %v7089, 1
        %v7091 = vadd.f32 %v7089, %v7090
        %v7092 = vrot.slane %v3301, 4
        %v7093 = vadd.f32 %v3301, %v7092
        %v7094 = vrot.slane %v7093, 2
        %v7095 = vadd.f32 %v7093, %v7094
        %v7096 = vrot.slane %v7095, 1
        %v7097 = vadd.f32 %v7095, %v7096
        %v7098 = vrot.slane %v3303, 4
        %v7099 = vadd.f32 %v3303, %v7098
        %v7100 = vrot.slane %v7099, 2
        %v7101 = vadd.f32 %v7099, %v7100
        %v7102 = vrot.slane %v7101, 1
        %v7103 = vadd.f32 %v7101, %v7102
        %v7104 = vrot.slane %v3305, 4
        %v7105 = vadd.f32 %v3305, %v7104
        %v7106 = vrot.slane %v7105, 2
        %v7107 = vadd.f32 %v7105, %v7106
        %v7108 = vrot.slane %v7107, 1
        %v7109 = vadd.f32 %v7107, %v7108
        %v7110 = vrot.slane %v3307, 4
        %v7111 = vadd.f32 %v3307, %v7110
        %v7112 = vrot.slane %v7111, 2
        %v7113 = vadd.f32 %v7111, %v7112
        %v7114 = vrot.slane %v7113, 1
        %v7115 = vadd.f32 %v7113, %v7114
        %v7116 = vrot.slane %v3309, 4
        %v7117 = vadd.f32 %v3309, %v7116
        %v7118 = vrot.slane %v7117, 2
        %v7119 = vadd.f32 %v7117, %v7118
        %v7120 = vrot.slane %v7119, 1
        %v7121 = vadd.f32 %v7119, %v7120
        %v7122 = vrot.slane %v3311, 4
        %v7123 = vadd.f32 %v3311, %v7122
        %v7124 = vrot.slane %v7123, 2
        %v7125 = vadd.f32 %v7123, %v7124
        %v7126 = vrot.slane %v7125, 1
        %v7127 = vadd.f32 %v7125, %v7126
        %v7128 = vrot.slane %v3313, 4
        %v7129 = vadd.f32 %v3313, %v7128
        %v7130 = vrot.slane %v7129, 2
        %v7131 = vadd.f32 %v7129, %v7130
        %v7132 = vrot.slane %v7131, 1
        %v7133 = vadd.f32 %v7131, %v7132
        %v7134 = vrot.slane %v3315, 4
        %v7135 = vadd.f32 %v3315, %v7134
        %v7136 = vrot.slane %v7135, 2
        %v7137 = vadd.f32 %v7135, %v7136
        %v7138 = vrot.slane %v7137, 1
        %v7139 = vadd.f32 %v7137, %v7138
        %v7140 = vrot.slane %v3317, 4
        %v7141 = vadd.f32 %v3317, %v7140
        %v7142 = vrot.slane %v7141, 2
        %v7143 = vadd.f32 %v7141, %v7142
        %v7144 = vrot.slane %v7143, 1
        %v7145 = vadd.f32 %v7143, %v7144
        %v7146 = vrot.slane %v3319, 4
        %v7147 = vadd.f32 %v3319, %v7146
        %v7148 = vrot.slane %v7147, 2
        %v7149 = vadd.f32 %v7147, %v7148
        %v7150 = vrot.slane %v7149, 1
        %v7151 = vadd.f32 %v7149, %v7150
        %v7152 = vrot.slane %v3321, 4
        %v7153 = vadd.f32 %v3321, %v7152
        %v7154 = vrot.slane %v7153, 2
        %v7155 = vadd.f32 %v7153, %v7154
        %v7156 = vrot.slane %v7155, 1
        %v7157 = vadd.f32 %v7155, %v7156
        %v7158 = vrot.slane %v3323, 4
        %v7159 = vadd.f32 %v3323, %v7158
        %v7160 = vrot.slane %v7159, 2
        %v7161 = vadd.f32 %v7159, %v7160
        %v7162 = vrot.slane %v7161, 1
        %v7163 = vadd.f32 %v7161, %v7162
        %v7164 = vrot.slane %v3325, 4
        %v7165 = vadd.f32 %v3325, %v7164
        %v7166 = vrot.slane %v7165, 2
        %v7167 = vadd.f32 %v7165, %v7166
        %v7168 = vrot.slane %v7167, 1
        %v7169 = vadd.f32 %v7167, %v7168
        %v7170 = vrot.slane %v3327, 4
        %v7171 = vadd.f32 %v3327, %v7170
        %v7172 = vrot.slane %v7171, 2
        %v7173 = vadd.f32 %v7171, %v7172
        %v7174 = vrot.slane %v7173, 1
        %v7175 = vadd.f32 %v7173, %v7174
        %v7176 = vrot.slane %v3329, 4
        %v7177 = vadd.f32 %v3329, %v7176
        %v7178 = vrot.slane %v7177, 2
        %v7179 = vadd.f32 %v7177, %v7178
        %v7180 = vrot.slane %v7179, 1
        %v7181 = vadd.f32 %v7179, %v7180
        %v7182 = vrot.slane %v3331, 4
        %v7183 = vadd.f32 %v3331, %v7182
        %v7184 = vrot.slane %v7183, 2
        %v7185 = vadd.f32 %v7183, %v7184
        %v7186 = vrot.slane %v7185, 1
        %v7187 = vadd.f32 %v7185, %v7186
        %v7188 = vrot.slane %v3333, 4
        %v7189 = vadd.f32 %v3333, %v7188
        %v7190 = vrot.slane %v7189, 2
        %v7191 = vadd.f32 %v7189, %v7190
        %v7192 = vrot.slane %v7191, 1
        %v7193 = vadd.f32 %v7191, %v7192
        %v7194 = vrot.slane %v3335, 4
        %v7195 = vadd.f32 %v3335, %v7194
        %v7196 = vrot.slane %v7195, 2
        %v7197 = vadd.f32 %v7195, %v7196
        %v7198 = vrot.slane %v7197, 1
        %v7199 = vadd.f32 %v7197, %v7198
        %v7200 = vrot.slane %v3337, 4
        %v7201 = vadd.f32 %v3337, %v7200
        %v7202 = vrot.slane %v7201, 2
        %v7203 = vadd.f32 %v7201, %v7202
        %v7204 = vrot.slane %v7203, 1
        %v7205 = vadd.f32 %v7203, %v7204
        %v7206 = vrot.slane %v3339, 4
        %v7207 = vadd.f32 %v3339, %v7206
        %v7208 = vrot.slane %v7207, 2
        %v7209 = vadd.f32 %v7207, %v7208
        %v7210 = vrot.slane %v7209, 1
        %v7211 = vadd.f32 %v7209, %v7210
        %v7212 = vrot.slane %v3341, 4
        %v7213 = vadd.f32 %v3341, %v7212
        %v7214 = vrot.slane %v7213, 2
        %v7215 = vadd.f32 %v7213, %v7214
        %v7216 = vrot.slane %v7215, 1
        %v7217 = vadd.f32 %v7215, %v7216
        %v7218 = vrot.slane %v3343, 4
        %v7219 = vadd.f32 %v3343, %v7218
        %v7220 = vrot.slane %v7219, 2
        %v7221 = vadd.f32 %v7219, %v7220
        %v7222 = vrot.slane %v7221, 1
        %v7223 = vadd.f32 %v7221, %v7222
        %v7224 = vrot.slane %v3345, 4
        %v7225 = vadd.f32 %v3345, %v7224
        %v7226 = vrot.slane %v7225, 2
        %v7227 = vadd.f32 %v7225, %v7226
        %v7228 = vrot.slane %v7227, 1
        %v7229 = vadd.f32 %v7227, %v7228
        %v7230 = vrot.slane %v3347, 4
        %v7231 = vadd.f32 %v3347, %v7230
        %v7232 = vrot.slane %v7231, 2
        %v7233 = vadd.f32 %v7231, %v7232
        %v7234 = vrot.slane %v7233, 1
        %v7235 = vadd.f32 %v7233, %v7234
        %v7236 = vrot.slane %v3349, 4
        %v7237 = vadd.f32 %v3349, %v7236
        %v7238 = vrot.slane %v7237, 2
        %v7239 = vadd.f32 %v7237, %v7238
        %v7240 = vrot.slane %v7239, 1
        %v7241 = vadd.f32 %v7239, %v7240
        %v7242 = vrot.slane %v3351, 4
        %v7243 = vadd.f32 %v3351, %v7242
        %v7244 = vrot.slane %v7243, 2
        %v7245 = vadd.f32 %v7243, %v7244
        %v7246 = vrot.slane %v7245, 1
        %v7247 = vadd.f32 %v7245, %v7246
        %v7248 = vrot.slane %v3353, 4
        %v7249 = vadd.f32 %v3353, %v7248
        %v7250 = vrot.slane %v7249, 2
        %v7251 = vadd.f32 %v7249, %v7250
        %v7252 = vrot.slane %v7251, 1
        %v7253 = vadd.f32 %v7251, %v7252
        %v7254 = vrot.slane %v3355, 4
        %v7255 = vadd.f32 %v3355, %v7254
        %v7256 = vrot.slane %v7255, 2
        %v7257 = vadd.f32 %v7255, %v7256
        %v7258 = vrot.slane %v7257, 1
        %v7259 = vadd.f32 %v7257, %v7258
        %v7260 = vrot.slane %v3357, 4
        %v7261 = vadd.f32 %v3357, %v7260
        %v7262 = vrot.slane %v7261, 2
        %v7263 = vadd.f32 %v7261, %v7262
        %v7264 = vrot.slane %v7263, 1
        %v7265 = vadd.f32 %v7263, %v7264
        %v7266 = vrot.slane %v3359, 4
        %v7267 = vadd.f32 %v3359, %v7266
        %v7268 = vrot.slane %v7267, 2
        %v7269 = vadd.f32 %v7267, %v7268
        %v7270 = vrot.slane %v7269, 1
        %v7271 = vadd.f32 %v7269, %v7270
        %v7272 = vrot.slane %v3361, 4
        %v7273 = vadd.f32 %v3361, %v7272
        %v7274 = vrot.slane %v7273, 2
        %v7275 = vadd.f32 %v7273, %v7274
        %v7276 = vrot.slane %v7275, 1
        %v7277 = vadd.f32 %v7275, %v7276
        %v7278 = vrot.slane %v3363, 4
        %v7279 = vadd.f32 %v3363, %v7278
        %v7280 = vrot.slane %v7279, 2
        %v7281 = vadd.f32 %v7279, %v7280
        %v7282 = vrot.slane %v7281, 1
        %v7283 = vadd.f32 %v7281, %v7282
        %v7284 = vrot.slane %v3365, 4
        %v7285 = vadd.f32 %v3365, %v7284
        %v7286 = vrot.slane %v7285, 2
        %v7287 = vadd.f32 %v7285, %v7286
        %v7288 = vrot.slane %v7287, 1
        %v7289 = vadd.f32 %v7287, %v7288
        %v7290 = vrot.slane %v3367, 4
        %v7291 = vadd.f32 %v3367, %v7290
        %v7292 = vrot.slane %v7291, 2
        %v7293 = vadd.f32 %v7291, %v7292
        %v7294 = vrot.slane %v7293, 1
        %v7295 = vadd.f32 %v7293, %v7294
        %v7296 = vrot.slane %v3369, 4
        %v7297 = vadd.f32 %v3369, %v7296
        %v7298 = vrot.slane %v7297, 2
        %v7299 = vadd.f32 %v7297, %v7298
        %v7300 = vrot.slane %v7299, 1
        %v7301 = vadd.f32 %v7299, %v7300
        %v7302 = vrot.slane %v3371, 4
        %v7303 = vadd.f32 %v3371, %v7302
        %v7304 = vrot.slane %v7303, 2
        %v7305 = vadd.f32 %v7303, %v7304
        %v7306 = vrot.slane %v7305, 1
        %v7307 = vadd.f32 %v7305, %v7306
        %v7308 = vrot.slane %v3373, 4
        %v7309 = vadd.f32 %v3373, %v7308
        %v7310 = vrot.slane %v7309, 2
        %v7311 = vadd.f32 %v7309, %v7310
        %v7312 = vrot.slane %v7311, 1
        %v7313 = vadd.f32 %v7311, %v7312
        %v7314 = vrot.slane %v3375, 4
        %v7315 = vadd.f32 %v3375, %v7314
        %v7316 = vrot.slane %v7315, 2
        %v7317 = vadd.f32 %v7315, %v7316
        %v7318 = vrot.slane %v7317, 1
        %v7319 = vadd.f32 %v7317, %v7318
        %v7320 = vrot.slane %v3377, 4
        %v7321 = vadd.f32 %v3377, %v7320
        %v7322 = vrot.slane %v7321, 2
        %v7323 = vadd.f32 %v7321, %v7322
        %v7324 = vrot.slane %v7323, 1
        %v7325 = vadd.f32 %v7323, %v7324
        %v7326 = vrot.slane %v3379, 4
        %v7327 = vadd.f32 %v3379, %v7326
        %v7328 = vrot.slane %v7327, 2
        %v7329 = vadd.f32 %v7327, %v7328
        %v7330 = vrot.slane %v7329, 1
        %v7331 = vadd.f32 %v7329, %v7330
        %v7332 = vrot.slane %v3381, 4
        %v7333 = vadd.f32 %v3381, %v7332
        %v7334 = vrot.slane %v7333, 2
        %v7335 = vadd.f32 %v7333, %v7334
        %v7336 = vrot.slane %v7335, 1
        %v7337 = vadd.f32 %v7335, %v7336
        %v7338 = vrot.slane %v3383, 4
        %v7339 = vadd.f32 %v3383, %v7338
        %v7340 = vrot.slane %v7339, 2
        %v7341 = vadd.f32 %v7339, %v7340
        %v7342 = vrot.slane %v7341, 1
        %v7343 = vadd.f32 %v7341, %v7342
        %v7344 = vrot.slane %v3385, 4
        %v7345 = vadd.f32 %v3385, %v7344
        %v7346 = vrot.slane %v7345, 2
        %v7347 = vadd.f32 %v7345, %v7346
        %v7348 = vrot.slane %v7347, 1
        %v7349 = vadd.f32 %v7347, %v7348
        %v7350 = vrot.slane %v3387, 4
        %v7351 = vadd.f32 %v3387, %v7350
        %v7352 = vrot.slane %v7351, 2
        %v7353 = vadd.f32 %v7351, %v7352
        %v7354 = vrot.slane %v7353, 1
        %v7355 = vadd.f32 %v7353, %v7354
        %v7356 = vrot.slane %v3389, 4
        %v7357 = vadd.f32 %v3389, %v7356
        %v7358 = vrot.slane %v7357, 2
        %v7359 = vadd.f32 %v7357, %v7358
        %v7360 = vrot.slane %v7359, 1
        %v7361 = vadd.f32 %v7359, %v7360
        %v7362 = vrot.slane %v3391, 4
        %v7363 = vadd.f32 %v3391, %v7362
        %v7364 = vrot.slane %v7363, 2
        %v7365 = vadd.f32 %v7363, %v7364
        %v7366 = vrot.slane %v7365, 1
        %v7367 = vadd.f32 %v7365, %v7366
        %v7368 = vrot.slane %v3393, 4
        %v7369 = vadd.f32 %v3393, %v7368
        %v7370 = vrot.slane %v7369, 2
        %v7371 = vadd.f32 %v7369, %v7370
        %v7372 = vrot.slane %v7371, 1
        %v7373 = vadd.f32 %v7371, %v7372
        %v7374 = vrot.slane %v3395, 4
        %v7375 = vadd.f32 %v3395, %v7374
        %v7376 = vrot.slane %v7375, 2
        %v7377 = vadd.f32 %v7375, %v7376
        %v7378 = vrot.slane %v7377, 1
        %v7379 = vadd.f32 %v7377, %v7378
        %v7380 = vrot.slane %v3397, 4
        %v7381 = vadd.f32 %v3397, %v7380
        %v7382 = vrot.slane %v7381, 2
        %v7383 = vadd.f32 %v7381, %v7382
        %v7384 = vrot.slane %v7383, 1
        %v7385 = vadd.f32 %v7383, %v7384
        %v7386 = vrot.slane %v3399, 4
        %v7387 = vadd.f32 %v3399, %v7386
        %v7388 = vrot.slane %v7387, 2
        %v7389 = vadd.f32 %v7387, %v7388
        %v7390 = vrot.slane %v7389, 1
        %v7391 = vadd.f32 %v7389, %v7390
        %v7392 = vrot.slane %v3401, 4
        %v7393 = vadd.f32 %v3401, %v7392
        %v7394 = vrot.slane %v7393, 2
        %v7395 = vadd.f32 %v7393, %v7394
        %v7396 = vrot.slane %v7395, 1
        %v7397 = vadd.f32 %v7395, %v7396
        %v7398 = vrot.slane %v3403, 4
        %v7399 = vadd.f32 %v3403, %v7398
        %v7400 = vrot.slane %v7399, 2
        %v7401 = vadd.f32 %v7399, %v7400
        %v7402 = vrot.slane %v7401, 1
        %v7403 = vadd.f32 %v7401, %v7402
        %v7404 = vrot.slane %v3405, 4
        %v7405 = vadd.f32 %v3405, %v7404
        %v7406 = vrot.slane %v7405, 2
        %v7407 = vadd.f32 %v7405, %v7406
        %v7408 = vrot.slane %v7407, 1
        %v7409 = vadd.f32 %v7407, %v7408
        %v7410 = vrot.slane %v3407, 4
        %v7411 = vadd.f32 %v3407, %v7410
        %v7412 = vrot.slane %v7411, 2
        %v7413 = vadd.f32 %v7411, %v7412
        %v7414 = vrot.slane %v7413, 1
        %v7415 = vadd.f32 %v7413, %v7414
        %v7416 = vrot.slane %v3409, 4
        %v7417 = vadd.f32 %v3409, %v7416
        %v7418 = vrot.slane %v7417, 2
        %v7419 = vadd.f32 %v7417, %v7418
        %v7420 = vrot.slane %v7419, 1
        %v7421 = vadd.f32 %v7419, %v7420
        %v7422 = vrot.slane %v3411, 4
        %v7423 = vadd.f32 %v3411, %v7422
        %v7424 = vrot.slane %v7423, 2
        %v7425 = vadd.f32 %v7423, %v7424
        %v7426 = vrot.slane %v7425, 1
        %v7427 = vadd.f32 %v7425, %v7426
        %v7428 = vrot.slane %v3413, 4
        %v7429 = vadd.f32 %v3413, %v7428
        %v7430 = vrot.slane %v7429, 2
        %v7431 = vadd.f32 %v7429, %v7430
        %v7432 = vrot.slane %v7431, 1
        %v7433 = vadd.f32 %v7431, %v7432
        %v7434 = vrot.slane %v3415, 4
        %v7435 = vadd.f32 %v3415, %v7434
        %v7436 = vrot.slane %v7435, 2
        %v7437 = vadd.f32 %v7435, %v7436
        %v7438 = vrot.slane %v7437, 1
        %v7439 = vadd.f32 %v7437, %v7438
        %v7440 = vrot.slane %v3417, 4
        %v7441 = vadd.f32 %v3417, %v7440
        %v7442 = vrot.slane %v7441, 2
        %v7443 = vadd.f32 %v7441, %v7442
        %v7444 = vrot.slane %v7443, 1
        %v7445 = vadd.f32 %v7443, %v7444
        %v7446 = vrot.slane %v3419, 4
        %v7447 = vadd.f32 %v3419, %v7446
        %v7448 = vrot.slane %v7447, 2
        %v7449 = vadd.f32 %v7447, %v7448
        %v7450 = vrot.slane %v7449, 1
        %v7451 = vadd.f32 %v7449, %v7450
        %v7452 = vrot.slane %v3421, 4
        %v7453 = vadd.f32 %v3421, %v7452
        %v7454 = vrot.slane %v7453, 2
        %v7455 = vadd.f32 %v7453, %v7454
        %v7456 = vrot.slane %v7455, 1
        %v7457 = vadd.f32 %v7455, %v7456
        %v7458 = vrot.slane %v3423, 4
        %v7459 = vadd.f32 %v3423, %v7458
        %v7460 = vrot.slane %v7459, 2
        %v7461 = vadd.f32 %v7459, %v7460
        %v7462 = vrot.slane %v7461, 1
        %v7463 = vadd.f32 %v7461, %v7462
        %v7464 = vrot.slane %v3425, 4
        %v7465 = vadd.f32 %v3425, %v7464
        %v7466 = vrot.slane %v7465, 2
        %v7467 = vadd.f32 %v7465, %v7466
        %v7468 = vrot.slane %v7467, 1
        %v7469 = vadd.f32 %v7467, %v7468
        %v7470 = vrot.slane %v3427, 4
        %v7471 = vadd.f32 %v3427, %v7470
        %v7472 = vrot.slane %v7471, 2
        %v7473 = vadd.f32 %v7471, %v7472
        %v7474 = vrot.slane %v7473, 1
        %v7475 = vadd.f32 %v7473, %v7474
        %v7476 = vrot.slane %v3429, 4
        %v7477 = vadd.f32 %v3429, %v7476
        %v7478 = vrot.slane %v7477, 2
        %v7479 = vadd.f32 %v7477, %v7478
        %v7480 = vrot.slane %v7479, 1
        %v7481 = vadd.f32 %v7479, %v7480
        %v7482 = vrot.slane %v3431, 4
        %v7483 = vadd.f32 %v3431, %v7482
        %v7484 = vrot.slane %v7483, 2
        %v7485 = vadd.f32 %v7483, %v7484
        %v7486 = vrot.slane %v7485, 1
        %v7487 = vadd.f32 %v7485, %v7486
        %v7488 = vrot.slane %v3433, 4
        %v7489 = vadd.f32 %v3433, %v7488
        %v7490 = vrot.slane %v7489, 2
        %v7491 = vadd.f32 %v7489, %v7490
        %v7492 = vrot.slane %v7491, 1
        %v7493 = vadd.f32 %v7491, %v7492
        %v7494 = vrot.slane %v3435, 4
        %v7495 = vadd.f32 %v3435, %v7494
        %v7496 = vrot.slane %v7495, 2
        %v7497 = vadd.f32 %v7495, %v7496
        %v7498 = vrot.slane %v7497, 1
        %v7499 = vadd.f32 %v7497, %v7498
        %v7500 = vrot.slane %v3437, 4
        %v7501 = vadd.f32 %v3437, %v7500
        %v7502 = vrot.slane %v7501, 2
        %v7503 = vadd.f32 %v7501, %v7502
        %v7504 = vrot.slane %v7503, 1
        %v7505 = vadd.f32 %v7503, %v7504
        %v7506 = vrot.slane %v3439, 4
        %v7507 = vadd.f32 %v3439, %v7506
        %v7508 = vrot.slane %v7507, 2
        %v7509 = vadd.f32 %v7507, %v7508
        %v7510 = vrot.slane %v7509, 1
        %v7511 = vadd.f32 %v7509, %v7510
        %v7512 = vrot.slane %v3441, 4
        %v7513 = vadd.f32 %v3441, %v7512
        %v7514 = vrot.slane %v7513, 2
        %v7515 = vadd.f32 %v7513, %v7514
        %v7516 = vrot.slane %v7515, 1
        %v7517 = vadd.f32 %v7515, %v7516
        %v7518 = vrot.slane %v3443, 4
        %v7519 = vadd.f32 %v3443, %v7518
        %v7520 = vrot.slane %v7519, 2
        %v7521 = vadd.f32 %v7519, %v7520
        %v7522 = vrot.slane %v7521, 1
        %v7523 = vadd.f32 %v7521, %v7522
        %v7524 = vrot.slane %v3445, 4
        %v7525 = vadd.f32 %v3445, %v7524
        %v7526 = vrot.slane %v7525, 2
        %v7527 = vadd.f32 %v7525, %v7526
        %v7528 = vrot.slane %v7527, 1
        %v7529 = vadd.f32 %v7527, %v7528
        %v7530 = vrot.slane %v3447, 4
        %v7531 = vadd.f32 %v3447, %v7530
        %v7532 = vrot.slane %v7531, 2
        %v7533 = vadd.f32 %v7531, %v7532
        %v7534 = vrot.slane %v7533, 1
        %v7535 = vadd.f32 %v7533, %v7534
        %v7536 = vrot.slane %v3449, 4
        %v7537 = vadd.f32 %v3449, %v7536
        %v7538 = vrot.slane %v7537, 2
        %v7539 = vadd.f32 %v7537, %v7538
        %v7540 = vrot.slane %v7539, 1
        %v7541 = vadd.f32 %v7539, %v7540
        %v7542 = vrot.slane %v3451, 4
        %v7543 = vadd.f32 %v3451, %v7542
        %v7544 = vrot.slane %v7543, 2
        %v7545 = vadd.f32 %v7543, %v7544
        %v7546 = vrot.slane %v7545, 1
        %v7547 = vadd.f32 %v7545, %v7546
        %v7548 = vrot.slane %v3453, 4
        %v7549 = vadd.f32 %v3453, %v7548
        %v7550 = vrot.slane %v7549, 2
        %v7551 = vadd.f32 %v7549, %v7550
        %v7552 = vrot.slane %v7551, 1
        %v7553 = vadd.f32 %v7551, %v7552
        %v7554 = vrot.slane %v3455, 4
        %v7555 = vadd.f32 %v3455, %v7554
        %v7556 = vrot.slane %v7555, 2
        %v7557 = vadd.f32 %v7555, %v7556
        %v7558 = vrot.slane %v7557, 1
        %v7559 = vadd.f32 %v7557, %v7558
        %v7560 = vrot.slane %v3457, 4
        %v7561 = vadd.f32 %v3457, %v7560
        %v7562 = vrot.slane %v7561, 2
        %v7563 = vadd.f32 %v7561, %v7562
        %v7564 = vrot.slane %v7563, 1
        %v7565 = vadd.f32 %v7563, %v7564
        %v7566 = vrot.slane %v3459, 4
        %v7567 = vadd.f32 %v3459, %v7566
        %v7568 = vrot.slane %v7567, 2
        %v7569 = vadd.f32 %v7567, %v7568
        %v7570 = vrot.slane %v7569, 1
        %v7571 = vadd.f32 %v7569, %v7570
        %v7572 = vrcp.pop %v6041
        %v7573 = vmul.f32 %v4505, %v7572
        %v7574 = vrcp.pop %v6047
        %v7575 = vmul.f32 %v4511, %v7574
        %v7576 = vrcp.pop %v6053
        %v7577 = vmul.f32 %v4517, %v7576
        %v7578 = vrcp.pop %v6059
        %v7579 = vmul.f32 %v4523, %v7578
        %v7580 = vrcp.pop %v6065
        %v7581 = vmul.f32 %v4529, %v7580
        %v7582 = vrcp.pop %v6071
        %v7583 = vmul.f32 %v4535, %v7582
        %v7584 = vrcp.pop %v6077
        %v7585 = vmul.f32 %v4541, %v7584
        %v7586 = vrcp.pop %v6083
        %v7587 = vmul.f32 %v4547, %v7586
        %v7588 = vrcp.pop %v6089
        %v7589 = vmul.f32 %v4553, %v7588
        %v7590 = vrcp.pop %v6095
        %v7591 = vmul.f32 %v4559, %v7590
        %v7592 = vrcp.pop %v6101
        %v7593 = vmul.f32 %v4565, %v7592
        %v7594 = vrcp.pop %v6107
        %v7595 = vmul.f32 %v4571, %v7594
        %v7596 = vrcp.pop %v6113
        %v7597 = vmul.f32 %v4577, %v7596
        %v7598 = vrcp.pop %v6119
        %v7599 = vmul.f32 %v4583, %v7598
        %v7600 = vrcp.pop %v6125
        %v7601 = vmul.f32 %v4589, %v7600
        %v7602 = vrcp.pop %v6131
        %v7603 = vmul.f32 %v4595, %v7602
        %v7604 = vrcp.pop %v6137
        %v7605 = vmul.f32 %v4601, %v7604
        %v7606 = vrcp.pop %v6143
        %v7607 = vmul.f32 %v4607, %v7606
        %v7608 = vrcp.pop %v6149
        %v7609 = vmul.f32 %v4613, %v7608
        %v7610 = vrcp.pop %v6155
        %v7611 = vmul.f32 %v4619, %v7610
        %v7612 = vrcp.pop %v6161
        %v7613 = vmul.f32 %v4625, %v7612
        %v7614 = vrcp.pop %v6167
        %v7615 = vmul.f32 %v4631, %v7614
        %v7616 = vrcp.pop %v6173
        %v7617 = vmul.f32 %v4637, %v7616
        %v7618 = vrcp.pop %v6179
        %v7619 = vmul.f32 %v4643, %v7618
        %v7620 = vrcp.pop %v6185
        %v7621 = vmul.f32 %v4649, %v7620
        %v7622 = vrcp.pop %v6191
        %v7623 = vmul.f32 %v4655, %v7622
        %v7624 = vrcp.pop %v6197
        %v7625 = vmul.f32 %v4661, %v7624
        %v7626 = vrcp.pop %v6203
        %v7627 = vmul.f32 %v4667, %v7626
        %v7628 = vrcp.pop %v6209
        %v7629 = vmul.f32 %v4673, %v7628
        %v7630 = vrcp.pop %v6215
        %v7631 = vmul.f32 %v4679, %v7630
        %v7632 = vrcp.pop %v6221
        %v7633 = vmul.f32 %v4685, %v7632
        %v7634 = vrcp.pop %v6227
        %v7635 = vmul.f32 %v4691, %v7634
        %v7636 = vrcp.pop %v6233
        %v7637 = vmul.f32 %v4697, %v7636
        %v7638 = vrcp.pop %v6239
        %v7639 = vmul.f32 %v4703, %v7638
        %v7640 = vrcp.pop %v6245
        %v7641 = vmul.f32 %v4709, %v7640
        %v7642 = vrcp.pop %v6251
        %v7643 = vmul.f32 %v4715, %v7642
        %v7644 = vrcp.pop %v6257
        %v7645 = vmul.f32 %v4721, %v7644
        %v7646 = vrcp.pop %v6263
        %v7647 = vmul.f32 %v4727, %v7646
        %v7648 = vrcp.pop %v6269
        %v7649 = vmul.f32 %v4733, %v7648
        %v7650 = vrcp.pop %v6275
        %v7651 = vmul.f32 %v4739, %v7650
        %v7652 = vrcp.pop %v6281
        %v7653 = vmul.f32 %v4745, %v7652
        %v7654 = vrcp.pop %v6287
        %v7655 = vmul.f32 %v4751, %v7654
        %v7656 = vrcp.pop %v6293
        %v7657 = vmul.f32 %v4757, %v7656
        %v7658 = vrcp.pop %v6299
        %v7659 = vmul.f32 %v4763, %v7658
        %v7660 = vrcp.pop %v6305
        %v7661 = vmul.f32 %v4769, %v7660
        %v7662 = vrcp.pop %v6311
        %v7663 = vmul.f32 %v4775, %v7662
        %v7664 = vrcp.pop %v6317
        %v7665 = vmul.f32 %v4781, %v7664
        %v7666 = vrcp.pop %v6323
        %v7667 = vmul.f32 %v4787, %v7666
        %v7668 = vrcp.pop %v6329
        %v7669 = vmul.f32 %v4793, %v7668
        %v7670 = vrcp.pop %v6335
        %v7671 = vmul.f32 %v4799, %v7670
        %v7672 = vrcp.pop %v6341
        %v7673 = vmul.f32 %v4805, %v7672
        %v7674 = vrcp.pop %v6347
        %v7675 = vmul.f32 %v4811, %v7674
        %v7676 = vrcp.pop %v6353
        %v7677 = vmul.f32 %v4817, %v7676
        %v7678 = vrcp.pop %v6359
        %v7679 = vmul.f32 %v4823, %v7678
        %v7680 = vrcp.pop %v6365
        %v7681 = vmul.f32 %v4829, %v7680
        %v7682 = vrcp.pop %v6371
        %v7683 = vmul.f32 %v4835, %v7682
        %v7684 = vrcp.pop %v6377
        %v7685 = vmul.f32 %v4841, %v7684
        %v7686 = vrcp.pop %v6383
        %v7687 = vmul.f32 %v4847, %v7686
        %v7688 = vrcp.pop %v6389
        %v7689 = vmul.f32 %v4853, %v7688
        %v7690 = vrcp.pop %v6395
        %v7691 = vmul.f32 %v4859, %v7690
        %v7692 = vrcp.pop %v6401
        %v7693 = vmul.f32 %v4865, %v7692
        %v7694 = vrcp.pop %v6407
        %v7695 = vmul.f32 %v4871, %v7694
        %v7696 = vrcp.pop %v6413
        %v7697 = vmul.f32 %v4877, %v7696
        %v7698 = vrcp.pop %v6419
        %v7699 = vmul.f32 %v4883, %v7698
        %v7700 = vrcp.pop %v6425
        %v7701 = vmul.f32 %v4889, %v7700
        %v7702 = vrcp.pop %v6431
        %v7703 = vmul.f32 %v4895, %v7702
        %v7704 = vrcp.pop %v6437
        %v7705 = vmul.f32 %v4901, %v7704
        %v7706 = vrcp.pop %v6443
        %v7707 = vmul.f32 %v4907, %v7706
        %v7708 = vrcp.pop %v6449
        %v7709 = vmul.f32 %v4913, %v7708
        %v7710 = vrcp.pop %v6455
        %v7711 = vmul.f32 %v4919, %v7710
        %v7712 = vrcp.pop %v6461
        %v7713 = vmul.f32 %v4925, %v7712
        %v7714 = vrcp.pop %v6467
        %v7715 = vmul.f32 %v4931, %v7714
        %v7716 = vrcp.pop %v6473
        %v7717 = vmul.f32 %v4937, %v7716
        %v7718 = vrcp.pop %v6479
        %v7719 = vmul.f32 %v4943, %v7718
        %v7720 = vrcp.pop %v6485
        %v7721 = vmul.f32 %v4949, %v7720
        %v7722 = vrcp.pop %v6491
        %v7723 = vmul.f32 %v4955, %v7722
        %v7724 = vrcp.pop %v6497
        %v7725 = vmul.f32 %v4961, %v7724
        %v7726 = vrcp.pop %v6503
        %v7727 = vmul.f32 %v4967, %v7726
        %v7728 = vrcp.pop %v6509
        %v7729 = vmul.f32 %v4973, %v7728
        %v7730 = vrcp.pop %v6515
        %v7731 = vmul.f32 %v4979, %v7730
        %v7732 = vrcp.pop %v6521
        %v7733 = vmul.f32 %v4985, %v7732
        %v7734 = vrcp.pop %v6527
        %v7735 = vmul.f32 %v4991, %v7734
        %v7736 = vrcp.pop %v6533
        %v7737 = vmul.f32 %v4997, %v7736
        %v7738 = vrcp.pop %v6539
        %v7739 = vmul.f32 %v5003, %v7738
        %v7740 = vrcp.pop %v6545
        %v7741 = vmul.f32 %v5009, %v7740
        %v7742 = vrcp.pop %v6551
        %v7743 = vmul.f32 %v5015, %v7742
        %v7744 = vrcp.pop %v6557
        %v7745 = vmul.f32 %v5021, %v7744
        %v7746 = vrcp.pop %v6563
        %v7747 = vmul.f32 %v5027, %v7746
        %v7748 = vrcp.pop %v6569
        %v7749 = vmul.f32 %v5033, %v7748
        %v7750 = vrcp.pop %v6575
        %v7751 = vmul.f32 %v5039, %v7750
        %v7752 = vrcp.pop %v6581
        %v7753 = vmul.f32 %v5045, %v7752
        %v7754 = vrcp.pop %v6587
        %v7755 = vmul.f32 %v5051, %v7754
        %v7756 = vrcp.pop %v6593
        %v7757 = vmul.f32 %v5057, %v7756
        %v7758 = vrcp.pop %v6599
        %v7759 = vmul.f32 %v5063, %v7758
        %v7760 = vrcp.pop %v6605
        %v7761 = vmul.f32 %v5069, %v7760
        %v7762 = vrcp.pop %v6611
        %v7763 = vmul.f32 %v5075, %v7762
        %v7764 = vrcp.pop %v6617
        %v7765 = vmul.f32 %v5081, %v7764
        %v7766 = vrcp.pop %v6623
        %v7767 = vmul.f32 %v5087, %v7766
        %v7768 = vrcp.pop %v6629
        %v7769 = vmul.f32 %v5093, %v7768
        %v7770 = vrcp.pop %v6635
        %v7771 = vmul.f32 %v5099, %v7770
        %v7772 = vrcp.pop %v6641
        %v7773 = vmul.f32 %v5105, %v7772
        %v7774 = vrcp.pop %v6647
        %v7775 = vmul.f32 %v5111, %v7774
        %v7776 = vrcp.pop %v6653
        %v7777 = vmul.f32 %v5117, %v7776
        %v7778 = vrcp.pop %v6659
        %v7779 = vmul.f32 %v5123, %v7778
        %v7780 = vrcp.pop %v6665
        %v7781 = vmul.f32 %v5129, %v7780
        %v7782 = vrcp.pop %v6671
        %v7783 = vmul.f32 %v5135, %v7782
        %v7784 = vrcp.pop %v6677
        %v7785 = vmul.f32 %v5141, %v7784
        %v7786 = vrcp.pop %v6683
        %v7787 = vmul.f32 %v5147, %v7786
        %v7788 = vrcp.pop %v6689
        %v7789 = vmul.f32 %v5153, %v7788
        %v7790 = vrcp.pop %v6695
        %v7791 = vmul.f32 %v5159, %v7790
        %v7792 = vrcp.pop %v6701
        %v7793 = vmul.f32 %v5165, %v7792
        %v7794 = vrcp.pop %v6707
        %v7795 = vmul.f32 %v5171, %v7794
        %v7796 = vrcp.pop %v6713
        %v7797 = vmul.f32 %v5177, %v7796
        %v7798 = vrcp.pop %v6719
        %v7799 = vmul.f32 %v5183, %v7798
        %v7800 = vrcp.pop %v6725
        %v7801 = vmul.f32 %v5189, %v7800
        %v7802 = vrcp.pop %v6731
        %v7803 = vmul.f32 %v5195, %v7802
        %v7804 = vrcp.pop %v6737
        %v7805 = vmul.f32 %v5201, %v7804
        %v7806 = vrcp.pop %v6743
        %v7807 = vmul.f32 %v5207, %v7806
        %v7808 = vrcp.pop %v6749
        %v7809 = vmul.f32 %v5213, %v7808
        %v7810 = vrcp.pop %v6755
        %v7811 = vmul.f32 %v5219, %v7810
        %v7812 = vrcp.pop %v6761
        %v7813 = vmul.f32 %v5225, %v7812
        %v7814 = vrcp.pop %v6767
        %v7815 = vmul.f32 %v5231, %v7814
        %v7816 = vrcp.pop %v6773
        %v7817 = vmul.f32 %v5237, %v7816
        %v7818 = vrcp.pop %v6779
        %v7819 = vmul.f32 %v5243, %v7818
        %v7820 = vrcp.pop %v6785
        %v7821 = vmul.f32 %v5249, %v7820
        %v7822 = vrcp.pop %v6791
        %v7823 = vmul.f32 %v5255, %v7822
        %v7824 = vrcp.pop %v6797
        %v7825 = vmul.f32 %v5261, %v7824
        %v7826 = vrcp.pop %v6803
        %v7827 = vmul.f32 %v5267, %v7826
        %v7828 = vrcp.pop %v6809
        %v7829 = vmul.f32 %v5273, %v7828
        %v7830 = vrcp.pop %v6815
        %v7831 = vmul.f32 %v5279, %v7830
        %v7832 = vrcp.pop %v6821
        %v7833 = vmul.f32 %v5285, %v7832
        %v7834 = vrcp.pop %v6827
        %v7835 = vmul.f32 %v5291, %v7834
        %v7836 = vrcp.pop %v6833
        %v7837 = vmul.f32 %v5297, %v7836
        %v7838 = vrcp.pop %v6839
        %v7839 = vmul.f32 %v5303, %v7838
        %v7840 = vrcp.pop %v6845
        %v7841 = vmul.f32 %v5309, %v7840
        %v7842 = vrcp.pop %v6851
        %v7843 = vmul.f32 %v5315, %v7842
        %v7844 = vrcp.pop %v6857
        %v7845 = vmul.f32 %v5321, %v7844
        %v7846 = vrcp.pop %v6863
        %v7847 = vmul.f32 %v5327, %v7846
        %v7848 = vrcp.pop %v6869
        %v7849 = vmul.f32 %v5333, %v7848
        %v7850 = vrcp.pop %v6875
        %v7851 = vmul.f32 %v5339, %v7850
        %v7852 = vrcp.pop %v6881
        %v7853 = vmul.f32 %v5345, %v7852
        %v7854 = vrcp.pop %v6887
        %v7855 = vmul.f32 %v5351, %v7854
        %v7856 = vrcp.pop %v6893
        %v7857 = vmul.f32 %v5357, %v7856
        %v7858 = vrcp.pop %v6899
        %v7859 = vmul.f32 %v5363, %v7858
        %v7860 = vrcp.pop %v6905
        %v7861 = vmul.f32 %v5369, %v7860
        %v7862 = vrcp.pop %v6911
        %v7863 = vmul.f32 %v5375, %v7862
        %v7864 = vrcp.pop %v6917
        %v7865 = vmul.f32 %v5381, %v7864
        %v7866 = vrcp.pop %v6923
        %v7867 = vmul.f32 %v5387, %v7866
        %v7868 = vrcp.pop %v6929
        %v7869 = vmul.f32 %v5393, %v7868
        %v7870 = vrcp.pop %v6935
        %v7871 = vmul.f32 %v5399, %v7870
        %v7872 = vrcp.pop %v6941
        %v7873 = vmul.f32 %v5405, %v7872
        %v7874 = vrcp.pop %v6947
        %v7875 = vmul.f32 %v5411, %v7874
        %v7876 = vrcp.pop %v6953
        %v7877 = vmul.f32 %v5417, %v7876
        %v7878 = vrcp.pop %v6959
        %v7879 = vmul.f32 %v5423, %v7878
        %v7880 = vrcp.pop %v6965
        %v7881 = vmul.f32 %v5429, %v7880
        %v7882 = vrcp.pop %v6971
        %v7883 = vmul.f32 %v5435, %v7882
        %v7884 = vrcp.pop %v6977
        %v7885 = vmul.f32 %v5441, %v7884
        %v7886 = vrcp.pop %v6983
        %v7887 = vmul.f32 %v5447, %v7886
        %v7888 = vrcp.pop %v6989
        %v7889 = vmul.f32 %v5453, %v7888
        %v7890 = vrcp.pop %v6995
        %v7891 = vmul.f32 %v5459, %v7890
        %v7892 = vrcp.pop %v7001
        %v7893 = vmul.f32 %v5465, %v7892
        %v7894 = vrcp.pop %v7007
        %v7895 = vmul.f32 %v5471, %v7894
        %v7896 = vrcp.pop %v7013
        %v7897 = vmul.f32 %v5477, %v7896
        %v7898 = vrcp.pop %v7019
        %v7899 = vmul.f32 %v5483, %v7898
        %v7900 = vrcp.pop %v7025
        %v7901 = vmul.f32 %v5489, %v7900
        %v7902 = vrcp.pop %v7031
        %v7903 = vmul.f32 %v5495, %v7902
        %v7904 = vrcp.pop %v7037
        %v7905 = vmul.f32 %v5501, %v7904
        %v7906 = vrcp.pop %v7043
        %v7907 = vmul.f32 %v5507, %v7906
        %v7908 = vrcp.pop %v7049
        %v7909 = vmul.f32 %v5513, %v7908
        %v7910 = vrcp.pop %v7055
        %v7911 = vmul.f32 %v5519, %v7910
        %v7912 = vrcp.pop %v7061
        %v7913 = vmul.f32 %v5525, %v7912
        %v7914 = vrcp.pop %v7067
        %v7915 = vmul.f32 %v5531, %v7914
        %v7916 = vrcp.pop %v7073
        %v7917 = vmul.f32 %v5537, %v7916
        %v7918 = vrcp.pop %v7079
        %v7919 = vmul.f32 %v5543, %v7918
        %v7920 = vrcp.pop %v7085
        %v7921 = vmul.f32 %v5549, %v7920
        %v7922 = vrcp.pop %v7091
        %v7923 = vmul.f32 %v5555, %v7922
        %v7924 = vrcp.pop %v7097
        %v7925 = vmul.f32 %v5561, %v7924
        %v7926 = vrcp.pop %v7103
        %v7927 = vmul.f32 %v5567, %v7926
        %v7928 = vrcp.pop %v7109
        %v7929 = vmul.f32 %v5573, %v7928
        %v7930 = vrcp.pop %v7115
        %v7931 = vmul.f32 %v5579, %v7930
        %v7932 = vrcp.pop %v7121
        %v7933 = vmul.f32 %v5585, %v7932
        %v7934 = vrcp.pop %v7127
        %v7935 = vmul.f32 %v5591, %v7934
        %v7936 = vrcp.pop %v7133
        %v7937 = vmul.f32 %v5597, %v7936
        %v7938 = vrcp.pop %v7139
        %v7939 = vmul.f32 %v5603, %v7938
        %v7940 = vrcp.pop %v7145
        %v7941 = vmul.f32 %v5609, %v7940
        %v7942 = vrcp.pop %v7151
        %v7943 = vmul.f32 %v5615, %v7942
        %v7944 = vrcp.pop %v7157
        %v7945 = vmul.f32 %v5621, %v7944
        %v7946 = vrcp.pop %v7163
        %v7947 = vmul.f32 %v5627, %v7946
        %v7948 = vrcp.pop %v7169
        %v7949 = vmul.f32 %v5633, %v7948
        %v7950 = vrcp.pop %v7175
        %v7951 = vmul.f32 %v5639, %v7950
        %v7952 = vrcp.pop %v7181
        %v7953 = vmul.f32 %v5645, %v7952
        %v7954 = vrcp.pop %v7187
        %v7955 = vmul.f32 %v5651, %v7954
        %v7956 = vrcp.pop %v7193
        %v7957 = vmul.f32 %v5657, %v7956
        %v7958 = vrcp.pop %v7199
        %v7959 = vmul.f32 %v5663, %v7958
        %v7960 = vrcp.pop %v7205
        %v7961 = vmul.f32 %v5669, %v7960
        %v7962 = vrcp.pop %v7211
        %v7963 = vmul.f32 %v5675, %v7962
        %v7964 = vrcp.pop %v7217
        %v7965 = vmul.f32 %v5681, %v7964
        %v7966 = vrcp.pop %v7223
        %v7967 = vmul.f32 %v5687, %v7966
        %v7968 = vrcp.pop %v7229
        %v7969 = vmul.f32 %v5693, %v7968
        %v7970 = vrcp.pop %v7235
        %v7971 = vmul.f32 %v5699, %v7970
        %v7972 = vrcp.pop %v7241
        %v7973 = vmul.f32 %v5705, %v7972
        %v7974 = vrcp.pop %v7247
        %v7975 = vmul.f32 %v5711, %v7974
        %v7976 = vrcp.pop %v7253
        %v7977 = vmul.f32 %v5717, %v7976
        %v7978 = vrcp.pop %v7259
        %v7979 = vmul.f32 %v5723, %v7978
        %v7980 = vrcp.pop %v7265
        %v7981 = vmul.f32 %v5729, %v7980
        %v7982 = vrcp.pop %v7271
        %v7983 = vmul.f32 %v5735, %v7982
        %v7984 = vrcp.pop %v7277
        %v7985 = vmul.f32 %v5741, %v7984
        %v7986 = vrcp.pop %v7283
        %v7987 = vmul.f32 %v5747, %v7986
        %v7988 = vrcp.pop %v7289
        %v7989 = vmul.f32 %v5753, %v7988
        %v7990 = vrcp.pop %v7295
        %v7991 = vmul.f32 %v5759, %v7990
        %v7992 = vrcp.pop %v7301
        %v7993 = vmul.f32 %v5765, %v7992
        %v7994 = vrcp.pop %v7307
        %v7995 = vmul.f32 %v5771, %v7994
        %v7996 = vrcp.pop %v7313
        %v7997 = vmul.f32 %v5777, %v7996
        %v7998 = vrcp.pop %v7319
        %v7999 = vmul.f32 %v5783, %v7998
        %v8000 = vrcp.pop %v7325
        %v8001 = vmul.f32 %v5789, %v8000
        %v8002 = vrcp.pop %v7331
        %v8003 = vmul.f32 %v5795, %v8002
        %v8004 = vrcp.pop %v7337
        %v8005 = vmul.f32 %v5801, %v8004
        %v8006 = vrcp.pop %v7343
        %v8007 = vmul.f32 %v5807, %v8006
        %v8008 = vrcp.pop %v7349
        %v8009 = vmul.f32 %v5813, %v8008
        %v8010 = vrcp.pop %v7355
        %v8011 = vmul.f32 %v5819, %v8010
        %v8012 = vrcp.pop %v7361
        %v8013 = vmul.f32 %v5825, %v8012
        %v8014 = vrcp.pop %v7367
        %v8015 = vmul.f32 %v5831, %v8014
        %v8016 = vrcp.pop %v7373
        %v8017 = vmul.f32 %v5837, %v8016
        %v8018 = vrcp.pop %v7379
        %v8019 = vmul.f32 %v5843, %v8018
        %v8020 = vrcp.pop %v7385
        %v8021 = vmul.f32 %v5849, %v8020
        %v8022 = vrcp.pop %v7391
        %v8023 = vmul.f32 %v5855, %v8022
        %v8024 = vrcp.pop %v7397
        %v8025 = vmul.f32 %v5861, %v8024
        %v8026 = vrcp.pop %v7403
        %v8027 = vmul.f32 %v5867, %v8026
        %v8028 = vrcp.pop %v7409
        %v8029 = vmul.f32 %v5873, %v8028
        %v8030 = vrcp.pop %v7415
        %v8031 = vmul.f32 %v5879, %v8030
        %v8032 = vrcp.pop %v7421
        %v8033 = vmul.f32 %v5885, %v8032
        %v8034 = vrcp.pop %v7427
        %v8035 = vmul.f32 %v5891, %v8034
        %v8036 = vrcp.pop %v7433
        %v8037 = vmul.f32 %v5897, %v8036
        %v8038 = vrcp.pop %v7439
        %v8039 = vmul.f32 %v5903, %v8038
        %v8040 = vrcp.pop %v7445
        %v8041 = vmul.f32 %v5909, %v8040
        %v8042 = vrcp.pop %v7451
        %v8043 = vmul.f32 %v5915, %v8042
        %v8044 = vrcp.pop %v7457
        %v8045 = vmul.f32 %v5921, %v8044
        %v8046 = vrcp.pop %v7463
        %v8047 = vmul.f32 %v5927, %v8046
        %v8048 = vrcp.pop %v7469
        %v8049 = vmul.f32 %v5933, %v8048
        %v8050 = vrcp.pop %v7475
        %v8051 = vmul.f32 %v5939, %v8050
        %v8052 = vrcp.pop %v7481
        %v8053 = vmul.f32 %v5945, %v8052
        %v8054 = vrcp.pop %v7487
        %v8055 = vmul.f32 %v5951, %v8054
        %v8056 = vrcp.pop %v7493
        %v8057 = vmul.f32 %v5957, %v8056
        %v8058 = vrcp.pop %v7499
        %v8059 = vmul.f32 %v5963, %v8058
        %v8060 = vrcp.pop %v7505
        %v8061 = vmul.f32 %v5969, %v8060
        %v8062 = vrcp.pop %v7511
        %v8063 = vmul.f32 %v5975, %v8062
        %v8064 = vrcp.pop %v7517
        %v8065 = vmul.f32 %v5981, %v8064
        %v8066 = vrcp.pop %v7523
        %v8067 = vmul.f32 %v5987, %v8066
        %v8068 = vrcp.pop %v7529
        %v8069 = vmul.f32 %v5993, %v8068
        %v8070 = vrcp.pop %v7535
        %v8071 = vmul.f32 %v5999, %v8070
        %v8072 = vrcp.pop %v7541
        %v8073 = vmul.f32 %v6005, %v8072
        %v8074 = vrcp.pop %v7547
        %v8075 = vmul.f32 %v6011, %v8074
        %v8076 = vrcp.pop %v7553
        %v8077 = vmul.f32 %v6017, %v8076
        %v8078 = vrcp.pop %v7559
        %v8079 = vmul.f32 %v6023, %v8078
        %v8080 = vrcp.pop %v7565
        %v8081 = vmul.f32 %v6029, %v8080
        %v8082 = vrcp.pop %v7571
        %v8083 = vmul.f32 %v6035, %v8082
        %v8084 = vld [vmem:[%s375] sm:$0xf]
        %v8085 = vld [vmem:[%s375 + $0x4] sm:$0xf]
        %v8086 = vld [vmem:[%s375 + $0x8] sm:$0xf]
        %v8087 = vld [vmem:[%s375 + $0xc] sm:$0xf]
        %v8088 = vld [vmem:[%s375 + $0x10] sm:$0xf]
        %v8089 = vld [vmem:[%s375 + $0x14] sm:$0xf]
        %v8090 = vld [vmem:[%s375 + $0x18] sm:$0xf]
        %v8091 = vld [vmem:[%s375 + $0x1c] sm:$0xf]
        %v8092 = vld [vmem:[%s375 + $0x20] sm:$0xf]
        %v8093 = vld [vmem:[%s375 + $0x24] sm:$0xf]
        %v8094 = vld [vmem:[%s375 + $0x28] sm:$0xf]
        %v8095 = vld [vmem:[%s375 + $0x2c] sm:$0xf]
        %v8096 = vld [vmem:[%s375 + $0x30] sm:$0xf]
        %v8097 = vld [vmem:[%s375 + $0x34] sm:$0xf]
        %v8098 = vld [vmem:[%s375 + $0x38] sm:$0xf]
        %v8099 = vld [vmem:[%s375 + $0x3c] sm:$0xf]
        %v8100 = vld [vmem:[%s375 + $0x40] sm:$0xf]
        %v8101 = vld [vmem:[%s375 + $0x44] sm:$0xf]
        %v8102 = vld [vmem:[%s375 + $0x48] sm:$0xf]
        %v8103 = vld [vmem:[%s375 + $0x4c] sm:$0xf]
        %v8104 = vld [vmem:[%s375 + $0x50] sm:$0xf]
        %v8105 = vld [vmem:[%s375 + $0x54] sm:$0xf]
        %v8106 = vld [vmem:[%s375 + $0x58] sm:$0xf]
        %v8107 = vld [vmem:[%s375 + $0x5c] sm:$0xf]
        %v8108 = vld [vmem:[%s375 + $0x60] sm:$0xf]
        %v8109 = vld [vmem:[%s375 + $0x64] sm:$0xf]
        %v8110 = vld [vmem:[%s375 + $0x68] sm:$0xf]
        %v8111 = vld [vmem:[%s375 + $0x6c] sm:$0xf]
        %v8112 = vld [vmem:[%s375 + $0x70] sm:$0xf]
        %v8113 = vld [vmem:[%s375 + $0x74] sm:$0xf]
        %v8114 = vld [vmem:[%s375 + $0x78] sm:$0xf]
        %v8115 = vld [vmem:[%s375 + $0x7c] sm:$0xf]
        %8117 = vset.pattern.permute.xlu0 0
        %8118 = vperm.xlu0 %8117, %v8084
        %v8119 = vpop.permute.xlu0 %8118
        %8121 = vset.pattern.permute.xlu0 0
        %8122 = vperm.xlu0 %8121, %v8085
        %v8123 = vpop.permute.xlu0 %8122
        %8125 = vset.pattern.permute.xlu0 0
        %8126 = vperm.xlu0 %8125, %v8086
        %v8127 = vpop.permute.xlu0 %8126
        %8129 = vset.pattern.permute.xlu0 0
        %8130 = vperm.xlu0 %8129, %v8087
        %v8131 = vpop.permute.xlu0 %8130
        %8133 = vset.pattern.permute.xlu0 0
        %8134 = vperm.xlu0 %8133, %v8088
        %v8135 = vpop.permute.xlu0 %8134
        %8137 = vset.pattern.permute.xlu0 0
        %8138 = vperm.xlu0 %8137, %v8089
        %v8139 = vpop.permute.xlu0 %8138
        %8141 = vset.pattern.permute.xlu0 0
        %8142 = vperm.xlu0 %8141, %v8090
        %v8143 = vpop.permute.xlu0 %8142
        %8145 = vset.pattern.permute.xlu0 0
        %8146 = vperm.xlu0 %8145, %v8091
        %v8147 = vpop.permute.xlu0 %8146
        %8149 = vset.pattern.permute.xlu0 0
        %8150 = vperm.xlu0 %8149, %v8092
        %v8151 = vpop.permute.xlu0 %8150
        %8153 = vset.pattern.permute.xlu0 0
        %8154 = vperm.xlu0 %8153, %v8093
        %v8155 = vpop.permute.xlu0 %8154
        %8157 = vset.pattern.permute.xlu0 0
        %8158 = vperm.xlu0 %8157, %v8094
        %v8159 = vpop.permute.xlu0 %8158
        %8161 = vset.pattern.permute.xlu0 0
        %8162 = vperm.xlu0 %8161, %v8095
        %v8163 = vpop.permute.xlu0 %8162
        %8165 = vset.pattern.permute.xlu0 0
        %8166 = vperm.xlu0 %8165, %v8096
        %v8167 = vpop.permute.xlu0 %8166
        %8169 = vset.pattern.permute.xlu0 0
        %8170 = vperm.xlu0 %8169, %v8097
        %v8171 = vpop.permute.xlu0 %8170
        %8173 = vset.pattern.permute.xlu0 0
        %8174 = vperm.xlu0 %8173, %v8098
        %v8175 = vpop.permute.xlu0 %8174
        %8177 = vset.pattern.permute.xlu0 0
        %8178 = vperm.xlu0 %8177, %v8099
        %v8179 = vpop.permute.xlu0 %8178
        %8181 = vset.pattern.permute.xlu0 0
        %8182 = vperm.xlu0 %8181, %v8100
        %v8183 = vpop.permute.xlu0 %8182
        %8185 = vset.pattern.permute.xlu0 0
        %8186 = vperm.xlu0 %8185, %v8101
        %v8187 = vpop.permute.xlu0 %8186
        %8189 = vset.pattern.permute.xlu0 0
        %8190 = vperm.xlu0 %8189, %v8102
        %v8191 = vpop.permute.xlu0 %8190
        %8193 = vset.pattern.permute.xlu0 0
        %8194 = vperm.xlu0 %8193, %v8103
        %v8195 = vpop.permute.xlu0 %8194
        %8197 = vset.pattern.permute.xlu0 0
        %8198 = vperm.xlu0 %8197, %v8104
        %v8199 = vpop.permute.xlu0 %8198
        %8201 = vset.pattern.permute.xlu0 0
        %8202 = vperm.xlu0 %8201, %v8105
        %v8203 = vpop.permute.xlu0 %8202
        %8205 = vset.pattern.permute.xlu0 0
        %8206 = vperm.xlu0 %8205, %v8106
        %v8207 = vpop.permute.xlu0 %8206
        %8209 = vset.pattern.permute.xlu0 0
        %8210 = vperm.xlu0 %8209, %v8107
        %v8211 = vpop.permute.xlu0 %8210
        %8213 = vset.pattern.permute.xlu0 0
        %8214 = vperm.xlu0 %8213, %v8108
        %v8215 = vpop.permute.xlu0 %8214
        %8217 = vset.pattern.permute.xlu0 0
        %8218 = vperm.xlu0 %8217, %v8109
        %v8219 = vpop.permute.xlu0 %8218
        %8221 = vset.pattern.permute.xlu0 0
        %8222 = vperm.xlu0 %8221, %v8110
        %v8223 = vpop.permute.xlu0 %8222
        %8225 = vset.pattern.permute.xlu0 0
        %8226 = vperm.xlu0 %8225, %v8111
        %v8227 = vpop.permute.xlu0 %8226
        %8229 = vset.pattern.permute.xlu0 0
        %8230 = vperm.xlu0 %8229, %v8112
        %v8231 = vpop.permute.xlu0 %8230
        %8233 = vset.pattern.permute.xlu0 0
        %8234 = vperm.xlu0 %8233, %v8113
        %v8235 = vpop.permute.xlu0 %8234
        %8237 = vset.pattern.permute.xlu0 0
        %8238 = vperm.xlu0 %8237, %v8114
        %v8239 = vpop.permute.xlu0 %8238
        %8241 = vset.pattern.permute.xlu0 0
        %8242 = vperm.xlu0 %8241, %v8115
        %v8243 = vpop.permute.xlu0 %8242
        %v8244 = vrot.slane %v8119, 1
        %v8245 = vrot.slane %v8119, 2
        %v8246 = vrot.slane %v8119, 3
        %v8247 = vrot.slane %v8123, 1
        %v8248 = vrot.slane %v8123, 2
        %v8249 = vrot.slane %v8123, 3
        %v8250 = vrot.slane %v8127, 1
        %v8251 = vrot.slane %v8127, 2
        %v8252 = vrot.slane %v8127, 3
        %v8253 = vrot.slane %v8131, 1
        %v8254 = vrot.slane %v8131, 2
        %v8255 = vrot.slane %v8131, 3
        %v8256 = vrot.slane %v8135, 1
        %v8257 = vrot.slane %v8135, 2
        %v8258 = vrot.slane %v8135, 3
        %v8259 = vrot.slane %v8139, 1
        %v8260 = vrot.slane %v8139, 2
        %v8261 = vrot.slane %v8139, 3
        %v8262 = vrot.slane %v8143, 1
        %v8263 = vrot.slane %v8143, 2
        %v8264 = vrot.slane %v8143, 3
        %v8265 = vrot.slane %v8147, 1
        %v8266 = vrot.slane %v8147, 2
        %v8267 = vrot.slane %v8147, 3
        %v8268 = vrot.slane %v8151, 1
        %v8269 = vrot.slane %v8151, 2
        %v8270 = vrot.slane %v8151, 3
        %v8271 = vrot.slane %v8155, 1
        %v8272 = vrot.slane %v8155, 2
        %v8273 = vrot.slane %v8155, 3
        %v8274 = vrot.slane %v8159, 1
        %v8275 = vrot.slane %v8159, 2
        %v8276 = vrot.slane %v8159, 3
        %v8277 = vrot.slane %v8163, 1
        %v8278 = vrot.slane %v8163, 2
        %v8279 = vrot.slane %v8163, 3
        %v8280 = vrot.slane %v8167, 1
        %v8281 = vrot.slane %v8167, 2
        %v8282 = vrot.slane %v8167, 3
        %v8283 = vrot.slane %v8171, 1
        %v8284 = vrot.slane %v8171, 2
        %v8285 = vrot.slane %v8171, 3
        %v8286 = vrot.slane %v8175, 1
        %v8287 = vrot.slane %v8175, 2
        %v8288 = vrot.slane %v8175, 3
        %v8289 = vrot.slane %v8179, 1
        %v8290 = vrot.slane %v8179, 2
        %v8291 = vrot.slane %v8179, 3
        %v8292 = vrot.slane %v8183, 1
        %v8293 = vrot.slane %v8183, 2
        %v8294 = vrot.slane %v8183, 3
        %v8295 = vrot.slane %v8187, 1
        %v8296 = vrot.slane %v8187, 2
        %v8297 = vrot.slane %v8187, 3
        %v8298 = vrot.slane %v8191, 1
        %v8299 = vrot.slane %v8191, 2
        %v8300 = vrot.slane %v8191, 3
        %v8301 = vrot.slane %v8195, 1
        %v8302 = vrot.slane %v8195, 2
        %v8303 = vrot.slane %v8195, 3
        %v8304 = vrot.slane %v8199, 1
        %v8305 = vrot.slane %v8199, 2
        %v8306 = vrot.slane %v8199, 3
        %v8307 = vrot.slane %v8203, 1
        %v8308 = vrot.slane %v8203, 2
        %v8309 = vrot.slane %v8203, 3
        %v8310 = vrot.slane %v8207, 1
        %v8311 = vrot.slane %v8207, 2
        %v8312 = vrot.slane %v8207, 3
        %v8313 = vrot.slane %v8211, 1
        %v8314 = vrot.slane %v8211, 2
        %v8315 = vrot.slane %v8211, 3
        %v8316 = vrot.slane %v8215, 1
        %v8317 = vrot.slane %v8215, 2
        %v8318 = vrot.slane %v8215, 3
        %v8319 = vrot.slane %v8219, 1
        %v8320 = vrot.slane %v8219, 2
        %v8321 = vrot.slane %v8219, 3
        %v8322 = vrot.slane %v8223, 1
        %v8323 = vrot.slane %v8223, 2
        %v8324 = vrot.slane %v8223, 3
        %v8325 = vrot.slane %v8227, 1
        %v8326 = vrot.slane %v8227, 2
        %v8327 = vrot.slane %v8227, 3
        %v8328 = vrot.slane %v8231, 1
        %v8329 = vrot.slane %v8231, 2
        %v8330 = vrot.slane %v8231, 3
        %v8331 = vrot.slane %v8235, 1
        %v8332 = vrot.slane %v8235, 2
        %v8333 = vrot.slane %v8235, 3
        %v8334 = vrot.slane %v8239, 1
        %v8335 = vrot.slane %v8239, 2
        %v8336 = vrot.slane %v8239, 3
        %v8337 = vrot.slane %v8243, 1
        %v8338 = vrot.slane %v8243, 2
        %v8339 = vrot.slane %v8243, 3
        %v8468 = vmul.f32 %v7573, %v8119
        %v8469 = vmul.f32 %v7575, %v8119
        %v8470 = vmul.f32 %v7577, %v8244
        %v8471 = vmul.f32 %v7579, %v8244
        %v8472 = vmul.f32 %v7581, %v8245
        %v8473 = vmul.f32 %v7583, %v8245
        %v8474 = vmul.f32 %v7585, %v8246
        %v8475 = vmul.f32 %v7587, %v8246
        %v8476 = vmul.f32 %v7589, %v8123
        %v8477 = vmul.f32 %v7591, %v8123
        %v8478 = vmul.f32 %v7593, %v8247
        %v8479 = vmul.f32 %v7595, %v8247
        %v8480 = vmul.f32 %v7597, %v8248
        %v8481 = vmul.f32 %v7599, %v8248
        %v8482 = vmul.f32 %v7601, %v8249
        %v8483 = vmul.f32 %v7603, %v8249
        %v8484 = vmul.f32 %v7605, %v8127
        %v8485 = vmul.f32 %v7607, %v8127
        %v8486 = vmul.f32 %v7609, %v8250
        %v8487 = vmul.f32 %v7611, %v8250
        %v8488 = vmul.f32 %v7613, %v8251
        %v8489 = vmul.f32 %v7615, %v8251
        %v8490 = vmul.f32 %v7617, %v8252
        %v8491 = vmul.f32 %v7619, %v8252
        %v8492 = vmul.f32 %v7621, %v8131
        %v8493 = vmul.f32 %v7623, %v8131
        %v8494 = vmul.f32 %v7625, %v8253
        %v8495 = vmul.f32 %v7627, %v8253
        %v8496 = vmul.f32 %v7629, %v8254
        %v8497 = vmul.f32 %v7631, %v8254
        %v8498 = vmul.f32 %v7633, %v8255
        %v8499 = vmul.f32 %v7635, %v8255
        %v8500 = vmul.f32 %v7637, %v8135
        %v8501 = vmul.f32 %v7639, %v8135
        %v8502 = vmul.f32 %v7641, %v8256
        %v8503 = vmul.f32 %v7643, %v8256
        %v8504 = vmul.f32 %v7645, %v8257
        %v8505 = vmul.f32 %v7647, %v8257
        %v8506 = vmul.f32 %v7649, %v8258
        %v8507 = vmul.f32 %v7651, %v8258
        %v8508 = vmul.f32 %v7653, %v8139
        %v8509 = vmul.f32 %v7655, %v8139
        %v8510 = vmul.f32 %v7657, %v8259
        %v8511 = vmul.f32 %v7659, %v8259
        %v8512 = vmul.f32 %v7661, %v8260
        %v8513 = vmul.f32 %v7663, %v8260
        %v8514 = vmul.f32 %v7665, %v8261
        %v8515 = vmul.f32 %v7667, %v8261
        %v8516 = vmul.f32 %v7669, %v8143
        %v8517 = vmul.f32 %v7671, %v8143
        %v8518 = vmul.f32 %v7673, %v8262
        %v8519 = vmul.f32 %v7675, %v8262
        %v8520 = vmul.f32 %v7677, %v8263
        %v8521 = vmul.f32 %v7679, %v8263
        %v8522 = vmul.f32 %v7681, %v8264
        %v8523 = vmul.f32 %v7683, %v8264
        %v8524 = vmul.f32 %v7685, %v8147
        %v8525 = vmul.f32 %v7687, %v8147
        %v8526 = vmul.f32 %v7689, %v8265
        %v8527 = vmul.f32 %v7691, %v8265
        %v8528 = vmul.f32 %v7693, %v8266
        %v8529 = vmul.f32 %v7695, %v8266
        %v8530 = vmul.f32 %v7697, %v8267
        %v8531 = vmul.f32 %v7699, %v8267
        %v8532 = vmul.f32 %v7701, %v8151
        %v8533 = vmul.f32 %v7703, %v8151
        %v8534 = vmul.f32 %v7705, %v8268
        %v8535 = vmul.f32 %v7707, %v8268
        %v8536 = vmul.f32 %v7709, %v8269
        %v8537 = vmul.f32 %v7711, %v8269
        %v8538 = vmul.f32 %v7713, %v8270
        %v8539 = vmul.f32 %v7715, %v8270
        %v8540 = vmul.f32 %v7717, %v8155
        %v8541 = vmul.f32 %v7719, %v8155
        %v8542 = vmul.f32 %v7721, %v8271
        %v8543 = vmul.f32 %v7723, %v8271
        %v8544 = vmul.f32 %v7725, %v8272
        %v8545 = vmul.f32 %v7727, %v8272
        %v8546 = vmul.f32 %v7729, %v8273
        %v8547 = vmul.f32 %v7731, %v8273
        %v8548 = vmul.f32 %v7733, %v8159
        %v8549 = vmul.f32 %v7735, %v8159
        %v8550 = vmul.f32 %v7737, %v8274
        %v8551 = vmul.f32 %v7739, %v8274
        %v8552 = vmul.f32 %v7741, %v8275
        %v8553 = vmul.f32 %v7743, %v8275
        %v8554 = vmul.f32 %v7745, %v8276
        %v8555 = vmul.f32 %v7747, %v8276
        %v8556 = vmul.f32 %v7749, %v8163
        %v8557 = vmul.f32 %v7751, %v8163
        %v8558 = vmul.f32 %v7753, %v8277
        %v8559 = vmul.f32 %v7755, %v8277
        %v8560 = vmul.f32 %v7757, %v8278
        %v8561 = vmul.f32 %v7759, %v8278
        %v8562 = vmul.f32 %v7761, %v8279
        %v8563 = vmul.f32 %v7763, %v8279
        %v8564 = vmul.f32 %v7765, %v8167
        %v8565 = vmul.f32 %v7767, %v8167
        %v8566 = vmul.f32 %v7769, %v8280
        %v8567 = vmul.f32 %v7771, %v8280
        %v8568 = vmul.f32 %v7773, %v8281
        %v8569 = vmul.f32 %v7775, %v8281
        %v8570 = vmul.f32 %v7777, %v8282
        %v8571 = vmul.f32 %v7779, %v8282
        %v8572 = vmul.f32 %v7781, %v8171
        %v8573 = vmul.f32 %v7783, %v8171
        %v8574 = vmul.f32 %v7785, %v8283
        %v8575 = vmul.f32 %v7787, %v8283
        %v8576 = vmul.f32 %v7789, %v8284
        %v8577 = vmul.f32 %v7791, %v8284
        %v8578 = vmul.f32 %v7793, %v8285
        %v8579 = vmul.f32 %v7795, %v8285
        %v8580 = vmul.f32 %v7797, %v8175
        %v8581 = vmul.f32 %v7799, %v8175
        %v8582 = vmul.f32 %v7801, %v8286
        %v8583 = vmul.f32 %v7803, %v8286
        %v8584 = vmul.f32 %v7805, %v8287
        %v8585 = vmul.f32 %v7807, %v8287
        %v8586 = vmul.f32 %v7809, %v8288
        %v8587 = vmul.f32 %v7811, %v8288
        %v8588 = vmul.f32 %v7813, %v8179
        %v8589 = vmul.f32 %v7815, %v8179
        %v8590 = vmul.f32 %v7817, %v8289
        %v8591 = vmul.f32 %v7819, %v8289
        %v8592 = vmul.f32 %v7821, %v8290
        %v8593 = vmul.f32 %v7823, %v8290
        %v8594 = vmul.f32 %v7825, %v8291
        %v8595 = vmul.f32 %v7827, %v8291
        %v8596 = vmul.f32 %v7829, %v8183
        %v8597 = vmul.f32 %v7831, %v8183
        %v8598 = vmul.f32 %v7833, %v8292
        %v8599 = vmul.f32 %v7835, %v8292
        %v8600 = vmul.f32 %v7837, %v8293
        %v8601 = vmul.f32 %v7839, %v8293
        %v8602 = vmul.f32 %v7841, %v8294
        %v8603 = vmul.f32 %v7843, %v8294
        %v8604 = vmul.f32 %v7845, %v8187
        %v8605 = vmul.f32 %v7847, %v8187
        %v8606 = vmul.f32 %v7849, %v8295
        %v8607 = vmul.f32 %v7851, %v8295
        %v8608 = vmul.f32 %v7853, %v8296
        %v8609 = vmul.f32 %v7855, %v8296
        %v8610 = vmul.f32 %v7857, %v8297
        %v8611 = vmul.f32 %v7859, %v8297
        %v8612 = vmul.f32 %v7861, %v8191
        %v8613 = vmul.f32 %v7863, %v8191
        %v8614 = vmul.f32 %v7865, %v8298
        %v8615 = vmul.f32 %v7867, %v8298
        %v8616 = vmul.f32 %v7869, %v8299
        %v8617 = vmul.f32 %v7871, %v8299
        %v8618 = vmul.f32 %v7873, %v8300
        %v8619 = vmul.f32 %v7875, %v8300
        %v8620 = vmul.f32 %v7877, %v8195
        %v8621 = vmul.f32 %v7879, %v8195
        %v8622 = vmul.f32 %v7881, %v8301
        %v8623 = vmul.f32 %v7883, %v8301
        %v8624 = vmul.f32 %v7885, %v8302
        %v8625 = vmul.f32 %v7887, %v8302
        %v8626 = vmul.f32 %v7889, %v8303
        %v8627 = vmul.f32 %v7891, %v8303
        %v8628 = vmul.f32 %v7893, %v8199
        %v8629 = vmul.f32 %v7895, %v8199
        %v8630 = vmul.f32 %v7897, %v8304
        %v8631 = vmul.f32 %v7899, %v8304
        %v8632 = vmul.f32 %v7901, %v8305
        %v8633 = vmul.f32 %v7903, %v8305
        %v8634 = vmul.f32 %v7905, %v8306
        %v8635 = vmul.f32 %v7907, %v8306
        %v8636 = vmul.f32 %v7909, %v8203
        %v8637 = vmul.f32 %v7911, %v8203
        %v8638 = vmul.f32 %v7913, %v8307
        %v8639 = vmul.f32 %v7915, %v8307
        %v8640 = vmul.f32 %v7917, %v8308
        %v8641 = vmul.f32 %v7919, %v8308
        %v8642 = vmul.f32 %v7921, %v8309
        %v8643 = vmul.f32 %v7923, %v8309
        %v8644 = vmul.f32 %v7925, %v8207
        %v8645 = vmul.f32 %v7927, %v8207
        %v8646 = vmul.f32 %v7929, %v8310
        %v8647 = vmul.f32 %v7931, %v8310
        %v8648 = vmul.f32 %v7933, %v8311
        %v8649 = vmul.f32 %v7935, %v8311
        %v8650 = vmul.f32 %v7937, %v8312
        %v8651 = vmul.f32 %v7939, %v8312
        %v8652 = vmul.f32 %v7941, %v8211
        %v8653 = vmul.f32 %v7943, %v8211
        %v8654 = vmul.f32 %v7945, %v8313
        %v8655 = vmul.f32 %v7947, %v8313
        %v8656 = vmul.f32 %v7949, %v8314
        %v8657 = vmul.f32 %v7951, %v8314
        %v8658 = vmul.f32 %v7953, %v8315
        %v8659 = vmul.f32 %v7955, %v8315
        %v8660 = vmul.f32 %v7957, %v8215
        %v8661 = vmul.f32 %v7959, %v8215
        %v8662 = vmul.f32 %v7961, %v8316
        %v8663 = vmul.f32 %v7963, %v8316
        %v8664 = vmul.f32 %v7965, %v8317
        %v8665 = vmul.f32 %v7967, %v8317
        %v8666 = vmul.f32 %v7969, %v8318
        %v8667 = vmul.f32 %v7971, %v8318
        %v8668 = vmul.f32 %v7973, %v8219
        %v8669 = vmul.f32 %v7975, %v8219
        %v8670 = vmul.f32 %v7977, %v8319
        %v8671 = vmul.f32 %v7979, %v8319
        %v8672 = vmul.f32 %v7981, %v8320
        %v8673 = vmul.f32 %v7983, %v8320
        %v8674 = vmul.f32 %v7985, %v8321
        %v8675 = vmul.f32 %v7987, %v8321
        %v8676 = vmul.f32 %v7989, %v8223
        %v8677 = vmul.f32 %v7991, %v8223
        %v8678 = vmul.f32 %v7993, %v8322
        %v8679 = vmul.f32 %v7995, %v8322
        %v8680 = vmul.f32 %v7997, %v8323
        %v8681 = vmul.f32 %v7999, %v8323
        %v8682 = vmul.f32 %v8001, %v8324
        %v8683 = vmul.f32 %v8003, %v8324
        %v8684 = vmul.f32 %v8005, %v8227
        %v8685 = vmul.f32 %v8007, %v8227
        %v8686 = vmul.f32 %v8009, %v8325
        %v8687 = vmul.f32 %v8011, %v8325
        %v8688 = vmul.f32 %v8013, %v8326
        %v8689 = vmul.f32 %v8015, %v8326
        %v8690 = vmul.f32 %v8017, %v8327
        %v8691 = vmul.f32 %v8019, %v8327
        %v8692 = vmul.f32 %v8021, %v8231
        %v8693 = vmul.f32 %v8023, %v8231
        %v8694 = vmul.f32 %v8025, %v8328
        %v8695 = vmul.f32 %v8027, %v8328
        %v8696 = vmul.f32 %v8029, %v8329
        %v8697 = vmul.f32 %v8031, %v8329
        %v8698 = vmul.f32 %v8033, %v8330
        %v8699 = vmul.f32 %v8035, %v8330
        %v8700 = vmul.f32 %v8037, %v8235
        %v8701 = vmul.f32 %v8039, %v8235
        %v8702 = vmul.f32 %v8041, %v8331
        %v8703 = vmul.f32 %v8043, %v8331
        %v8704 = vmul.f32 %v8045, %v8332
        %v8705 = vmul.f32 %v8047, %v8332
        %v8706 = vmul.f32 %v8049, %v8333
        %v8707 = vmul.f32 %v8051, %v8333
        %v8708 = vmul.f32 %v8053, %v8239
        %v8709 = vmul.f32 %v8055, %v8239
        %v8710 = vmul.f32 %v8057, %v8334
        %v8711 = vmul.f32 %v8059, %v8334
        %v8712 = vmul.f32 %v8061, %v8335
        %v8713 = vmul.f32 %v8063, %v8335
        %v8714 = vmul.f32 %v8065, %v8336
        %v8715 = vmul.f32 %v8067, %v8336
        %v8716 = vmul.f32 %v8069, %v8243
        %v8717 = vmul.f32 %v8071, %v8243
        %v8718 = vmul.f32 %v8073, %v8337
        %v8719 = vmul.f32 %v8075, %v8337
        %v8720 = vmul.f32 %v8077, %v8338
        %v8721 = vmul.f32 %v8079, %v8338
        %v8722 = vmul.f32 %v8081, %v8339
        %v8723 = vmul.f32 %v8083, %v8339
        %v8980 = vrot.slane %v8470, 7
        %vm8981 = vcmask 1041409
        %v8982 = vsel %vm8981, %v8980, %v8468
        %v8983 = vrot.slane %v8472, 6
        %vm8984 = vcmask 1042434
        %v8985 = vsel %vm8984, %v8983, %v8982
        %v8986 = vrot.slane %v8474, 5
        %vm8987 = vcmask 1043459
        %v8988 = vsel %vm8987, %v8986, %v8985
        %v8989 = vrot.slane %v8471, 7
        %v8990 = vsel %vm8981, %v8989, %v8469
        %v8991 = vrot.slane %v8473, 6
        %v8992 = vsel %vm8984, %v8991, %v8990
        %v8993 = vrot.slane %v8475, 5
        %v8994 = vsel %vm8987, %v8993, %v8992
        %v8995 = vrot.slane %v8478, 7
        %v8996 = vsel %vm8981, %v8995, %v8476
        %v8997 = vrot.slane %v8480, 6
        %v8998 = vsel %vm8984, %v8997, %v8996
        %v8999 = vrot.slane %v8482, 5
        %v9000 = vsel %vm8987, %v8999, %v8998
        %v9001 = vrot.slane %v8479, 7
        %v9002 = vsel %vm8981, %v9001, %v8477
        %v9003 = vrot.slane %v8481, 6
        %v9004 = vsel %vm8984, %v9003, %v9002
        %v9005 = vrot.slane %v8483, 5
        %v9006 = vsel %vm8987, %v9005, %v9004
        %v9007 = vrot.slane %v8486, 7
        %v9008 = vsel %vm8981, %v9007, %v8484
        %v9009 = vrot.slane %v8488, 6
        %v9010 = vsel %vm8984, %v9009, %v9008
        %v9011 = vrot.slane %v8490, 5
        %v9012 = vsel %vm8987, %v9011, %v9010
        %v9013 = vrot.slane %v8487, 7
        %v9014 = vsel %vm8981, %v9013, %v8485
        %v9015 = vrot.slane %v8489, 6
        %v9016 = vsel %vm8984, %v9015, %v9014
        %v9017 = vrot.slane %v8491, 5
        %v9018 = vsel %vm8987, %v9017, %v9016
        %v9019 = vrot.slane %v8494, 7
        %v9020 = vsel %vm8981, %v9019, %v8492
        %v9021 = vrot.slane %v8496, 6
        %v9022 = vsel %vm8984, %v9021, %v9020
        %v9023 = vrot.slane %v8498, 5
        %v9024 = vsel %vm8987, %v9023, %v9022
        %v9025 = vrot.slane %v8495, 7
        %v9026 = vsel %vm8981, %v9025, %v8493
        %v9027 = vrot.slane %v8497, 6
        %v9028 = vsel %vm8984, %v9027, %v9026
        %v9029 = vrot.slane %v8499, 5
        %v9030 = vsel %vm8987, %v9029, %v9028
        %v9031 = vrot.slane %v8502, 7
        %v9032 = vsel %vm8981, %v9031, %v8500
        %v9033 = vrot.slane %v8504, 6
        %v9034 = vsel %vm8984, %v9033, %v9032
        %v9035 = vrot.slane %v8506, 5
        %v9036 = vsel %vm8987, %v9035, %v9034
        %v9037 = vrot.slane %v8503, 7
        %v9038 = vsel %vm8981, %v9037, %v8501
        %v9039 = vrot.slane %v8505, 6
        %v9040 = vsel %vm8984, %v9039, %v9038
        %v9041 = vrot.slane %v8507, 5
        %v9042 = vsel %vm8987, %v9041, %v9040
        %v9043 = vrot.slane %v8510, 7
        %v9044 = vsel %vm8981, %v9043, %v8508
        %v9045 = vrot.slane %v8512, 6
        %v9046 = vsel %vm8984, %v9045, %v9044
        %v9047 = vrot.slane %v8514, 5
        %v9048 = vsel %vm8987, %v9047, %v9046
        %v9049 = vrot.slane %v8511, 7
        %v9050 = vsel %vm8981, %v9049, %v8509
        %v9051 = vrot.slane %v8513, 6
        %v9052 = vsel %vm8984, %v9051, %v9050
        %v9053 = vrot.slane %v8515, 5
        %v9054 = vsel %vm8987, %v9053, %v9052
        %v9055 = vrot.slane %v8518, 7
        %v9056 = vsel %vm8981, %v9055, %v8516
        %v9057 = vrot.slane %v8520, 6
        %v9058 = vsel %vm8984, %v9057, %v9056
        %v9059 = vrot.slane %v8522, 5
        %v9060 = vsel %vm8987, %v9059, %v9058
        %v9061 = vrot.slane %v8519, 7
        %v9062 = vsel %vm8981, %v9061, %v8517
        %v9063 = vrot.slane %v8521, 6
        %v9064 = vsel %vm8984, %v9063, %v9062
        %v9065 = vrot.slane %v8523, 5
        %v9066 = vsel %vm8987, %v9065, %v9064
        %v9067 = vrot.slane %v8526, 7
        %v9068 = vsel %vm8981, %v9067, %v8524
        %v9069 = vrot.slane %v8528, 6
        %v9070 = vsel %vm8984, %v9069, %v9068
        %v9071 = vrot.slane %v8530, 5
        %v9072 = vsel %vm8987, %v9071, %v9070
        %v9073 = vrot.slane %v8527, 7
        %v9074 = vsel %vm8981, %v9073, %v8525
        %v9075 = vrot.slane %v8529, 6
        %v9076 = vsel %vm8984, %v9075, %v9074
        %v9077 = vrot.slane %v8531, 5
        %v9078 = vsel %vm8987, %v9077, %v9076
        %v9079 = vrot.slane %v8534, 7
        %v9080 = vsel %vm8981, %v9079, %v8532
        %v9081 = vrot.slane %v8536, 6
        %v9082 = vsel %vm8984, %v9081, %v9080
        %v9083 = vrot.slane %v8538, 5
        %v9084 = vsel %vm8987, %v9083, %v9082
        %v9085 = vrot.slane %v8535, 7
        %v9086 = vsel %vm8981, %v9085, %v8533
        %v9087 = vrot.slane %v8537, 6
        %v9088 = vsel %vm8984, %v9087, %v9086
        %v9089 = vrot.slane %v8539, 5
        %v9090 = vsel %vm8987, %v9089, %v9088
        %v9091 = vrot.slane %v8542, 7
        %v9092 = vsel %vm8981, %v9091, %v8540
        %v9093 = vrot.slane %v8544, 6
        %v9094 = vsel %vm8984, %v9093, %v9092
        %v9095 = vrot.slane %v8546, 5
        %v9096 = vsel %vm8987, %v9095, %v9094
        %v9097 = vrot.slane %v8543, 7
        %v9098 = vsel %vm8981, %v9097, %v8541
        %v9099 = vrot.slane %v8545, 6
        %v9100 = vsel %vm8984, %v9099, %v9098
        %v9101 = vrot.slane %v8547, 5
        %v9102 = vsel %vm8987, %v9101, %v9100
        %v9103 = vrot.slane %v8550, 7
        %v9104 = vsel %vm8981, %v9103, %v8548
        %v9105 = vrot.slane %v8552, 6
        %v9106 = vsel %vm8984, %v9105, %v9104
        %v9107 = vrot.slane %v8554, 5
        %v9108 = vsel %vm8987, %v9107, %v9106
        %v9109 = vrot.slane %v8551, 7
        %v9110 = vsel %vm8981, %v9109, %v8549
        %v9111 = vrot.slane %v8553, 6
        %v9112 = vsel %vm8984, %v9111, %v9110
        %v9113 = vrot.slane %v8555, 5
        %v9114 = vsel %vm8987, %v9113, %v9112
        %v9115 = vrot.slane %v8558, 7
        %v9116 = vsel %vm8981, %v9115, %v8556
        %v9117 = vrot.slane %v8560, 6
        %v9118 = vsel %vm8984, %v9117, %v9116
        %v9119 = vrot.slane %v8562, 5
        %v9120 = vsel %vm8987, %v9119, %v9118
        %v9121 = vrot.slane %v8559, 7
        %v9122 = vsel %vm8981, %v9121, %v8557
        %v9123 = vrot.slane %v8561, 6
        %v9124 = vsel %vm8984, %v9123, %v9122
        %v9125 = vrot.slane %v8563, 5
        %v9126 = vsel %vm8987, %v9125, %v9124
        %v9127 = vrot.slane %v8566, 7
        %v9128 = vsel %vm8981, %v9127, %v8564
        %v9129 = vrot.slane %v8568, 6
        %v9130 = vsel %vm8984, %v9129, %v9128
        %v9131 = vrot.slane %v8570, 5
        %v9132 = vsel %vm8987, %v9131, %v9130
        %v9133 = vrot.slane %v8567, 7
        %v9134 = vsel %vm8981, %v9133, %v8565
        %v9135 = vrot.slane %v8569, 6
        %v9136 = vsel %vm8984, %v9135, %v9134
        %v9137 = vrot.slane %v8571, 5
        %v9138 = vsel %vm8987, %v9137, %v9136
        %v9139 = vrot.slane %v8574, 7
        %v9140 = vsel %vm8981, %v9139, %v8572
        %v9141 = vrot.slane %v8576, 6
        %v9142 = vsel %vm8984, %v9141, %v9140
        %v9143 = vrot.slane %v8578, 5
        %v9144 = vsel %vm8987, %v9143, %v9142
        %v9145 = vrot.slane %v8575, 7
        %v9146 = vsel %vm8981, %v9145, %v8573
        %v9147 = vrot.slane %v8577, 6
        %v9148 = vsel %vm8984, %v9147, %v9146
        %v9149 = vrot.slane %v8579, 5
        %v9150 = vsel %vm8987, %v9149, %v9148
        %v9151 = vrot.slane %v8582, 7
        %v9152 = vsel %vm8981, %v9151, %v8580
        %v9153 = vrot.slane %v8584, 6
        %v9154 = vsel %vm8984, %v9153, %v9152
        %v9155 = vrot.slane %v8586, 5
        %v9156 = vsel %vm8987, %v9155, %v9154
        %v9157 = vrot.slane %v8583, 7
        %v9158 = vsel %vm8981, %v9157, %v8581
        %v9159 = vrot.slane %v8585, 6
        %v9160 = vsel %vm8984, %v9159, %v9158
        %v9161 = vrot.slane %v8587, 5
        %v9162 = vsel %vm8987, %v9161, %v9160
        %v9163 = vrot.slane %v8590, 7
        %v9164 = vsel %vm8981, %v9163, %v8588
        %v9165 = vrot.slane %v8592, 6
        %v9166 = vsel %vm8984, %v9165, %v9164
        %v9167 = vrot.slane %v8594, 5
        %v9168 = vsel %vm8987, %v9167, %v9166
        %v9169 = vrot.slane %v8591, 7
        %v9170 = vsel %vm8981, %v9169, %v8589
        %v9171 = vrot.slane %v8593, 6
        %v9172 = vsel %vm8984, %v9171, %v9170
        %v9173 = vrot.slane %v8595, 5
        %v9174 = vsel %vm8987, %v9173, %v9172
        %v9175 = vrot.slane %v8598, 7
        %v9176 = vsel %vm8981, %v9175, %v8596
        %v9177 = vrot.slane %v8600, 6
        %v9178 = vsel %vm8984, %v9177, %v9176
        %v9179 = vrot.slane %v8602, 5
        %v9180 = vsel %vm8987, %v9179, %v9178
        %v9181 = vrot.slane %v8599, 7
        %v9182 = vsel %vm8981, %v9181, %v8597
        %v9183 = vrot.slane %v8601, 6
        %v9184 = vsel %vm8984, %v9183, %v9182
        %v9185 = vrot.slane %v8603, 5
        %v9186 = vsel %vm8987, %v9185, %v9184
        %v9187 = vrot.slane %v8606, 7
        %v9188 = vsel %vm8981, %v9187, %v8604
        %v9189 = vrot.slane %v8608, 6
        %v9190 = vsel %vm8984, %v9189, %v9188
        %v9191 = vrot.slane %v8610, 5
        %v9192 = vsel %vm8987, %v9191, %v9190
        %v9193 = vrot.slane %v8607, 7
        %v9194 = vsel %vm8981, %v9193, %v8605
        %v9195 = vrot.slane %v8609, 6
        %v9196 = vsel %vm8984, %v9195, %v9194
        %v9197 = vrot.slane %v8611, 5
        %v9198 = vsel %vm8987, %v9197, %v9196
        %v9199 = vrot.slane %v8614, 7
        %v9200 = vsel %vm8981, %v9199, %v8612
        %v9201 = vrot.slane %v8616, 6
        %v9202 = vsel %vm8984, %v9201, %v9200
        %v9203 = vrot.slane %v8618, 5
        %v9204 = vsel %vm8987, %v9203, %v9202
        %v9205 = vrot.slane %v8615, 7
        %v9206 = vsel %vm8981, %v9205, %v8613
        %v9207 = vrot.slane %v8617, 6
        %v9208 = vsel %vm8984, %v9207, %v9206
        %v9209 = vrot.slane %v8619, 5
        %v9210 = vsel %vm8987, %v9209, %v9208
        %v9211 = vrot.slane %v8622, 7
        %v9212 = vsel %vm8981, %v9211, %v8620
        %v9213 = vrot.slane %v8624, 6
        %v9214 = vsel %vm8984, %v9213, %v9212
        %v9215 = vrot.slane %v8626, 5
        %v9216 = vsel %vm8987, %v9215, %v9214
        %v9217 = vrot.slane %v8623, 7
        %v9218 = vsel %vm8981, %v9217, %v8621
        %v9219 = vrot.slane %v8625, 6
        %v9220 = vsel %vm8984, %v9219, %v9218
        %v9221 = vrot.slane %v8627, 5
        %v9222 = vsel %vm8987, %v9221, %v9220
        %v9223 = vrot.slane %v8630, 7
        %v9224 = vsel %vm8981, %v9223, %v8628
        %v9225 = vrot.slane %v8632, 6
        %v9226 = vsel %vm8984, %v9225, %v9224
        %v9227 = vrot.slane %v8634, 5
        %v9228 = vsel %vm8987, %v9227, %v9226
        %v9229 = vrot.slane %v8631, 7
        %v9230 = vsel %vm8981, %v9229, %v8629
        %v9231 = vrot.slane %v8633, 6
        %v9232 = vsel %vm8984, %v9231, %v9230
        %v9233 = vrot.slane %v8635, 5
        %v9234 = vsel %vm8987, %v9233, %v9232
        %v9235 = vrot.slane %v8638, 7
        %v9236 = vsel %vm8981, %v9235, %v8636
        %v9237 = vrot.slane %v8640, 6
        %v9238 = vsel %vm8984, %v9237, %v9236
        %v9239 = vrot.slane %v8642, 5
        %v9240 = vsel %vm8987, %v9239, %v9238
        %v9241 = vrot.slane %v8639, 7
        %v9242 = vsel %vm8981, %v9241, %v8637
        %v9243 = vrot.slane %v8641, 6
        %v9244 = vsel %vm8984, %v9243, %v9242
        %v9245 = vrot.slane %v8643, 5
        %v9246 = vsel %vm8987, %v9245, %v9244
        %v9247 = vrot.slane %v8646, 7
        %v9248 = vsel %vm8981, %v9247, %v8644
        %v9249 = vrot.slane %v8648, 6
        %v9250 = vsel %vm8984, %v9249, %v9248
        %v9251 = vrot.slane %v8650, 5
        %v9252 = vsel %vm8987, %v9251, %v9250
        %v9253 = vrot.slane %v8647, 7
        %v9254 = vsel %vm8981, %v9253, %v8645
        %v9255 = vrot.slane %v8649, 6
        %v9256 = vsel %vm8984, %v9255, %v9254
        %v9257 = vrot.slane %v8651, 5
        %v9258 = vsel %vm8987, %v9257, %v9256
        %v9259 = vrot.slane %v8654, 7
        %v9260 = vsel %vm8981, %v9259, %v8652
        %v9261 = vrot.slane %v8656, 6
        %v9262 = vsel %vm8984, %v9261, %v9260
        %v9263 = vrot.slane %v8658, 5
        %v9264 = vsel %vm8987, %v9263, %v9262
        %v9265 = vrot.slane %v8655, 7
        %v9266 = vsel %vm8981, %v9265, %v8653
        %v9267 = vrot.slane %v8657, 6
        %v9268 = vsel %vm8984, %v9267, %v9266
        %v9269 = vrot.slane %v8659, 5
        %v9270 = vsel %vm8987, %v9269, %v9268
        %v9271 = vrot.slane %v8662, 7
        %v9272 = vsel %vm8981, %v9271, %v8660
        %v9273 = vrot.slane %v8664, 6
        %v9274 = vsel %vm8984, %v9273, %v9272
        %v9275 = vrot.slane %v8666, 5
        %v9276 = vsel %vm8987, %v9275, %v9274
        %v9277 = vrot.slane %v8663, 7
        %v9278 = vsel %vm8981, %v9277, %v8661
        %v9279 = vrot.slane %v8665, 6
        %v9280 = vsel %vm8984, %v9279, %v9278
        %v9281 = vrot.slane %v8667, 5
        %v9282 = vsel %vm8987, %v9281, %v9280
        %v9283 = vrot.slane %v8670, 7
        %v9284 = vsel %vm8981, %v9283, %v8668
        %v9285 = vrot.slane %v8672, 6
        %v9286 = vsel %vm8984, %v9285, %v9284
        %v9287 = vrot.slane %v8674, 5
        %v9288 = vsel %vm8987, %v9287, %v9286
        %v9289 = vrot.slane %v8671, 7
        %v9290 = vsel %vm8981, %v9289, %v8669
        %v9291 = vrot.slane %v8673, 6
        %v9292 = vsel %vm8984, %v9291, %v9290
        %v9293 = vrot.slane %v8675, 5
        %v9294 = vsel %vm8987, %v9293, %v9292
        %v9295 = vrot.slane %v8678, 7
        %v9296 = vsel %vm8981, %v9295, %v8676
        %v9297 = vrot.slane %v8680, 6
        %v9298 = vsel %vm8984, %v9297, %v9296
        %v9299 = vrot.slane %v8682, 5
        %v9300 = vsel %vm8987, %v9299, %v9298
        %v9301 = vrot.slane %v8679, 7
        %v9302 = vsel %vm8981, %v9301, %v8677
        %v9303 = vrot.slane %v8681, 6
        %v9304 = vsel %vm8984, %v9303, %v9302
        %v9305 = vrot.slane %v8683, 5
        %v9306 = vsel %vm8987, %v9305, %v9304
        %v9307 = vrot.slane %v8686, 7
        %v9308 = vsel %vm8981, %v9307, %v8684
        %v9309 = vrot.slane %v8688, 6
        %v9310 = vsel %vm8984, %v9309, %v9308
        %v9311 = vrot.slane %v8690, 5
        %v9312 = vsel %vm8987, %v9311, %v9310
        %v9313 = vrot.slane %v8687, 7
        %v9314 = vsel %vm8981, %v9313, %v8685
        %v9315 = vrot.slane %v8689, 6
        %v9316 = vsel %vm8984, %v9315, %v9314
        %v9317 = vrot.slane %v8691, 5
        %v9318 = vsel %vm8987, %v9317, %v9316
        %v9319 = vrot.slane %v8694, 7
        %v9320 = vsel %vm8981, %v9319, %v8692
        %v9321 = vrot.slane %v8696, 6
        %v9322 = vsel %vm8984, %v9321, %v9320
        %v9323 = vrot.slane %v8698, 5
        %v9324 = vsel %vm8987, %v9323, %v9322
        %v9325 = vrot.slane %v8695, 7
        %v9326 = vsel %vm8981, %v9325, %v8693
        %v9327 = vrot.slane %v8697, 6
        %v9328 = vsel %vm8984, %v9327, %v9326
        %v9329 = vrot.slane %v8699, 5
        %v9330 = vsel %vm8987, %v9329, %v9328
        %v9331 = vrot.slane %v8702, 7
        %v9332 = vsel %vm8981, %v9331, %v8700
        %v9333 = vrot.slane %v8704, 6
        %v9334 = vsel %vm8984, %v9333, %v9332
        %v9335 = vrot.slane %v8706, 5
        %v9336 = vsel %vm8987, %v9335, %v9334
        %v9337 = vrot.slane %v8703, 7
        %v9338 = vsel %vm8981, %v9337, %v8701
        %v9339 = vrot.slane %v8705, 6
        %v9340 = vsel %vm8984, %v9339, %v9338
        %v9341 = vrot.slane %v8707, 5
        %v9342 = vsel %vm8987, %v9341, %v9340
        %v9343 = vrot.slane %v8710, 7
        %v9344 = vsel %vm8981, %v9343, %v8708
        %v9345 = vrot.slane %v8712, 6
        %v9346 = vsel %vm8984, %v9345, %v9344
        %v9347 = vrot.slane %v8714, 5
        %v9348 = vsel %vm8987, %v9347, %v9346
        %v9349 = vrot.slane %v8711, 7
        %v9350 = vsel %vm8981, %v9349, %v8709
        %v9351 = vrot.slane %v8713, 6
        %v9352 = vsel %vm8984, %v9351, %v9350
        %v9353 = vrot.slane %v8715, 5
        %v9354 = vsel %vm8987, %v9353, %v9352
        %v9355 = vrot.slane %v8718, 7
        %v9356 = vsel %vm8981, %v9355, %v8716
        %v9357 = vrot.slane %v8720, 6
        %v9358 = vsel %vm8984, %v9357, %v9356
        %v9359 = vrot.slane %v8722, 5
        %v9360 = vsel %vm8987, %v9359, %v9358
        %v9361 = vrot.slane %v8719, 7
        %v9362 = vsel %vm8981, %v9361, %v8717
        %v9363 = vrot.slane %v8721, 6
        %v9364 = vsel %vm8984, %v9363, %v9362
        %v9365 = vrot.slane %v8723, 5
        %v9366 = vsel %vm8987, %v9365, %v9364
        %vm9431 = vcmask 1043456
        %v9432 = vsel %vm9431, %v8988, 0.0
        %v9433 = vrot.slane %v9432, 4
        %v9434 = vadd.f32 %v9432, %v9433
        %v9435 = vrot.slane %v9434, 2
        %v9436 = vadd.f32 %v9434, %v9435
        %v9437 = vrot.slane %v9436, 1
        %v9438 = vadd.f32 %v9436, %v9437
        %v9439 = vsel %vm9431, %v8994, 0.0
        %v9440 = vrot.slane %v9439, 4
        %v9441 = vadd.f32 %v9439, %v9440
        %v9442 = vrot.slane %v9441, 2
        %v9443 = vadd.f32 %v9441, %v9442
        %v9444 = vrot.slane %v9443, 1
        %v9445 = vadd.f32 %v9443, %v9444
        %v9446 = vsel %vm9431, %v9000, 0.0
        %v9447 = vrot.slane %v9446, 4
        %v9448 = vadd.f32 %v9446, %v9447
        %v9449 = vrot.slane %v9448, 2
        %v9450 = vadd.f32 %v9448, %v9449
        %v9451 = vrot.slane %v9450, 1
        %v9452 = vadd.f32 %v9450, %v9451
        %v9453 = vsel %vm9431, %v9006, 0.0
        %v9454 = vrot.slane %v9453, 4
        %v9455 = vadd.f32 %v9453, %v9454
        %v9456 = vrot.slane %v9455, 2
        %v9457 = vadd.f32 %v9455, %v9456
        %v9458 = vrot.slane %v9457, 1
        %v9459 = vadd.f32 %v9457, %v9458
        %v9460 = vsel %vm9431, %v9012, 0.0
        %v9461 = vrot.slane %v9460, 4
        %v9462 = vadd.f32 %v9460, %v9461
        %v9463 = vrot.slane %v9462, 2
        %v9464 = vadd.f32 %v9462, %v9463
        %v9465 = vrot.slane %v9464, 1
        %v9466 = vadd.f32 %v9464, %v9465
        %v9467 = vsel %vm9431, %v9018, 0.0
        %v9468 = vrot.slane %v9467, 4
        %v9469 = vadd.f32 %v9467, %v9468
        %v9470 = vrot.slane %v9469, 2
        %v9471 = vadd.f32 %v9469, %v9470
        %v9472 = vrot.slane %v9471, 1
        %v9473 = vadd.f32 %v9471, %v9472
        %v9474 = vsel %vm9431, %v9024, 0.0
        %v9475 = vrot.slane %v9474, 4
        %v9476 = vadd.f32 %v9474, %v9475
        %v9477 = vrot.slane %v9476, 2
        %v9478 = vadd.f32 %v9476, %v9477
        %v9479 = vrot.slane %v9478, 1
        %v9480 = vadd.f32 %v9478, %v9479
        %v9481 = vsel %vm9431, %v9030, 0.0
        %v9482 = vrot.slane %v9481, 4
        %v9483 = vadd.f32 %v9481, %v9482
        %v9484 = vrot.slane %v9483, 2
        %v9485 = vadd.f32 %v9483, %v9484
        %v9486 = vrot.slane %v9485, 1
        %v9487 = vadd.f32 %v9485, %v9486
        %v9488 = vsel %vm9431, %v9036, 0.0
        %v9489 = vrot.slane %v9488, 4
        %v9490 = vadd.f32 %v9488, %v9489
        %v9491 = vrot.slane %v9490, 2
        %v9492 = vadd.f32 %v9490, %v9491
        %v9493 = vrot.slane %v9492, 1
        %v9494 = vadd.f32 %v9492, %v9493
        %v9495 = vsel %vm9431, %v9042, 0.0
        %v9496 = vrot.slane %v9495, 4
        %v9497 = vadd.f32 %v9495, %v9496
        %v9498 = vrot.slane %v9497, 2
        %v9499 = vadd.f32 %v9497, %v9498
        %v9500 = vrot.slane %v9499, 1
        %v9501 = vadd.f32 %v9499, %v9500
        %v9502 = vsel %vm9431, %v9048, 0.0
        %v9503 = vrot.slane %v9502, 4
        %v9504 = vadd.f32 %v9502, %v9503
        %v9505 = vrot.slane %v9504, 2
        %v9506 = vadd.f32 %v9504, %v9505
        %v9507 = vrot.slane %v9506, 1
        %v9508 = vadd.f32 %v9506, %v9507
        %v9509 = vsel %vm9431, %v9054, 0.0
        %v9510 = vrot.slane %v9509, 4
        %v9511 = vadd.f32 %v9509, %v9510
        %v9512 = vrot.slane %v9511, 2
        %v9513 = vadd.f32 %v9511, %v9512
        %v9514 = vrot.slane %v9513, 1
        %v9515 = vadd.f32 %v9513, %v9514
        %v9516 = vsel %vm9431, %v9060, 0.0
        %v9517 = vrot.slane %v9516, 4
        %v9518 = vadd.f32 %v9516, %v9517
        %v9519 = vrot.slane %v9518, 2
        %v9520 = vadd.f32 %v9518, %v9519
        %v9521 = vrot.slane %v9520, 1
        %v9522 = vadd.f32 %v9520, %v9521
        %v9523 = vsel %vm9431, %v9066, 0.0
        %v9524 = vrot.slane %v9523, 4
        %v9525 = vadd.f32 %v9523, %v9524
        %v9526 = vrot.slane %v9525, 2
        %v9527 = vadd.f32 %v9525, %v9526
        %v9528 = vrot.slane %v9527, 1
        %v9529 = vadd.f32 %v9527, %v9528
        %v9530 = vsel %vm9431, %v9072, 0.0
        %v9531 = vrot.slane %v9530, 4
        %v9532 = vadd.f32 %v9530, %v9531
        %v9533 = vrot.slane %v9532, 2
        %v9534 = vadd.f32 %v9532, %v9533
        %v9535 = vrot.slane %v9534, 1
        %v9536 = vadd.f32 %v9534, %v9535
        %v9537 = vsel %vm9431, %v9078, 0.0
        %v9538 = vrot.slane %v9537, 4
        %v9539 = vadd.f32 %v9537, %v9538
        %v9540 = vrot.slane %v9539, 2
        %v9541 = vadd.f32 %v9539, %v9540
        %v9542 = vrot.slane %v9541, 1
        %v9543 = vadd.f32 %v9541, %v9542
        %v9544 = vsel %vm9431, %v9084, 0.0
        %v9545 = vrot.slane %v9544, 4
        %v9546 = vadd.f32 %v9544, %v9545
        %v9547 = vrot.slane %v9546, 2
        %v9548 = vadd.f32 %v9546, %v9547
        %v9549 = vrot.slane %v9548, 1
        %v9550 = vadd.f32 %v9548, %v9549
        %v9551 = vsel %vm9431, %v9090, 0.0
        %v9552 = vrot.slane %v9551, 4
        %v9553 = vadd.f32 %v9551, %v9552
        %v9554 = vrot.slane %v9553, 2
        %v9555 = vadd.f32 %v9553, %v9554
        %v9556 = vrot.slane %v9555, 1
        %v9557 = vadd.f32 %v9555, %v9556
        %v9558 = vsel %vm9431, %v9096, 0.0
        %v9559 = vrot.slane %v9558, 4
        %v9560 = vadd.f32 %v9558, %v9559
        %v9561 = vrot.slane %v9560, 2
        %v9562 = vadd.f32 %v9560, %v9561
        %v9563 = vrot.slane %v9562, 1
        %v9564 = vadd.f32 %v9562, %v9563
        %v9565 = vsel %vm9431, %v9102, 0.0
        %v9566 = vrot.slane %v9565, 4
        %v9567 = vadd.f32 %v9565, %v9566
        %v9568 = vrot.slane %v9567, 2
        %v9569 = vadd.f32 %v9567, %v9568
        %v9570 = vrot.slane %v9569, 1
        %v9571 = vadd.f32 %v9569, %v9570
        %v9572 = vsel %vm9431, %v9108, 0.0
        %v9573 = vrot.slane %v9572, 4
        %v9574 = vadd.f32 %v9572, %v9573
        %v9575 = vrot.slane %v9574, 2
        %v9576 = vadd.f32 %v9574, %v9575
        %v9577 = vrot.slane %v9576, 1
        %v9578 = vadd.f32 %v9576, %v9577
        %v9579 = vsel %vm9431, %v9114, 0.0
        %v9580 = vrot.slane %v9579, 4
        %v9581 = vadd.f32 %v9579, %v9580
        %v9582 = vrot.slane %v9581, 2
        %v9583 = vadd.f32 %v9581, %v9582
        %v9584 = vrot.slane %v9583, 1
        %v9585 = vadd.f32 %v9583, %v9584
        %v9586 = vsel %vm9431, %v9120, 0.0
        %v9587 = vrot.slane %v9586, 4
        %v9588 = vadd.f32 %v9586, %v9587
        %v9589 = vrot.slane %v9588, 2
        %v9590 = vadd.f32 %v9588, %v9589
        %v9591 = vrot.slane %v9590, 1
        %v9592 = vadd.f32 %v9590, %v9591
        %v9593 = vsel %vm9431, %v9126, 0.0
        %v9594 = vrot.slane %v9593, 4
        %v9595 = vadd.f32 %v9593, %v9594
        %v9596 = vrot.slane %v9595, 2
        %v9597 = vadd.f32 %v9595, %v9596
        %v9598 = vrot.slane %v9597, 1
        %v9599 = vadd.f32 %v9597, %v9598
        %v9600 = vsel %vm9431, %v9132, 0.0
        %v9601 = vrot.slane %v9600, 4
        %v9602 = vadd.f32 %v9600, %v9601
        %v9603 = vrot.slane %v9602, 2
        %v9604 = vadd.f32 %v9602, %v9603
        %v9605 = vrot.slane %v9604, 1
        %v9606 = vadd.f32 %v9604, %v9605
        %v9607 = vsel %vm9431, %v9138, 0.0
        %v9608 = vrot.slane %v9607, 4
        %v9609 = vadd.f32 %v9607, %v9608
        %v9610 = vrot.slane %v9609, 2
        %v9611 = vadd.f32 %v9609, %v9610
        %v9612 = vrot.slane %v9611, 1
        %v9613 = vadd.f32 %v9611, %v9612
        %v9614 = vsel %vm9431, %v9144, 0.0
        %v9615 = vrot.slane %v9614, 4
        %v9616 = vadd.f32 %v9614, %v9615
        %v9617 = vrot.slane %v9616, 2
        %v9618 = vadd.f32 %v9616, %v9617
        %v9619 = vrot.slane %v9618, 1
        %v9620 = vadd.f32 %v9618, %v9619
        %v9621 = vsel %vm9431, %v9150, 0.0
        %v9622 = vrot.slane %v9621, 4
        %v9623 = vadd.f32 %v9621, %v9622
        %v9624 = vrot.slane %v9623, 2
        %v9625 = vadd.f32 %v9623, %v9624
        %v9626 = vrot.slane %v9625, 1
        %v9627 = vadd.f32 %v9625, %v9626
        %v9628 = vsel %vm9431, %v9156, 0.0
        %v9629 = vrot.slane %v9628, 4
        %v9630 = vadd.f32 %v9628, %v9629
        %v9631 = vrot.slane %v9630, 2
        %v9632 = vadd.f32 %v9630, %v9631
        %v9633 = vrot.slane %v9632, 1
        %v9634 = vadd.f32 %v9632, %v9633
        %v9635 = vsel %vm9431, %v9162, 0.0
        %v9636 = vrot.slane %v9635, 4
        %v9637 = vadd.f32 %v9635, %v9636
        %v9638 = vrot.slane %v9637, 2
        %v9639 = vadd.f32 %v9637, %v9638
        %v9640 = vrot.slane %v9639, 1
        %v9641 = vadd.f32 %v9639, %v9640
        %v9642 = vsel %vm9431, %v9168, 0.0
        %v9643 = vrot.slane %v9642, 4
        %v9644 = vadd.f32 %v9642, %v9643
        %v9645 = vrot.slane %v9644, 2
        %v9646 = vadd.f32 %v9644, %v9645
        %v9647 = vrot.slane %v9646, 1
        %v9648 = vadd.f32 %v9646, %v9647
        %v9649 = vsel %vm9431, %v9174, 0.0
        %v9650 = vrot.slane %v9649, 4
        %v9651 = vadd.f32 %v9649, %v9650
        %v9652 = vrot.slane %v9651, 2
        %v9653 = vadd.f32 %v9651, %v9652
        %v9654 = vrot.slane %v9653, 1
        %v9655 = vadd.f32 %v9653, %v9654
        %v9656 = vsel %vm9431, %v9180, 0.0
        %v9657 = vrot.slane %v9656, 4
        %v9658 = vadd.f32 %v9656, %v9657
        %v9659 = vrot.slane %v9658, 2
        %v9660 = vadd.f32 %v9658, %v9659
        %v9661 = vrot.slane %v9660, 1
        %v9662 = vadd.f32 %v9660, %v9661
        %v9663 = vsel %vm9431, %v9186, 0.0
        %v9664 = vrot.slane %v9663, 4
        %v9665 = vadd.f32 %v9663, %v9664
        %v9666 = vrot.slane %v9665, 2
        %v9667 = vadd.f32 %v9665, %v9666
        %v9668 = vrot.slane %v9667, 1
        %v9669 = vadd.f32 %v9667, %v9668
        %v9670 = vsel %vm9431, %v9192, 0.0
        %v9671 = vrot.slane %v9670, 4
        %v9672 = vadd.f32 %v9670, %v9671
        %v9673 = vrot.slane %v9672, 2
        %v9674 = vadd.f32 %v9672, %v9673
        %v9675 = vrot.slane %v9674, 1
        %v9676 = vadd.f32 %v9674, %v9675
        %v9677 = vsel %vm9431, %v9198, 0.0
        %v9678 = vrot.slane %v9677, 4
        %v9679 = vadd.f32 %v9677, %v9678
        %v9680 = vrot.slane %v9679, 2
        %v9681 = vadd.f32 %v9679, %v9680
        %v9682 = vrot.slane %v9681, 1
        %v9683 = vadd.f32 %v9681, %v9682
        %v9684 = vsel %vm9431, %v9204, 0.0
        %v9685 = vrot.slane %v9684, 4
        %v9686 = vadd.f32 %v9684, %v9685
        %v9687 = vrot.slane %v9686, 2
        %v9688 = vadd.f32 %v9686, %v9687
        %v9689 = vrot.slane %v9688, 1
        %v9690 = vadd.f32 %v9688, %v9689
        %v9691 = vsel %vm9431, %v9210, 0.0
        %v9692 = vrot.slane %v9691, 4
        %v9693 = vadd.f32 %v9691, %v9692
        %v9694 = vrot.slane %v9693, 2
        %v9695 = vadd.f32 %v9693, %v9694
        %v9696 = vrot.slane %v9695, 1
        %v9697 = vadd.f32 %v9695, %v9696
        %v9698 = vsel %vm9431, %v9216, 0.0
        %v9699 = vrot.slane %v9698, 4
        %v9700 = vadd.f32 %v9698, %v9699
        %v9701 = vrot.slane %v9700, 2
        %v9702 = vadd.f32 %v9700, %v9701
        %v9703 = vrot.slane %v9702, 1
        %v9704 = vadd.f32 %v9702, %v9703
        %v9705 = vsel %vm9431, %v9222, 0.0
        %v9706 = vrot.slane %v9705, 4
        %v9707 = vadd.f32 %v9705, %v9706
        %v9708 = vrot.slane %v9707, 2
        %v9709 = vadd.f32 %v9707, %v9708
        %v9710 = vrot.slane %v9709, 1
        %v9711 = vadd.f32 %v9709, %v9710
        %v9712 = vsel %vm9431, %v9228, 0.0
        %v9713 = vrot.slane %v9712, 4
        %v9714 = vadd.f32 %v9712, %v9713
        %v9715 = vrot.slane %v9714, 2
        %v9716 = vadd.f32 %v9714, %v9715
        %v9717 = vrot.slane %v9716, 1
        %v9718 = vadd.f32 %v9716, %v9717
        %v9719 = vsel %vm9431, %v9234, 0.0
        %v9720 = vrot.slane %v9719, 4
        %v9721 = vadd.f32 %v9719, %v9720
        %v9722 = vrot.slane %v9721, 2
        %v9723 = vadd.f32 %v9721, %v9722
        %v9724 = vrot.slane %v9723, 1
        %v9725 = vadd.f32 %v9723, %v9724
        %v9726 = vsel %vm9431, %v9240, 0.0
        %v9727 = vrot.slane %v9726, 4
        %v9728 = vadd.f32 %v9726, %v9727
        %v9729 = vrot.slane %v9728, 2
        %v9730 = vadd.f32 %v9728, %v9729
        %v9731 = vrot.slane %v9730, 1
        %v9732 = vadd.f32 %v9730, %v9731
        %v9733 = vsel %vm9431, %v9246, 0.0
        %v9734 = vrot.slane %v9733, 4
        %v9735 = vadd.f32 %v9733, %v9734
        %v9736 = vrot.slane %v9735, 2
        %v9737 = vadd.f32 %v9735, %v9736
        %v9738 = vrot.slane %v9737, 1
        %v9739 = vadd.f32 %v9737, %v9738
        %v9740 = vsel %vm9431, %v9252, 0.0
        %v9741 = vrot.slane %v9740, 4
        %v9742 = vadd.f32 %v9740, %v9741
        %v9743 = vrot.slane %v9742, 2
        %v9744 = vadd.f32 %v9742, %v9743
        %v9745 = vrot.slane %v9744, 1
        %v9746 = vadd.f32 %v9744, %v9745
        %v9747 = vsel %vm9431, %v9258, 0.0
        %v9748 = vrot.slane %v9747, 4
        %v9749 = vadd.f32 %v9747, %v9748
        %v9750 = vrot.slane %v9749, 2
        %v9751 = vadd.f32 %v9749, %v9750
        %v9752 = vrot.slane %v9751, 1
        %v9753 = vadd.f32 %v9751, %v9752
        %v9754 = vsel %vm9431, %v9264, 0.0
        %v9755 = vrot.slane %v9754, 4
        %v9756 = vadd.f32 %v9754, %v9755
        %v9757 = vrot.slane %v9756, 2
        %v9758 = vadd.f32 %v9756, %v9757
        %v9759 = vrot.slane %v9758, 1
        %v9760 = vadd.f32 %v9758, %v9759
        %v9761 = vsel %vm9431, %v9270, 0.0
        %v9762 = vrot.slane %v9761, 4
        %v9763 = vadd.f32 %v9761, %v9762
        %v9764 = vrot.slane %v9763, 2
        %v9765 = vadd.f32 %v9763, %v9764
        %v9766 = vrot.slane %v9765, 1
        %v9767 = vadd.f32 %v9765, %v9766
        %v9768 = vsel %vm9431, %v9276, 0.0
        %v9769 = vrot.slane %v9768, 4
        %v9770 = vadd.f32 %v9768, %v9769
        %v9771 = vrot.slane %v9770, 2
        %v9772 = vadd.f32 %v9770, %v9771
        %v9773 = vrot.slane %v9772, 1
        %v9774 = vadd.f32 %v9772, %v9773
        %v9775 = vsel %vm9431, %v9282, 0.0
        %v9776 = vrot.slane %v9775, 4
        %v9777 = vadd.f32 %v9775, %v9776
        %v9778 = vrot.slane %v9777, 2
        %v9779 = vadd.f32 %v9777, %v9778
        %v9780 = vrot.slane %v9779, 1
        %v9781 = vadd.f32 %v9779, %v9780
        %v9782 = vsel %vm9431, %v9288, 0.0
        %v9783 = vrot.slane %v9782, 4
        %v9784 = vadd.f32 %v9782, %v9783
        %v9785 = vrot.slane %v9784, 2
        %v9786 = vadd.f32 %v9784, %v9785
        %v9787 = vrot.slane %v9786, 1
        %v9788 = vadd.f32 %v9786, %v9787
        %v9789 = vsel %vm9431, %v9294, 0.0
        %v9790 = vrot.slane %v9789, 4
        %v9791 = vadd.f32 %v9789, %v9790
        %v9792 = vrot.slane %v9791, 2
        %v9793 = vadd.f32 %v9791, %v9792
        %v9794 = vrot.slane %v9793, 1
        %v9795 = vadd.f32 %v9793, %v9794
        %v9796 = vsel %vm9431, %v9300, 0.0
        %v9797 = vrot.slane %v9796, 4
        %v9798 = vadd.f32 %v9796, %v9797
        %v9799 = vrot.slane %v9798, 2
        %v9800 = vadd.f32 %v9798, %v9799
        %v9801 = vrot.slane %v9800, 1
        %v9802 = vadd.f32 %v9800, %v9801
        %v9803 = vsel %vm9431, %v9306, 0.0
        %v9804 = vrot.slane %v9803, 4
        %v9805 = vadd.f32 %v9803, %v9804
        %v9806 = vrot.slane %v9805, 2
        %v9807 = vadd.f32 %v9805, %v9806
        %v9808 = vrot.slane %v9807, 1
        %v9809 = vadd.f32 %v9807, %v9808
        %v9810 = vsel %vm9431, %v9312, 0.0
        %v9811 = vrot.slane %v9810, 4
        %v9812 = vadd.f32 %v9810, %v9811
        %v9813 = vrot.slane %v9812, 2
        %v9814 = vadd.f32 %v9812, %v9813
        %v9815 = vrot.slane %v9814, 1
        %v9816 = vadd.f32 %v9814, %v9815
        %v9817 = vsel %vm9431, %v9318, 0.0
        %v9818 = vrot.slane %v9817, 4
        %v9819 = vadd.f32 %v9817, %v9818
        %v9820 = vrot.slane %v9819, 2
        %v9821 = vadd.f32 %v9819, %v9820
        %v9822 = vrot.slane %v9821, 1
        %v9823 = vadd.f32 %v9821, %v9822
        %v9824 = vsel %vm9431, %v9324, 0.0
        %v9825 = vrot.slane %v9824, 4
        %v9826 = vadd.f32 %v9824, %v9825
        %v9827 = vrot.slane %v9826, 2
        %v9828 = vadd.f32 %v9826, %v9827
        %v9829 = vrot.slane %v9828, 1
        %v9830 = vadd.f32 %v9828, %v9829
        %v9831 = vsel %vm9431, %v9330, 0.0
        %v9832 = vrot.slane %v9831, 4
        %v9833 = vadd.f32 %v9831, %v9832
        %v9834 = vrot.slane %v9833, 2
        %v9835 = vadd.f32 %v9833, %v9834
        %v9836 = vrot.slane %v9835, 1
        %v9837 = vadd.f32 %v9835, %v9836
        %v9838 = vsel %vm9431, %v9336, 0.0
        %v9839 = vrot.slane %v9838, 4
        %v9840 = vadd.f32 %v9838, %v9839
        %v9841 = vrot.slane %v9840, 2
        %v9842 = vadd.f32 %v9840, %v9841
        %v9843 = vrot.slane %v9842, 1
        %v9844 = vadd.f32 %v9842, %v9843
        %v9845 = vsel %vm9431, %v9342, 0.0
        %v9846 = vrot.slane %v9845, 4
        %v9847 = vadd.f32 %v9845, %v9846
        %v9848 = vrot.slane %v9847, 2
        %v9849 = vadd.f32 %v9847, %v9848
        %v9850 = vrot.slane %v9849, 1
        %v9851 = vadd.f32 %v9849, %v9850
        %v9852 = vsel %vm9431, %v9348, 0.0
        %v9853 = vrot.slane %v9852, 4
        %v9854 = vadd.f32 %v9852, %v9853
        %v9855 = vrot.slane %v9854, 2
        %v9856 = vadd.f32 %v9854, %v9855
        %v9857 = vrot.slane %v9856, 1
        %v9858 = vadd.f32 %v9856, %v9857
        %v9859 = vsel %vm9431, %v9354, 0.0
        %v9860 = vrot.slane %v9859, 4
        %v9861 = vadd.f32 %v9859, %v9860
        %v9862 = vrot.slane %v9861, 2
        %v9863 = vadd.f32 %v9861, %v9862
        %v9864 = vrot.slane %v9863, 1
        %v9865 = vadd.f32 %v9863, %v9864
        %v9866 = vsel %vm9431, %v9360, 0.0
        %v9867 = vrot.slane %v9866, 4
        %v9868 = vadd.f32 %v9866, %v9867
        %v9869 = vrot.slane %v9868, 2
        %v9870 = vadd.f32 %v9868, %v9869
        %v9871 = vrot.slane %v9870, 1
        %v9872 = vadd.f32 %v9870, %v9871
        %v9873 = vsel %vm9431, %v9366, 0.0
        %v9874 = vrot.slane %v9873, 4
        %v9875 = vadd.f32 %v9873, %v9874
        %v9876 = vrot.slane %v9875, 2
        %v9877 = vadd.f32 %v9875, %v9876
        %v9878 = vrot.slane %v9877, 1
        %v9879 = vadd.f32 %v9877, %v9878
        %v9944 = vrot.slane %v9452, 7
        %v9945 = vsel %vm8981, %v9944, %v9438
        %v9946 = vrot.slane %v9466, 6
        %v9947 = vsel %vm8984, %v9946, %v9945
        %v9948 = vrot.slane %v9480, 5
        %v9949 = vsel %vm8987, %v9948, %v9947
        %v9950 = vrot.slane %v9494, 4
        %vm9951 = vcmask 1044484
        %v9952 = vsel %vm9951, %v9950, %v9949
        %v9953 = vrot.slane %v9508, 3
        %vm9954 = vcmask 1045509
        %v9955 = vsel %vm9954, %v9953, %v9952
        %v9956 = vrot.slane %v9522, 2
        %vm9957 = vcmask 1046534
        %v9958 = vsel %vm9957, %v9956, %v9955
        %v9959 = vrot.slane %v9536, 1
        %vm9960 = vcmask 1047559
        %v9961 = vsel %vm9960, %v9959, %v9958
        %v9962 = vrot.slane %v9459, 7
        %v9963 = vsel %vm8981, %v9962, %v9445
        %v9964 = vrot.slane %v9473, 6
        %v9965 = vsel %vm8984, %v9964, %v9963
        %v9966 = vrot.slane %v9487, 5
        %v9967 = vsel %vm8987, %v9966, %v9965
        %v9968 = vrot.slane %v9501, 4
        %v9969 = vsel %vm9951, %v9968, %v9967
        %v9970 = vrot.slane %v9515, 3
        %v9971 = vsel %vm9954, %v9970, %v9969
        %v9972 = vrot.slane %v9529, 2
        %v9973 = vsel %vm9957, %v9972, %v9971
        %v9974 = vrot.slane %v9543, 1
        %v9975 = vsel %vm9960, %v9974, %v9973
        %v9976 = vrot.slane %v9564, 7
        %v9977 = vsel %vm8981, %v9976, %v9550
        %v9978 = vrot.slane %v9578, 6
        %v9979 = vsel %vm8984, %v9978, %v9977
        %v9980 = vrot.slane %v9592, 5
        %v9981 = vsel %vm8987, %v9980, %v9979
        %v9982 = vrot.slane %v9606, 4
        %v9983 = vsel %vm9951, %v9982, %v9981
        %v9984 = vrot.slane %v9620, 3
        %v9985 = vsel %vm9954, %v9984, %v9983
        %v9986 = vrot.slane %v9634, 2
        %v9987 = vsel %vm9957, %v9986, %v9985
        %v9988 = vrot.slane %v9648, 1
        %v9989 = vsel %vm9960, %v9988, %v9987
        %v9990 = vrot.slane %v9571, 7
        %v9991 = vsel %vm8981, %v9990, %v9557
        %v9992 = vrot.slane %v9585, 6
        %v9993 = vsel %vm8984, %v9992, %v9991
        %v9994 = vrot.slane %v9599, 5
        %v9995 = vsel %vm8987, %v9994, %v9993
        %v9996 = vrot.slane %v9613, 4
        %v9997 = vsel %vm9951, %v9996, %v9995
        %v9998 = vrot.slane %v9627, 3
        %v9999 = vsel %vm9954, %v9998, %v9997
        %v10000 = vrot.slane %v9641, 2
        %v10001 = vsel %vm9957, %v10000, %v9999
        %v10002 = vrot.slane %v9655, 1
        %v10003 = vsel %vm9960, %v10002, %v10001
        %v10004 = vrot.slane %v9676, 7
        %v10005 = vsel %vm8981, %v10004, %v9662
        %v10006 = vrot.slane %v9690, 6
        %v10007 = vsel %vm8984, %v10006, %v10005
        %v10008 = vrot.slane %v9704, 5
        %v10009 = vsel %vm8987, %v10008, %v10007
        %v10010 = vrot.slane %v9718, 4
        %v10011 = vsel %vm9951, %v10010, %v10009
        %v10012 = vrot.slane %v9732, 3
        %v10013 = vsel %vm9954, %v10012, %v10011
        %v10014 = vrot.slane %v9746, 2
        %v10015 = vsel %vm9957, %v10014, %v10013
        %v10016 = vrot.slane %v9760, 1
        %v10017 = vsel %vm9960, %v10016, %v10015
        %v10018 = vrot.slane %v9683, 7
        %v10019 = vsel %vm8981, %v10018, %v9669
        %v10020 = vrot.slane %v9697, 6
        %v10021 = vsel %vm8984, %v10020, %v10019
        %v10022 = vrot.slane %v9711, 5
        %v10023 = vsel %vm8987, %v10022, %v10021
        %v10024 = vrot.slane %v9725, 4
        %v10025 = vsel %vm9951, %v10024, %v10023
        %v10026 = vrot.slane %v9739, 3
        %v10027 = vsel %vm9954, %v10026, %v10025
        %v10028 = vrot.slane %v9753, 2
        %v10029 = vsel %vm9957, %v10028, %v10027
        %v10030 = vrot.slane %v9767, 1
        %v10031 = vsel %vm9960, %v10030, %v10029
        %v10032 = vrot.slane %v9788, 7
        %v10033 = vsel %vm8981, %v10032, %v9774
        %v10034 = vrot.slane %v9802, 6
        %v10035 = vsel %vm8984, %v10034, %v10033
        %v10036 = vrot.slane %v9816, 5
        %v10037 = vsel %vm8987, %v10036, %v10035
        %v10038 = vrot.slane %v9830, 4
        %v10039 = vsel %vm9951, %v10038, %v10037
        %v10040 = vrot.slane %v9844, 3
        %v10041 = vsel %vm9954, %v10040, %v10039
        %v10042 = vrot.slane %v9858, 2
        %v10043 = vsel %vm9957, %v10042, %v10041
        %v10044 = vrot.slane %v9872, 1
        %v10045 = vsel %vm9960, %v10044, %v10043
        %v10046 = vrot.slane %v9795, 7
        %v10047 = vsel %vm8981, %v10046, %v9781
        %v10048 = vrot.slane %v9809, 6
        %v10049 = vsel %vm8984, %v10048, %v10047
        %v10050 = vrot.slane %v9823, 5
        %v10051 = vsel %vm8987, %v10050, %v10049
        %v10052 = vrot.slane %v9837, 4
        %v10053 = vsel %vm9951, %v10052, %v10051
        %v10054 = vrot.slane %v9851, 3
        %v10055 = vsel %vm9954, %v10054, %v10053
        %v10056 = vrot.slane %v9865, 2
        %v10057 = vsel %vm9957, %v10056, %v10055
        %v10058 = vrot.slane %v9879, 1
        %v10059 = vsel %vm9960, %v10058, %v10057
        %10068 = vst [vmem:[%s370] sm:$0xff] %v9961
        %10069 = vst [vmem:[%s370 + $0x8] sm:$0xff] %v9975
        %10070 = vst [vmem:[%s370 + $0x10] sm:$0xff] %v9989
        %10071 = vst [vmem:[%s370 + $0x18] sm:$0xff] %v10003
        %10072 = vst [vmem:[%s370 + $0x20] sm:$0xff] %v10017
        %10073 = vst [vmem:[%s370 + $0x28] sm:$0xff] %v10031
        %10074 = vst [vmem:[%s370 + $0x30] sm:$0xff] %v10045
        %10075 = vst [vmem:[%s370 + $0x38] sm:$0xff] %v10059
        %s10076 = sand.u32 %s176, 1
        %s10077 = scalar_lea.sflag [#allocation4], %s10076
        %s10078 = sand.u32 %s176, 1
        %s10079 = smul.addr %s10078, 64
        %s10080 = scalar_lea.vmem [#allocation11], %s10079
        // Predicated region
        $region65: #{tpu_custom_call.1} parent=43 // pred_check
          %p10081 = pneg %p186
        $region66: #{tpu_custom_call.1} parent=43 // pred_check_branch
          %10083 = sbr.rel (%p10081) target = $region68
        $region67: #{tpu_custom_call.1} parent=43 // pred_region
          %s10084 = smul.u32 4, %s27
          %s10086 = ssub.s32 1024, 1024
          %10087 = vsyncadd %s10077, %s10086
          %s10088 = smul.addr %s10084, 2
          %s10089 = smul.addr %s10088, 128
          %s10090 = scalar_lea.hbm %s6, %s10089
          %s10091 = sshll.u32 %s10080, 4
          %s10092 = int_to_ptr.vmem [resolvable:$true] %s10091
          %10097 = dma.vmem_to_hbm [thread:$0]  %s10092, 1024, %s10090, %s10077, 256, 256, 16
        $region68: #{tpu_custom_call.1} parent=43 // pred_fallthru
          _
      $region44: #{tpu_custom_call.1} parent=5 // pred_fallthru
        _
      %p10098 = scmp.le.s32.totalorder 2, %s22
      // Predicated region
      $region69: #{tpu_custom_call.1} parent=5 // pred_check
        %p10099 = pneg %p10098
      $region70: #{tpu_custom_call.1} parent=5 // pred_check_branch
        %10101 = sbr.rel (%p10099) target = $region72
      $region71: #{tpu_custom_call.1} parent=5 // pred_region
        %s10102 = ssub.s32 %s22, 2
        // Predicated region
        $region73: #{tpu_custom_call.1} parent=71 // pred_check
          %p10103 = pneg %p192
        $region74: #{tpu_custom_call.1} parent=71 // pred_check_branch
          %10105 = sbr.rel (%p10103) target = $region76
        $region75: #{tpu_custom_call.1} parent=71 // pred_region
          %s10106 = sand.u32 %s177, 1
          %s10107 = scalar_lea.sflag [#allocation4], %s10106
          %s10108 = sand.u32 %s177, 1
          %s10109 = smul.addr %s10108, 64
          %s10110 = scalar_lea.vmem [#allocation11], %s10109
          %10111 = dma.done %s10107, 1024
        $region76: #{tpu_custom_call.1} parent=71 // pred_fallthru
          _
      $region72: #{tpu_custom_call.1} parent=5 // pred_fallthru
        _
    $region6: #{tpu_custom_call.1} parent=1 // loop_footer
      %s26 = sadd.s32 1, %s22
    $region7: #{tpu_custom_call.1} parent=1 // loop_footer_branch
      %21 = sbr.rel target = $region3
    $region8: #{tpu_custom_call.1} parent=1 // loop_exit
      _
    %10112 = vsyncpa [#allocation3], 1
    %s10113 = scalar_lea.sflag [#allocation3], 1
    %10114 = vsyncpa %s10113, 1
    %10115 = vsyncpa [#allocation6], 1
    %s10116 = scalar_lea.sflag [#allocation6], 1
    %10117 = vsyncpa %s10116, 1
    %10118 = vsyncpa [#allocation9], 1
    %10119 = vsyncpa [#allocation4], 1
    %s10120 = scalar_lea.sflag [#allocation4], 1
    %10121 = vsyncpa %s10120, 1

</llo_original>
